<compile_context>
chip_gen: v7x
topology: tpu7x:2x2x1
jax: 0.10.0
libtpu: 0.0.40
codegen_flags: <defaults>
</compile_context>

<pallas_src>
import math
from functools import partial

import jax
import jax.numpy as jnp
from jax.experimental import pallas as pl
from jax.experimental.pallas import tpu as pltpu


LN_EPS = 1e-5  # torch.nn.LayerNorm default


# -------------------------------------------------------------------------
# small math helpers (usable inside kernels and in the JAX reference)
# -------------------------------------------------------------------------
def _gelu(v):
    # exact erf-based GELU (torch.nn.GELU default)
    return 0.5 * v * (1.0 + jax.lax.erf(v * (1.0 / math.sqrt(2.0))))


def _layer_norm(v, g, b):
    mu = jnp.mean(v, axis=-1, keepdims=True)
    var = jnp.mean((v - mu) ** 2, axis=-1, keepdims=True)
    return (v - mu) * jax.lax.rsqrt(var + LN_EPS) * g + b


# -------------------------------------------------------------------------
# BlockSpec helpers
# -------------------------------------------------------------------------
def _bcast_spec(shape):
    # whole-array block, constant across the layer grid (fetched into VMEM once)
    n = len(shape)
    return pl.BlockSpec(tuple(shape), lambda l: (0,) * n)


def _layer_spec(shape):
    # per-layer slice of a (L, ...) stacked parameter; leading layer dim squeezed away
    n = len(shape) - 1
    return pl.BlockSpec((None,) + tuple(shape[1:]), lambda l: (l,) + (0,) * n)


# -------------------------------------------------------------------------
# fused decoder kernel — all layers, grid=(layers,), x carried in VMEM
# -------------------------------------------------------------------------
def _decoder_kernel(x_ref, emb_ref, y_ref, mem_ref,
                    wt1_ref, bt1_ref, wt2_ref, bt2_ref,
                    w1_ref, b1_ref,
                    wcl1a_ref, wcl1b_ref, wcl2a_ref, wcl2b_ref,
                    wq_ref, wkv_ref, w0_ref, ln_ref,
                    xo_ref, att_ref,
                    *, heads, dim_head, h1):
    layer = pl.program_id(0)
    B, dim = x_ref.shape
    S = mem_ref.shape[0] // B
    H, Dh = heads, dim_head
    HD = H * Dh

    # --- layer 0 prologue: time-MLP (GELU) + modulation; initializes the carried activation ---
    @pl.when(layer == 0)
    def _():
        h = _gelu(jnp.dot(emb_ref[...], wt1_ref[...],
                          preferred_element_type=jnp.float32) + bt1_ref[...])
        t = jnp.dot(h, wt2_ref[...], preferred_element_type=jnp.float32) + bt2_ref[...]
        scale, shift = t[:, :dim], t[:, dim:]
        xo_ref[...] = x_ref[...] * (scale + 1.0) + shift

    x = xo_ref[...]                                     # VMEM-resident carry across layers
    y = y_ref[...]
    lnp = ln_ref[...]                                   # (6, dim): g1,b1,g2,b2,g3,b3

    # --- first stage of all 8 weight/bias-generator MLPs (shared cond=y): one fused matmul ---
    h_all = jnp.maximum(
        jnp.dot(y, w1_ref[...], preferred_element_type=jnp.float32) + b1_ref[...], 0.0)  # (B, 8*h1)

    ones = jnp.ones((B, 1), jnp.float32)

    def cond_linear(xin, idx, w_ref):
        # ConditionalLinear folded into ONE MXU matmul:
        #   out[b,o] = sum_{j,i} h_lin[b,j]*x[b,i]*W2[j*din+i,o] + sum_i x[b,i]*bL2[i,o]
        #              + sum_j h_bias[b,j]*Wb2[j,o] + bb2[o]
        #           == [h0*x | .. | h_{h1-1}*x | x | h_bias | 1] @ [W2 ; bL2 ; Wb2 ; bb2]
        hs = h_all[:, (2 * idx) * h1:(2 * idx + 1) * h1]        # linear-path hidden
        hb = h_all[:, (2 * idx + 1) * h1:(2 * idx + 2) * h1]    # bias-path hidden
        pieces = [hs[:, j:j + 1] * xin for j in range(h1)] + [xin, hb, ones]
        g = jnp.concatenate(pieces, axis=-1)
        return jnp.dot(g, w_ref[...], preferred_element_type=jnp.float32)

    # --- cond_mlp1 -> residual -> LayerNorm1 (dropout == identity in eval) ---
    hidden = jnp.maximum(cond_linear(x, 0, wcl1a_ref), 0.0)
    x = _layer_norm(cond_linear(hidden, 1, wcl1b_ref) + x, lnp[0:1, :], lnp[1:2, :])

    # --- cross attention, single query token; heads split via static lane slices ---
    q = jnp.dot(x, wq_ref[...], preferred_element_type=jnp.float32)            # (B, HD)  '(h d)'
    kv = jnp.dot(mem_ref[...], wkv_ref[...], preferred_element_type=jnp.float32)  # (B*S, 2HD) [K|V]
    kv = kv.reshape(B, S, 2 * HD)
    scale_f = Dh ** -0.5
    ctx_heads, att_heads = [], []
    for hh in range(H):
        qh = q[:, hh * Dh:(hh + 1) * Dh]                      # (B, Dh)
        kh = kv[:, :, hh * Dh:(hh + 1) * Dh]                  # (B, S, Dh)
        vh = kv[:, :, HD + hh * Dh:HD + (hh + 1) * Dh]        # (B, S, Dh)
        sc = jnp.sum(qh[:, None, :] * kh, axis=-1) * scale_f  # (B, S)
        sc = sc - jnp.max(sc, axis=-1, keepdims=True)
        ex = jnp.exp(sc)
        ah = ex * pl.reciprocal(jnp.sum(ex, axis=-1, keepdims=True), approx=True)
        ctx_heads.append(jnp.sum(ah[:, :, None] * vh, axis=1))  # (B, Dh)
        att_heads.append(ah)
    ctx = jnp.concatenate(ctx_heads, axis=-1)                 # (B, HD) == 'b t (h d)'
    x = _layer_norm(jnp.dot(ctx, w0_ref[...], preferred_element_type=jnp.float32) + x,
                    lnp[2:3, :], lnp[3:4, :])

    # --- cond_mlp2 -> residual -> LayerNorm3 ---
    hidden = jnp.maximum(cond_linear(x, 2, wcl2a_ref), 0.0)
    x = _layer_norm(cond_linear(hidden, 3, wcl2b_ref) + x, lnp[4:5, :], lnp[5:6, :])

    xo_ref[...] = x

    # only the last layer's attention map is returned by the module -> store it only then
    @pl.when(layer == pl.num_programs(0) - 1)
    def _():
        att_ref[...] = jnp.concatenate(att_heads, axis=-1)    # (B, H*S), head-major


# -------------------------------------------------------------------------
# parameter init (torch-style layout, deterministic synthetic values)
# -------------------------------------------------------------------------
def init_linear(key, din, dout, bias=True):
    k1, k2 = jax.random.split(key)
    lim = 1.0 / math.sqrt(din)
    w = jax.random.uniform(k1, (din, dout), jnp.float32, -lim, lim)
    b = (jax.random.uniform(k2, (dout,), jnp.float32, -lim, lim)
         if bias else jnp.zeros((dout,), jnp.float32))
    return w, b


def init_conditional_linear(key, din, dout, dcond):
    ks = jax.random.split(key, 4)
    Wl1, bl1 = init_linear(ks[0], dcond, dcond // 2)
    Wl2, bl2 = init_linear(ks[1], dcond // 2, din * dout)   # columns '(o i)' packed
    Wb1, bb1 = init_linear(ks[2], dcond, dcond // 2)
    Wb2, bb2 = init_linear(ks[3], dcond // 2, dout)
    return dict(Wl1=Wl1, bl1=bl1, Wl2=Wl2, bl2=bl2,
                Wb1=Wb1, bb1=bb1, Wb2=Wb2, bb2=bb2,
                din=din, dout=dout)


def init_block(key, dim, dim_mem, sem_dim, heads, dim_linear_block=256):
    dim_head = int(dim / heads)
    _dim = dim_head * heads
    ks = jax.random.split(key, 7)
    ones = jnp.ones((dim,), jnp.float32)
    zeros = jnp.zeros((dim,), jnp.float32)
    return dict(
        cl1a=init_conditional_linear(ks[0], dim, dim_linear_block, sem_dim),
        cl1b=init_conditional_linear(ks[1], dim_linear_block, dim, sem_dim),
        cl2a=init_conditional_linear(ks[2], dim, dim_linear_block, sem_dim),
        cl2b=init_conditional_linear(ks[3], dim_linear_block, dim, sem_dim),
        Wq=init_linear(ks[4], dim, _dim, bias=False)[0],
        Wkv=init_linear(ks[5], dim_mem, 2 * _dim, bias=False)[0],
        W0=init_linear(ks[6], _dim, dim, bias=False)[0],
        g1=ones, b1=zeros, g2=ones, b2=zeros, g3=ones, b3=zeros,
    )


def init_decoder(key, dim, dim_mem, sem_dim, layers, heads):
    ks = jax.random.split(key, layers + 2)
    Wt1, bt1 = init_linear(ks[0], dim, 2 * dim)
    Wt2, bt2 = init_linear(ks[1], 2 * dim, 2 * dim)
    blocks = [init_block(ks[2 + i], dim, dim_mem, sem_dim, heads) for i in range(layers)]
    return dict(Wt1=Wt1, bt1=bt1, Wt2=Wt2, bt2=bt2, blocks=blocks,
                heads=heads, dim_head=int(dim / heads))


# -------------------------------------------------------------------------
# host-side parameter packing (one-time, exact re-layout of the same math)
# -------------------------------------------------------------------------
def _perm_hd(H, Dh):
    # '(d h)' column packing -> '(h d)' packing: new[h*Dh + d] = old[d*H + h]
    return (jnp.arange(Dh)[None, :] * H + jnp.arange(H)[:, None]).reshape(-1)


def _perm_kv(H, Dh):
    # '(d k h)' packing -> [ K in '(h d)' | V in '(h d)' ]
    base = (jnp.arange(Dh)[None, :] * (2 * H) + jnp.arange(H)[:, None]).reshape(-1)
    return jnp.concatenate([base, base + H])


def _pack_cond(p):
    # Pack a ConditionalLinear into one (h1*din + din + h1 + 1, dout) matrix (f32, exact).
    din, dout = p["din"], p["dout"]
    h1 = p["Wl1"].shape[1]
    w2 = p["Wl2"].reshape(h1, dout, din).transpose(0, 2, 1).reshape(h1 * din, dout)
    bL = p["bl2"].reshape(dout, din).T                       # (din, dout)
    return jnp.concatenate([w2, bL, p["Wb2"], p["bb2"][None, :]], axis=0)


def pack_decoder_params(params):
    H, Dh = params["heads"], params["dim_head"]
    blocks = params["blocks"]
    h1 = blocks[0]["cl1a"]["Wl1"].shape[1]
    pq, pkv = _perm_hd(H, Dh), _perm_kv(H, Dh)

    def pack_layer(b):
        cls = [b["cl1a"], b["cl1b"], b["cl2a"], b["cl2b"]]
        w1 = jnp.concatenate(sum([[c["Wl1"], c["Wb1"]] for c in cls], []), axis=1)   # (sem, 8*h1)
        b1 = jnp.concatenate(sum([[c["bl1"], c["bb1"]] for c in cls], []), axis=0)   # (8*h1,)
        ln = jnp.stack([b["g1"], b["b1"], b["g2"], b["b2"], b["g3"], b["b3"]], axis=0)
        return dict(
            w1_all=w1, b1_all=b1[None, :],
            wcl1a=_pack_cond(b["cl1a"]), wcl1b=_pack_cond(b["cl1b"]),
            wcl2a=_pack_cond(b["cl2a"]), wcl2b=_pack_cond(b["cl2b"]),
            wq=b["Wq"][:, pq], wkv=b["Wkv"][:, pkv], w0=b["W0"], ln=ln,
        )

    per = [pack_layer(b) for b in blocks]
    stacked = {k: jnp.stack([p[k] for p in per], axis=0) for k in per[0]}
    packed = dict(wt1=params["Wt1"], bt1=params["bt1"][None, :],
                  wt2=params["Wt2"], bt2=params["bt2"][None, :], **stacked)
    meta = dict(heads=H, dim_head=Dh, layers=len(blocks), h1=h1)
    return packed, meta


# -------------------------------------------------------------------------
# forward pass
# -------------------------------------------------------------------------
def sinusoidal_pos_emb(t, dim):
    half = dim // 2
    freqs = jnp.exp(jnp.arange(half, dtype=jnp.float32) * -(math.log(10000.0) / (half - 1)))
    emb = t[:, None] * freqs[None, :]
    return jnp.concatenate([jnp.sin(emb), jnp.cos(emb)], axis=-1)


@partial(jax.jit, static_argnames=("heads", "dim_head", "layers", "h1"))
def transformer_decoder_fwd(packed, x, y, memory, time, *, heads, dim_head, layers, h1):
    B, dim = x.shape
    _, S, dmem = memory.shape
    H, Dh = heads, dim_head

    emb = sinusoidal_pos_emb(time, dim)
    mem2d = memory.reshape(B * S, dmem)

    in_specs = [
        _bcast_spec((B, dim)),                       # x
        _bcast_spec((B, dim)),                       # sinusoidal emb
        _bcast_spec((B, y.shape[1])),                # y
        _bcast_spec((B * S, dmem)),                  # memory (flattened)
        _bcast_spec(packed["wt1"].shape), _bcast_spec(packed["bt1"].shape),
        _bcast_spec(packed["wt2"].shape), _bcast_spec(packed["bt2"].shape),
        _layer_spec(packed["w1_all"].shape), _layer_spec(packed["b1_all"].shape),
        _layer_spec(packed["wcl1a"].shape), _layer_spec(packed["wcl1b"].shape),
        _layer_spec(packed["wcl2a"].shape), _layer_spec(packed["wcl2b"].shape),
        _layer_spec(packed["wq"].shape), _layer_spec(packed["wkv"].shape),
        _layer_spec(packed["w0"].shape), _layer_spec(packed["ln"].shape),
    ]
    out_specs = (pl.BlockSpec((B, dim), lambda l: (0, 0)),
                 pl.BlockSpec((B, H * S), lambda l: (0, 0)))
    out_shape = (jax.ShapeDtypeStruct((B, dim), jnp.float32),
                 jax.ShapeDtypeStruct((B, H * S), jnp.float32))

    x_out, att = pl.pallas_call(
        partial(_decoder_kernel, heads=H, dim_head=Dh, h1=h1),
        grid=(layers,),
        in_specs=in_specs,
        out_specs=out_specs,
        out_shape=out_shape,
        compiler_params=pltpu.CompilerParams(
            dimension_semantics=("arbitrary",),       # layer l+1 depends on layer l (carried x)
            vmem_limit_bytes=32 * 1024 * 1024,        # safe on v5e/v6e/v7x; usage ~12 MiB
        ),
    )(x, emb, y, mem2d,
      packed["wt1"], packed["bt1"], packed["wt2"], packed["bt2"],
      packed["w1_all"], packed["b1_all"],
      packed["wcl1a"], packed["wcl1b"], packed["wcl2a"], packed["wcl2b"],
      packed["wq"], packed["wkv"], packed["w0"], packed["ln"])

    att_cross = att.reshape(B, H, 1, S)               # last layer's attention, (B, H, 1, S)
    return x_out, att_cross


# -------------------------------------------------------------------------
# pure-JAX reference (faithful port of the PyTorch module), for validation
# -------------------------------------------------------------------------
def _ref_cond_linear(p, xin, cond):
    h = jax.nn.relu(cond @ p["Wl1"] + p["bl1"])
    Lf = h @ p["Wl2"] + p["bl2"]
    L = Lf.reshape(xin.shape[0], p["dout"], p["din"])
    hb = jax.nn.relu(cond @ p["Wb1"] + p["bb1"])
    bias = hb @ p["Wb2"] + p["bb2"]
    return jnp.einsum('boi,bi->bo', L, xin) + bias


def _ref_layer_norm(v, g, b):
    mu = jnp.mean(v, axis=-1, keepdims=True)
    var = jnp.mean((v - mu) ** 2, axis=-1, keepdims=True)
    return (v - mu) / jnp.sqrt(var + LN_EPS) * g + b


def reference_forward(params, x, y, memory, time):
    B, dim = x.shape
    H, Dh = params["heads"], params["dim_head"]
    HD = H * Dh
    S = memory.shape[1]
    emb = sinusoidal_pos_emb(time, dim)
    t = _gelu(emb @ params["Wt1"] + params["bt1"]) @ params["Wt2"] + params["bt2"]
    scale, shift = t[:, :dim], t[:, dim:]
    x = x * (scale + 1.0) + shift
    att = None
    for blk in params["blocks"]:
        x_ = _ref_cond_linear(blk["cl1b"],
                              jax.nn.relu(_ref_cond_linear(blk["cl1a"], x, y)), y)
        x = _ref_layer_norm(x_ + x, blk["g1"], blk["b1"])
        q = (x[:, None, :] @ blk["Wq"]).reshape(B, 1, Dh, H).transpose(0, 3, 1, 2)       # b h t d
        kvr = (memory @ blk["Wkv"]).reshape(B, S, Dh, 2, H).transpose(3, 0, 4, 1, 2)     # k b h s d
        k, v = kvr[0], kvr[1]
        sc = jnp.einsum('bhtd,bhsd->bhts', q, k) * (Dh ** -0.5)
        att = jax.nn.softmax(sc, axis=-1)                                                # (B,H,1,S)
        out = jnp.einsum('bhts,bhsd->bhtd', att, v).transpose(0, 2, 1, 3).reshape(B, 1, HD)
        x = _ref_layer_norm((out @ blk["W0"]).reshape(B, dim) + x, blk["g2"], blk["b2"])
        x_ = _ref_cond_linear(blk["cl2b"],
                              jax.nn.relu(_ref_cond_linear(blk["cl2a"], x, y)), y)
        x = _ref_layer_norm(x_ + x, blk["g3"], blk["b3"])
    return x, att


# -------------------------------------------------------------------------
# main
# -------------------------------------------------------------------------
if __name__ == "__main__":
    B, DIM, DIM_MEM, SEM_DIM, S, HEADS, LAYERS = 2, 32, 16, 32, 8, 4, 2

    key = jax.random.PRNGKey(0)
    kp, kx, ky, km = jax.random.split(key, 4)

    params = init_decoder(kp, DIM, DIM_MEM, SEM_DIM, LAYERS, HEADS)
    packed, meta = pack_decoder_params(params)

    x = jax.random.normal(kx, (B, DIM), jnp.float32)
    y = jax.random.normal(ky, (B, SEM_DIM), jnp.float32)
    memory = jax.random.normal(km, (B, S, DIM_MEM), jnp.float32)
    time_t = jnp.array([3.0, 17.0], dtype=jnp.float32)

    out, att_cross = transformer_decoder_fwd(packed, x, y, memory, time_t, **meta)
    jax.block_until_ready((out, att_cross))

    assert out.shape == (B, DIM)
    assert att_cross.shape == (B, HEADS, 1, S)

    ref_out, ref_att = reference_forward(params, x, y, memory, time_t)
    assert jnp.allclose(out, ref_out, atol=2e-3, rtol=2e-3), \
        f"max abs err {float(jnp.max(jnp.abs(out - ref_out)))}"
    assert jnp.allclose(att_cross, ref_att, atol=2e-3, rtol=2e-3), \
        f"max abs err {float(jnp.max(jnp.abs(att_cross - ref_att)))}"

    print("KERNEL_OK")
</pallas_src>

<mosaic_0001>
module attributes {stable_mosaic.version = 11 : i64} {
  func.func @_decoder_kernel(%arg0: i32, %arg1: memref<2x32xf32, #tpu.memory_space<vmem>>, %arg2: memref<2x32xf32, #tpu.memory_space<vmem>>, %arg3: memref<2x32xf32, #tpu.memory_space<vmem>>, %arg4: memref<16x16xf32, #tpu.memory_space<vmem>>, %arg5: memref<32x64xf32, #tpu.memory_space<vmem>>, %arg6: memref<1x64xf32, #tpu.memory_space<vmem>>, %arg7: memref<64x64xf32, #tpu.memory_space<vmem>>, %arg8: memref<1x64xf32, #tpu.memory_space<vmem>>, %arg9: memref<1x32x128xf32, #tpu.memory_space<vmem>>, %arg10: memref<1x1x128xf32, #tpu.memory_space<vmem>>, %arg11: memref<1x561x256xf32, #tpu.memory_space<vmem>>, %arg12: memref<1x4369x32xf32, #tpu.memory_space<vmem>>, %arg13: memref<1x561x256xf32, #tpu.memory_space<vmem>>, %arg14: memref<1x4369x32xf32, #tpu.memory_space<vmem>>, %arg15: memref<1x32x32xf32, #tpu.memory_space<vmem>>, %arg16: memref<1x16x64xf32, #tpu.memory_space<vmem>>, %arg17: memref<1x32x32xf32, #tpu.memory_space<vmem>>, %arg18: memref<1x6x32xf32, #tpu.memory_space<vmem>>, %arg19: memref<2x32xf32, #tpu.memory_space<vmem>>, %arg20: memref<2x32xf32, #tpu.memory_space<vmem>>) attributes {dimension_semantics = [#tpu.dimension_semantics<arbitrary>], iteration_bounds = array<i64: 2>, scalar_prefetch = 0 : i64, scratch_operands = 0 : i64, tpu.core_type = #tpu.core_type<tc>, window_params = [{pipeline_mode = #tpu.pipeline_mode<synchronous>, transform_indices = @transform_0, window_bounds = array<i64: 2, 32>}, {pipeline_mode = #tpu.pipeline_mode<synchronous>, transform_indices = @transform_1, window_bounds = array<i64: 2, 32>}, {pipeline_mode = #tpu.pipeline_mode<synchronous>, transform_indices = @transform_2, window_bounds = array<i64: 2, 32>}, {pipeline_mode = #tpu.pipeline_mode<synchronous>, transform_indices = @transform_3, window_bounds = array<i64: 16, 16>}, {pipeline_mode = #tpu.pipeline_mode<synchronous>, transform_indices = @transform_4, window_bounds = array<i64: 32, 64>}, {pipeline_mode = #tpu.pipeline_mode<synchronous>, transform_indices = @transform_5, window_bounds = array<i64: 1, 64>}, {pipeline_mode = #tpu.pipeline_mode<synchronous>, transform_indices = @transform_6, window_bounds = array<i64: 64, 64>}, {pipeline_mode = #tpu.pipeline_mode<synchronous>, transform_indices = @transform_7, window_bounds = array<i64: 1, 64>}, {transform_indices = @transform_8, window_bounds = array<i64: 1, 32, 128>}, {transform_indices = @transform_9, window_bounds = array<i64: 1, 1, 128>}, {transform_indices = @transform_10, window_bounds = array<i64: 1, 561, 256>}, {transform_indices = @transform_11, window_bounds = array<i64: 1, 4369, 32>}, {transform_indices = @transform_12, window_bounds = array<i64: 1, 561, 256>}, {transform_indices = @transform_13, window_bounds = array<i64: 1, 4369, 32>}, {transform_indices = @transform_14, window_bounds = array<i64: 1, 32, 32>}, {transform_indices = @transform_15, window_bounds = array<i64: 1, 16, 64>}, {transform_indices = @transform_16, window_bounds = array<i64: 1, 32, 32>}, {transform_indices = @transform_17, window_bounds = array<i64: 1, 6, 32>}, {pipeline_mode = #tpu.pipeline_mode<synchronous>, transform_indices = @transform_18, window_bounds = array<i64: 2, 32>}, {pipeline_mode = #tpu.pipeline_mode<synchronous>, transform_indices = @transform_19, window_bounds = array<i64: 2, 32>}]} {
    %c0_i32 = arith.constant 0 : i32
    %0 = arith.cmpi eq, %arg0, %c0_i32 : i32
    %1 = arith.extui %0 : i1 to i32
    %c0_i32_0 = arith.constant 0 : i32
    %2 = arith.cmpi ne, %1, %c0_i32_0 : i32
    scf.if %2 {
      %c0_85 = arith.constant 0 : index
      %c0_86 = arith.constant 0 : index
      %428 = vector.load %arg2[%c0_85, %c0_86] : memref<2x32xf32, #tpu.memory_space<vmem>>, vector<2x32xf32>
      %c0_87 = arith.constant 0 : index
      %c0_88 = arith.constant 0 : index
      %429 = vector.load %arg5[%c0_87, %c0_88] : memref<32x64xf32, #tpu.memory_space<vmem>>, vector<32x64xf32>
      %cst_89 = arith.constant dense<0.000000e+00> : vector<2x64xf32>
      %430 = tpu.matmul %428, %429, %cst_89 {dimension_numbers = #tpu.dot_dimension_numbers<[1], [0], [0], [1], [0, 0, 1, 1], [], []>} : vector<2x32xf32>, vector<32x64xf32>, vector<2x64xf32> -> vector<2x64xf32>
      %c0_90 = arith.constant 0 : index
      %c0_91 = arith.constant 0 : index
      %431 = vector.load %arg6[%c0_90, %c0_91] : memref<1x64xf32, #tpu.memory_space<vmem>>, vector<1x64xf32>
      %432 = vector.broadcast %431 : vector<1x64xf32> to vector<2x64xf32>
      %433 = arith.addf %430, %432 : vector<2x64xf32>
      %cst_92 = arith.constant 5.000000e-01 : f32
      %434 = vector.broadcast %cst_92 : f32 to vector<2x64xf32>
      %435 = arith.mulf %434, %433 : vector<2x64xf32>
      %cst_93 = arith.constant 0.707106769 : f32
      %436 = vector.broadcast %cst_93 : f32 to vector<2x64xf32>
      %437 = arith.mulf %433, %436 : vector<2x64xf32>
      %438 = math.erf %437 : vector<2x64xf32>
      %cst_94 = arith.constant 1.000000e+00 : f32
      %439 = vector.broadcast %cst_94 : f32 to vector<2x64xf32>
      %440 = arith.addf %439, %438 : vector<2x64xf32>
      %441 = arith.mulf %435, %440 : vector<2x64xf32>
      %c0_95 = arith.constant 0 : index
      %c0_96 = arith.constant 0 : index
      %442 = vector.load %arg7[%c0_95, %c0_96] : memref<64x64xf32, #tpu.memory_space<vmem>>, vector<64x64xf32>
      %cst_97 = arith.constant dense<0.000000e+00> : vector<2x64xf32>
      %443 = tpu.matmul %441, %442, %cst_97 {dimension_numbers = #tpu.dot_dimension_numbers<[1], [0], [0], [1], [0, 0, 1, 1], [], []>} : vector<2x64xf32>, vector<64x64xf32>, vector<2x64xf32> -> vector<2x64xf32>
      %c0_98 = arith.constant 0 : index
      %c0_99 = arith.constant 0 : index
      %444 = vector.load %arg8[%c0_98, %c0_99] : memref<1x64xf32, #tpu.memory_space<vmem>>, vector<1x64xf32>
      %445 = vector.broadcast %444 : vector<1x64xf32> to vector<2x64xf32>
      %446 = arith.addf %443, %445 : vector<2x64xf32>
      %447 = vector.extract_strided_slice %446 {offsets = [0, 0], sizes = [2, 32], strides = [1, 1]} : vector<2x64xf32> to vector<2x32xf32>
      %448 = vector.extract_strided_slice %446 {offsets = [0, 32], sizes = [2, 32], strides = [1, 1]} : vector<2x64xf32> to vector<2x32xf32>
      %c0_100 = arith.constant 0 : index
      %c0_101 = arith.constant 0 : index
      %449 = vector.load %arg1[%c0_100, %c0_101] : memref<2x32xf32, #tpu.memory_space<vmem>>, vector<2x32xf32>
      %cst_102 = arith.constant 1.000000e+00 : f32
      %450 = vector.broadcast %cst_102 : f32 to vector<2x32xf32>
      %451 = arith.addf %447, %450 : vector<2x32xf32>
      %452 = arith.mulf %449, %451 : vector<2x32xf32>
      %453 = arith.addf %452, %448 : vector<2x32xf32>
      %c0_103 = arith.constant 0 : index
      %c0_104 = arith.constant 0 : index
      %454 = vector.load %arg19[%c0_103, %c0_104] : memref<2x32xf32, #tpu.memory_space<vmem>>, vector<2x32xf32>
      tpu.vector_store %arg19[%c0_103, %c0_104], %453 {strides = array<i32>} : memref<2x32xf32, #tpu.memory_space<vmem>>, vector<2x32xf32>,
    } else {
    }
    %c0 = arith.constant 0 : index
    %c0_1 = arith.constant 0 : index
    %3 = vector.load %arg19[%c0, %c0_1] : memref<2x32xf32, #tpu.memory_space<vmem>>, vector<2x32xf32>
    %c0_2 = arith.constant 0 : index
    %c0_3 = arith.constant 0 : index
    %4 = vector.load %arg3[%c0_2, %c0_3] : memref<2x32xf32, #tpu.memory_space<vmem>>, vector<2x32xf32>
    %c0_4 = arith.constant 0 : index
    %c0_5 = arith.constant 0 : index
    %c0_6 = arith.constant 0 : index
    %5 = vector.load %arg18[%c0_4, %c0_5, %c0_6] : memref<1x6x32xf32, #tpu.memory_space<vmem>>, vector<1x6x32xf32>
    %6 = vector.shape_cast %5 : vector<1x6x32xf32> to vector<6x32xf32>
    %c0_7 = arith.constant 0 : index
    %c0_8 = arith.constant 0 : index
    %c0_9 = arith.constant 0 : index
    %7 = vector.load %arg9[%c0_7, %c0_8, %c0_9] : memref<1x32x128xf32, #tpu.memory_space<vmem>>, vector<1x32x128xf32>
    %8 = vector.shape_cast %7 : vector<1x32x128xf32> to vector<32x128xf32>
    %cst = arith.constant dense<0.000000e+00> : vector<2x128xf32>
    %9 = tpu.matmul %4, %8, %cst {dimension_numbers = #tpu.dot_dimension_numbers<[1], [0], [0], [1], [0, 0, 1, 1], [], []>} : vector<2x32xf32>, vector<32x128xf32>, vector<2x128xf32> -> vector<2x128xf32>
    %c0_10 = arith.constant 0 : index
    %c0_11 = arith.constant 0 : index
    %c0_12 = arith.constant 0 : index
    %10 = vector.load %arg10[%c0_10, %c0_11, %c0_12] : memref<1x1x128xf32, #tpu.memory_space<vmem>>, vector<1x1x128xf32>
    %11 = vector.shape_cast %10 : vector<1x1x128xf32> to vector<1x128xf32>
    %12 = vector.broadcast %11 : vector<1x128xf32> to vector<2x128xf32>
    %13 = arith.addf %9, %12 : vector<2x128xf32>
    %cst_13 = arith.constant 0.000000e+00 : f32
    %14 = vector.broadcast %cst_13 : f32 to vector<2x128xf32>
    %15 = arith.maximumf %13, %14 : vector<2x128xf32>
    %cst_14 = arith.constant 1.000000e+00 : f32
    %16 = vector.broadcast %cst_14 : f32 to vector<2x1xf32>
    %17 = vector.extract_strided_slice %15 {offsets = [0, 0], sizes = [2, 16], strides = [1, 1]} : vector<2x128xf32> to vector<2x16xf32>
    %18 = vector.extract_strided_slice %15 {offsets = [0, 16], sizes = [2, 16], strides = [1, 1]} : vector<2x128xf32> to vector<2x16xf32>
    %19 = vector.extract_strided_slice %17 {offsets = [0, 0], sizes = [2, 1], strides = [1, 1]} : vector<2x16xf32> to vector<2x1xf32>
    %20 = vector.broadcast %19 : vector<2x1xf32> to vector<2x32xf32>
    %21 = arith.mulf %20, %3 : vector<2x32xf32>
    %22 = vector.extract_strided_slice %17 {offsets = [0, 1], sizes = [2, 1], strides = [1, 1]} : vector<2x16xf32> to vector<2x1xf32>
    %23 = vector.broadcast %22 : vector<2x1xf32> to vector<2x32xf32>
    %24 = arith.mulf %23, %3 : vector<2x32xf32>
    %25 = vector.extract_strided_slice %17 {offsets = [0, 2], sizes = [2, 1], strides = [1, 1]} : vector<2x16xf32> to vector<2x1xf32>
    %26 = vector.broadcast %25 : vector<2x1xf32> to vector<2x32xf32>
    %27 = arith.mulf %26, %3 : vector<2x32xf32>
    %28 = vector.extract_strided_slice %17 {offsets = [0, 3], sizes = [2, 1], strides = [1, 1]} : vector<2x16xf32> to vector<2x1xf32>
    %29 = vector.broadcast %28 : vector<2x1xf32> to vector<2x32xf32>
    %30 = arith.mulf %29, %3 : vector<2x32xf32>
    %31 = vector.extract_strided_slice %17 {offsets = [0, 4], sizes = [2, 1], strides = [1, 1]} : vector<2x16xf32> to vector<2x1xf32>
    %32 = vector.broadcast %31 : vector<2x1xf32> to vector<2x32xf32>
    %33 = arith.mulf %32, %3 : vector<2x32xf32>
    %34 = vector.extract_strided_slice %17 {offsets = [0, 5], sizes = [2, 1], strides = [1, 1]} : vector<2x16xf32> to vector<2x1xf32>
    %35 = vector.broadcast %34 : vector<2x1xf32> to vector<2x32xf32>
    %36 = arith.mulf %35, %3 : vector<2x32xf32>
    %37 = vector.extract_strided_slice %17 {offsets = [0, 6], sizes = [2, 1], strides = [1, 1]} : vector<2x16xf32> to vector<2x1xf32>
    %38 = vector.broadcast %37 : vector<2x1xf32> to vector<2x32xf32>
    %39 = arith.mulf %38, %3 : vector<2x32xf32>
    %40 = vector.extract_strided_slice %17 {offsets = [0, 7], sizes = [2, 1], strides = [1, 1]} : vector<2x16xf32> to vector<2x1xf32>
    %41 = vector.broadcast %40 : vector<2x1xf32> to vector<2x32xf32>
    %42 = arith.mulf %41, %3 : vector<2x32xf32>
    %43 = vector.extract_strided_slice %17 {offsets = [0, 8], sizes = [2, 1], strides = [1, 1]} : vector<2x16xf32> to vector<2x1xf32>
    %44 = vector.broadcast %43 : vector<2x1xf32> to vector<2x32xf32>
    %45 = arith.mulf %44, %3 : vector<2x32xf32>
    %46 = vector.extract_strided_slice %17 {offsets = [0, 9], sizes = [2, 1], strides = [1, 1]} : vector<2x16xf32> to vector<2x1xf32>
    %47 = vector.broadcast %46 : vector<2x1xf32> to vector<2x32xf32>
    %48 = arith.mulf %47, %3 : vector<2x32xf32>
    %49 = vector.extract_strided_slice %17 {offsets = [0, 10], sizes = [2, 1], strides = [1, 1]} : vector<2x16xf32> to vector<2x1xf32>
    %50 = vector.broadcast %49 : vector<2x1xf32> to vector<2x32xf32>
    %51 = arith.mulf %50, %3 : vector<2x32xf32>
    %52 = vector.extract_strided_slice %17 {offsets = [0, 11], sizes = [2, 1], strides = [1, 1]} : vector<2x16xf32> to vector<2x1xf32>
    %53 = vector.broadcast %52 : vector<2x1xf32> to vector<2x32xf32>
    %54 = arith.mulf %53, %3 : vector<2x32xf32>
    %55 = vector.extract_strided_slice %17 {offsets = [0, 12], sizes = [2, 1], strides = [1, 1]} : vector<2x16xf32> to vector<2x1xf32>
    %56 = vector.broadcast %55 : vector<2x1xf32> to vector<2x32xf32>
    %57 = arith.mulf %56, %3 : vector<2x32xf32>
    %58 = vector.extract_strided_slice %17 {offsets = [0, 13], sizes = [2, 1], strides = [1, 1]} : vector<2x16xf32> to vector<2x1xf32>
    %59 = vector.broadcast %58 : vector<2x1xf32> to vector<2x32xf32>
    %60 = arith.mulf %59, %3 : vector<2x32xf32>
    %61 = vector.extract_strided_slice %17 {offsets = [0, 14], sizes = [2, 1], strides = [1, 1]} : vector<2x16xf32> to vector<2x1xf32>
    %62 = vector.broadcast %61 : vector<2x1xf32> to vector<2x32xf32>
    %63 = arith.mulf %62, %3 : vector<2x32xf32>
    %64 = vector.extract_strided_slice %17 {offsets = [0, 15], sizes = [2, 1], strides = [1, 1]} : vector<2x16xf32> to vector<2x1xf32>
    %65 = vector.broadcast %64 : vector<2x1xf32> to vector<2x32xf32>
    %66 = arith.mulf %65, %3 : vector<2x32xf32>
    %67 = tpu.concatenate %21, %24, %27, %30, %33, %36, %39, %42, %45, %48, %51, %54, %57, %60, %63, %66 in 1 : vector<2x32xf32>, vector<2x32xf32>, vector<2x32xf32>, vector<2x32xf32>, vector<2x32xf32>, vector<2x32xf32>, vector<2x32xf32>, vector<2x32xf32>, vector<2x32xf32>, vector<2x32xf32>, vector<2x32xf32>, vector<2x32xf32>, vector<2x32xf32>, vector<2x32xf32>, vector<2x32xf32>, vector<2x32xf32> -> vector<2x512xf32>
    %68 = tpu.concatenate %3, %18, %16 in 1 : vector<2x32xf32>, vector<2x16xf32>, vector<2x1xf32> -> vector<2x49xf32>
    %69 = tpu.concatenate %67, %68 in 1 : vector<2x512xf32>, vector<2x49xf32> -> vector<2x561xf32>
    %c0_15 = arith.constant 0 : index
    %c0_16 = arith.constant 0 : index
    %c0_17 = arith.constant 0 : index
    %70 = vector.load %arg11[%c0_15, %c0_16, %c0_17] : memref<1x561x256xf32, #tpu.memory_space<vmem>>, vector<1x561x256xf32>
    %71 = vector.shape_cast %70 : vector<1x561x256xf32> to vector<561x256xf32>
    %cst_18 = arith.constant dense<0.000000e+00> : vector<2x256xf32>
    %72 = tpu.matmul %69, %71, %cst_18 {dimension_numbers = #tpu.dot_dimension_numbers<[1], [0], [0], [1], [0, 0, 1, 1], [], []>} : vector<2x561xf32>, vector<561x256xf32>, vector<2x256xf32> -> vector<2x256xf32>
    %cst_19 = arith.constant 0.000000e+00 : f32
    %73 = vector.broadcast %cst_19 : f32 to vector<2x256xf32>
    %74 = arith.maximumf %72, %73 : vector<2x256xf32>
    %75 = vector.extract_strided_slice %15 {offsets = [0, 32], sizes = [2, 16], strides = [1, 1]} : vector<2x128xf32> to vector<2x16xf32>
    %76 = vector.extract_strided_slice %15 {offsets = [0, 48], sizes = [2, 16], strides = [1, 1]} : vector<2x128xf32> to vector<2x16xf32>
    %77 = vector.extract_strided_slice %75 {offsets = [0, 0], sizes = [2, 1], strides = [1, 1]} : vector<2x16xf32> to vector<2x1xf32>
    %78 = vector.broadcast %77 : vector<2x1xf32> to vector<2x256xf32>
    %79 = arith.mulf %78, %74 : vector<2x256xf32>
    %80 = vector.extract_strided_slice %75 {offsets = [0, 1], sizes = [2, 1], strides = [1, 1]} : vector<2x16xf32> to vector<2x1xf32>
    %81 = vector.broadcast %80 : vector<2x1xf32> to vector<2x256xf32>
    %82 = arith.mulf %81, %74 : vector<2x256xf32>
    %83 = vector.extract_strided_slice %75 {offsets = [0, 2], sizes = [2, 1], strides = [1, 1]} : vector<2x16xf32> to vector<2x1xf32>
    %84 = vector.broadcast %83 : vector<2x1xf32> to vector<2x256xf32>
    %85 = arith.mulf %84, %74 : vector<2x256xf32>
    %86 = vector.extract_strided_slice %75 {offsets = [0, 3], sizes = [2, 1], strides = [1, 1]} : vector<2x16xf32> to vector<2x1xf32>
    %87 = vector.broadcast %86 : vector<2x1xf32> to vector<2x256xf32>
    %88 = arith.mulf %87, %74 : vector<2x256xf32>
    %89 = vector.extract_strided_slice %75 {offsets = [0, 4], sizes = [2, 1], strides = [1, 1]} : vector<2x16xf32> to vector<2x1xf32>
    %90 = vector.broadcast %89 : vector<2x1xf32> to vector<2x256xf32>
    %91 = arith.mulf %90, %74 : vector<2x256xf32>
    %92 = vector.extract_strided_slice %75 {offsets = [0, 5], sizes = [2, 1], strides = [1, 1]} : vector<2x16xf32> to vector<2x1xf32>
    %93 = vector.broadcast %92 : vector<2x1xf32> to vector<2x256xf32>
    %94 = arith.mulf %93, %74 : vector<2x256xf32>
    %95 = vector.extract_strided_slice %75 {offsets = [0, 6], sizes = [2, 1], strides = [1, 1]} : vector<2x16xf32> to vector<2x1xf32>
    %96 = vector.broadcast %95 : vector<2x1xf32> to vector<2x256xf32>
    %97 = arith.mulf %96, %74 : vector<2x256xf32>
    %98 = vector.extract_strided_slice %75 {offsets = [0, 7], sizes = [2, 1], strides = [1, 1]} : vector<2x16xf32> to vector<2x1xf32>
    %99 = vector.broadcast %98 : vector<2x1xf32> to vector<2x256xf32>
    %100 = arith.mulf %99, %74 : vector<2x256xf32>
    %101 = vector.extract_strided_slice %75 {offsets = [0, 8], sizes = [2, 1], strides = [1, 1]} : vector<2x16xf32> to vector<2x1xf32>
    %102 = vector.broadcast %101 : vector<2x1xf32> to vector<2x256xf32>
    %103 = arith.mulf %102, %74 : vector<2x256xf32>
    %104 = vector.extract_strided_slice %75 {offsets = [0, 9], sizes = [2, 1], strides = [1, 1]} : vector<2x16xf32> to vector<2x1xf32>
    %105 = vector.broadcast %104 : vector<2x1xf32> to vector<2x256xf32>
    %106 = arith.mulf %105, %74 : vector<2x256xf32>
    %107 = vector.extract_strided_slice %75 {offsets = [0, 10], sizes = [2, 1], strides = [1, 1]} : vector<2x16xf32> to vector<2x1xf32>
    %108 = vector.broadcast %107 : vector<2x1xf32> to vector<2x256xf32>
    %109 = arith.mulf %108, %74 : vector<2x256xf32>
    %110 = vector.extract_strided_slice %75 {offsets = [0, 11], sizes = [2, 1], strides = [1, 1]} : vector<2x16xf32> to vector<2x1xf32>
    %111 = vector.broadcast %110 : vector<2x1xf32> to vector<2x256xf32>
    %112 = arith.mulf %111, %74 : vector<2x256xf32>
    %113 = vector.extract_strided_slice %75 {offsets = [0, 12], sizes = [2, 1], strides = [1, 1]} : vector<2x16xf32> to vector<2x1xf32>
    %114 = vector.broadcast %113 : vector<2x1xf32> to vector<2x256xf32>
    %115 = arith.mulf %114, %74 : vector<2x256xf32>
    %116 = vector.extract_strided_slice %75 {offsets = [0, 13], sizes = [2, 1], strides = [1, 1]} : vector<2x16xf32> to vector<2x1xf32>
    %117 = vector.broadcast %116 : vector<2x1xf32> to vector<2x256xf32>
    %118 = arith.mulf %117, %74 : vector<2x256xf32>
    %119 = vector.extract_strided_slice %75 {offsets = [0, 14], sizes = [2, 1], strides = [1, 1]} : vector<2x16xf32> to vector<2x1xf32>
    %120 = vector.broadcast %119 : vector<2x1xf32> to vector<2x256xf32>
    %121 = arith.mulf %120, %74 : vector<2x256xf32>
    %122 = vector.extract_strided_slice %75 {offsets = [0, 15], sizes = [2, 1], strides = [1, 1]} : vector<2x16xf32> to vector<2x1xf32>
    %123 = vector.broadcast %122 : vector<2x1xf32> to vector<2x256xf32>
    %124 = arith.mulf %123, %74 : vector<2x256xf32>
    %125 = tpu.concatenate %79, %82, %85, %88, %91, %94, %97, %100, %103, %106, %109, %112, %115, %118, %121, %124 in 1 : vector<2x256xf32>, vector<2x256xf32>, vector<2x256xf32>, vector<2x256xf32>, vector<2x256xf32>, vector<2x256xf32>, vector<2x256xf32>, vector<2x256xf32>, vector<2x256xf32>, vector<2x256xf32>, vector<2x256xf32>, vector<2x256xf32>, vector<2x256xf32>, vector<2x256xf32>, vector<2x256xf32>, vector<2x256xf32> -> vector<2x4096xf32>
    %126 = tpu.concatenate %74, %76, %16 in 1 : vector<2x256xf32>, vector<2x16xf32>, vector<2x1xf32> -> vector<2x273xf32>
    %127 = tpu.concatenate %125, %126 in 1 : vector<2x4096xf32>, vector<2x273xf32> -> vector<2x4369xf32>
    %c0_20 = arith.constant 0 : index
    %c0_21 = arith.constant 0 : index
    %c0_22 = arith.constant 0 : index
    %128 = vector.load %arg12[%c0_20, %c0_21, %c0_22] : memref<1x4369x32xf32, #tpu.memory_space<vmem>>, vector<1x4369x32xf32>
    %129 = vector.shape_cast %128 : vector<1x4369x32xf32> to vector<4369x32xf32>
    %cst_23 = arith.constant dense<0.000000e+00> : vector<2x32xf32>
    %130 = tpu.matmul %127, %129, %cst_23 {dimension_numbers = #tpu.dot_dimension_numbers<[1], [0], [0], [1], [0, 0, 1, 1], [], []>} : vector<2x4369xf32>, vector<4369x32xf32>, vector<2x32xf32> -> vector<2x32xf32>
    %131 = arith.addf %130, %3 : vector<2x32xf32>
    %132 = vector.extract_strided_slice %6 {offsets = [0, 0], sizes = [1, 32], strides = [1, 1]} : vector<6x32xf32> to vector<1x32xf32>
    %133 = vector.extract_strided_slice %6 {offsets = [1, 0], sizes = [1, 32], strides = [1, 1]} : vector<6x32xf32> to vector<1x32xf32>
    %cst_24 = arith.constant dense<0.000000e+00> : vector<2xf32>
    %134 = vector.multi_reduction <add>, %131, %cst_24 [1] : vector<2x32xf32> to vector<2xf32>
    %135 = vector.shape_cast %134 : vector<2xf32> to vector<2x1xf32>
    %cst_25 = arith.constant 3.200000e+01 : f32
    %136 = vector.broadcast %cst_25 : f32 to vector<2x1xf32>
    %137 = arith.divf %135, %136 : vector<2x1xf32>
    %138 = vector.broadcast %137 : vector<2x1xf32> to vector<2x32xf32>
    %139 = arith.subf %131, %138 : vector<2x32xf32>
    %140 = arith.mulf %139, %139 : vector<2x32xf32>
    %cst_26 = arith.constant dense<0.000000e+00> : vector<2xf32>
    %141 = vector.multi_reduction <add>, %140, %cst_26 [1] : vector<2x32xf32> to vector<2xf32>
    %142 = vector.shape_cast %141 : vector<2xf32> to vector<2x1xf32>
    %cst_27 = arith.constant 3.200000e+01 : f32
    %143 = vector.broadcast %cst_27 : f32 to vector<2x1xf32>
    %144 = arith.divf %142, %143 : vector<2x1xf32>
    %145 = vector.broadcast %137 : vector<2x1xf32> to vector<2x32xf32>
    %146 = arith.subf %131, %145 : vector<2x32xf32>
    %cst_28 = arith.constant 9.99999974E-6 : f32
    %147 = vector.broadcast %cst_28 : f32 to vector<2x1xf32>
    %148 = arith.addf %144, %147 : vector<2x1xf32>
    %149 = math.rsqrt %148 : vector<2x1xf32>
    %150 = vector.broadcast %149 : vector<2x1xf32> to vector<2x32xf32>
    %151 = arith.mulf %146, %150 : vector<2x32xf32>
    %152 = vector.broadcast %132 : vector<1x32xf32> to vector<2x32xf32>
    %153 = arith.mulf %151, %152 : vector<2x32xf32>
    %154 = vector.broadcast %133 : vector<1x32xf32> to vector<2x32xf32>
    %155 = arith.addf %153, %154 : vector<2x32xf32>
    %c0_29 = arith.constant 0 : index
    %c0_30 = arith.constant 0 : index
    %c0_31 = arith.constant 0 : index
    %156 = vector.load %arg15[%c0_29, %c0_30, %c0_31] : memref<1x32x32xf32, #tpu.memory_space<vmem>>, vector<1x32x32xf32>
    %157 = vector.shape_cast %156 : vector<1x32x32xf32> to vector<32x32xf32>
    %cst_32 = arith.constant dense<0.000000e+00> : vector<2x32xf32>
    %158 = tpu.matmul %155, %157, %cst_32 {dimension_numbers = #tpu.dot_dimension_numbers<[1], [0], [0], [1], [0, 0, 1, 1], [], []>} : vector<2x32xf32>, vector<32x32xf32>, vector<2x32xf32> -> vector<2x32xf32>
    %c0_33 = arith.constant 0 : index
    %c0_34 = arith.constant 0 : index
    %159 = vector.load %arg4[%c0_33, %c0_34] : memref<16x16xf32, #tpu.memory_space<vmem>>, vector<16x16xf32>
    %c0_35 = arith.constant 0 : index
    %c0_36 = arith.constant 0 : index
    %c0_37 = arith.constant 0 : index
    %160 = vector.load %arg16[%c0_35, %c0_36, %c0_37] : memref<1x16x64xf32, #tpu.memory_space<vmem>>, vector<1x16x64xf32>
    %161 = vector.shape_cast %160 : vector<1x16x64xf32> to vector<16x64xf32>
    %cst_38 = arith.constant dense<0.000000e+00> : vector<16x64xf32>
    %162 = tpu.matmul %159, %161, %cst_38 {dimension_numbers = #tpu.dot_dimension_numbers<[1], [0], [0], [1], [0, 0, 1, 1], [], []>} : vector<16x16xf32>, vector<16x64xf32>, vector<16x64xf32> -> vector<16x64xf32>
    %163 = vector.shape_cast %162 : vector<16x64xf32> to vector<2x8x64xf32>
    %164 = vector.extract_strided_slice %158 {offsets = [0, 0], sizes = [2, 8], strides = [1, 1]} : vector<2x32xf32> to vector<2x8xf32>
    %165 = vector.extract_strided_slice %163 {offsets = [0, 0, 0], sizes = [2, 8, 8], strides = [1, 1, 1]} : vector<2x8x64xf32> to vector<2x8x8xf32>
    %166 = vector.extract_strided_slice %163 {offsets = [0, 0, 32], sizes = [2, 8, 8], strides = [1, 1, 1]} : vector<2x8x64xf32> to vector<2x8x8xf32>
    %167 = vector.shape_cast %164 : vector<2x8xf32> to vector<2x1x8xf32>
    %168 = vector.broadcast %167 : vector<2x1x8xf32> to vector<2x8x8xf32>
    %169 = arith.mulf %168, %165 : vector<2x8x8xf32>
    %cst_39 = arith.constant dense<0.000000e+00> : vector<2x8xf32>
    %170 = vector.multi_reduction <add>, %169, %cst_39 [2] : vector<2x8x8xf32> to vector<2x8xf32>
    %cst_40 = arith.constant 0.353553385 : f32
    %171 = vector.broadcast %cst_40 : f32 to vector<2x8xf32>
    %172 = arith.mulf %170, %171 : vector<2x8xf32>
    %cst_41 = arith.constant dense<0xFF800000> : vector<2xf32>
    %173 = vector.multi_reduction <maximumf>, %172, %cst_41 [1] : vector<2x8xf32> to vector<2xf32>
    %174 = vector.shape_cast %173 : vector<2xf32> to vector<2x1xf32>
    %175 = vector.broadcast %174 : vector<2x1xf32> to vector<2x8xf32>
    %176 = arith.subf %172, %175 : vector<2x8xf32>
    %177 = math.exp %176 : vector<2x8xf32>
    %cst_42 = arith.constant dense<0.000000e+00> : vector<2xf32>
    %178 = vector.multi_reduction <add>, %177, %cst_42 [1] : vector<2x8xf32> to vector<2xf32>
    %179 = vector.shape_cast %178 : vector<2xf32> to vector<2x1xf32>
    %180 = tpu.reciprocal %179 {approx = true} : vector<2x1xf32> -> vector<2x1xf32>
    %181 = vector.broadcast %180 : vector<2x1xf32> to vector<2x8xf32>
    %182 = arith.mulf %177, %181 : vector<2x8xf32>
    %183 = vector.shape_cast %182 : vector<2x8xf32> to vector<2x8x1xf32>
    %184 = vector.broadcast %183 : vector<2x8x1xf32> to vector<2x8x8xf32>
    %185 = arith.mulf %184, %166 : vector<2x8x8xf32>
    %cst_43 = arith.constant dense<0.000000e+00> : vector<2x8xf32>
    %186 = vector.multi_reduction <add>, %185, %cst_43 [1] : vector<2x8x8xf32> to vector<2x8xf32>
    %187 = vector.extract_strided_slice %158 {offsets = [0, 8], sizes = [2, 8], strides = [1, 1]} : vector<2x32xf32> to vector<2x8xf32>
    %188 = vector.extract_strided_slice %163 {offsets = [0, 0, 8], sizes = [2, 8, 8], strides = [1, 1, 1]} : vector<2x8x64xf32> to vector<2x8x8xf32>
    %189 = vector.extract_strided_slice %163 {offsets = [0, 0, 40], sizes = [2, 8, 8], strides = [1, 1, 1]} : vector<2x8x64xf32> to vector<2x8x8xf32>
    %190 = vector.shape_cast %187 : vector<2x8xf32> to vector<2x1x8xf32>
    %191 = vector.broadcast %190 : vector<2x1x8xf32> to vector<2x8x8xf32>
    %192 = arith.mulf %191, %188 : vector<2x8x8xf32>
    %cst_44 = arith.constant dense<0.000000e+00> : vector<2x8xf32>
    %193 = vector.multi_reduction <add>, %192, %cst_44 [2] : vector<2x8x8xf32> to vector<2x8xf32>
    %cst_45 = arith.constant 0.353553385 : f32
    %194 = vector.broadcast %cst_45 : f32 to vector<2x8xf32>
    %195 = arith.mulf %193, %194 : vector<2x8xf32>
    %cst_46 = arith.constant dense<0xFF800000> : vector<2xf32>
    %196 = vector.multi_reduction <maximumf>, %195, %cst_46 [1] : vector<2x8xf32> to vector<2xf32>
    %197 = vector.shape_cast %196 : vector<2xf32> to vector<2x1xf32>
    %198 = vector.broadcast %197 : vector<2x1xf32> to vector<2x8xf32>
    %199 = arith.subf %195, %198 : vector<2x8xf32>
    %200 = math.exp %199 : vector<2x8xf32>
    %cst_47 = arith.constant dense<0.000000e+00> : vector<2xf32>
    %201 = vector.multi_reduction <add>, %200, %cst_47 [1] : vector<2x8xf32> to vector<2xf32>
    %202 = vector.shape_cast %201 : vector<2xf32> to vector<2x1xf32>
    %203 = tpu.reciprocal %202 {approx = true} : vector<2x1xf32> -> vector<2x1xf32>
    %204 = vector.broadcast %203 : vector<2x1xf32> to vector<2x8xf32>
    %205 = arith.mulf %200, %204 : vector<2x8xf32>
    %206 = vector.shape_cast %205 : vector<2x8xf32> to vector<2x8x1xf32>
    %207 = vector.broadcast %206 : vector<2x8x1xf32> to vector<2x8x8xf32>
    %208 = arith.mulf %207, %189 : vector<2x8x8xf32>
    %cst_48 = arith.constant dense<0.000000e+00> : vector<2x8xf32>
    %209 = vector.multi_reduction <add>, %208, %cst_48 [1] : vector<2x8x8xf32> to vector<2x8xf32>
    %210 = vector.extract_strided_slice %158 {offsets = [0, 16], sizes = [2, 8], strides = [1, 1]} : vector<2x32xf32> to vector<2x8xf32>
    %211 = vector.extract_strided_slice %163 {offsets = [0, 0, 16], sizes = [2, 8, 8], strides = [1, 1, 1]} : vector<2x8x64xf32> to vector<2x8x8xf32>
    %212 = vector.extract_strided_slice %163 {offsets = [0, 0, 48], sizes = [2, 8, 8], strides = [1, 1, 1]} : vector<2x8x64xf32> to vector<2x8x8xf32>
    %213 = vector.shape_cast %210 : vector<2x8xf32> to vector<2x1x8xf32>
    %214 = vector.broadcast %213 : vector<2x1x8xf32> to vector<2x8x8xf32>
    %215 = arith.mulf %214, %211 : vector<2x8x8xf32>
    %cst_49 = arith.constant dense<0.000000e+00> : vector<2x8xf32>
    %216 = vector.multi_reduction <add>, %215, %cst_49 [2] : vector<2x8x8xf32> to vector<2x8xf32>
    %cst_50 = arith.constant 0.353553385 : f32
    %217 = vector.broadcast %cst_50 : f32 to vector<2x8xf32>
    %218 = arith.mulf %216, %217 : vector<2x8xf32>
    %cst_51 = arith.constant dense<0xFF800000> : vector<2xf32>
    %219 = vector.multi_reduction <maximumf>, %218, %cst_51 [1] : vector<2x8xf32> to vector<2xf32>
    %220 = vector.shape_cast %219 : vector<2xf32> to vector<2x1xf32>
    %221 = vector.broadcast %220 : vector<2x1xf32> to vector<2x8xf32>
    %222 = arith.subf %218, %221 : vector<2x8xf32>
    %223 = math.exp %222 : vector<2x8xf32>
    %cst_52 = arith.constant dense<0.000000e+00> : vector<2xf32>
    %224 = vector.multi_reduction <add>, %223, %cst_52 [1] : vector<2x8xf32> to vector<2xf32>
    %225 = vector.shape_cast %224 : vector<2xf32> to vector<2x1xf32>
    %226 = tpu.reciprocal %225 {approx = true} : vector<2x1xf32> -> vector<2x1xf32>
    %227 = vector.broadcast %226 : vector<2x1xf32> to vector<2x8xf32>
    %228 = arith.mulf %223, %227 : vector<2x8xf32>
    %229 = vector.shape_cast %228 : vector<2x8xf32> to vector<2x8x1xf32>
    %230 = vector.broadcast %229 : vector<2x8x1xf32> to vector<2x8x8xf32>
    %231 = arith.mulf %230, %212 : vector<2x8x8xf32>
    %cst_53 = arith.constant dense<0.000000e+00> : vector<2x8xf32>
    %232 = vector.multi_reduction <add>, %231, %cst_53 [1] : vector<2x8x8xf32> to vector<2x8xf32>
    %233 = vector.extract_strided_slice %158 {offsets = [0, 24], sizes = [2, 8], strides = [1, 1]} : vector<2x32xf32> to vector<2x8xf32>
    %234 = vector.extract_strided_slice %163 {offsets = [0, 0, 24], sizes = [2, 8, 8], strides = [1, 1, 1]} : vector<2x8x64xf32> to vector<2x8x8xf32>
    %235 = vector.extract_strided_slice %163 {offsets = [0, 0, 56], sizes = [2, 8, 8], strides = [1, 1, 1]} : vector<2x8x64xf32> to vector<2x8x8xf32>
    %236 = vector.shape_cast %233 : vector<2x8xf32> to vector<2x1x8xf32>
    %237 = vector.broadcast %236 : vector<2x1x8xf32> to vector<2x8x8xf32>
    %238 = arith.mulf %237, %234 : vector<2x8x8xf32>
    %cst_54 = arith.constant dense<0.000000e+00> : vector<2x8xf32>
    %239 = vector.multi_reduction <add>, %238, %cst_54 [2] : vector<2x8x8xf32> to vector<2x8xf32>
    %cst_55 = arith.constant 0.353553385 : f32
    %240 = vector.broadcast %cst_55 : f32 to vector<2x8xf32>
    %241 = arith.mulf %239, %240 : vector<2x8xf32>
    %cst_56 = arith.constant dense<0xFF800000> : vector<2xf32>
    %242 = vector.multi_reduction <maximumf>, %241, %cst_56 [1] : vector<2x8xf32> to vector<2xf32>
    %243 = vector.shape_cast %242 : vector<2xf32> to vector<2x1xf32>
    %244 = vector.broadcast %243 : vector<2x1xf32> to vector<2x8xf32>
    %245 = arith.subf %241, %244 : vector<2x8xf32>
    %246 = math.exp %245 : vector<2x8xf32>
    %cst_57 = arith.constant dense<0.000000e+00> : vector<2xf32>
    %247 = vector.multi_reduction <add>, %246, %cst_57 [1] : vector<2x8xf32> to vector<2xf32>
    %248 = vector.shape_cast %247 : vector<2xf32> to vector<2x1xf32>
    %249 = tpu.reciprocal %248 {approx = true} : vector<2x1xf32> -> vector<2x1xf32>
    %250 = vector.broadcast %249 : vector<2x1xf32> to vector<2x8xf32>
    %251 = arith.mulf %246, %250 : vector<2x8xf32>
    %252 = vector.shape_cast %251 : vector<2x8xf32> to vector<2x8x1xf32>
    %253 = vector.broadcast %252 : vector<2x8x1xf32> to vector<2x8x8xf32>
    %254 = arith.mulf %253, %235 : vector<2x8x8xf32>
    %cst_58 = arith.constant dense<0.000000e+00> : vector<2x8xf32>
    %255 = vector.multi_reduction <add>, %254, %cst_58 [1] : vector<2x8x8xf32> to vector<2x8xf32>
    %256 = tpu.concatenate %186, %209, %232, %255 in 1 : vector<2x8xf32>, vector<2x8xf32>, vector<2x8xf32>, vector<2x8xf32> -> vector<2x32xf32>
    %c0_59 = arith.constant 0 : index
    %c0_60 = arith.constant 0 : index
    %c0_61 = arith.constant 0 : index
    %257 = vector.load %arg17[%c0_59, %c0_60, %c0_61] : memref<1x32x32xf32, #tpu.memory_space<vmem>>, vector<1x32x32xf32>
    %258 = vector.shape_cast %257 : vector<1x32x32xf32> to vector<32x32xf32>
    %cst_62 = arith.constant dense<0.000000e+00> : vector<2x32xf32>
    %259 = tpu.matmul %256, %258, %cst_62 {dimension_numbers = #tpu.dot_dimension_numbers<[1], [0], [0], [1], [0, 0, 1, 1], [], []>} : vector<2x32xf32>, vector<32x32xf32>, vector<2x32xf32> -> vector<2x32xf32>
    %260 = arith.addf %259, %155 : vector<2x32xf32>
    %261 = vector.extract_strided_slice %6 {offsets = [2, 0], sizes = [1, 32], strides = [1, 1]} : vector<6x32xf32> to vector<1x32xf32>
    %262 = vector.extract_strided_slice %6 {offsets = [3, 0], sizes = [1, 32], strides = [1, 1]} : vector<6x32xf32> to vector<1x32xf32>
    %cst_63 = arith.constant dense<0.000000e+00> : vector<2xf32>
    %263 = vector.multi_reduction <add>, %260, %cst_63 [1] : vector<2x32xf32> to vector<2xf32>
    %264 = vector.shape_cast %263 : vector<2xf32> to vector<2x1xf32>
    %cst_64 = arith.constant 3.200000e+01 : f32
    %265 = vector.broadcast %cst_64 : f32 to vector<2x1xf32>
    %266 = arith.divf %264, %265 : vector<2x1xf32>
    %267 = vector.broadcast %266 : vector<2x1xf32> to vector<2x32xf32>
    %268 = arith.subf %260, %267 : vector<2x32xf32>
    %269 = arith.mulf %268, %268 : vector<2x32xf32>
    %cst_65 = arith.constant dense<0.000000e+00> : vector<2xf32>
    %270 = vector.multi_reduction <add>, %269, %cst_65 [1] : vector<2x32xf32> to vector<2xf32>
    %271 = vector.shape_cast %270 : vector<2xf32> to vector<2x1xf32>
    %cst_66 = arith.constant 3.200000e+01 : f32
    %272 = vector.broadcast %cst_66 : f32 to vector<2x1xf32>
    %273 = arith.divf %271, %272 : vector<2x1xf32>
    %274 = vector.broadcast %266 : vector<2x1xf32> to vector<2x32xf32>
    %275 = arith.subf %260, %274 : vector<2x32xf32>
    %cst_67 = arith.constant 9.99999974E-6 : f32
    %276 = vector.broadcast %cst_67 : f32 to vector<2x1xf32>
    %277 = arith.addf %273, %276 : vector<2x1xf32>
    %278 = math.rsqrt %277 : vector<2x1xf32>
    %279 = vector.broadcast %278 : vector<2x1xf32> to vector<2x32xf32>
    %280 = arith.mulf %275, %279 : vector<2x32xf32>
    %281 = vector.broadcast %261 : vector<1x32xf32> to vector<2x32xf32>
    %282 = arith.mulf %280, %281 : vector<2x32xf32>
    %283 = vector.broadcast %262 : vector<1x32xf32> to vector<2x32xf32>
    %284 = arith.addf %282, %283 : vector<2x32xf32>
    %285 = vector.extract_strided_slice %15 {offsets = [0, 64], sizes = [2, 16], strides = [1, 1]} : vector<2x128xf32> to vector<2x16xf32>
    %286 = vector.extract_strided_slice %15 {offsets = [0, 80], sizes = [2, 16], strides = [1, 1]} : vector<2x128xf32> to vector<2x16xf32>
    %287 = vector.extract_strided_slice %285 {offsets = [0, 0], sizes = [2, 1], strides = [1, 1]} : vector<2x16xf32> to vector<2x1xf32>
    %288 = vector.broadcast %287 : vector<2x1xf32> to vector<2x32xf32>
    %289 = arith.mulf %288, %284 : vector<2x32xf32>
    %290 = vector.extract_strided_slice %285 {offsets = [0, 1], sizes = [2, 1], strides = [1, 1]} : vector<2x16xf32> to vector<2x1xf32>
    %291 = vector.broadcast %290 : vector<2x1xf32> to vector<2x32xf32>
    %292 = arith.mulf %291, %284 : vector<2x32xf32>
    %293 = vector.extract_strided_slice %285 {offsets = [0, 2], sizes = [2, 1], strides = [1, 1]} : vector<2x16xf32> to vector<2x1xf32>
    %294 = vector.broadcast %293 : vector<2x1xf32> to vector<2x32xf32>
    %295 = arith.mulf %294, %284 : vector<2x32xf32>
    %296 = vector.extract_strided_slice %285 {offsets = [0, 3], sizes = [2, 1], strides = [1, 1]} : vector<2x16xf32> to vector<2x1xf32>
    %297 = vector.broadcast %296 : vector<2x1xf32> to vector<2x32xf32>
    %298 = arith.mulf %297, %284 : vector<2x32xf32>
    %299 = vector.extract_strided_slice %285 {offsets = [0, 4], sizes = [2, 1], strides = [1, 1]} : vector<2x16xf32> to vector<2x1xf32>
    %300 = vector.broadcast %299 : vector<2x1xf32> to vector<2x32xf32>
    %301 = arith.mulf %300, %284 : vector<2x32xf32>
    %302 = vector.extract_strided_slice %285 {offsets = [0, 5], sizes = [2, 1], strides = [1, 1]} : vector<2x16xf32> to vector<2x1xf32>
    %303 = vector.broadcast %302 : vector<2x1xf32> to vector<2x32xf32>
    %304 = arith.mulf %303, %284 : vector<2x32xf32>
    %305 = vector.extract_strided_slice %285 {offsets = [0, 6], sizes = [2, 1], strides = [1, 1]} : vector<2x16xf32> to vector<2x1xf32>
    %306 = vector.broadcast %305 : vector<2x1xf32> to vector<2x32xf32>
    %307 = arith.mulf %306, %284 : vector<2x32xf32>
    %308 = vector.extract_strided_slice %285 {offsets = [0, 7], sizes = [2, 1], strides = [1, 1]} : vector<2x16xf32> to vector<2x1xf32>
    %309 = vector.broadcast %308 : vector<2x1xf32> to vector<2x32xf32>
    %310 = arith.mulf %309, %284 : vector<2x32xf32>
    %311 = vector.extract_strided_slice %285 {offsets = [0, 8], sizes = [2, 1], strides = [1, 1]} : vector<2x16xf32> to vector<2x1xf32>
    %312 = vector.broadcast %311 : vector<2x1xf32> to vector<2x32xf32>
    %313 = arith.mulf %312, %284 : vector<2x32xf32>
    %314 = vector.extract_strided_slice %285 {offsets = [0, 9], sizes = [2, 1], strides = [1, 1]} : vector<2x16xf32> to vector<2x1xf32>
    %315 = vector.broadcast %314 : vector<2x1xf32> to vector<2x32xf32>
    %316 = arith.mulf %315, %284 : vector<2x32xf32>
    %317 = vector.extract_strided_slice %285 {offsets = [0, 10], sizes = [2, 1], strides = [1, 1]} : vector<2x16xf32> to vector<2x1xf32>
    %318 = vector.broadcast %317 : vector<2x1xf32> to vector<2x32xf32>
    %319 = arith.mulf %318, %284 : vector<2x32xf32>
    %320 = vector.extract_strided_slice %285 {offsets = [0, 11], sizes = [2, 1], strides = [1, 1]} : vector<2x16xf32> to vector<2x1xf32>
    %321 = vector.broadcast %320 : vector<2x1xf32> to vector<2x32xf32>
    %322 = arith.mulf %321, %284 : vector<2x32xf32>
    %323 = vector.extract_strided_slice %285 {offsets = [0, 12], sizes = [2, 1], strides = [1, 1]} : vector<2x16xf32> to vector<2x1xf32>
    %324 = vector.broadcast %323 : vector<2x1xf32> to vector<2x32xf32>
    %325 = arith.mulf %324, %284 : vector<2x32xf32>
    %326 = vector.extract_strided_slice %285 {offsets = [0, 13], sizes = [2, 1], strides = [1, 1]} : vector<2x16xf32> to vector<2x1xf32>
    %327 = vector.broadcast %326 : vector<2x1xf32> to vector<2x32xf32>
    %328 = arith.mulf %327, %284 : vector<2x32xf32>
    %329 = vector.extract_strided_slice %285 {offsets = [0, 14], sizes = [2, 1], strides = [1, 1]} : vector<2x16xf32> to vector<2x1xf32>
    %330 = vector.broadcast %329 : vector<2x1xf32> to vector<2x32xf32>
    %331 = arith.mulf %330, %284 : vector<2x32xf32>
    %332 = vector.extract_strided_slice %285 {offsets = [0, 15], sizes = [2, 1], strides = [1, 1]} : vector<2x16xf32> to vector<2x1xf32>
    %333 = vector.broadcast %332 : vector<2x1xf32> to vector<2x32xf32>
    %334 = arith.mulf %333, %284 : vector<2x32xf32>
    %335 = tpu.concatenate %289, %292, %295, %298, %301, %304, %307, %310, %313, %316, %319, %322, %325, %328, %331, %334 in 1 : vector<2x32xf32>, vector<2x32xf32>, vector<2x32xf32>, vector<2x32xf32>, vector<2x32xf32>, vector<2x32xf32>, vector<2x32xf32>, vector<2x32xf32>, vector<2x32xf32>, vector<2x32xf32>, vector<2x32xf32>, vector<2x32xf32>, vector<2x32xf32>, vector<2x32xf32>, vector<2x32xf32>, vector<2x32xf32> -> vector<2x512xf32>
    %336 = tpu.concatenate %284, %286, %16 in 1 : vector<2x32xf32>, vector<2x16xf32>, vector<2x1xf32> -> vector<2x49xf32>
    %337 = tpu.concatenate %335, %336 in 1 : vector<2x512xf32>, vector<2x49xf32> -> vector<2x561xf32>
    %c0_68 = arith.constant 0 : index
    %c0_69 = arith.constant 0 : index
    %c0_70 = arith.constant 0 : index
    %338 = vector.load %arg13[%c0_68, %c0_69, %c0_70] : memref<1x561x256xf32, #tpu.memory_space<vmem>>, vector<1x561x256xf32>
    %339 = vector.shape_cast %338 : vector<1x561x256xf32> to vector<561x256xf32>
    %cst_71 = arith.constant dense<0.000000e+00> : vector<2x256xf32>
    %340 = tpu.matmul %337, %339, %cst_71 {dimension_numbers = #tpu.dot_dimension_numbers<[1], [0], [0], [1], [0, 0, 1, 1], [], []>} : vector<2x561xf32>, vector<561x256xf32>, vector<2x256xf32> -> vector<2x256xf32>
    %cst_72 = arith.constant 0.000000e+00 : f32
    %341 = vector.broadcast %cst_72 : f32 to vector<2x256xf32>
    %342 = arith.maximumf %340, %341 : vector<2x256xf32>
    %343 = vector.extract_strided_slice %15 {offsets = [0, 96], sizes = [2, 16], strides = [1, 1]} : vector<2x128xf32> to vector<2x16xf32>
    %344 = vector.extract_strided_slice %15 {offsets = [0, 112], sizes = [2, 16], strides = [1, 1]} : vector<2x128xf32> to vector<2x16xf32>
    %345 = vector.extract_strided_slice %343 {offsets = [0, 0], sizes = [2, 1], strides = [1, 1]} : vector<2x16xf32> to vector<2x1xf32>
    %346 = vector.broadcast %345 : vector<2x1xf32> to vector<2x256xf32>
    %347 = arith.mulf %346, %342 : vector<2x256xf32>
    %348 = vector.extract_strided_slice %343 {offsets = [0, 1], sizes = [2, 1], strides = [1, 1]} : vector<2x16xf32> to vector<2x1xf32>
    %349 = vector.broadcast %348 : vector<2x1xf32> to vector<2x256xf32>
    %350 = arith.mulf %349, %342 : vector<2x256xf32>
    %351 = vector.extract_strided_slice %343 {offsets = [0, 2], sizes = [2, 1], strides = [1, 1]} : vector<2x16xf32> to vector<2x1xf32>
    %352 = vector.broadcast %351 : vector<2x1xf32> to vector<2x256xf32>
    %353 = arith.mulf %352, %342 : vector<2x256xf32>
    %354 = vector.extract_strided_slice %343 {offsets = [0, 3], sizes = [2, 1], strides = [1, 1]} : vector<2x16xf32> to vector<2x1xf32>
    %355 = vector.broadcast %354 : vector<2x1xf32> to vector<2x256xf32>
    %356 = arith.mulf %355, %342 : vector<2x256xf32>
    %357 = vector.extract_strided_slice %343 {offsets = [0, 4], sizes = [2, 1], strides = [1, 1]} : vector<2x16xf32> to vector<2x1xf32>
    %358 = vector.broadcast %357 : vector<2x1xf32> to vector<2x256xf32>
    %359 = arith.mulf %358, %342 : vector<2x256xf32>
    %360 = vector.extract_strided_slice %343 {offsets = [0, 5], sizes = [2, 1], strides = [1, 1]} : vector<2x16xf32> to vector<2x1xf32>
    %361 = vector.broadcast %360 : vector<2x1xf32> to vector<2x256xf32>
    %362 = arith.mulf %361, %342 : vector<2x256xf32>
    %363 = vector.extract_strided_slice %343 {offsets = [0, 6], sizes = [2, 1], strides = [1, 1]} : vector<2x16xf32> to vector<2x1xf32>
    %364 = vector.broadcast %363 : vector<2x1xf32> to vector<2x256xf32>
    %365 = arith.mulf %364, %342 : vector<2x256xf32>
    %366 = vector.extract_strided_slice %343 {offsets = [0, 7], sizes = [2, 1], strides = [1, 1]} : vector<2x16xf32> to vector<2x1xf32>
    %367 = vector.broadcast %366 : vector<2x1xf32> to vector<2x256xf32>
    %368 = arith.mulf %367, %342 : vector<2x256xf32>
    %369 = vector.extract_strided_slice %343 {offsets = [0, 8], sizes = [2, 1], strides = [1, 1]} : vector<2x16xf32> to vector<2x1xf32>
    %370 = vector.broadcast %369 : vector<2x1xf32> to vector<2x256xf32>
    %371 = arith.mulf %370, %342 : vector<2x256xf32>
    %372 = vector.extract_strided_slice %343 {offsets = [0, 9], sizes = [2, 1], strides = [1, 1]} : vector<2x16xf32> to vector<2x1xf32>
    %373 = vector.broadcast %372 : vector<2x1xf32> to vector<2x256xf32>
    %374 = arith.mulf %373, %342 : vector<2x256xf32>
    %375 = vector.extract_strided_slice %343 {offsets = [0, 10], sizes = [2, 1], strides = [1, 1]} : vector<2x16xf32> to vector<2x1xf32>
    %376 = vector.broadcast %375 : vector<2x1xf32> to vector<2x256xf32>
    %377 = arith.mulf %376, %342 : vector<2x256xf32>
    %378 = vector.extract_strided_slice %343 {offsets = [0, 11], sizes = [2, 1], strides = [1, 1]} : vector<2x16xf32> to vector<2x1xf32>
    %379 = vector.broadcast %378 : vector<2x1xf32> to vector<2x256xf32>
    %380 = arith.mulf %379, %342 : vector<2x256xf32>
    %381 = vector.extract_strided_slice %343 {offsets = [0, 12], sizes = [2, 1], strides = [1, 1]} : vector<2x16xf32> to vector<2x1xf32>
    %382 = vector.broadcast %381 : vector<2x1xf32> to vector<2x256xf32>
    %383 = arith.mulf %382, %342 : vector<2x256xf32>
    %384 = vector.extract_strided_slice %343 {offsets = [0, 13], sizes = [2, 1], strides = [1, 1]} : vector<2x16xf32> to vector<2x1xf32>
    %385 = vector.broadcast %384 : vector<2x1xf32> to vector<2x256xf32>
    %386 = arith.mulf %385, %342 : vector<2x256xf32>
    %387 = vector.extract_strided_slice %343 {offsets = [0, 14], sizes = [2, 1], strides = [1, 1]} : vector<2x16xf32> to vector<2x1xf32>
    %388 = vector.broadcast %387 : vector<2x1xf32> to vector<2x256xf32>
    %389 = arith.mulf %388, %342 : vector<2x256xf32>
    %390 = vector.extract_strided_slice %343 {offsets = [0, 15], sizes = [2, 1], strides = [1, 1]} : vector<2x16xf32> to vector<2x1xf32>
    %391 = vector.broadcast %390 : vector<2x1xf32> to vector<2x256xf32>
    %392 = arith.mulf %391, %342 : vector<2x256xf32>
    %393 = tpu.concatenate %347, %350, %353, %356, %359, %362, %365, %368, %371, %374, %377, %380, %383, %386, %389, %392 in 1 : vector<2x256xf32>, vector<2x256xf32>, vector<2x256xf32>, vector<2x256xf32>, vector<2x256xf32>, vector<2x256xf32>, vector<2x256xf32>, vector<2x256xf32>, vector<2x256xf32>, vector<2x256xf32>, vector<2x256xf32>, vector<2x256xf32>, vector<2x256xf32>, vector<2x256xf32>, vector<2x256xf32>, vector<2x256xf32> -> vector<2x4096xf32>
    %394 = tpu.concatenate %342, %344, %16 in 1 : vector<2x256xf32>, vector<2x16xf32>, vector<2x1xf32> -> vector<2x273xf32>
    %395 = tpu.concatenate %393, %394 in 1 : vector<2x4096xf32>, vector<2x273xf32> -> vector<2x4369xf32>
    %c0_73 = arith.constant 0 : index
    %c0_74 = arith.constant 0 : index
    %c0_75 = arith.constant 0 : index
    %396 = vector.load %arg14[%c0_73, %c0_74, %c0_75] : memref<1x4369x32xf32, #tpu.memory_space<vmem>>, vector<1x4369x32xf32>
    %397 = vector.shape_cast %396 : vector<1x4369x32xf32> to vector<4369x32xf32>
    %cst_76 = arith.constant dense<0.000000e+00> : vector<2x32xf32>
    %398 = tpu.matmul %395, %397, %cst_76 {dimension_numbers = #tpu.dot_dimension_numbers<[1], [0], [0], [1], [0, 0, 1, 1], [], []>} : vector<2x4369xf32>, vector<4369x32xf32>, vector<2x32xf32> -> vector<2x32xf32>
    %399 = arith.addf %398, %284 : vector<2x32xf32>
    %400 = vector.extract_strided_slice %6 {offsets = [4, 0], sizes = [1, 32], strides = [1, 1]} : vector<6x32xf32> to vector<1x32xf32>
    %401 = vector.extract_strided_slice %6 {offsets = [5, 0], sizes = [1, 32], strides = [1, 1]} : vector<6x32xf32> to vector<1x32xf32>
    %cst_77 = arith.constant dense<0.000000e+00> : vector<2xf32>
    %402 = vector.multi_reduction <add>, %399, %cst_77 [1] : vector<2x32xf32> to vector<2xf32>
    %403 = vector.shape_cast %402 : vector<2xf32> to vector<2x1xf32>
    %cst_78 = arith.constant 3.200000e+01 : f32
    %404 = vector.broadcast %cst_78 : f32 to vector<2x1xf32>
    %405 = arith.divf %403, %404 : vector<2x1xf32>
    %406 = vector.broadcast %405 : vector<2x1xf32> to vector<2x32xf32>
    %407 = arith.subf %399, %406 : vector<2x32xf32>
    %408 = arith.mulf %407, %407 : vector<2x32xf32>
    %cst_79 = arith.constant dense<0.000000e+00> : vector<2xf32>
    %409 = vector.multi_reduction <add>, %408, %cst_79 [1] : vector<2x32xf32> to vector<2xf32>
    %410 = vector.shape_cast %409 : vector<2xf32> to vector<2x1xf32>
    %cst_80 = arith.constant 3.200000e+01 : f32
    %411 = vector.broadcast %cst_80 : f32 to vector<2x1xf32>
    %412 = arith.divf %410, %411 : vector<2x1xf32>
    %413 = vector.broadcast %405 : vector<2x1xf32> to vector<2x32xf32>
    %414 = arith.subf %399, %413 : vector<2x32xf32>
    %cst_81 = arith.constant 9.99999974E-6 : f32
    %415 = vector.broadcast %cst_81 : f32 to vector<2x1xf32>
    %416 = arith.addf %412, %415 : vector<2x1xf32>
    %417 = math.rsqrt %416 : vector<2x1xf32>
    %418 = vector.broadcast %417 : vector<2x1xf32> to vector<2x32xf32>
    %419 = arith.mulf %414, %418 : vector<2x32xf32>
    %420 = vector.broadcast %400 : vector<1x32xf32> to vector<2x32xf32>
    %421 = arith.mulf %419, %420 : vector<2x32xf32>
    %422 = vector.broadcast %401 : vector<1x32xf32> to vector<2x32xf32>
    %423 = arith.addf %421, %422 : vector<2x32xf32>
    %c0_82 = arith.constant 0 : index
    %c0_83 = arith.constant 0 : index
    %424 = vector.load %arg19[%c0_82, %c0_83] : memref<2x32xf32, #tpu.memory_space<vmem>>, vector<2x32xf32>
    tpu.vector_store %arg19[%c0_82, %c0_83], %423 {strides = array<i32>} : memref<2x32xf32, #tpu.memory_space<vmem>>, vector<2x32xf32>,
    %c1_i32 = arith.constant 1 : i32
    %425 = arith.cmpi eq, %arg0, %c1_i32 : i32
    %426 = arith.extui %425 : i1 to i32
    %c0_i32_84 = arith.constant 0 : i32
    %427 = arith.cmpi ne, %426, %c0_i32_84 : i32
    scf.if %427 {
      %428 = tpu.concatenate %182, %205, %228, %251 in 1 : vector<2x8xf32>, vector<2x8xf32>, vector<2x8xf32>, vector<2x8xf32> -> vector<2x32xf32>
      %c0_85 = arith.constant 0 : index
      %c0_86 = arith.constant 0 : index
      %429 = vector.load %arg20[%c0_85, %c0_86] : memref<2x32xf32, #tpu.memory_space<vmem>>, vector<2x32xf32>
      tpu.vector_store %arg20[%c0_85, %c0_86], %428 {strides = array<i32>} : memref<2x32xf32, #tpu.memory_space<vmem>>, vector<2x32xf32>,
    } else {
    }
    return
  }
  func.func @transform_0(%arg0: i32) -> (i32, i32) {
    %c0_i32 = arith.constant 0 : i32
    %c0_i32_0 = arith.constant 0 : i32
    %c0_i32_1 = arith.constant 0 : i32
    return %c0_i32, %c0_i32_0 : i32, i32
  }
  func.func @transform_1(%arg0: i32) -> (i32, i32) {
    %c0_i32 = arith.constant 0 : i32
    %c0_i32_0 = arith.constant 0 : i32
    %c0_i32_1 = arith.constant 0 : i32
    return %c0_i32, %c0_i32_0 : i32, i32
  }
  func.func @transform_2(%arg0: i32) -> (i32, i32) {
    %c0_i32 = arith.constant 0 : i32
    %c0_i32_0 = arith.constant 0 : i32
    %c0_i32_1 = arith.constant 0 : i32
    return %c0_i32, %c0_i32_0 : i32, i32
  }
  func.func @transform_3(%arg0: i32) -> (i32, i32) {
    %c0_i32 = arith.constant 0 : i32
    %c0_i32_0 = arith.constant 0 : i32
    %c0_i32_1 = arith.constant 0 : i32
    return %c0_i32, %c0_i32_0 : i32, i32
  }
  func.func @transform_4(%arg0: i32) -> (i32, i32) {
    %c0_i32 = arith.constant 0 : i32
    %c0_i32_0 = arith.constant 0 : i32
    %c0_i32_1 = arith.constant 0 : i32
    return %c0_i32, %c0_i32_0 : i32, i32
  }
  func.func @transform_5(%arg0: i32) -> (i32, i32) {
    %c0_i32 = arith.constant 0 : i32
    %c0_i32_0 = arith.constant 0 : i32
    %c0_i32_1 = arith.constant 0 : i32
    return %c0_i32, %c0_i32_0 : i32, i32
  }
  func.func @transform_6(%arg0: i32) -> (i32, i32) {
    %c0_i32 = arith.constant 0 : i32
    %c0_i32_0 = arith.constant 0 : i32
    %c0_i32_1 = arith.constant 0 : i32
    return %c0_i32, %c0_i32_0 : i32, i32
  }
  func.func @transform_7(%arg0: i32) -> (i32, i32) {
    %c0_i32 = arith.constant 0 : i32
    %c0_i32_0 = arith.constant 0 : i32
    %c0_i32_1 = arith.constant 0 : i32
    return %c0_i32, %c0_i32_0 : i32, i32
  }
  func.func @transform_8(%arg0: i32) -> (i32, i32, i32) {
    %c0_i32 = arith.constant 0 : i32
    %c0_i32_0 = arith.constant 0 : i32
    %c0_i32_1 = arith.constant 0 : i32
    return %arg0, %c0_i32, %c0_i32_0 : i32, i32, i32
  }
  func.func @transform_9(%arg0: i32) -> (i32, i32, i32) {
    %c0_i32 = arith.constant 0 : i32
    %c0_i32_0 = arith.constant 0 : i32
    %c0_i32_1 = arith.constant 0 : i32
    return %arg0, %c0_i32, %c0_i32_0 : i32, i32, i32
  }
  func.func @transform_10(%arg0: i32) -> (i32, i32, i32) {
    %c0_i32 = arith.constant 0 : i32
    %c0_i32_0 = arith.constant 0 : i32
    %c0_i32_1 = arith.constant 0 : i32
    return %arg0, %c0_i32, %c0_i32_0 : i32, i32, i32
  }
  func.func @transform_11(%arg0: i32) -> (i32, i32, i32) {
    %c0_i32 = arith.constant 0 : i32
    %c0_i32_0 = arith.constant 0 : i32
    %c0_i32_1 = arith.constant 0 : i32
    return %arg0, %c0_i32, %c0_i32_0 : i32, i32, i32
  }
  func.func @transform_12(%arg0: i32) -> (i32, i32, i32) {
    %c0_i32 = arith.constant 0 : i32
    %c0_i32_0 = arith.constant 0 : i32
    %c0_i32_1 = arith.constant 0 : i32
    return %arg0, %c0_i32, %c0_i32_0 : i32, i32, i32
  }
  func.func @transform_13(%arg0: i32) -> (i32, i32, i32) {
    %c0_i32 = arith.constant 0 : i32
    %c0_i32_0 = arith.constant 0 : i32
    %c0_i32_1 = arith.constant 0 : i32
    return %arg0, %c0_i32, %c0_i32_0 : i32, i32, i32
  }
  func.func @transform_14(%arg0: i32) -> (i32, i32, i32) {
    %c0_i32 = arith.constant 0 : i32
    %c0_i32_0 = arith.constant 0 : i32
    %c0_i32_1 = arith.constant 0 : i32
    return %arg0, %c0_i32, %c0_i32_0 : i32, i32, i32
  }
  func.func @transform_15(%arg0: i32) -> (i32, i32, i32) {
    %c0_i32 = arith.constant 0 : i32
    %c0_i32_0 = arith.constant 0 : i32
    %c0_i32_1 = arith.constant 0 : i32
    return %arg0, %c0_i32, %c0_i32_0 : i32, i32, i32
  }
  func.func @transform_16(%arg0: i32) -> (i32, i32, i32) {
    %c0_i32 = arith.constant 0 : i32
    %c0_i32_0 = arith.constant 0 : i32
    %c0_i32_1 = arith.constant 0 : i32
    return %arg0, %c0_i32, %c0_i32_0 : i32, i32, i32
  }
  func.func @transform_17(%arg0: i32) -> (i32, i32, i32) {
    %c0_i32 = arith.constant 0 : i32
    %c0_i32_0 = arith.constant 0 : i32
    %c0_i32_1 = arith.constant 0 : i32
    return %arg0, %c0_i32, %c0_i32_0 : i32, i32, i32
  }
  func.func @transform_18(%arg0: i32) -> (i32, i32) {
    %c0_i32 = arith.constant 0 : i32
    %c0_i32_0 = arith.constant 0 : i32
    %c0_i32_1 = arith.constant 0 : i32
    return %c0_i32, %c0_i32_0 : i32, i32
  }
  func.func @transform_19(%arg0: i32) -> (i32, i32) {
    %c0_i32 = arith.constant 0 : i32
    %c0_i32_0 = arith.constant 0 : i32
    %c0_i32_1 = arith.constant 0 : i32
    return %c0_i32, %c0_i32_0 : i32, i32
  }
}

</mosaic_0001>

<llo_original>
// kernel: transformer_decoder_fwd.1
$region0: #{transformer_decoder_fwd.1}
  #allocation0 [shape = 'u32[]', space=smem, size = 0x4, offset = 0x4, fixed_abs, tag = 'smem constant byte address 0x4 - core index']
  #allocation1 [shape = 'u32[144,128]{1,0:T(1,128)}', space=vmem, size = 0x12000, scoped, tag = 'internal scratch']
  %s0 = inlined_call_operand.vmem [shape: f32[2,32], index: 0, kind: input, shape index: {}]
  %s1 = inlined_call_operand.vmem [shape: f32[2,32], index: 1, kind: input, shape index: {}]
  %s2 = inlined_call_operand.vmem [shape: f32[2,32], index: 2, kind: input, shape index: {}]
  %s3 = inlined_call_operand.vmem [shape: f32[16,16], index: 3, kind: input, shape index: {}]
  %s4 = inlined_call_operand.vmem [shape: f32[32,64], index: 4, kind: input, shape index: {}]
  %s5 = inlined_call_operand.vmem [shape: f32[1,64], index: 5, kind: input, shape index: {}]
  %s6 = inlined_call_operand.vmem [shape: f32[64,64], index: 6, kind: input, shape index: {}]
  %s7 = inlined_call_operand.vmem [shape: f32[1,64], index: 7, kind: input, shape index: {}]
  %s8 = inlined_call_operand.vmem [shape: f32[2,32,128], index: 8, kind: input, shape index: {}]
  %s9 = inlined_call_operand.vmem [shape: f32[2,1,128], index: 9, kind: input, shape index: {}]
  %s10 = inlined_call_operand.vmem [shape: f32[2,561,256], index: 10, kind: input, shape index: {}]
  %s11 = inlined_call_operand.vmem [shape: f32[2,4369,32], index: 11, kind: input, shape index: {}]
  %s12 = inlined_call_operand.vmem [shape: f32[2,561,256], index: 12, kind: input, shape index: {}]
  %s13 = inlined_call_operand.vmem [shape: f32[2,4369,32], index: 13, kind: input, shape index: {}]
  %s14 = inlined_call_operand.vmem [shape: f32[2,32,32], index: 14, kind: input, shape index: {}]
  %s15 = inlined_call_operand.vmem [shape: f32[2,16,64], index: 15, kind: input, shape index: {}]
  %s16 = inlined_call_operand.vmem [shape: f32[2,32,32], index: 16, kind: input, shape index: {}]
  %s17 = inlined_call_operand.vmem [shape: f32[2,6,32], index: 17, kind: input, shape index: {}]
  %s18 = inlined_call_operand.hbm [shape: f32[2,32], index: 18, kind: output, shape index: {0}]
  %s19 = inlined_call_operand.vmem [shape: f32[2,32], index: 19, kind: output, shape index: {1}]
  %20 = xla_tuple %s18, %s19
  %s21 = sld [smem:[#allocation0]]
  $region121: #{transformer_decoder_fwd.1} parent=0
    _
  %s23 = ssub.s32 1, %s21
  %s24 = scalar_select 0, %s23, %s21
  $region1: #{transformer_decoder_fwd.1} parent=0
    #allocation2 [shape = 'u8[1024]{0}', space=vmem, size = 0x400, scoped, tag = 'output window, operand 0, single buffered']
    #allocation3 [shape = 's32[2]{0}', space=sflag, size = 0x8, scoped, tag = 'scoped memory for transformer_decoder_fwd.1']
    %25 = vsyncpa [#allocation3], 0
    loop: start=0, step=1, limit=4
    $region2: #{transformer_decoder_fwd.1} parent=1 // loop_pre_header
      _
    $region3: #{transformer_decoder_fwd.1} parent=1 // loop_header
      %s27 = sphi 0, %s31
      %p28 = scmp.ge.s32.totalorder %s27, 4
      %s35 = sphi 0, %s35
      %s37 = sphi 0, %s35
      %s38 = sphi 0, %s37
      %s52 = sphi 0, %s38
      %s56 = sphi 0, %s56
      %s58 = sphi 0, %s56
      %s59 = sphi 0, %s58
      %s73 = sphi 0, %s59
      %s77 = sphi 0, %s77
      %s79 = sphi 0, %s77
      %s80 = sphi 0, %s79
      %s94 = sphi 0, %s80
      %s98 = sphi 0, %s98
      %s100 = sphi 0, %s98
      %s101 = sphi 0, %s100
      %s115 = sphi 0, %s101
      %s119 = sphi 0, %s119
      %s121 = sphi 0, %s119
      %s122 = sphi 0, %s121
      %s136 = sphi 0, %s122
      %s140 = sphi 0, %s140
      %s142 = sphi 0, %s140
      %s143 = sphi 0, %s142
      %s157 = sphi 0, %s143
      %s161 = sphi 0, %s161
      %s163 = sphi 0, %s161
      %s164 = sphi 0, %s163
      %s178 = sphi 0, %s164
      %s182 = sphi 0, %s182
      %s184 = sphi 0, %s182
      %s185 = sphi 0, %s184
      %s199 = sphi 0, %s185
      %s205 = sphi 0, %s207
      %s208 = sphi 0, %s205
      %s209 = sphi 0, %s208
      %s225 = sphi 0, %s209
      %s231 = sphi 0, %s233
      %s234 = sphi 0, %s231
      %s235 = sphi 0, %s234
      %s251 = sphi 0, %s235
      %s257 = sphi 0, %s259
      %s260 = sphi 0, %s257
      %s261 = sphi 0, %s260
      %s277 = sphi 0, %s261
      %s283 = sphi 0, %s285
      %s286 = sphi 0, %s283
      %s287 = sphi 0, %s286
      %s303 = sphi 0, %s287
      %s309 = sphi 0, %s311
      %s312 = sphi 0, %s309
      %s313 = sphi 0, %s312
      %s329 = sphi 0, %s313
      %s335 = sphi 0, %s337
      %s338 = sphi 0, %s335
      %s339 = sphi 0, %s338
      %s355 = sphi 0, %s339
      %s361 = sphi 0, %s363
      %s364 = sphi 0, %s361
      %s365 = sphi 0, %s364
      %s381 = sphi 0, %s365
      %s387 = sphi 0, %s389
      %s390 = sphi 0, %s387
      %s391 = sphi 0, %s390
      %s407 = sphi 0, %s391
      %s413 = sphi 0, %s415
      %s416 = sphi 0, %s413
      %s417 = sphi 0, %s416
      %s433 = sphi 0, %s417
      %s439 = sphi 0, %s441
      %s442 = sphi 0, %s439
      %s443 = sphi 0, %s442
      %s459 = sphi 0, %s443
      %s463 = sphi 0, %s463
      %s465 = sphi 0, %s463
      %s466 = sphi 0, %s465
      %s480 = sphi 0, %s466
      %s484 = sphi 0, %s484
      %s486 = sphi 0, %s484
      %s487 = sphi 0, %s486
      %s501 = sphi 0, %s487
    $region4: #{transformer_decoder_fwd.1} parent=1 // loop_header_branch
      %30 = sbr.rel (%p28) target = $region8
    $region5: #{transformer_decoder_fwd.1} parent=1 // loop_body
      %s32 = ssub.s32 %s27, 1
      %s33 = ssub.s32 %s27, 2
      %s34 = sadd.s32 %s27, 1
      %s36 = sadd.s32 %s35, 1
      %p39 = scmp.eq.s32.totalorder %s27, 1
      %p40 = scmp.ne.s32.totalorder %s35, %s37
      %p41 = scmp.eq.s32.totalorder %s27, 0
      %p42 = por %p40, %p41
      %p43 = scmp.ne.s32.totalorder %s35, %s37
      %p44 = scmp.eq.s32.totalorder %s32, 1
      %p45 = por %p43, %p44
      %p46 = scmp.ne.s32.totalorder %s37, %s38
      %p47 = scmp.eq.s32.totalorder %s32, 0
      %p48 = por %p46, %p47
      %p49 = scmp.ne.s32.totalorder %s37, %s38
      %p50 = scmp.eq.s32.totalorder %s33, 1
      %p51 = por %p49, %p50
      %p53 = scmp.ne.s32.totalorder %s38, %s52
      %p54 = scmp.eq.s32.totalorder %s33, 0
      %p55 = por %p53, %p54
      %s57 = sadd.s32 %s56, 1
      %p60 = scmp.eq.s32.totalorder %s27, 1
      %p61 = scmp.ne.s32.totalorder %s56, %s58
      %p62 = scmp.eq.s32.totalorder %s27, 0
      %p63 = por %p61, %p62
      %p64 = scmp.ne.s32.totalorder %s56, %s58
      %p65 = scmp.eq.s32.totalorder %s32, 1
      %p66 = por %p64, %p65
      %p67 = scmp.ne.s32.totalorder %s58, %s59
      %p68 = scmp.eq.s32.totalorder %s32, 0
      %p69 = por %p67, %p68
      %p70 = scmp.ne.s32.totalorder %s58, %s59
      %p71 = scmp.eq.s32.totalorder %s33, 1
      %p72 = por %p70, %p71
      %p74 = scmp.ne.s32.totalorder %s59, %s73
      %p75 = scmp.eq.s32.totalorder %s33, 0
      %p76 = por %p74, %p75
      %s78 = sadd.s32 %s77, 1
      %p81 = scmp.eq.s32.totalorder %s27, 1
      %p82 = scmp.ne.s32.totalorder %s77, %s79
      %p83 = scmp.eq.s32.totalorder %s27, 0
      %p84 = por %p82, %p83
      %p85 = scmp.ne.s32.totalorder %s77, %s79
      %p86 = scmp.eq.s32.totalorder %s32, 1
      %p87 = por %p85, %p86
      %p88 = scmp.ne.s32.totalorder %s79, %s80
      %p89 = scmp.eq.s32.totalorder %s32, 0
      %p90 = por %p88, %p89
      %p91 = scmp.ne.s32.totalorder %s79, %s80
      %p92 = scmp.eq.s32.totalorder %s33, 1
      %p93 = por %p91, %p92
      %p95 = scmp.ne.s32.totalorder %s80, %s94
      %p96 = scmp.eq.s32.totalorder %s33, 0
      %p97 = por %p95, %p96
      %s99 = sadd.s32 %s98, 1
      %p102 = scmp.eq.s32.totalorder %s27, 1
      %p103 = scmp.ne.s32.totalorder %s98, %s100
      %p104 = scmp.eq.s32.totalorder %s27, 0
      %p105 = por %p103, %p104
      %p106 = scmp.ne.s32.totalorder %s98, %s100
      %p107 = scmp.eq.s32.totalorder %s32, 1
      %p108 = por %p106, %p107
      %p109 = scmp.ne.s32.totalorder %s100, %s101
      %p110 = scmp.eq.s32.totalorder %s32, 0
      %p111 = por %p109, %p110
      %p112 = scmp.ne.s32.totalorder %s100, %s101
      %p113 = scmp.eq.s32.totalorder %s33, 1
      %p114 = por %p112, %p113
      %p116 = scmp.ne.s32.totalorder %s101, %s115
      %p117 = scmp.eq.s32.totalorder %s33, 0
      %p118 = por %p116, %p117
      %s120 = sadd.s32 %s119, 1
      %p123 = scmp.eq.s32.totalorder %s27, 1
      %p124 = scmp.ne.s32.totalorder %s119, %s121
      %p125 = scmp.eq.s32.totalorder %s27, 0
      %p126 = por %p124, %p125
      %p127 = scmp.ne.s32.totalorder %s119, %s121
      %p128 = scmp.eq.s32.totalorder %s32, 1
      %p129 = por %p127, %p128
      %p130 = scmp.ne.s32.totalorder %s121, %s122
      %p131 = scmp.eq.s32.totalorder %s32, 0
      %p132 = por %p130, %p131
      %p133 = scmp.ne.s32.totalorder %s121, %s122
      %p134 = scmp.eq.s32.totalorder %s33, 1
      %p135 = por %p133, %p134
      %p137 = scmp.ne.s32.totalorder %s122, %s136
      %p138 = scmp.eq.s32.totalorder %s33, 0
      %p139 = por %p137, %p138
      %s141 = sadd.s32 %s140, 1
      %p144 = scmp.eq.s32.totalorder %s27, 1
      %p145 = scmp.ne.s32.totalorder %s140, %s142
      %p146 = scmp.eq.s32.totalorder %s27, 0
      %p147 = por %p145, %p146
      %p148 = scmp.ne.s32.totalorder %s140, %s142
      %p149 = scmp.eq.s32.totalorder %s32, 1
      %p150 = por %p148, %p149
      %p151 = scmp.ne.s32.totalorder %s142, %s143
      %p152 = scmp.eq.s32.totalorder %s32, 0
      %p153 = por %p151, %p152
      %p154 = scmp.ne.s32.totalorder %s142, %s143
      %p155 = scmp.eq.s32.totalorder %s33, 1
      %p156 = por %p154, %p155
      %p158 = scmp.ne.s32.totalorder %s143, %s157
      %p159 = scmp.eq.s32.totalorder %s33, 0
      %p160 = por %p158, %p159
      %s162 = sadd.s32 %s161, 1
      %p165 = scmp.eq.s32.totalorder %s27, 1
      %p166 = scmp.ne.s32.totalorder %s161, %s163
      %p167 = scmp.eq.s32.totalorder %s27, 0
      %p168 = por %p166, %p167
      %p169 = scmp.ne.s32.totalorder %s161, %s163
      %p170 = scmp.eq.s32.totalorder %s32, 1
      %p171 = por %p169, %p170
      %p172 = scmp.ne.s32.totalorder %s163, %s164
      %p173 = scmp.eq.s32.totalorder %s32, 0
      %p174 = por %p172, %p173
      %p175 = scmp.ne.s32.totalorder %s163, %s164
      %p176 = scmp.eq.s32.totalorder %s33, 1
      %p177 = por %p175, %p176
      %p179 = scmp.ne.s32.totalorder %s164, %s178
      %p180 = scmp.eq.s32.totalorder %s33, 0
      %p181 = por %p179, %p180
      %s183 = sadd.s32 %s182, 1
      %p186 = scmp.eq.s32.totalorder %s27, 1
      %p187 = scmp.ne.s32.totalorder %s182, %s184
      %p188 = scmp.eq.s32.totalorder %s27, 0
      %p189 = por %p187, %p188
      %p190 = scmp.ne.s32.totalorder %s182, %s184
      %p191 = scmp.eq.s32.totalorder %s32, 1
      %p192 = por %p190, %p191
      %p193 = scmp.ne.s32.totalorder %s184, %s185
      %p194 = scmp.eq.s32.totalorder %s32, 0
      %p195 = por %p193, %p194
      %p196 = scmp.ne.s32.totalorder %s184, %s185
      %p197 = scmp.eq.s32.totalorder %s33, 1
      %p198 = por %p196, %p197
      %p200 = scmp.ne.s32.totalorder %s185, %s199
      %p201 = scmp.eq.s32.totalorder %s33, 0
      %p202 = por %p200, %p201
      %s203 = ssub.s32 %s27, %s34
      %p204 = scmp.eq.s32.totalorder %s203, 0
      %s206 = sadd.s32 %s205, 1
      %s207 = scalar_select %p204, %s205, %s206
      %p210 = pneg %p204
      %p211 = scmp.eq.s32.totalorder %s27, 1
      %p212 = por %p210, %p211
      %p213 = scmp.ne.s32.totalorder %s205, %s208
      %p214 = scmp.eq.s32.totalorder %s27, 0
      %p215 = por %p213, %p214
      %p216 = scmp.ne.s32.totalorder %s205, %s208
      %p217 = scmp.eq.s32.totalorder %s32, 1
      %p218 = por %p216, %p217
      %p219 = scmp.ne.s32.totalorder %s208, %s209
      %p220 = scmp.eq.s32.totalorder %s32, 0
      %p221 = por %p219, %p220
      %p222 = scmp.ne.s32.totalorder %s208, %s209
      %p223 = scmp.eq.s32.totalorder %s33, 1
      %p224 = por %p222, %p223
      %p226 = scmp.ne.s32.totalorder %s209, %s225
      %p227 = scmp.eq.s32.totalorder %s33, 0
      %p228 = por %p226, %p227
      %s229 = ssub.s32 %s27, %s34
      %p230 = scmp.eq.s32.totalorder %s229, 0
      %s232 = sadd.s32 %s231, 1
      %s233 = scalar_select %p230, %s231, %s232
      %p236 = pneg %p230
      %p237 = scmp.eq.s32.totalorder %s27, 1
      %p238 = por %p236, %p237
      %p239 = scmp.ne.s32.totalorder %s231, %s234
      %p240 = scmp.eq.s32.totalorder %s27, 0
      %p241 = por %p239, %p240
      %p242 = scmp.ne.s32.totalorder %s231, %s234
      %p243 = scmp.eq.s32.totalorder %s32, 1
      %p244 = por %p242, %p243
      %p245 = scmp.ne.s32.totalorder %s234, %s235
      %p246 = scmp.eq.s32.totalorder %s32, 0
      %p247 = por %p245, %p246
      %p248 = scmp.ne.s32.totalorder %s234, %s235
      %p249 = scmp.eq.s32.totalorder %s33, 1
      %p250 = por %p248, %p249
      %p252 = scmp.ne.s32.totalorder %s235, %s251
      %p253 = scmp.eq.s32.totalorder %s33, 0
      %p254 = por %p252, %p253
      %s255 = ssub.s32 %s27, %s34
      %p256 = scmp.eq.s32.totalorder %s255, 0
      %s258 = sadd.s32 %s257, 1
      %s259 = scalar_select %p256, %s257, %s258
      %p262 = pneg %p256
      %p263 = scmp.eq.s32.totalorder %s27, 1
      %p264 = por %p262, %p263
      %p265 = scmp.ne.s32.totalorder %s257, %s260
      %p266 = scmp.eq.s32.totalorder %s27, 0
      %p267 = por %p265, %p266
      %p268 = scmp.ne.s32.totalorder %s257, %s260
      %p269 = scmp.eq.s32.totalorder %s32, 1
      %p270 = por %p268, %p269
      %p271 = scmp.ne.s32.totalorder %s260, %s261
      %p272 = scmp.eq.s32.totalorder %s32, 0
      %p273 = por %p271, %p272
      %p274 = scmp.ne.s32.totalorder %s260, %s261
      %p275 = scmp.eq.s32.totalorder %s33, 1
      %p276 = por %p274, %p275
      %p278 = scmp.ne.s32.totalorder %s261, %s277
      %p279 = scmp.eq.s32.totalorder %s33, 0
      %p280 = por %p278, %p279
      %s281 = ssub.s32 %s27, %s34
      %p282 = scmp.eq.s32.totalorder %s281, 0
      %s284 = sadd.s32 %s283, 1
      %s285 = scalar_select %p282, %s283, %s284
      %p288 = pneg %p282
      %p289 = scmp.eq.s32.totalorder %s27, 1
      %p290 = por %p288, %p289
      %p291 = scmp.ne.s32.totalorder %s283, %s286
      %p292 = scmp.eq.s32.totalorder %s27, 0
      %p293 = por %p291, %p292
      %p294 = scmp.ne.s32.totalorder %s283, %s286
      %p295 = scmp.eq.s32.totalorder %s32, 1
      %p296 = por %p294, %p295
      %p297 = scmp.ne.s32.totalorder %s286, %s287
      %p298 = scmp.eq.s32.totalorder %s32, 0
      %p299 = por %p297, %p298
      %p300 = scmp.ne.s32.totalorder %s286, %s287
      %p301 = scmp.eq.s32.totalorder %s33, 1
      %p302 = por %p300, %p301
      %p304 = scmp.ne.s32.totalorder %s287, %s303
      %p305 = scmp.eq.s32.totalorder %s33, 0
      %p306 = por %p304, %p305
      %s307 = ssub.s32 %s27, %s34
      %p308 = scmp.eq.s32.totalorder %s307, 0
      %s310 = sadd.s32 %s309, 1
      %s311 = scalar_select %p308, %s309, %s310
      %p314 = pneg %p308
      %p315 = scmp.eq.s32.totalorder %s27, 1
      %p316 = por %p314, %p315
      %p317 = scmp.ne.s32.totalorder %s309, %s312
      %p318 = scmp.eq.s32.totalorder %s27, 0
      %p319 = por %p317, %p318
      %p320 = scmp.ne.s32.totalorder %s309, %s312
      %p321 = scmp.eq.s32.totalorder %s32, 1
      %p322 = por %p320, %p321
      %p323 = scmp.ne.s32.totalorder %s312, %s313
      %p324 = scmp.eq.s32.totalorder %s32, 0
      %p325 = por %p323, %p324
      %p326 = scmp.ne.s32.totalorder %s312, %s313
      %p327 = scmp.eq.s32.totalorder %s33, 1
      %p328 = por %p326, %p327
      %p330 = scmp.ne.s32.totalorder %s313, %s329
      %p331 = scmp.eq.s32.totalorder %s33, 0
      %p332 = por %p330, %p331
      %s333 = ssub.s32 %s27, %s34
      %p334 = scmp.eq.s32.totalorder %s333, 0
      %s336 = sadd.s32 %s335, 1
      %s337 = scalar_select %p334, %s335, %s336
      %p340 = pneg %p334
      %p341 = scmp.eq.s32.totalorder %s27, 1
      %p342 = por %p340, %p341
      %p343 = scmp.ne.s32.totalorder %s335, %s338
      %p344 = scmp.eq.s32.totalorder %s27, 0
      %p345 = por %p343, %p344
      %p346 = scmp.ne.s32.totalorder %s335, %s338
      %p347 = scmp.eq.s32.totalorder %s32, 1
      %p348 = por %p346, %p347
      %p349 = scmp.ne.s32.totalorder %s338, %s339
      %p350 = scmp.eq.s32.totalorder %s32, 0
      %p351 = por %p349, %p350
      %p352 = scmp.ne.s32.totalorder %s338, %s339
      %p353 = scmp.eq.s32.totalorder %s33, 1
      %p354 = por %p352, %p353
      %p356 = scmp.ne.s32.totalorder %s339, %s355
      %p357 = scmp.eq.s32.totalorder %s33, 0
      %p358 = por %p356, %p357
      %s359 = ssub.s32 %s27, %s34
      %p360 = scmp.eq.s32.totalorder %s359, 0
      %s362 = sadd.s32 %s361, 1
      %s363 = scalar_select %p360, %s361, %s362
      %p366 = pneg %p360
      %p367 = scmp.eq.s32.totalorder %s27, 1
      %p368 = por %p366, %p367
      %p369 = scmp.ne.s32.totalorder %s361, %s364
      %p370 = scmp.eq.s32.totalorder %s27, 0
      %p371 = por %p369, %p370
      %p372 = scmp.ne.s32.totalorder %s361, %s364
      %p373 = scmp.eq.s32.totalorder %s32, 1
      %p374 = por %p372, %p373
      %p375 = scmp.ne.s32.totalorder %s364, %s365
      %p376 = scmp.eq.s32.totalorder %s32, 0
      %p377 = por %p375, %p376
      %p378 = scmp.ne.s32.totalorder %s364, %s365
      %p379 = scmp.eq.s32.totalorder %s33, 1
      %p380 = por %p378, %p379
      %p382 = scmp.ne.s32.totalorder %s365, %s381
      %p383 = scmp.eq.s32.totalorder %s33, 0
      %p384 = por %p382, %p383
      %s385 = ssub.s32 %s27, %s34
      %p386 = scmp.eq.s32.totalorder %s385, 0
      %s388 = sadd.s32 %s387, 1
      %s389 = scalar_select %p386, %s387, %s388
      %p392 = pneg %p386
      %p393 = scmp.eq.s32.totalorder %s27, 1
      %p394 = por %p392, %p393
      %p395 = scmp.ne.s32.totalorder %s387, %s390
      %p396 = scmp.eq.s32.totalorder %s27, 0
      %p397 = por %p395, %p396
      %p398 = scmp.ne.s32.totalorder %s387, %s390
      %p399 = scmp.eq.s32.totalorder %s32, 1
      %p400 = por %p398, %p399
      %p401 = scmp.ne.s32.totalorder %s390, %s391
      %p402 = scmp.eq.s32.totalorder %s32, 0
      %p403 = por %p401, %p402
      %p404 = scmp.ne.s32.totalorder %s390, %s391
      %p405 = scmp.eq.s32.totalorder %s33, 1
      %p406 = por %p404, %p405
      %p408 = scmp.ne.s32.totalorder %s391, %s407
      %p409 = scmp.eq.s32.totalorder %s33, 0
      %p410 = por %p408, %p409
      %s411 = ssub.s32 %s27, %s34
      %p412 = scmp.eq.s32.totalorder %s411, 0
      %s414 = sadd.s32 %s413, 1
      %s415 = scalar_select %p412, %s413, %s414
      %p418 = pneg %p412
      %p419 = scmp.eq.s32.totalorder %s27, 1
      %p420 = por %p418, %p419
      %p421 = scmp.ne.s32.totalorder %s413, %s416
      %p422 = scmp.eq.s32.totalorder %s27, 0
      %p423 = por %p421, %p422
      %p424 = scmp.ne.s32.totalorder %s413, %s416
      %p425 = scmp.eq.s32.totalorder %s32, 1
      %p426 = por %p424, %p425
      %p427 = scmp.ne.s32.totalorder %s416, %s417
      %p428 = scmp.eq.s32.totalorder %s32, 0
      %p429 = por %p427, %p428
      %p430 = scmp.ne.s32.totalorder %s416, %s417
      %p431 = scmp.eq.s32.totalorder %s33, 1
      %p432 = por %p430, %p431
      %p434 = scmp.ne.s32.totalorder %s417, %s433
      %p435 = scmp.eq.s32.totalorder %s33, 0
      %p436 = por %p434, %p435
      %s437 = ssub.s32 %s27, %s34
      %p438 = scmp.eq.s32.totalorder %s437, 0
      %s440 = sadd.s32 %s439, 1
      %s441 = scalar_select %p438, %s439, %s440
      %p444 = pneg %p438
      %p445 = scmp.eq.s32.totalorder %s27, 1
      %p446 = por %p444, %p445
      %p447 = scmp.ne.s32.totalorder %s439, %s442
      %p448 = scmp.eq.s32.totalorder %s27, 0
      %p449 = por %p447, %p448
      %p450 = scmp.ne.s32.totalorder %s439, %s442
      %p451 = scmp.eq.s32.totalorder %s32, 1
      %p452 = por %p450, %p451
      %p453 = scmp.ne.s32.totalorder %s442, %s443
      %p454 = scmp.eq.s32.totalorder %s32, 0
      %p455 = por %p453, %p454
      %p456 = scmp.ne.s32.totalorder %s442, %s443
      %p457 = scmp.eq.s32.totalorder %s33, 1
      %p458 = por %p456, %p457
      %p460 = scmp.ne.s32.totalorder %s443, %s459
      %p461 = scmp.eq.s32.totalorder %s33, 0
      %p462 = por %p460, %p461
      %s464 = sadd.s32 %s463, 1
      %p467 = scmp.eq.s32.totalorder %s27, 1
      %p468 = scmp.ne.s32.totalorder %s463, %s465
      %p469 = scmp.eq.s32.totalorder %s27, 0
      %p470 = por %p468, %p469
      %p471 = scmp.ne.s32.totalorder %s463, %s465
      %p472 = scmp.eq.s32.totalorder %s32, 1
      %p473 = por %p471, %p472
      %p474 = scmp.ne.s32.totalorder %s465, %s466
      %p475 = scmp.eq.s32.totalorder %s32, 0
      %p476 = por %p474, %p475
      %p477 = scmp.ne.s32.totalorder %s465, %s466
      %p478 = scmp.eq.s32.totalorder %s33, 1
      %p479 = por %p477, %p478
      %p481 = scmp.ne.s32.totalorder %s466, %s480
      %p482 = scmp.eq.s32.totalorder %s33, 0
      %p483 = por %p481, %p482
      %s485 = sadd.s32 %s484, 1
      %p488 = scmp.eq.s32.totalorder %s27, 1
      %p489 = scmp.ne.s32.totalorder %s484, %s486
      %p490 = scmp.eq.s32.totalorder %s27, 0
      %p491 = por %p489, %p490
      %p492 = scmp.ne.s32.totalorder %s484, %s486
      %p493 = scmp.eq.s32.totalorder %s32, 1
      %p494 = por %p492, %p493
      %p495 = scmp.ne.s32.totalorder %s486, %s487
      %p496 = scmp.eq.s32.totalorder %s32, 0
      %p497 = por %p495, %p496
      %p498 = scmp.ne.s32.totalorder %s486, %s487
      %p499 = scmp.eq.s32.totalorder %s33, 1
      %p500 = por %p498, %p499
      %p502 = scmp.ne.s32.totalorder %s487, %s501
      %p503 = scmp.eq.s32.totalorder %s33, 0
      %p504 = por %p502, %p503
      %p505 = scmp.le.s32.totalorder 1, %s27
      %p506 = scmp.lt.s32.totalorder %s27, 3
      %p507 = pnand %p505, %p506
      %p508 = pneg %p507
      // Predicated region
      $region9: #{transformer_decoder_fwd.1} parent=5 // pred_check
        _
      $region10: #{transformer_decoder_fwd.1} parent=5 // pred_check_branch
        %510 = sbr.rel (%p507) target = $region12
      $region11: #{transformer_decoder_fwd.1} parent=5 // pred_region
        %s511 = ssub.s32 %s27, 1
        // Predicated region
        $region13: #{transformer_decoder_fwd.1} parent=11 // pred_check
          %p512 = pneg %p48
        $region14: #{transformer_decoder_fwd.1} parent=11 // pred_check_branch
          %514 = sbr.rel (%p512) target = $region16
        $region15: #{transformer_decoder_fwd.1} parent=11 // pred_region
          _
        $region16: #{transformer_decoder_fwd.1} parent=11 // pred_fallthru
          _
        // Predicated region
        $region17: #{transformer_decoder_fwd.1} parent=11 // pred_check
          %p515 = pneg %p69
        $region18: #{transformer_decoder_fwd.1} parent=11 // pred_check_branch
          %517 = sbr.rel (%p515) target = $region20
        $region19: #{transformer_decoder_fwd.1} parent=11 // pred_region
          _
        $region20: #{transformer_decoder_fwd.1} parent=11 // pred_fallthru
          _
        // Predicated region
        $region21: #{transformer_decoder_fwd.1} parent=11 // pred_check
          %p518 = pneg %p90
        $region22: #{transformer_decoder_fwd.1} parent=11 // pred_check_branch
          %520 = sbr.rel (%p518) target = $region24
        $region23: #{transformer_decoder_fwd.1} parent=11 // pred_region
          _
        $region24: #{transformer_decoder_fwd.1} parent=11 // pred_fallthru
          _
        // Predicated region
        $region25: #{transformer_decoder_fwd.1} parent=11 // pred_check
          %p521 = pneg %p111
        $region26: #{transformer_decoder_fwd.1} parent=11 // pred_check_branch
          %523 = sbr.rel (%p521) target = $region28
        $region27: #{transformer_decoder_fwd.1} parent=11 // pred_region
          _
        $region28: #{transformer_decoder_fwd.1} parent=11 // pred_fallthru
          _
        // Predicated region
        $region29: #{transformer_decoder_fwd.1} parent=11 // pred_check
          %p524 = pneg %p132
        $region30: #{transformer_decoder_fwd.1} parent=11 // pred_check_branch
          %526 = sbr.rel (%p524) target = $region32
        $region31: #{transformer_decoder_fwd.1} parent=11 // pred_region
          _
        $region32: #{transformer_decoder_fwd.1} parent=11 // pred_fallthru
          _
        // Predicated region
        $region33: #{transformer_decoder_fwd.1} parent=11 // pred_check
          %p527 = pneg %p153
        $region34: #{transformer_decoder_fwd.1} parent=11 // pred_check_branch
          %529 = sbr.rel (%p527) target = $region36
        $region35: #{transformer_decoder_fwd.1} parent=11 // pred_region
          _
        $region36: #{transformer_decoder_fwd.1} parent=11 // pred_fallthru
          _
        // Predicated region
        $region37: #{transformer_decoder_fwd.1} parent=11 // pred_check
          %p530 = pneg %p174
        $region38: #{transformer_decoder_fwd.1} parent=11 // pred_check_branch
          %532 = sbr.rel (%p530) target = $region40
        $region39: #{transformer_decoder_fwd.1} parent=11 // pred_region
          _
        $region40: #{transformer_decoder_fwd.1} parent=11 // pred_fallthru
          _
        // Predicated region
        $region41: #{transformer_decoder_fwd.1} parent=11 // pred_check
          %p533 = pneg %p195
        $region42: #{transformer_decoder_fwd.1} parent=11 // pred_check_branch
          %535 = sbr.rel (%p533) target = $region44
        $region43: #{transformer_decoder_fwd.1} parent=11 // pred_region
          _
        $region44: #{transformer_decoder_fwd.1} parent=11 // pred_fallthru
          _
      $region12: #{transformer_decoder_fwd.1} parent=5 // pred_fallthru
        _
      %p536 = scmp.lt.s32.totalorder %s27, 2
      // Predicated region
      $region45: #{transformer_decoder_fwd.1} parent=5 // pred_check
        %p537 = pneg %p536
      $region46: #{transformer_decoder_fwd.1} parent=5 // pred_check_branch
        %539 = sbr.rel (%p537) target = $region48
      $region47: #{transformer_decoder_fwd.1} parent=5 // pred_region
        // Predicated region
        $region49: #{transformer_decoder_fwd.1} parent=47 // pred_check
          %p540 = pneg %p215
        $region50: #{transformer_decoder_fwd.1} parent=47 // pred_check_branch
          %542 = sbr.rel (%p540) target = $region52
        $region51: #{transformer_decoder_fwd.1} parent=47 // pred_region
          %p543 = scmp.lt.s32.totalorder %s27, 1
          %s544 = scalar_select %p543, %s27, 1
          %s545 = smul.addr %s544, 4
          %s546 = smul.addr %s545, 8
          %s547 = scalar_lea.vmem %s8, %s546
        $region52: #{transformer_decoder_fwd.1} parent=47 // pred_fallthru
          _
        // Predicated region
        $region53: #{transformer_decoder_fwd.1} parent=47 // pred_check
          %p548 = pneg %p241
        $region54: #{transformer_decoder_fwd.1} parent=47 // pred_check_branch
          %550 = sbr.rel (%p548) target = $region56
        $region55: #{transformer_decoder_fwd.1} parent=47 // pred_region
          %p551 = scmp.lt.s32.totalorder %s27, 1
          %s552 = scalar_select %p551, %s27, 1
          %s553 = scalar_lea.vmem %s9, %s552
        $region56: #{transformer_decoder_fwd.1} parent=47 // pred_fallthru
          _
        // Predicated region
        $region57: #{transformer_decoder_fwd.1} parent=47 // pred_check
          %p554 = pneg %p267
        $region58: #{transformer_decoder_fwd.1} parent=47 // pred_check_branch
          %556 = sbr.rel (%p554) target = $region60
        $region59: #{transformer_decoder_fwd.1} parent=47 // pred_region
          %p557 = scmp.lt.s32.totalorder %s27, 1
          %s558 = scalar_select %p557, %s27, 1
          %s559 = smul.addr %s558, 142
          %s560 = smul.addr %s559, 8
          %s561 = scalar_lea.vmem %s10, %s560
        $region60: #{transformer_decoder_fwd.1} parent=47 // pred_fallthru
          _
        // Predicated region
        $region61: #{transformer_decoder_fwd.1} parent=47 // pred_check
          %p562 = pneg %p293
        $region62: #{transformer_decoder_fwd.1} parent=47 // pred_check_branch
          %564 = sbr.rel (%p562) target = $region64
        $region63: #{transformer_decoder_fwd.1} parent=47 // pred_region
          %p565 = scmp.lt.s32.totalorder %s27, 1
          %s566 = scalar_select %p565, %s27, 1
          %s567 = smul.addr %s566, 547
          %s568 = smul.addr %s567, 8
          %s569 = scalar_lea.vmem %s11, %s568
        $region64: #{transformer_decoder_fwd.1} parent=47 // pred_fallthru
          _
        // Predicated region
        $region65: #{transformer_decoder_fwd.1} parent=47 // pred_check
          %p570 = pneg %p319
        $region66: #{transformer_decoder_fwd.1} parent=47 // pred_check_branch
          %572 = sbr.rel (%p570) target = $region68
        $region67: #{transformer_decoder_fwd.1} parent=47 // pred_region
          %p573 = scmp.lt.s32.totalorder %s27, 1
          %s574 = scalar_select %p573, %s27, 1
          %s575 = smul.addr %s574, 142
          %s576 = smul.addr %s575, 8
          %s577 = scalar_lea.vmem %s12, %s576
        $region68: #{transformer_decoder_fwd.1} parent=47 // pred_fallthru
          _
        // Predicated region
        $region69: #{transformer_decoder_fwd.1} parent=47 // pred_check
          %p578 = pneg %p345
        $region70: #{transformer_decoder_fwd.1} parent=47 // pred_check_branch
          %580 = sbr.rel (%p578) target = $region72
        $region71: #{transformer_decoder_fwd.1} parent=47 // pred_region
          %p581 = scmp.lt.s32.totalorder %s27, 1
          %s582 = scalar_select %p581, %s27, 1
          %s583 = smul.addr %s582, 547
          %s584 = smul.addr %s583, 8
          %s585 = scalar_lea.vmem %s13, %s584
        $region72: #{transformer_decoder_fwd.1} parent=47 // pred_fallthru
          _
        // Predicated region
        $region73: #{transformer_decoder_fwd.1} parent=47 // pred_check
          %p586 = pneg %p371
        $region74: #{transformer_decoder_fwd.1} parent=47 // pred_check_branch
          %588 = sbr.rel (%p586) target = $region76
        $region75: #{transformer_decoder_fwd.1} parent=47 // pred_region
          %p589 = scmp.lt.s32.totalorder %s27, 1
          %s590 = scalar_select %p589, %s27, 1
          %s591 = smul.addr %s590, 4
          %s592 = smul.addr %s591, 8
          %s593 = scalar_lea.vmem %s14, %s592
        $region76: #{transformer_decoder_fwd.1} parent=47 // pred_fallthru
          _
        // Predicated region
        $region77: #{transformer_decoder_fwd.1} parent=47 // pred_check
          %p594 = pneg %p397
        $region78: #{transformer_decoder_fwd.1} parent=47 // pred_check_branch
          %596 = sbr.rel (%p594) target = $region80
        $region79: #{transformer_decoder_fwd.1} parent=47 // pred_region
          %p597 = scmp.lt.s32.totalorder %s27, 1
          %s598 = scalar_select %p597, %s27, 1
          %s599 = smul.addr %s598, 2
          %s600 = smul.addr %s599, 8
          %s601 = scalar_lea.vmem %s15, %s600
        $region80: #{transformer_decoder_fwd.1} parent=47 // pred_fallthru
          _
        // Predicated region
        $region81: #{transformer_decoder_fwd.1} parent=47 // pred_check
          %p602 = pneg %p423
        $region82: #{transformer_decoder_fwd.1} parent=47 // pred_check_branch
          %604 = sbr.rel (%p602) target = $region84
        $region83: #{transformer_decoder_fwd.1} parent=47 // pred_region
          %p605 = scmp.lt.s32.totalorder %s27, 1
          %s606 = scalar_select %p605, %s27, 1
          %s607 = smul.addr %s606, 4
          %s608 = smul.addr %s607, 8
          %s609 = scalar_lea.vmem %s16, %s608
        $region84: #{transformer_decoder_fwd.1} parent=47 // pred_fallthru
          _
        // Predicated region
        $region85: #{transformer_decoder_fwd.1} parent=47 // pred_check
          %p610 = pneg %p449
        $region86: #{transformer_decoder_fwd.1} parent=47 // pred_check_branch
          %612 = sbr.rel (%p610) target = $region88
        $region87: #{transformer_decoder_fwd.1} parent=47 // pred_region
          %p613 = scmp.lt.s32.totalorder %s27, 1
          %s614 = scalar_select %p613, %s27, 1
          %s615 = smul.addr %s614, 8
          %s616 = scalar_lea.vmem %s17, %s615
        $region88: #{transformer_decoder_fwd.1} parent=47 // pred_fallthru
          _
      $region48: #{transformer_decoder_fwd.1} parent=5 // pred_fallthru
        _
      %p617 = scmp.le.s32.totalorder 1, %s27
      %p618 = scmp.lt.s32.totalorder %s27, 3
      %p619 = pnand %p617, %p618
      %p620 = pneg %p619
      // Predicated region
      $region89: #{transformer_decoder_fwd.1} parent=5 // pred_check
        _
      $region90: #{transformer_decoder_fwd.1} parent=5 // pred_check_branch
        %622 = sbr.rel (%p619) target = $region92
      $region91: #{transformer_decoder_fwd.1} parent=5 // pred_region
        %s623 = ssub.s32 %s27, 1
        %p624 = pneg %p48
        %p625 = pneg %p45
        %p626 = pneg %p69
        %p627 = pneg %p66
        %p628 = pneg %p90
        %p629 = pneg %p87
        %p630 = pneg %p111
        %p631 = pneg %p108
        %p632 = pneg %p132
        %p633 = pneg %p129
        %p634 = pneg %p153
        %p635 = pneg %p150
        %p636 = pneg %p174
        %p637 = pneg %p171
        %p638 = pneg %p195
        %p639 = pneg %p192
        %p640 = scmp.lt.s32.totalorder %s32, 1
        %s641 = scalar_select %p640, %s32, 1
        %s642 = smul.addr %s641, 4
        %s643 = smul.addr %s642, 8
        %s644 = scalar_lea.vmem %s8, %s643
        %p645 = pneg %p221
        %p646 = pneg %p218
        %p647 = scmp.lt.s32.totalorder %s32, 1
        %s648 = scalar_select %p647, %s32, 1
        %s649 = scalar_lea.vmem %s9, %s648
        %p650 = pneg %p247
        %p651 = pneg %p244
        %p652 = scmp.lt.s32.totalorder %s32, 1
        %s653 = scalar_select %p652, %s32, 1
        %s654 = smul.addr %s653, 142
        %s655 = smul.addr %s654, 8
        %s656 = scalar_lea.vmem %s10, %s655
        %p657 = pneg %p273
        %p658 = pneg %p270
        %p659 = scmp.lt.s32.totalorder %s32, 1
        %s660 = scalar_select %p659, %s32, 1
        %s661 = smul.addr %s660, 547
        %s662 = smul.addr %s661, 8
        %s663 = scalar_lea.vmem %s11, %s662
        %p664 = pneg %p299
        %p665 = pneg %p296
        %p666 = scmp.lt.s32.totalorder %s32, 1
        %s667 = scalar_select %p666, %s32, 1
        %s668 = smul.addr %s667, 142
        %s669 = smul.addr %s668, 8
        %s670 = scalar_lea.vmem %s12, %s669
        %p671 = pneg %p325
        %p672 = pneg %p322
        %p673 = scmp.lt.s32.totalorder %s32, 1
        %s674 = scalar_select %p673, %s32, 1
        %s675 = smul.addr %s674, 547
        %s676 = smul.addr %s675, 8
        %s677 = scalar_lea.vmem %s13, %s676
        %p678 = pneg %p351
        %p679 = pneg %p348
        %p680 = scmp.lt.s32.totalorder %s32, 1
        %s681 = scalar_select %p680, %s32, 1
        %s682 = smul.addr %s681, 4
        %s683 = smul.addr %s682, 8
        %s684 = scalar_lea.vmem %s14, %s683
        %p685 = pneg %p377
        %p686 = pneg %p374
        %p687 = scmp.lt.s32.totalorder %s32, 1
        %s688 = scalar_select %p687, %s32, 1
        %s689 = smul.addr %s688, 2
        %s690 = smul.addr %s689, 8
        %s691 = scalar_lea.vmem %s15, %s690
        %p692 = pneg %p403
        %p693 = pneg %p400
        %p694 = scmp.lt.s32.totalorder %s32, 1
        %s695 = scalar_select %p694, %s32, 1
        %s696 = smul.addr %s695, 4
        %s697 = smul.addr %s696, 8
        %s698 = scalar_lea.vmem %s16, %s697
        %p699 = pneg %p429
        %p700 = pneg %p426
        %p701 = scmp.lt.s32.totalorder %s32, 1
        %s702 = scalar_select %p701, %s32, 1
        %s703 = smul.addr %s702, 8
        %s704 = scalar_lea.vmem %s17, %s703
        %p705 = pneg %p455
        %p706 = pneg %p452
        %p707 = pneg %p476
        %p708 = pneg %p473
        %p709 = pneg %p497
        %p710 = pneg %p494
        %p711 = scmp.lt.s32.totalorder %s32, 1
        %s712 = scalar_select %p711, %s32, 1
        %s713 = smul.addr %s712, 4
        %s714 = smul.addr %s713, 8
        %s715 = scalar_lea.vmem %s8, %s714
        %p716 = scmp.lt.s32.totalorder %s32, 1
        %s717 = scalar_select %p716, %s32, 1
        %s718 = scalar_lea.vmem %s9, %s717
        %p719 = scmp.lt.s32.totalorder %s32, 1
        %s720 = scalar_select %p719, %s32, 1
        %s721 = smul.addr %s720, 142
        %s722 = smul.addr %s721, 8
        %s723 = scalar_lea.vmem %s10, %s722
        %p724 = scmp.lt.s32.totalorder %s32, 1
        %s725 = scalar_select %p724, %s32, 1
        %s726 = smul.addr %s725, 547
        %s727 = smul.addr %s726, 8
        %s728 = scalar_lea.vmem %s11, %s727
        %p729 = scmp.lt.s32.totalorder %s32, 1
        %s730 = scalar_select %p729, %s32, 1
        %s731 = smul.addr %s730, 142
        %s732 = smul.addr %s731, 8
        %s733 = scalar_lea.vmem %s12, %s732
        %p734 = scmp.lt.s32.totalorder %s32, 1
        %s735 = scalar_select %p734, %s32, 1
        %s736 = smul.addr %s735, 547
        %s737 = smul.addr %s736, 8
        %s738 = scalar_lea.vmem %s13, %s737
        %p739 = scmp.lt.s32.totalorder %s32, 1
        %s740 = scalar_select %p739, %s32, 1
        %s741 = smul.addr %s740, 4
        %s742 = smul.addr %s741, 8
        %s743 = scalar_lea.vmem %s14, %s742
        %p744 = scmp.lt.s32.totalorder %s32, 1
        %s745 = scalar_select %p744, %s32, 1
        %s746 = smul.addr %s745, 2
        %s747 = smul.addr %s746, 8
        %s748 = scalar_lea.vmem %s15, %s747
        %p749 = scmp.lt.s32.totalorder %s32, 1
        %s750 = scalar_select %p749, %s32, 1
        %s751 = smul.addr %s750, 4
        %s752 = smul.addr %s751, 8
        %s753 = scalar_lea.vmem %s16, %s752
        %p754 = scmp.lt.s32.totalorder %s32, 1
        %s755 = scalar_select %p754, %s32, 1
        %s756 = smul.addr %s755, 8
        %s757 = scalar_lea.vmem %s17, %s756
        %p758 = scmp.eq.s32.totalorder %s32, 0
        // Predicated region
        $region93: #{transformer_decoder_fwd.1} parent=91 // pred_check
          %p759 = pneg %p758
        $region94: #{transformer_decoder_fwd.1} parent=91 // pred_check_branch
          %761 = sbr.rel (%p759) target = $region96
        $region95: #{transformer_decoder_fwd.1} parent=91 // pred_region
          %v762 = vld [vmem:[%s1] sm:$0x3]
          %v763 = vld [vmem:[%s4] sm:$0xff]
          %v764 = vld [vmem:[%s4 + $0x8] sm:$0xff]
          %v765 = vld [vmem:[%s4 + $0x10] sm:$0xff]
          %v766 = vld [vmem:[%s4 + $0x18] sm:$0xff]
          %v767 = vld [vmem:[%s5] sm:$0x1]
          %v769 = vlaneseq
          %v770 = vshrl.u32 %v769, 7
          %v771 = vsub.s32 0, %v770
          %v772 = vrot.slane %v767, %v771
          %vm774 = vcmask 261120
          %v776 = vsel %vm774, %v762, 0
          %778 = vmatprep.subr.mxu0 0.0
          %779 = vmatpush1.msra.mxu0 %v763
          %780 = vmatprep.subr.mxu0 0.0
          %781 = vmatpush1.msra.mxu0 %v764
          %782 = vmatprep.subr.mxu0 0.0
          %783 = vmatpush1.msra.mxu0 %v765
          %784 = vmatprep.subr.mxu0 0.0
          %785 = vmatpush1.msra.mxu0 %v766
          %786 = vmatprep.subr.mxu0 0.0
          %787 = vmatpush1.msra.mxu0 0.0
          %788 = vmatprep.subr.mxu0 0.0
          %789 = vmatpush1.msra.mxu0 0.0
          %790 = vmatprep.subr.mxu0 0.0
          %791 = vmatpush1.msra.mxu0 0.0
          %792 = vmatprep.subr.mxu0 0.0
          %793 = vmatpush1.msra.mxu0 0.0
          %794 = vmatprep.subr.mxu0 0.0
          %795 = vmatpush1.msra.mxu0 0.0
          %796 = vmatprep.subr.mxu0 0.0
          %797 = vmatpush1.msra.mxu0 0.0
          %798 = vmatprep.subr.mxu0 0.0
          %799 = vmatpush1.msra.mxu0 0.0
          %800 = vmatprep.subr.mxu0 0.0
          %801 = vmatpush1.msra.mxu0 0.0
          %802 = vmatprep.subr.mxu0 0.0
          %803 = vmatpush1.msra.mxu0 0.0
          %804 = vmatprep.subr.mxu0 0.0
          %805 = vmatpush1.msra.mxu0 0.0
          %806 = vmatprep.subr.mxu0 0.0
          %807 = vmatpush1.msra.mxu0 0.0
          %808 = vmatprep.subr.mxu0 0.0
          %809 = vmatpush1.msra.mxu0 0.0
          %810 = vmatprep.subr.mxu0 0.0
          %811 = vmatpush1.msra.mxu0 0.0
          %812 = vmatprep.subr.mxu0 0.0
          %813 = vmatpush1.msra.mxu0 0.0
          %814 = vmatprep.subr.mxu0 0.0
          %815 = vmatpush1.msra.mxu0 0.0
          %816 = vmatprep.subr.mxu0 0.0
          %817 = vmatpush1.msra.mxu0 0.0
          %818 = vmatprep.subr.mxu0 0.0
          %819 = vmatpush1.msra.mxu0 0.0
          %820 = vmatprep.subr.mxu0 0.0
          %821 = vmatpush1.msra.mxu0 0.0
          %822 = vmatprep.subr.mxu0 0.0
          %823 = vmatpush1.msra.mxu0 0.0
          %824 = vmatprep.subr.mxu0 0.0
          %825 = vmatpush1.msra.mxu0 0.0
          %826 = vmatprep.subr.mxu0 0.0
          %827 = vmatpush1.msra.mxu0 0.0
          %828 = vmatprep.subr.mxu0 0.0
          %829 = vmatpush1.msra.mxu0 0.0
          %830 = vmatprep.subr.mxu0 0.0
          %831 = vmatpush1.msra.mxu0 0.0
          %832 = vmatprep.subr.mxu0 0.0
          %833 = vmatpush1.msra.mxu0 0.0
          %834 = vmatprep.subr.mxu0 0.0
          %835 = vmatpush1.msra.mxu0 0.0
          %836 = vmatprep.subr.mxu0 0.0
          %837 = vmatpush1.msra.mxu0 0.0
          %838 = vmatprep.subr.mxu0 0.0
          %839 = vmatpush1.msra.mxu0 0.0
          %840 = vmatprep.subr.mxu0 0.0
          %841 = vmatpush1.msra.mxu0 0.0
          %842 = vmatprep.mubr.f32.mxu0 0.0
          %843 = vmatmul.mubr.f32.gmra.mrb[0].mxu0 %v776
          %v844 = vpop.f32.mrb[0].mxu0
          %v845 = vadd.f32 %v772, %v844
          %v846 = vpop.f32.mrb[0].mxu0
          %847 = vdwg.mxu0
          %v848 = vmul.f32 %v845, 0.5
          %v849 = vmul.f32 %v845, 0.70710677
          %v850 = verf.f32.pop %v849
          %v851 = vadd.f32 %v850, 1.0
          %v852 = vmul.f32 %v848, %v851
          %v853 = vld [vmem:[%s6] sm:$0xff]
          %v854 = vld [vmem:[%s6 + $0x8] sm:$0xff]
          %v855 = vld [vmem:[%s6 + $0x10] sm:$0xff]
          %v856 = vld [vmem:[%s6 + $0x18] sm:$0xff]
          %v857 = vld [vmem:[%s6 + $0x20] sm:$0xff]
          %v858 = vld [vmem:[%s6 + $0x28] sm:$0xff]
          %v859 = vld [vmem:[%s6 + $0x30] sm:$0xff]
          %v860 = vld [vmem:[%s6 + $0x38] sm:$0xff]
          %v861 = vld [vmem:[%s7] sm:$0x1]
          %v863 = vlaneseq
          %v864 = vshrl.u32 %v863, 7
          %v865 = vsub.s32 0, %v864
          %v866 = vrot.slane %v861, %v865
          %vm868 = vcmask 523264
          %v870 = vsel %vm868, %v852, 0
          %872 = vmatprep.subr.mxu0 0.0
          %873 = vmatpush1.msra.mxu0 %v853
          %874 = vmatprep.subr.mxu0 0.0
          %875 = vmatpush1.msra.mxu0 %v854
          %876 = vmatprep.subr.mxu0 0.0
          %877 = vmatpush1.msra.mxu0 %v855
          %878 = vmatprep.subr.mxu0 0.0
          %879 = vmatpush1.msra.mxu0 %v856
          %880 = vmatprep.subr.mxu0 0.0
          %881 = vmatpush1.msra.mxu0 %v857
          %882 = vmatprep.subr.mxu0 0.0
          %883 = vmatpush1.msra.mxu0 %v858
          %884 = vmatprep.subr.mxu0 0.0
          %885 = vmatpush1.msra.mxu0 %v859
          %886 = vmatprep.subr.mxu0 0.0
          %887 = vmatpush1.msra.mxu0 %v860
          %888 = vmatprep.subr.mxu0 0.0
          %889 = vmatpush1.msra.mxu0 0.0
          %890 = vmatprep.subr.mxu0 0.0
          %891 = vmatpush1.msra.mxu0 0.0
          %892 = vmatprep.subr.mxu0 0.0
          %893 = vmatpush1.msra.mxu0 0.0
          %894 = vmatprep.subr.mxu0 0.0
          %895 = vmatpush1.msra.mxu0 0.0
          %896 = vmatprep.subr.mxu0 0.0
          %897 = vmatpush1.msra.mxu0 0.0
          %898 = vmatprep.subr.mxu0 0.0
          %899 = vmatpush1.msra.mxu0 0.0
          %900 = vmatprep.subr.mxu0 0.0
          %901 = vmatpush1.msra.mxu0 0.0
          %902 = vmatprep.subr.mxu0 0.0
          %903 = vmatpush1.msra.mxu0 0.0
          %904 = vmatprep.subr.mxu0 0.0
          %905 = vmatpush1.msra.mxu0 0.0
          %906 = vmatprep.subr.mxu0 0.0
          %907 = vmatpush1.msra.mxu0 0.0
          %908 = vmatprep.subr.mxu0 0.0
          %909 = vmatpush1.msra.mxu0 0.0
          %910 = vmatprep.subr.mxu0 0.0
          %911 = vmatpush1.msra.mxu0 0.0
          %912 = vmatprep.subr.mxu0 0.0
          %913 = vmatpush1.msra.mxu0 0.0
          %914 = vmatprep.subr.mxu0 0.0
          %915 = vmatpush1.msra.mxu0 0.0
          %916 = vmatprep.subr.mxu0 0.0
          %917 = vmatpush1.msra.mxu0 0.0
          %918 = vmatprep.subr.mxu0 0.0
          %919 = vmatpush1.msra.mxu0 0.0
          %920 = vmatprep.subr.mxu0 0.0
          %921 = vmatpush1.msra.mxu0 0.0
          %922 = vmatprep.subr.mxu0 0.0
          %923 = vmatpush1.msra.mxu0 0.0
          %924 = vmatprep.subr.mxu0 0.0
          %925 = vmatpush1.msra.mxu0 0.0
          %926 = vmatprep.subr.mxu0 0.0
          %927 = vmatpush1.msra.mxu0 0.0
          %928 = vmatprep.subr.mxu0 0.0
          %929 = vmatpush1.msra.mxu0 0.0
          %930 = vmatprep.subr.mxu0 0.0
          %931 = vmatpush1.msra.mxu0 0.0
          %932 = vmatprep.subr.mxu0 0.0
          %933 = vmatpush1.msra.mxu0 0.0
          %934 = vmatprep.subr.mxu0 0.0
          %935 = vmatpush1.msra.mxu0 0.0
          %936 = vmatprep.mubr.f32.mxu0 0.0
          %937 = vmatmul.mubr.f32.gmra.mrb[0].mxu0 %v870
          %v938 = vpop.f32.mrb[0].mxu0
          %v939 = vadd.f32 %v866, %v938
          %v940 = vpop.f32.mrb[0].mxu0
          %941 = vdwg.mxu0
          %v942 = vld [vmem:[%s0] sm:$0x3]
          %v943 = vadd.f32 %v939, 1.0
          %v944 = vmul.f32 %v942, %v943
          %946 = vrot.lane.b32.xlu0 %v939, 96
          %v947 = vpop.permute.xlu0 %946
          %v949 = vadd.f32 %v944, %v947
          %vm950 = vcmask 254976
          %951 = vst.msk [vmem:[#allocation2] sm:$0x3] %vm950, %v949
        $region96: #{transformer_decoder_fwd.1} parent=91 // pred_fallthru
          _
        %v952 = vld [vmem:[#allocation2] sm:$0x3]
        %v953 = vld [vmem:[%s2] sm:$0x3]
        %v954 = vld [vmem:[%s757] sm:$0x3f]
        %v955 = vld [vmem:[%s715] sm:$0xff]
        %v956 = vld [vmem:[%s715 + $0x8] sm:$0xff]
        %v957 = vld [vmem:[%s715 + $0x10] sm:$0xff]
        %v958 = vld [vmem:[%s715 + $0x18] sm:$0xff]
        %v959 = vld [vmem:[%s718] sm:$0x1]
        %v961 = vlaneseq
        %v962 = vshrl.u32 %v961, 7
        %v963 = vsub.s32 0, %v962
        %v964 = vrot.slane %v959, %v963
        %vm966 = vcmask 261120
        %v968 = vsel %vm966, %v953, 0
        %970 = vmatprep.subr.mxu0 0.0
        %971 = vmatpush1.msra.mxu0 %v955
        %972 = vmatprep.subr.mxu0 0.0
        %973 = vmatpush1.msra.mxu0 %v956
        %974 = vmatprep.subr.mxu0 0.0
        %975 = vmatpush1.msra.mxu0 %v957
        %976 = vmatprep.subr.mxu0 0.0
        %977 = vmatpush1.msra.mxu0 %v958
        %978 = vmatprep.subr.mxu0 0.0
        %979 = vmatpush1.msra.mxu0 0.0
        %980 = vmatprep.subr.mxu0 0.0
        %981 = vmatpush1.msra.mxu0 0.0
        %982 = vmatprep.subr.mxu0 0.0
        %983 = vmatpush1.msra.mxu0 0.0
        %984 = vmatprep.subr.mxu0 0.0
        %985 = vmatpush1.msra.mxu0 0.0
        %986 = vmatprep.subr.mxu0 0.0
        %987 = vmatpush1.msra.mxu0 0.0
        %988 = vmatprep.subr.mxu0 0.0
        %989 = vmatpush1.msra.mxu0 0.0
        %990 = vmatprep.subr.mxu0 0.0
        %991 = vmatpush1.msra.mxu0 0.0
        %992 = vmatprep.subr.mxu0 0.0
        %993 = vmatpush1.msra.mxu0 0.0
        %994 = vmatprep.subr.mxu0 0.0
        %995 = vmatpush1.msra.mxu0 0.0
        %996 = vmatprep.subr.mxu0 0.0
        %997 = vmatpush1.msra.mxu0 0.0
        %998 = vmatprep.subr.mxu0 0.0
        %999 = vmatpush1.msra.mxu0 0.0
        %1000 = vmatprep.subr.mxu0 0.0
        %1001 = vmatpush1.msra.mxu0 0.0
        %1002 = vmatprep.subr.mxu0 0.0
        %1003 = vmatpush1.msra.mxu0 0.0
        %1004 = vmatprep.subr.mxu0 0.0
        %1005 = vmatpush1.msra.mxu0 0.0
        %1006 = vmatprep.subr.mxu0 0.0
        %1007 = vmatpush1.msra.mxu0 0.0
        %1008 = vmatprep.subr.mxu0 0.0
        %1009 = vmatpush1.msra.mxu0 0.0
        %1010 = vmatprep.subr.mxu0 0.0
        %1011 = vmatpush1.msra.mxu0 0.0
        %1012 = vmatprep.subr.mxu0 0.0
        %1013 = vmatpush1.msra.mxu0 0.0
        %1014 = vmatprep.subr.mxu0 0.0
        %1015 = vmatpush1.msra.mxu0 0.0
        %1016 = vmatprep.subr.mxu0 0.0
        %1017 = vmatpush1.msra.mxu0 0.0
        %1018 = vmatprep.subr.mxu0 0.0
        %1019 = vmatpush1.msra.mxu0 0.0
        %1020 = vmatprep.subr.mxu0 0.0
        %1021 = vmatpush1.msra.mxu0 0.0
        %1022 = vmatprep.subr.mxu0 0.0
        %1023 = vmatpush1.msra.mxu0 0.0
        %1024 = vmatprep.subr.mxu0 0.0
        %1025 = vmatpush1.msra.mxu0 0.0
        %1026 = vmatprep.subr.mxu0 0.0
        %1027 = vmatpush1.msra.mxu0 0.0
        %1028 = vmatprep.subr.mxu0 0.0
        %1029 = vmatpush1.msra.mxu0 0.0
        %1030 = vmatprep.subr.mxu0 0.0
        %1031 = vmatpush1.msra.mxu0 0.0
        %1032 = vmatprep.subr.mxu0 0.0
        %1033 = vmatpush1.msra.mxu0 0.0
        %1034 = vmatprep.mubr.f32.mxu0 0.0
        %1035 = vmatmul.mubr.f32.gmra.mrb[0].mxu0 %v968
        %v1036 = vpop.f32.mrb[0].mxu0
        %v1037 = vadd.f32 %v964, %v1036
        %v1038 = vpop.f32.mrb[0].mxu0
        %1039 = vdwg.mxu0
        %v1040 = vmax.f32 %v1037, 0.0
        %1042 = vset.pattern.permute.xlu0 0
        %1043 = vperm.xlu0 %1042, %v1040
        %v1044 = vpop.permute.xlu0 %1043
        %v1046 = vmul.f32 %v1044, %v952
        %1047 = vset.pattern.permute.xlu0 1
        %1048 = vperm.xlu0 %1047, %v1040
        %v1049 = vpop.permute.xlu0 %1048
        %v1051 = vmul.f32 %v1049, %v952
        %1052 = vset.pattern.permute.xlu0 2
        %1053 = vperm.xlu0 %1052, %v1040
        %v1054 = vpop.permute.xlu0 %1053
        %v1056 = vmul.f32 %v1054, %v952
        %1057 = vset.pattern.permute.xlu0 3
        %1058 = vperm.xlu0 %1057, %v1040
        %v1059 = vpop.permute.xlu0 %1058
        %v1061 = vmul.f32 %v1059, %v952
        %1062 = vset.pattern.permute.xlu0 4
        %1063 = vperm.xlu0 %1062, %v1040
        %v1064 = vpop.permute.xlu0 %1063
        %v1066 = vmul.f32 %v1064, %v952
        %1067 = vset.pattern.permute.xlu0 5
        %1068 = vperm.xlu0 %1067, %v1040
        %v1069 = vpop.permute.xlu0 %1068
        %v1071 = vmul.f32 %v1069, %v952
        %1072 = vset.pattern.permute.xlu0 6
        %1073 = vperm.xlu0 %1072, %v1040
        %v1074 = vpop.permute.xlu0 %1073
        %v1076 = vmul.f32 %v1074, %v952
        %1077 = vset.pattern.permute.xlu0 7
        %1078 = vperm.xlu0 %1077, %v1040
        %v1079 = vpop.permute.xlu0 %1078
        %v1081 = vmul.f32 %v1079, %v952
        %1082 = vset.pattern.permute.xlu0 8
        %1083 = vperm.xlu0 %1082, %v1040
        %v1084 = vpop.permute.xlu0 %1083
        %v1086 = vmul.f32 %v1084, %v952
        %1087 = vset.pattern.permute.xlu0 9
        %1088 = vperm.xlu0 %1087, %v1040
        %v1089 = vpop.permute.xlu0 %1088
        %v1091 = vmul.f32 %v1089, %v952
        %1092 = vset.pattern.permute.xlu0 10
        %1093 = vperm.xlu0 %1092, %v1040
        %v1094 = vpop.permute.xlu0 %1093
        %v1096 = vmul.f32 %v1094, %v952
        %1097 = vset.pattern.permute.xlu0 11
        %1098 = vperm.xlu0 %1097, %v1040
        %v1099 = vpop.permute.xlu0 %1098
        %v1101 = vmul.f32 %v1099, %v952
        %1102 = vset.pattern.permute.xlu0 12
        %1103 = vperm.xlu0 %1102, %v1040
        %v1104 = vpop.permute.xlu0 %1103
        %v1106 = vmul.f32 %v1104, %v952
        %1107 = vset.pattern.permute.xlu0 13
        %1108 = vperm.xlu0 %1107, %v1040
        %v1109 = vpop.permute.xlu0 %1108
        %v1111 = vmul.f32 %v1109, %v952
        %1112 = vset.pattern.permute.xlu0 14
        %1113 = vperm.xlu0 %1112, %v1040
        %v1114 = vpop.permute.xlu0 %1113
        %v1116 = vmul.f32 %v1114, %v952
        %1117 = vset.pattern.permute.xlu0 15
        %1118 = vperm.xlu0 %1117, %v1040
        %v1119 = vpop.permute.xlu0 %1118
        %v1121 = vmul.f32 %v1119, %v952
        %1123 = vrot.lane.b32.xlu0 %v1051, 32
        %v1124 = vpop.permute.xlu0 %1123
        %1127 = vrot.lane.b32.xlu0 %v1056, 64
        %v1128 = vpop.permute.xlu0 %1127
        %1131 = vrot.lane.b32.xlu0 %v1061, 96
        %v1132 = vpop.permute.xlu0 %1131
        %1135 = vrot.lane.b32.xlu0 %v1071, 32
        %v1136 = vpop.permute.xlu0 %1135
        %1139 = vrot.lane.b32.xlu0 %v1076, 64
        %v1140 = vpop.permute.xlu0 %1139
        %1143 = vrot.lane.b32.xlu0 %v1081, 96
        %v1144 = vpop.permute.xlu0 %1143
        %1147 = vrot.lane.b32.xlu0 %v1091, 32
        %v1148 = vpop.permute.xlu0 %1147
        %1151 = vrot.lane.b32.xlu0 %v1096, 64
        %v1152 = vpop.permute.xlu0 %1151
        %1155 = vrot.lane.b32.xlu0 %v1101, 96
        %v1156 = vpop.permute.xlu0 %1155
        %1159 = vrot.lane.b32.xlu0 %v1111, 32
        %v1160 = vpop.permute.xlu0 %1159
        %1163 = vrot.lane.b32.xlu0 %v1116, 64
        %v1164 = vpop.permute.xlu0 %1163
        %1167 = vrot.lane.b32.xlu0 %v1121, 96
        %v1168 = vpop.permute.xlu0 %1167
        %v1170 = vsel %vm966, %v1046, %v1124
        %vm1171 = vcmask 523264
        %v1172 = vsel %vm1171, %v1170, %v1128
        %vm1173 = vcmask 785408
        %v1174 = vsel %vm1173, %v1172, %v1132
        %v1175 = vsel %vm966, %v1066, %v1136
        %v1176 = vsel %vm1171, %v1175, %v1140
        %v1177 = vsel %vm1173, %v1176, %v1144
        %v1178 = vsel %vm966, %v1086, %v1148
        %v1179 = vsel %vm1171, %v1178, %v1152
        %v1180 = vsel %vm1173, %v1179, %v1156
        %v1181 = vsel %vm966, %v1106, %v1160
        %v1182 = vsel %vm1171, %v1181, %v1164
        %v1183 = vsel %vm1173, %v1182, %v1168
        %1184 = vrot.lane.b32.xlu0 %v1040, 16
        %v1185 = vpop.permute.xlu0 %1184
        %v1187 = vsel %vm966, %v952, %v1185
        %vm1188 = vcmask 392192
        %v1189 = vsel %vm1188, %v1187, 1.0
        %v1190 = vld [vmem:[%s723] sm:$0xff]
        %v1191 = vld [vmem:[%s723 + $0x8] sm:$0xff]
        %v1192 = vld [vmem:[%s723 + $0x10] sm:$0xff]
        %v1193 = vld [vmem:[%s723 + $0x18] sm:$0xff]
        %v1194 = vld [vmem:[%s723 + $0x20] sm:$0xff]
        %v1195 = vld [vmem:[%s723 + $0x28] sm:$0xff]
        %v1196 = vld [vmem:[%s723 + $0x30] sm:$0xff]
        %v1197 = vld [vmem:[%s723 + $0x38] sm:$0xff]
        %v1198 = vld [vmem:[%s723 + $0x40] sm:$0xff]
        %v1199 = vld [vmem:[%s723 + $0x48] sm:$0xff]
        %v1200 = vld [vmem:[%s723 + $0x50] sm:$0xff]
        %v1201 = vld [vmem:[%s723 + $0x58] sm:$0xff]
        %v1202 = vld [vmem:[%s723 + $0x60] sm:$0xff]
        %v1203 = vld [vmem:[%s723 + $0x68] sm:$0xff]
        %v1204 = vld [vmem:[%s723 + $0x70] sm:$0xff]
        %v1205 = vld [vmem:[%s723 + $0x78] sm:$0xff]
        %v1206 = vld [vmem:[%s723 + $0x80] sm:$0xff]
        %v1207 = vld [vmem:[%s723 + $0x88] sm:$0xff]
        %v1208 = vld [vmem:[%s723 + $0x90] sm:$0xff]
        %v1209 = vld [vmem:[%s723 + $0x98] sm:$0xff]
        %v1210 = vld [vmem:[%s723 + $0xa0] sm:$0xff]
        %v1211 = vld [vmem:[%s723 + $0xa8] sm:$0xff]
        %v1212 = vld [vmem:[%s723 + $0xb0] sm:$0xff]
        %v1213 = vld [vmem:[%s723 + $0xb8] sm:$0xff]
        %v1214 = vld [vmem:[%s723 + $0xc0] sm:$0xff]
        %v1215 = vld [vmem:[%s723 + $0xc8] sm:$0xff]
        %v1216 = vld [vmem:[%s723 + $0xd0] sm:$0xff]
        %v1217 = vld [vmem:[%s723 + $0xd8] sm:$0xff]
        %v1218 = vld [vmem:[%s723 + $0xe0] sm:$0xff]
        %v1219 = vld [vmem:[%s723 + $0xe8] sm:$0xff]
        %v1220 = vld [vmem:[%s723 + $0xf0] sm:$0xff]
        %v1221 = vld [vmem:[%s723 + $0xf8] sm:$0xff]
        %v1222 = vld [vmem:[%s723 + $0x100] sm:$0xff]
        %v1223 = vld [vmem:[%s723 + $0x108] sm:$0xff]
        %v1224 = vld [vmem:[%s723 + $0x110] sm:$0xff]
        %v1225 = vld [vmem:[%s723 + $0x118] sm:$0xff]
        %v1226 = vld [vmem:[%s723 + $0x120] sm:$0xff]
        %v1227 = vld [vmem:[%s723 + $0x128] sm:$0xff]
        %v1228 = vld [vmem:[%s723 + $0x130] sm:$0xff]
        %v1229 = vld [vmem:[%s723 + $0x138] sm:$0xff]
        %v1230 = vld [vmem:[%s723 + $0x140] sm:$0xff]
        %v1231 = vld [vmem:[%s723 + $0x148] sm:$0xff]
        %v1232 = vld [vmem:[%s723 + $0x150] sm:$0xff]
        %v1233 = vld [vmem:[%s723 + $0x158] sm:$0xff]
        %v1234 = vld [vmem:[%s723 + $0x160] sm:$0xff]
        %v1235 = vld [vmem:[%s723 + $0x168] sm:$0xff]
        %v1236 = vld [vmem:[%s723 + $0x170] sm:$0xff]
        %v1237 = vld [vmem:[%s723 + $0x178] sm:$0xff]
        %v1238 = vld [vmem:[%s723 + $0x180] sm:$0xff]
        %v1239 = vld [vmem:[%s723 + $0x188] sm:$0xff]
        %v1240 = vld [vmem:[%s723 + $0x190] sm:$0xff]
        %v1241 = vld [vmem:[%s723 + $0x198] sm:$0xff]
        %v1242 = vld [vmem:[%s723 + $0x1a0] sm:$0xff]
        %v1243 = vld [vmem:[%s723 + $0x1a8] sm:$0xff]
        %v1244 = vld [vmem:[%s723 + $0x1b0] sm:$0xff]
        %v1245 = vld [vmem:[%s723 + $0x1b8] sm:$0xff]
        %v1246 = vld [vmem:[%s723 + $0x1c0] sm:$0xff]
        %v1247 = vld [vmem:[%s723 + $0x1c8] sm:$0xff]
        %v1248 = vld [vmem:[%s723 + $0x1d0] sm:$0xff]
        %v1249 = vld [vmem:[%s723 + $0x1d8] sm:$0xff]
        %v1250 = vld [vmem:[%s723 + $0x1e0] sm:$0xff]
        %v1251 = vld [vmem:[%s723 + $0x1e8] sm:$0xff]
        %v1252 = vld [vmem:[%s723 + $0x1f0] sm:$0xff]
        %v1253 = vld [vmem:[%s723 + $0x1f8] sm:$0xff]
        %v1254 = vld [vmem:[%s723 + $0x200] sm:$0xff]
        %v1255 = vld [vmem:[%s723 + $0x208] sm:$0xff]
        %v1256 = vld [vmem:[%s723 + $0x210] sm:$0xff]
        %v1257 = vld [vmem:[%s723 + $0x218] sm:$0xff]
        %v1258 = vld [vmem:[%s723 + $0x220] sm:$0xff]
        %v1259 = vld [vmem:[%s723 + $0x228] sm:$0xff]
        %v1260 = vld [vmem:[%s723 + $0x230] sm:$0xff]
        %v1261 = vld [vmem:[%s723 + $0x238] sm:$0xff]
        %v1262 = vld [vmem:[%s723 + $0x240] sm:$0xff]
        %v1263 = vld [vmem:[%s723 + $0x248] sm:$0xff]
        %v1264 = vld [vmem:[%s723 + $0x250] sm:$0xff]
        %v1265 = vld [vmem:[%s723 + $0x258] sm:$0xff]
        %v1266 = vld [vmem:[%s723 + $0x260] sm:$0xff]
        %v1267 = vld [vmem:[%s723 + $0x268] sm:$0xff]
        %v1268 = vld [vmem:[%s723 + $0x270] sm:$0xff]
        %v1269 = vld [vmem:[%s723 + $0x278] sm:$0xff]
        %v1270 = vld [vmem:[%s723 + $0x280] sm:$0xff]
        %v1271 = vld [vmem:[%s723 + $0x288] sm:$0xff]
        %v1272 = vld [vmem:[%s723 + $0x290] sm:$0xff]
        %v1273 = vld [vmem:[%s723 + $0x298] sm:$0xff]
        %v1274 = vld [vmem:[%s723 + $0x2a0] sm:$0xff]
        %v1275 = vld [vmem:[%s723 + $0x2a8] sm:$0xff]
        %v1276 = vld [vmem:[%s723 + $0x2b0] sm:$0xff]
        %v1277 = vld [vmem:[%s723 + $0x2b8] sm:$0xff]
        %v1278 = vld [vmem:[%s723 + $0x2c0] sm:$0xff]
        %v1279 = vld [vmem:[%s723 + $0x2c8] sm:$0xff]
        %v1280 = vld [vmem:[%s723 + $0x2d0] sm:$0xff]
        %v1281 = vld [vmem:[%s723 + $0x2d8] sm:$0xff]
        %v1282 = vld [vmem:[%s723 + $0x2e0] sm:$0xff]
        %v1283 = vld [vmem:[%s723 + $0x2e8] sm:$0xff]
        %v1284 = vld [vmem:[%s723 + $0x2f0] sm:$0xff]
        %v1285 = vld [vmem:[%s723 + $0x2f8] sm:$0xff]
        %v1286 = vld [vmem:[%s723 + $0x300] sm:$0xff]
        %v1287 = vld [vmem:[%s723 + $0x308] sm:$0xff]
        %v1288 = vld [vmem:[%s723 + $0x310] sm:$0xff]
        %v1289 = vld [vmem:[%s723 + $0x318] sm:$0xff]
        %v1290 = vld [vmem:[%s723 + $0x320] sm:$0xff]
        %v1291 = vld [vmem:[%s723 + $0x328] sm:$0xff]
        %v1292 = vld [vmem:[%s723 + $0x330] sm:$0xff]
        %v1293 = vld [vmem:[%s723 + $0x338] sm:$0xff]
        %v1294 = vld [vmem:[%s723 + $0x340] sm:$0xff]
        %v1295 = vld [vmem:[%s723 + $0x348] sm:$0xff]
        %v1296 = vld [vmem:[%s723 + $0x350] sm:$0xff]
        %v1297 = vld [vmem:[%s723 + $0x358] sm:$0xff]
        %v1298 = vld [vmem:[%s723 + $0x360] sm:$0xff]
        %v1299 = vld [vmem:[%s723 + $0x368] sm:$0xff]
        %v1300 = vld [vmem:[%s723 + $0x370] sm:$0xff]
        %v1301 = vld [vmem:[%s723 + $0x378] sm:$0xff]
        %v1302 = vld [vmem:[%s723 + $0x380] sm:$0xff]
        %v1303 = vld [vmem:[%s723 + $0x388] sm:$0xff]
        %v1304 = vld [vmem:[%s723 + $0x390] sm:$0xff]
        %v1305 = vld [vmem:[%s723 + $0x398] sm:$0xff]
        %v1306 = vld [vmem:[%s723 + $0x3a0] sm:$0xff]
        %v1307 = vld [vmem:[%s723 + $0x3a8] sm:$0xff]
        %v1308 = vld [vmem:[%s723 + $0x3b0] sm:$0xff]
        %v1309 = vld [vmem:[%s723 + $0x3b8] sm:$0xff]
        %v1310 = vld [vmem:[%s723 + $0x3c0] sm:$0xff]
        %v1311 = vld [vmem:[%s723 + $0x3c8] sm:$0xff]
        %v1312 = vld [vmem:[%s723 + $0x3d0] sm:$0xff]
        %v1313 = vld [vmem:[%s723 + $0x3d8] sm:$0xff]
        %v1314 = vld [vmem:[%s723 + $0x3e0] sm:$0xff]
        %v1315 = vld [vmem:[%s723 + $0x3e8] sm:$0xff]
        %v1316 = vld [vmem:[%s723 + $0x3f0] sm:$0xff]
        %v1317 = vld [vmem:[%s723 + $0x3f8] sm:$0xff]
        %v1318 = vld [vmem:[%s723 + $0x400] sm:$0xff]
        %v1319 = vld [vmem:[%s723 + $0x408] sm:$0xff]
        %v1320 = vld [vmem:[%s723 + $0x410] sm:$0xff]
        %v1321 = vld [vmem:[%s723 + $0x418] sm:$0xff]
        %v1322 = vld [vmem:[%s723 + $0x420] sm:$0xff]
        %v1323 = vld [vmem:[%s723 + $0x428] sm:$0xff]
        %v1324 = vld [vmem:[%s723 + $0x430] sm:$0xff]
        %v1325 = vld [vmem:[%s723 + $0x438] sm:$0xff]
        %v1326 = vld [vmem:[%s723 + $0x440] sm:$0xff]
        %v1327 = vld [vmem:[%s723 + $0x448] sm:$0xff]
        %v1328 = vld [vmem:[%s723 + $0x450] sm:$0xff]
        %v1329 = vld [vmem:[%s723 + $0x458] sm:$0xff]
        %v1330 = vld [vmem:[%s723 + $0x460] sm:$0x1]
        %v1331 = vld [vmem:[%s723 + $0x468] sm:$0x1]
        %vm1332 = vcmask 400384
        %v1334 = vsel %vm1332, %v1189, 0
        %vm1336 = vcmask 1040384
        %v1338 = vsel %vm1336, %v1330, 0
        %v1341 = vsel %vm1336, %v1331, 0
        %1343 = vmatprep.subr.mxu0 %v1191
        %1344 = vmatpush1.msra.mxu0 %v1190
        %1345 = vmatprep.subr.mxu0 %v1193
        %1346 = vmatpush1.msra.mxu0 %v1192
        %1347 = vmatprep.subr.mxu0 %v1195
        %1348 = vmatpush1.msra.mxu0 %v1194
        %1349 = vmatprep.subr.mxu0 %v1197
        %1350 = vmatpush1.msra.mxu0 %v1196
        %1351 = vmatprep.subr.mxu0 %v1199
        %1352 = vmatpush1.msra.mxu0 %v1198
        %1353 = vmatprep.subr.mxu0 %v1201
        %1354 = vmatpush1.msra.mxu0 %v1200
        %1355 = vmatprep.subr.mxu0 %v1203
        %1356 = vmatpush1.msra.mxu0 %v1202
        %1357 = vmatprep.subr.mxu0 %v1205
        %1358 = vmatpush1.msra.mxu0 %v1204
        %1359 = vmatprep.subr.mxu0 %v1207
        %1360 = vmatpush1.msra.mxu0 %v1206
        %1361 = vmatprep.subr.mxu0 %v1209
        %1362 = vmatpush1.msra.mxu0 %v1208
        %1363 = vmatprep.subr.mxu0 %v1211
        %1364 = vmatpush1.msra.mxu0 %v1210
        %1365 = vmatprep.subr.mxu0 %v1213
        %1366 = vmatpush1.msra.mxu0 %v1212
        %1367 = vmatprep.subr.mxu0 %v1215
        %1368 = vmatpush1.msra.mxu0 %v1214
        %1369 = vmatprep.subr.mxu0 %v1217
        %1370 = vmatpush1.msra.mxu0 %v1216
        %1371 = vmatprep.subr.mxu0 %v1219
        %1372 = vmatpush1.msra.mxu0 %v1218
        %1373 = vmatprep.subr.mxu0 %v1221
        %1374 = vmatpush1.msra.mxu0 %v1220
        %1375 = vmatprep.subr.mxu0 %v1223
        %1376 = vmatpush1.msra.mxu0 %v1222
        %1377 = vmatprep.subr.mxu0 %v1225
        %1378 = vmatpush1.msra.mxu0 %v1224
        %1379 = vmatprep.subr.mxu0 %v1227
        %1380 = vmatpush1.msra.mxu0 %v1226
        %1381 = vmatprep.subr.mxu0 %v1229
        %1382 = vmatpush1.msra.mxu0 %v1228
        %1383 = vmatprep.subr.mxu0 %v1231
        %1384 = vmatpush1.msra.mxu0 %v1230
        %1385 = vmatprep.subr.mxu0 %v1233
        %1386 = vmatpush1.msra.mxu0 %v1232
        %1387 = vmatprep.subr.mxu0 %v1235
        %1388 = vmatpush1.msra.mxu0 %v1234
        %1389 = vmatprep.subr.mxu0 %v1237
        %1390 = vmatpush1.msra.mxu0 %v1236
        %1391 = vmatprep.subr.mxu0 %v1239
        %1392 = vmatpush1.msra.mxu0 %v1238
        %1393 = vmatprep.subr.mxu0 %v1241
        %1394 = vmatpush1.msra.mxu0 %v1240
        %1395 = vmatprep.subr.mxu0 %v1243
        %1396 = vmatpush1.msra.mxu0 %v1242
        %1397 = vmatprep.subr.mxu0 %v1245
        %1398 = vmatpush1.msra.mxu0 %v1244
        %1399 = vmatprep.subr.mxu0 %v1247
        %1400 = vmatpush1.msra.mxu0 %v1246
        %1401 = vmatprep.subr.mxu0 %v1249
        %1402 = vmatpush1.msra.mxu0 %v1248
        %1403 = vmatprep.subr.mxu0 %v1251
        %1404 = vmatpush1.msra.mxu0 %v1250
        %1405 = vmatprep.subr.mxu0 %v1253
        %1406 = vmatpush1.msra.mxu0 %v1252
        %1407 = vmatprep.mubr.f32.mxu0 %v1177
        %1408 = vmatmul.mubr.f32.gmra.mrb[0].mxu0 %v1174
        %v1409 = vpop.f32.mrb[0].mxu0
        %v1410 = vadd.f32 0.0, %v1409
        %v1411 = vpop.f32.mrb[0].mxu0
        %v1412 = vadd.f32 0.0, %v1411
        %1413 = vdwg.mxu0
        %1414 = vmatprep.subr.mxu0 %v1255
        %1415 = vmatpush1.msra.mxu0 %v1254
        %1416 = vmatprep.subr.mxu0 %v1257
        %1417 = vmatpush1.msra.mxu0 %v1256
        %1418 = vmatprep.subr.mxu0 %v1259
        %1419 = vmatpush1.msra.mxu0 %v1258
        %1420 = vmatprep.subr.mxu0 %v1261
        %1421 = vmatpush1.msra.mxu0 %v1260
        %1422 = vmatprep.subr.mxu0 %v1263
        %1423 = vmatpush1.msra.mxu0 %v1262
        %1424 = vmatprep.subr.mxu0 %v1265
        %1425 = vmatpush1.msra.mxu0 %v1264
        %1426 = vmatprep.subr.mxu0 %v1267
        %1427 = vmatpush1.msra.mxu0 %v1266
        %1428 = vmatprep.subr.mxu0 %v1269
        %1429 = vmatpush1.msra.mxu0 %v1268
        %1430 = vmatprep.subr.mxu0 %v1271
        %1431 = vmatpush1.msra.mxu0 %v1270
        %1432 = vmatprep.subr.mxu0 %v1273
        %1433 = vmatpush1.msra.mxu0 %v1272
        %1434 = vmatprep.subr.mxu0 %v1275
        %1435 = vmatpush1.msra.mxu0 %v1274
        %1436 = vmatprep.subr.mxu0 %v1277
        %1437 = vmatpush1.msra.mxu0 %v1276
        %1438 = vmatprep.subr.mxu0 %v1279
        %1439 = vmatpush1.msra.mxu0 %v1278
        %1440 = vmatprep.subr.mxu0 %v1281
        %1441 = vmatpush1.msra.mxu0 %v1280
        %1442 = vmatprep.subr.mxu0 %v1283
        %1443 = vmatpush1.msra.mxu0 %v1282
        %1444 = vmatprep.subr.mxu0 %v1285
        %1445 = vmatpush1.msra.mxu0 %v1284
        %1446 = vmatprep.subr.mxu0 %v1287
        %1447 = vmatpush1.msra.mxu0 %v1286
        %1448 = vmatprep.subr.mxu0 %v1289
        %1449 = vmatpush1.msra.mxu0 %v1288
        %1450 = vmatprep.subr.mxu0 %v1291
        %1451 = vmatpush1.msra.mxu0 %v1290
        %1452 = vmatprep.subr.mxu0 %v1293
        %1453 = vmatpush1.msra.mxu0 %v1292
        %1454 = vmatprep.subr.mxu0 %v1295
        %1455 = vmatpush1.msra.mxu0 %v1294
        %1456 = vmatprep.subr.mxu0 %v1297
        %1457 = vmatpush1.msra.mxu0 %v1296
        %1458 = vmatprep.subr.mxu0 %v1299
        %1459 = vmatpush1.msra.mxu0 %v1298
        %1460 = vmatprep.subr.mxu0 %v1301
        %1461 = vmatpush1.msra.mxu0 %v1300
        %1462 = vmatprep.subr.mxu0 %v1303
        %1463 = vmatpush1.msra.mxu0 %v1302
        %1464 = vmatprep.subr.mxu0 %v1305
        %1465 = vmatpush1.msra.mxu0 %v1304
        %1466 = vmatprep.subr.mxu0 %v1307
        %1467 = vmatpush1.msra.mxu0 %v1306
        %1468 = vmatprep.subr.mxu0 %v1309
        %1469 = vmatpush1.msra.mxu0 %v1308
        %1470 = vmatprep.subr.mxu0 %v1311
        %1471 = vmatpush1.msra.mxu0 %v1310
        %1472 = vmatprep.subr.mxu0 %v1313
        %1473 = vmatpush1.msra.mxu0 %v1312
        %1474 = vmatprep.subr.mxu0 %v1315
        %1475 = vmatpush1.msra.mxu0 %v1314
        %1476 = vmatprep.subr.mxu0 %v1317
        %1477 = vmatpush1.msra.mxu0 %v1316
        %1478 = vmatprep.mubr.f32.mxu0 %v1183
        %1479 = vmatmul.mubr.f32.gmra.mrb[0].mxu0 %v1180
        %v1480 = vpop.f32.mrb[0].mxu0
        %v1481 = vadd.f32 %v1410, %v1480
        %v1482 = vpop.f32.mrb[0].mxu0
        %v1483 = vadd.f32 %v1412, %v1482
        %1484 = vdwg.mxu0
        %1485 = vmatprep.subr.mxu0 %v1319
        %1486 = vmatpush1.msra.mxu0 %v1318
        %1487 = vmatprep.subr.mxu0 %v1321
        %1488 = vmatpush1.msra.mxu0 %v1320
        %1489 = vmatprep.subr.mxu0 %v1323
        %1490 = vmatpush1.msra.mxu0 %v1322
        %1491 = vmatprep.subr.mxu0 %v1325
        %1492 = vmatpush1.msra.mxu0 %v1324
        %1493 = vmatprep.subr.mxu0 %v1327
        %1494 = vmatpush1.msra.mxu0 %v1326
        %1495 = vmatprep.subr.mxu0 %v1329
        %1496 = vmatpush1.msra.mxu0 %v1328
        %1497 = vmatprep.subr.mxu0 %v1341
        %1498 = vmatpush1.msra.mxu0 %v1338
        %1499 = vmatprep.subr.mxu0 0.0
        %1500 = vmatpush1.msra.mxu0 0.0
        %1501 = vmatprep.subr.mxu0 0.0
        %1502 = vmatpush1.msra.mxu0 0.0
        %1503 = vmatprep.subr.mxu0 0.0
        %1504 = vmatpush1.msra.mxu0 0.0
        %1505 = vmatprep.subr.mxu0 0.0
        %1506 = vmatpush1.msra.mxu0 0.0
        %1507 = vmatprep.subr.mxu0 0.0
        %1508 = vmatpush1.msra.mxu0 0.0
        %1509 = vmatprep.subr.mxu0 0.0
        %1510 = vmatpush1.msra.mxu0 0.0
        %1511 = vmatprep.subr.mxu0 0.0
        %1512 = vmatpush1.msra.mxu0 0.0
        %1513 = vmatprep.subr.mxu0 0.0
        %1514 = vmatpush1.msra.mxu0 0.0
        %1515 = vmatprep.subr.mxu0 0.0
        %1516 = vmatpush1.msra.mxu0 0.0
        %1517 = vmatprep.subr.mxu0 0.0
        %1518 = vmatpush1.msra.mxu0 0.0
        %1519 = vmatprep.subr.mxu0 0.0
        %1520 = vmatpush1.msra.mxu0 0.0
        %1521 = vmatprep.subr.mxu0 0.0
        %1522 = vmatpush1.msra.mxu0 0.0
        %1523 = vmatprep.subr.mxu0 0.0
        %1524 = vmatpush1.msra.mxu0 0.0
        %1525 = vmatprep.subr.mxu0 0.0
        %1526 = vmatpush1.msra.mxu0 0.0
        %1527 = vmatprep.subr.mxu0 0.0
        %1528 = vmatpush1.msra.mxu0 0.0
        %1529 = vmatprep.subr.mxu0 0.0
        %1530 = vmatpush1.msra.mxu0 0.0
        %1531 = vmatprep.subr.mxu0 0.0
        %1532 = vmatpush1.msra.mxu0 0.0
        %1533 = vmatprep.subr.mxu0 0.0
        %1534 = vmatpush1.msra.mxu0 0.0
        %1535 = vmatprep.subr.mxu0 0.0
        %1536 = vmatpush1.msra.mxu0 0.0
        %1537 = vmatprep.subr.mxu0 0.0
        %1538 = vmatpush1.msra.mxu0 0.0
        %1539 = vmatprep.subr.mxu0 0.0
        %1540 = vmatpush1.msra.mxu0 0.0
        %1541 = vmatprep.subr.mxu0 0.0
        %1542 = vmatpush1.msra.mxu0 0.0
        %1543 = vmatprep.subr.mxu0 0.0
        %1544 = vmatpush1.msra.mxu0 0.0
        %1545 = vmatprep.subr.mxu0 0.0
        %1546 = vmatpush1.msra.mxu0 0.0
        %1547 = vmatprep.subr.mxu0 0.0
        %1548 = vmatpush1.msra.mxu0 0.0
        %1549 = vmatprep.mubr.f32.mxu0 0.0
        %1550 = vmatmul.mubr.f32.gmra.mrb[0].mxu0 %v1334
        %v1551 = vpop.f32.mrb[0].mxu0
        %v1552 = vadd.f32 %v1481, %v1551
        %v1553 = vpop.f32.mrb[0].mxu0
        %v1554 = vadd.f32 %v1483, %v1553
        %1555 = vdwg.mxu0
        %v1556 = vmax.f32 %v1552, 0.0
        %v1557 = vmax.f32 %v1554, 0.0
        %1558 = vset.pattern.permute.xlu0 32
        %1559 = vperm.xlu0 %1558, %v1040
        %v1560 = vpop.permute.xlu0 %1559
        %v1562 = vmul.f32 %v1560, %v1556
        %v1563 = vmul.f32 %v1560, %v1557
        %1564 = vset.pattern.permute.xlu0 33
        %1565 = vperm.xlu0 %1564, %v1040
        %v1566 = vpop.permute.xlu0 %1565
        %v1568 = vmul.f32 %v1566, %v1556
        %v1569 = vmul.f32 %v1566, %v1557
        %1570 = vset.pattern.permute.xlu0 34
        %1571 = vperm.xlu0 %1570, %v1040
        %v1572 = vpop.permute.xlu0 %1571
        %v1574 = vmul.f32 %v1572, %v1556
        %v1575 = vmul.f32 %v1572, %v1557
        %1576 = vset.pattern.permute.xlu0 35
        %1577 = vperm.xlu0 %1576, %v1040
        %v1578 = vpop.permute.xlu0 %1577
        %v1580 = vmul.f32 %v1578, %v1556
        %v1581 = vmul.f32 %v1578, %v1557
        %1582 = vset.pattern.permute.xlu0 36
        %1583 = vperm.xlu0 %1582, %v1040
        %v1584 = vpop.permute.xlu0 %1583
        %v1586 = vmul.f32 %v1584, %v1556
        %v1587 = vmul.f32 %v1584, %v1557
        %1588 = vset.pattern.permute.xlu0 37
        %1589 = vperm.xlu0 %1588, %v1040
        %v1590 = vpop.permute.xlu0 %1589
        %v1592 = vmul.f32 %v1590, %v1556
        %v1593 = vmul.f32 %v1590, %v1557
        %1594 = vset.pattern.permute.xlu0 38
        %1595 = vperm.xlu0 %1594, %v1040
        %v1596 = vpop.permute.xlu0 %1595
        %v1598 = vmul.f32 %v1596, %v1556
        %v1599 = vmul.f32 %v1596, %v1557
        %1600 = vset.pattern.permute.xlu0 39
        %1601 = vperm.xlu0 %1600, %v1040
        %v1602 = vpop.permute.xlu0 %1601
        %v1604 = vmul.f32 %v1602, %v1556
        %v1605 = vmul.f32 %v1602, %v1557
        %1606 = vset.pattern.permute.xlu0 40
        %1607 = vperm.xlu0 %1606, %v1040
        %v1608 = vpop.permute.xlu0 %1607
        %v1610 = vmul.f32 %v1608, %v1556
        %v1611 = vmul.f32 %v1608, %v1557
        %1612 = vset.pattern.permute.xlu0 41
        %1613 = vperm.xlu0 %1612, %v1040
        %v1614 = vpop.permute.xlu0 %1613
        %v1616 = vmul.f32 %v1614, %v1556
        %v1617 = vmul.f32 %v1614, %v1557
        %1618 = vset.pattern.permute.xlu0 42
        %1619 = vperm.xlu0 %1618, %v1040
        %v1620 = vpop.permute.xlu0 %1619
        %v1622 = vmul.f32 %v1620, %v1556
        %v1623 = vmul.f32 %v1620, %v1557
        %1624 = vset.pattern.permute.xlu0 43
        %1625 = vperm.xlu0 %1624, %v1040
        %v1626 = vpop.permute.xlu0 %1625
        %v1628 = vmul.f32 %v1626, %v1556
        %v1629 = vmul.f32 %v1626, %v1557
        %1630 = vset.pattern.permute.xlu0 44
        %1631 = vperm.xlu0 %1630, %v1040
        %v1632 = vpop.permute.xlu0 %1631
        %v1634 = vmul.f32 %v1632, %v1556
        %v1635 = vmul.f32 %v1632, %v1557
        %1636 = vset.pattern.permute.xlu0 45
        %1637 = vperm.xlu0 %1636, %v1040
        %v1638 = vpop.permute.xlu0 %1637
        %v1640 = vmul.f32 %v1638, %v1556
        %v1641 = vmul.f32 %v1638, %v1557
        %1642 = vset.pattern.permute.xlu0 46
        %1643 = vperm.xlu0 %1642, %v1040
        %v1644 = vpop.permute.xlu0 %1643
        %v1646 = vmul.f32 %v1644, %v1556
        %v1647 = vmul.f32 %v1644, %v1557
        %1648 = vset.pattern.permute.xlu0 47
        %1649 = vperm.xlu0 %1648, %v1040
        %v1650 = vpop.permute.xlu0 %1649
        %v1652 = vmul.f32 %v1650, %v1556
        %v1653 = vmul.f32 %v1650, %v1557
        %1654 = vrot.lane.b32.xlu0 %v1040, 80
        %v1655 = vpop.permute.xlu0 %1654
        %vm1657 = vcmask 130048
        %v1658 = vsel %vm1657, %v1655, 1.0
        %v1659 = vld [vmem:[%s728] sm:$0xff]
        %v1660 = vld [vmem:[%s728 + $0x8] sm:$0xff]
        %v1661 = vld [vmem:[%s728 + $0x10] sm:$0xff]
        %v1662 = vld [vmem:[%s728 + $0x18] sm:$0xff]
        %v1663 = vld [vmem:[%s728 + $0x20] sm:$0xff]
        %v1664 = vld [vmem:[%s728 + $0x28] sm:$0xff]
        %v1665 = vld [vmem:[%s728 + $0x30] sm:$0xff]
        %v1666 = vld [vmem:[%s728 + $0x38] sm:$0xff]
        %v1667 = vld [vmem:[%s728 + $0x40] sm:$0xff]
        %v1668 = vld [vmem:[%s728 + $0x48] sm:$0xff]
        %v1669 = vld [vmem:[%s728 + $0x50] sm:$0xff]
        %v1670 = vld [vmem:[%s728 + $0x58] sm:$0xff]
        %v1671 = vld [vmem:[%s728 + $0x60] sm:$0xff]
        %v1672 = vld [vmem:[%s728 + $0x68] sm:$0xff]
        %v1673 = vld [vmem:[%s728 + $0x70] sm:$0xff]
        %v1674 = vld [vmem:[%s728 + $0x78] sm:$0xff]
        %v1675 = vld [vmem:[%s728 + $0x80] sm:$0xff]
        %v1676 = vld [vmem:[%s728 + $0x88] sm:$0xff]
        %v1677 = vld [vmem:[%s728 + $0x90] sm:$0xff]
        %v1678 = vld [vmem:[%s728 + $0x98] sm:$0xff]
        %v1679 = vld [vmem:[%s728 + $0xa0] sm:$0xff]
        %v1680 = vld [vmem:[%s728 + $0xa8] sm:$0xff]
        %v1681 = vld [vmem:[%s728 + $0xb0] sm:$0xff]
        %v1682 = vld [vmem:[%s728 + $0xb8] sm:$0xff]
        %v1683 = vld [vmem:[%s728 + $0xc0] sm:$0xff]
        %v1684 = vld [vmem:[%s728 + $0xc8] sm:$0xff]
        %v1685 = vld [vmem:[%s728 + $0xd0] sm:$0xff]
        %v1686 = vld [vmem:[%s728 + $0xd8] sm:$0xff]
        %v1687 = vld [vmem:[%s728 + $0xe0] sm:$0xff]
        %v1688 = vld [vmem:[%s728 + $0xe8] sm:$0xff]
        %v1689 = vld [vmem:[%s728 + $0xf0] sm:$0xff]
        %v1690 = vld [vmem:[%s728 + $0xf8] sm:$0xff]
        %v1691 = vld [vmem:[%s728 + $0x100] sm:$0xff]
        %v1692 = vld [vmem:[%s728 + $0x108] sm:$0xff]
        %v1693 = vld [vmem:[%s728 + $0x110] sm:$0xff]
        %v1694 = vld [vmem:[%s728 + $0x118] sm:$0xff]
        %v1695 = vld [vmem:[%s728 + $0x120] sm:$0xff]
        %v1696 = vld [vmem:[%s728 + $0x128] sm:$0xff]
        %v1697 = vld [vmem:[%s728 + $0x130] sm:$0xff]
        %v1698 = vld [vmem:[%s728 + $0x138] sm:$0xff]
        %v1699 = vld [vmem:[%s728 + $0x140] sm:$0xff]
        %v1700 = vld [vmem:[%s728 + $0x148] sm:$0xff]
        %v1701 = vld [vmem:[%s728 + $0x150] sm:$0xff]
        %v1702 = vld [vmem:[%s728 + $0x158] sm:$0xff]
        %v1703 = vld [vmem:[%s728 + $0x160] sm:$0xff]
        %v1704 = vld [vmem:[%s728 + $0x168] sm:$0xff]
        %v1705 = vld [vmem:[%s728 + $0x170] sm:$0xff]
        %v1706 = vld [vmem:[%s728 + $0x178] sm:$0xff]
        %v1707 = vld [vmem:[%s728 + $0x180] sm:$0xff]
        %v1708 = vld [vmem:[%s728 + $0x188] sm:$0xff]
        %v1709 = vld [vmem:[%s728 + $0x190] sm:$0xff]
        %v1710 = vld [vmem:[%s728 + $0x198] sm:$0xff]
        %v1711 = vld [vmem:[%s728 + $0x1a0] sm:$0xff]
        %v1712 = vld [vmem:[%s728 + $0x1a8] sm:$0xff]
        %v1713 = vld [vmem:[%s728 + $0x1b0] sm:$0xff]
        %v1714 = vld [vmem:[%s728 + $0x1b8] sm:$0xff]
        %v1715 = vld [vmem:[%s728 + $0x1c0] sm:$0xff]
        %v1716 = vld [vmem:[%s728 + $0x1c8] sm:$0xff]
        %v1717 = vld [vmem:[%s728 + $0x1d0] sm:$0xff]
        %v1718 = vld [vmem:[%s728 + $0x1d8] sm:$0xff]
        %v1719 = vld [vmem:[%s728 + $0x1e0] sm:$0xff]
        %v1720 = vld [vmem:[%s728 + $0x1e8] sm:$0xff]
        %v1721 = vld [vmem:[%s728 + $0x1f0] sm:$0xff]
        %v1722 = vld [vmem:[%s728 + $0x1f8] sm:$0xff]
        %v1723 = vld [vmem:[%s728 + $0x200] sm:$0xff]
        %v1724 = vld [vmem:[%s728 + $0x208] sm:$0xff]
        %v1725 = vld [vmem:[%s728 + $0x210] sm:$0xff]
        %v1726 = vld [vmem:[%s728 + $0x218] sm:$0xff]
        %v1727 = vld [vmem:[%s728 + $0x220] sm:$0xff]
        %v1728 = vld [vmem:[%s728 + $0x228] sm:$0xff]
        %v1729 = vld [vmem:[%s728 + $0x230] sm:$0xff]
        %v1730 = vld [vmem:[%s728 + $0x238] sm:$0xff]
        %v1731 = vld [vmem:[%s728 + $0x240] sm:$0xff]
        %v1732 = vld [vmem:[%s728 + $0x248] sm:$0xff]
        %v1733 = vld [vmem:[%s728 + $0x250] sm:$0xff]
        %v1734 = vld [vmem:[%s728 + $0x258] sm:$0xff]
        %v1735 = vld [vmem:[%s728 + $0x260] sm:$0xff]
        %v1736 = vld [vmem:[%s728 + $0x268] sm:$0xff]
        %v1737 = vld [vmem:[%s728 + $0x270] sm:$0xff]
        %v1738 = vld [vmem:[%s728 + $0x278] sm:$0xff]
        %v1739 = vld [vmem:[%s728 + $0x280] sm:$0xff]
        %v1740 = vld [vmem:[%s728 + $0x288] sm:$0xff]
        %v1741 = vld [vmem:[%s728 + $0x290] sm:$0xff]
        %v1742 = vld [vmem:[%s728 + $0x298] sm:$0xff]
        %v1743 = vld [vmem:[%s728 + $0x2a0] sm:$0xff]
        %v1744 = vld [vmem:[%s728 + $0x2a8] sm:$0xff]
        %v1745 = vld [vmem:[%s728 + $0x2b0] sm:$0xff]
        %v1746 = vld [vmem:[%s728 + $0x2b8] sm:$0xff]
        %v1747 = vld [vmem:[%s728 + $0x2c0] sm:$0xff]
        %v1748 = vld [vmem:[%s728 + $0x2c8] sm:$0xff]
        %v1749 = vld [vmem:[%s728 + $0x2d0] sm:$0xff]
        %v1750 = vld [vmem:[%s728 + $0x2d8] sm:$0xff]
        %v1751 = vld [vmem:[%s728 + $0x2e0] sm:$0xff]
        %v1752 = vld [vmem:[%s728 + $0x2e8] sm:$0xff]
        %v1753 = vld [vmem:[%s728 + $0x2f0] sm:$0xff]
        %v1754 = vld [vmem:[%s728 + $0x2f8] sm:$0xff]
        %v1755 = vld [vmem:[%s728 + $0x300] sm:$0xff]
        %v1756 = vld [vmem:[%s728 + $0x308] sm:$0xff]
        %v1757 = vld [vmem:[%s728 + $0x310] sm:$0xff]
        %v1758 = vld [vmem:[%s728 + $0x318] sm:$0xff]
        %v1759 = vld [vmem:[%s728 + $0x320] sm:$0xff]
        %v1760 = vld [vmem:[%s728 + $0x328] sm:$0xff]
        %v1761 = vld [vmem:[%s728 + $0x330] sm:$0xff]
        %v1762 = vld [vmem:[%s728 + $0x338] sm:$0xff]
        %v1763 = vld [vmem:[%s728 + $0x340] sm:$0xff]
        %v1764 = vld [vmem:[%s728 + $0x348] sm:$0xff]
        %v1765 = vld [vmem:[%s728 + $0x350] sm:$0xff]
        %v1766 = vld [vmem:[%s728 + $0x358] sm:$0xff]
        %v1767 = vld [vmem:[%s728 + $0x360] sm:$0xff]
        %v1768 = vld [vmem:[%s728 + $0x368] sm:$0xff]
        %v1769 = vld [vmem:[%s728 + $0x370] sm:$0xff]
        %v1770 = vld [vmem:[%s728 + $0x378] sm:$0xff]
        %v1771 = vld [vmem:[%s728 + $0x380] sm:$0xff]
        %v1772 = vld [vmem:[%s728 + $0x388] sm:$0xff]
        %v1773 = vld [vmem:[%s728 + $0x390] sm:$0xff]
        %v1774 = vld [vmem:[%s728 + $0x398] sm:$0xff]
        %v1775 = vld [vmem:[%s728 + $0x3a0] sm:$0xff]
        %v1776 = vld [vmem:[%s728 + $0x3a8] sm:$0xff]
        %v1777 = vld [vmem:[%s728 + $0x3b0] sm:$0xff]
        %v1778 = vld [vmem:[%s728 + $0x3b8] sm:$0xff]
        %v1779 = vld [vmem:[%s728 + $0x3c0] sm:$0xff]
        %v1780 = vld [vmem:[%s728 + $0x3c8] sm:$0xff]
        %v1781 = vld [vmem:[%s728 + $0x3d0] sm:$0xff]
        %v1782 = vld [vmem:[%s728 + $0x3d8] sm:$0xff]
        %v1783 = vld [vmem:[%s728 + $0x3e0] sm:$0xff]
        %v1784 = vld [vmem:[%s728 + $0x3e8] sm:$0xff]
        %v1785 = vld [vmem:[%s728 + $0x3f0] sm:$0xff]
        %v1786 = vld [vmem:[%s728 + $0x3f8] sm:$0xff]
        %v1787 = vld [vmem:[%s728 + $0x400] sm:$0xff]
        %v1788 = vld [vmem:[%s728 + $0x408] sm:$0xff]
        %v1789 = vld [vmem:[%s728 + $0x410] sm:$0xff]
        %v1790 = vld [vmem:[%s728 + $0x418] sm:$0xff]
        %v1791 = vld [vmem:[%s728 + $0x420] sm:$0xff]
        %v1792 = vld [vmem:[%s728 + $0x428] sm:$0xff]
        %v1793 = vld [vmem:[%s728 + $0x430] sm:$0xff]
        %v1794 = vld [vmem:[%s728 + $0x438] sm:$0xff]
        %v1795 = vld [vmem:[%s728 + $0x440] sm:$0xff]
        %v1796 = vld [vmem:[%s728 + $0x448] sm:$0xff]
        %v1797 = vld [vmem:[%s728 + $0x450] sm:$0xff]
        %v1798 = vld [vmem:[%s728 + $0x458] sm:$0xff]
        %v1799 = vld [vmem:[%s728 + $0x460] sm:$0xff]
        %v1800 = vld [vmem:[%s728 + $0x468] sm:$0xff]
        %v1801 = vld [vmem:[%s728 + $0x470] sm:$0xff]
        %v1802 = vld [vmem:[%s728 + $0x478] sm:$0xff]
        %v1803 = vld [vmem:[%s728 + $0x480] sm:$0xff]
        %v1804 = vld [vmem:[%s728 + $0x488] sm:$0xff]
        %v1805 = vld [vmem:[%s728 + $0x490] sm:$0xff]
        %v1806 = vld [vmem:[%s728 + $0x498] sm:$0xff]
        %v1807 = vld [vmem:[%s728 + $0x4a0] sm:$0xff]
        %v1808 = vld [vmem:[%s728 + $0x4a8] sm:$0xff]
        %v1809 = vld [vmem:[%s728 + $0x4b0] sm:$0xff]
        %v1810 = vld [vmem:[%s728 + $0x4b8] sm:$0xff]
        %v1811 = vld [vmem:[%s728 + $0x4c0] sm:$0xff]
        %v1812 = vld [vmem:[%s728 + $0x4c8] sm:$0xff]
        %v1813 = vld [vmem:[%s728 + $0x4d0] sm:$0xff]
        %v1814 = vld [vmem:[%s728 + $0x4d8] sm:$0xff]
        %v1815 = vld [vmem:[%s728 + $0x4e0] sm:$0xff]
        %v1816 = vld [vmem:[%s728 + $0x4e8] sm:$0xff]
        %v1817 = vld [vmem:[%s728 + $0x4f0] sm:$0xff]
        %v1818 = vld [vmem:[%s728 + $0x4f8] sm:$0xff]
        %v1819 = vld [vmem:[%s728 + $0x500] sm:$0xff]
        %v1820 = vld [vmem:[%s728 + $0x508] sm:$0xff]
        %v1821 = vld [vmem:[%s728 + $0x510] sm:$0xff]
        %v1822 = vld [vmem:[%s728 + $0x518] sm:$0xff]
        %v1823 = vld [vmem:[%s728 + $0x520] sm:$0xff]
        %v1824 = vld [vmem:[%s728 + $0x528] sm:$0xff]
        %v1825 = vld [vmem:[%s728 + $0x530] sm:$0xff]
        %v1826 = vld [vmem:[%s728 + $0x538] sm:$0xff]
        %v1827 = vld [vmem:[%s728 + $0x540] sm:$0xff]
        %v1828 = vld [vmem:[%s728 + $0x548] sm:$0xff]
        %v1829 = vld [vmem:[%s728 + $0x550] sm:$0xff]
        %v1830 = vld [vmem:[%s728 + $0x558] sm:$0xff]
        %v1831 = vld [vmem:[%s728 + $0x560] sm:$0xff]
        %v1832 = vld [vmem:[%s728 + $0x568] sm:$0xff]
        %v1833 = vld [vmem:[%s728 + $0x570] sm:$0xff]
        %v1834 = vld [vmem:[%s728 + $0x578] sm:$0xff]
        %v1835 = vld [vmem:[%s728 + $0x580] sm:$0xff]
        %v1836 = vld [vmem:[%s728 + $0x588] sm:$0xff]
        %v1837 = vld [vmem:[%s728 + $0x590] sm:$0xff]
        %v1838 = vld [vmem:[%s728 + $0x598] sm:$0xff]
        %v1839 = vld [vmem:[%s728 + $0x5a0] sm:$0xff]
        %v1840 = vld [vmem:[%s728 + $0x5a8] sm:$0xff]
        %v1841 = vld [vmem:[%s728 + $0x5b0] sm:$0xff]
        %v1842 = vld [vmem:[%s728 + $0x5b8] sm:$0xff]
        %v1843 = vld [vmem:[%s728 + $0x5c0] sm:$0xff]
        %v1844 = vld [vmem:[%s728 + $0x5c8] sm:$0xff]
        %v1845 = vld [vmem:[%s728 + $0x5d0] sm:$0xff]
        %v1846 = vld [vmem:[%s728 + $0x5d8] sm:$0xff]
        %v1847 = vld [vmem:[%s728 + $0x5e0] sm:$0xff]
        %v1848 = vld [vmem:[%s728 + $0x5e8] sm:$0xff]
        %v1849 = vld [vmem:[%s728 + $0x5f0] sm:$0xff]
        %v1850 = vld [vmem:[%s728 + $0x5f8] sm:$0xff]
        %v1851 = vld [vmem:[%s728 + $0x600] sm:$0xff]
        %v1852 = vld [vmem:[%s728 + $0x608] sm:$0xff]
        %v1853 = vld [vmem:[%s728 + $0x610] sm:$0xff]
        %v1854 = vld [vmem:[%s728 + $0x618] sm:$0xff]
        %v1855 = vld [vmem:[%s728 + $0x620] sm:$0xff]
        %v1856 = vld [vmem:[%s728 + $0x628] sm:$0xff]
        %v1857 = vld [vmem:[%s728 + $0x630] sm:$0xff]
        %v1858 = vld [vmem:[%s728 + $0x638] sm:$0xff]
        %v1859 = vld [vmem:[%s728 + $0x640] sm:$0xff]
        %v1860 = vld [vmem:[%s728 + $0x648] sm:$0xff]
        %v1861 = vld [vmem:[%s728 + $0x650] sm:$0xff]
        %v1862 = vld [vmem:[%s728 + $0x658] sm:$0xff]
        %v1863 = vld [vmem:[%s728 + $0x660] sm:$0xff]
        %v1864 = vld [vmem:[%s728 + $0x668] sm:$0xff]
        %v1865 = vld [vmem:[%s728 + $0x670] sm:$0xff]
        %v1866 = vld [vmem:[%s728 + $0x678] sm:$0xff]
        %v1867 = vld [vmem:[%s728 + $0x680] sm:$0xff]
        %v1868 = vld [vmem:[%s728 + $0x688] sm:$0xff]
        %v1869 = vld [vmem:[%s728 + $0x690] sm:$0xff]
        %v1870 = vld [vmem:[%s728 + $0x698] sm:$0xff]
        %v1871 = vld [vmem:[%s728 + $0x6a0] sm:$0xff]
        %v1872 = vld [vmem:[%s728 + $0x6a8] sm:$0xff]
        %v1873 = vld [vmem:[%s728 + $0x6b0] sm:$0xff]
        %v1874 = vld [vmem:[%s728 + $0x6b8] sm:$0xff]
        %v1875 = vld [vmem:[%s728 + $0x6c0] sm:$0xff]
        %v1876 = vld [vmem:[%s728 + $0x6c8] sm:$0xff]
        %v1877 = vld [vmem:[%s728 + $0x6d0] sm:$0xff]
        %v1878 = vld [vmem:[%s728 + $0x6d8] sm:$0xff]
        %v1879 = vld [vmem:[%s728 + $0x6e0] sm:$0xff]
        %v1880 = vld [vmem:[%s728 + $0x6e8] sm:$0xff]
        %v1881 = vld [vmem:[%s728 + $0x6f0] sm:$0xff]
        %v1882 = vld [vmem:[%s728 + $0x6f8] sm:$0xff]
        %v1883 = vld [vmem:[%s728 + $0x700] sm:$0xff]
        %v1884 = vld [vmem:[%s728 + $0x708] sm:$0xff]
        %v1885 = vld [vmem:[%s728 + $0x710] sm:$0xff]
        %v1886 = vld [vmem:[%s728 + $0x718] sm:$0xff]
        %v1887 = vld [vmem:[%s728 + $0x720] sm:$0xff]
        %v1888 = vld [vmem:[%s728 + $0x728] sm:$0xff]
        %v1889 = vld [vmem:[%s728 + $0x730] sm:$0xff]
        %v1890 = vld [vmem:[%s728 + $0x738] sm:$0xff]
        %v1891 = vld [vmem:[%s728 + $0x740] sm:$0xff]
        %v1892 = vld [vmem:[%s728 + $0x748] sm:$0xff]
        %v1893 = vld [vmem:[%s728 + $0x750] sm:$0xff]
        %v1894 = vld [vmem:[%s728 + $0x758] sm:$0xff]
        %v1895 = vld [vmem:[%s728 + $0x760] sm:$0xff]
        %v1896 = vld [vmem:[%s728 + $0x768] sm:$0xff]
        %v1897 = vld [vmem:[%s728 + $0x770] sm:$0xff]
        %v1898 = vld [vmem:[%s728 + $0x778] sm:$0xff]
        %v1899 = vld [vmem:[%s728 + $0x780] sm:$0xff]
        %v1900 = vld [vmem:[%s728 + $0x788] sm:$0xff]
        %v1901 = vld [vmem:[%s728 + $0x790] sm:$0xff]
        %v1902 = vld [vmem:[%s728 + $0x798] sm:$0xff]
        %v1903 = vld [vmem:[%s728 + $0x7a0] sm:$0xff]
        %v1904 = vld [vmem:[%s728 + $0x7a8] sm:$0xff]
        %v1905 = vld [vmem:[%s728 + $0x7b0] sm:$0xff]
        %v1906 = vld [vmem:[%s728 + $0x7b8] sm:$0xff]
        %v1907 = vld [vmem:[%s728 + $0x7c0] sm:$0xff]
        %v1908 = vld [vmem:[%s728 + $0x7c8] sm:$0xff]
        %v1909 = vld [vmem:[%s728 + $0x7d0] sm:$0xff]
        %v1910 = vld [vmem:[%s728 + $0x7d8] sm:$0xff]
        %v1911 = vld [vmem:[%s728 + $0x7e0] sm:$0xff]
        %v1912 = vld [vmem:[%s728 + $0x7e8] sm:$0xff]
        %v1913 = vld [vmem:[%s728 + $0x7f0] sm:$0xff]
        %v1914 = vld [vmem:[%s728 + $0x7f8] sm:$0xff]
        %v1915 = vld [vmem:[%s728 + $0x800] sm:$0xff]
        %v1916 = vld [vmem:[%s728 + $0x808] sm:$0xff]
        %v1917 = vld [vmem:[%s728 + $0x810] sm:$0xff]
        %v1918 = vld [vmem:[%s728 + $0x818] sm:$0xff]
        %v1919 = vld [vmem:[%s728 + $0x820] sm:$0xff]
        %v1920 = vld [vmem:[%s728 + $0x828] sm:$0xff]
        %v1921 = vld [vmem:[%s728 + $0x830] sm:$0xff]
        %v1922 = vld [vmem:[%s728 + $0x838] sm:$0xff]
        %v1923 = vld [vmem:[%s728 + $0x840] sm:$0xff]
        %v1924 = vld [vmem:[%s728 + $0x848] sm:$0xff]
        %v1925 = vld [vmem:[%s728 + $0x850] sm:$0xff]
        %v1926 = vld [vmem:[%s728 + $0x858] sm:$0xff]
        %v1927 = vld [vmem:[%s728 + $0x860] sm:$0xff]
        %v1928 = vld [vmem:[%s728 + $0x868] sm:$0xff]
        %v1929 = vld [vmem:[%s728 + $0x870] sm:$0xff]
        %v1930 = vld [vmem:[%s728 + $0x878] sm:$0xff]
        %v1931 = vld [vmem:[%s728 + $0x880] sm:$0xff]
        %v1932 = vld [vmem:[%s728 + $0x888] sm:$0xff]
        %v1933 = vld [vmem:[%s728 + $0x890] sm:$0xff]
        %v1934 = vld [vmem:[%s728 + $0x898] sm:$0xff]
        %v1935 = vld [vmem:[%s728 + $0x8a0] sm:$0xff]
        %v1936 = vld [vmem:[%s728 + $0x8a8] sm:$0xff]
        %v1937 = vld [vmem:[%s728 + $0x8b0] sm:$0xff]
        %v1938 = vld [vmem:[%s728 + $0x8b8] sm:$0xff]
        %v1939 = vld [vmem:[%s728 + $0x8c0] sm:$0xff]
        %v1940 = vld [vmem:[%s728 + $0x8c8] sm:$0xff]
        %v1941 = vld [vmem:[%s728 + $0x8d0] sm:$0xff]
        %v1942 = vld [vmem:[%s728 + $0x8d8] sm:$0xff]
        %v1943 = vld [vmem:[%s728 + $0x8e0] sm:$0xff]
        %v1944 = vld [vmem:[%s728 + $0x8e8] sm:$0xff]
        %v1945 = vld [vmem:[%s728 + $0x8f0] sm:$0xff]
        %v1946 = vld [vmem:[%s728 + $0x8f8] sm:$0xff]
        %v1947 = vld [vmem:[%s728 + $0x900] sm:$0xff]
        %v1948 = vld [vmem:[%s728 + $0x908] sm:$0xff]
        %v1949 = vld [vmem:[%s728 + $0x910] sm:$0xff]
        %v1950 = vld [vmem:[%s728 + $0x918] sm:$0xff]
        %v1951 = vld [vmem:[%s728 + $0x920] sm:$0xff]
        %v1952 = vld [vmem:[%s728 + $0x928] sm:$0xff]
        %v1953 = vld [vmem:[%s728 + $0x930] sm:$0xff]
        %v1954 = vld [vmem:[%s728 + $0x938] sm:$0xff]
        %v1955 = vld [vmem:[%s728 + $0x940] sm:$0xff]
        %v1956 = vld [vmem:[%s728 + $0x948] sm:$0xff]
        %v1957 = vld [vmem:[%s728 + $0x950] sm:$0xff]
        %v1958 = vld [vmem:[%s728 + $0x958] sm:$0xff]
        %v1959 = vld [vmem:[%s728 + $0x960] sm:$0xff]
        %v1960 = vld [vmem:[%s728 + $0x968] sm:$0xff]
        %v1961 = vld [vmem:[%s728 + $0x970] sm:$0xff]
        %v1962 = vld [vmem:[%s728 + $0x978] sm:$0xff]
        %v1963 = vld [vmem:[%s728 + $0x980] sm:$0xff]
        %v1964 = vld [vmem:[%s728 + $0x988] sm:$0xff]
        %v1965 = vld [vmem:[%s728 + $0x990] sm:$0xff]
        %v1966 = vld [vmem:[%s728 + $0x998] sm:$0xff]
        %v1967 = vld [vmem:[%s728 + $0x9a0] sm:$0xff]
        %v1968 = vld [vmem:[%s728 + $0x9a8] sm:$0xff]
        %v1969 = vld [vmem:[%s728 + $0x9b0] sm:$0xff]
        %v1970 = vld [vmem:[%s728 + $0x9b8] sm:$0xff]
        %v1971 = vld [vmem:[%s728 + $0x9c0] sm:$0xff]
        %v1972 = vld [vmem:[%s728 + $0x9c8] sm:$0xff]
        %v1973 = vld [vmem:[%s728 + $0x9d0] sm:$0xff]
        %v1974 = vld [vmem:[%s728 + $0x9d8] sm:$0xff]
        %v1975 = vld [vmem:[%s728 + $0x9e0] sm:$0xff]
        %v1976 = vld [vmem:[%s728 + $0x9e8] sm:$0xff]
        %v1977 = vld [vmem:[%s728 + $0x9f0] sm:$0xff]
        %v1978 = vld [vmem:[%s728 + $0x9f8] sm:$0xff]
        %v1979 = vld [vmem:[%s728 + $0xa00] sm:$0xff]
        %v1980 = vld [vmem:[%s728 + $0xa08] sm:$0xff]
        %v1981 = vld [vmem:[%s728 + $0xa10] sm:$0xff]
        %v1982 = vld [vmem:[%s728 + $0xa18] sm:$0xff]
        %v1983 = vld [vmem:[%s728 + $0xa20] sm:$0xff]
        %v1984 = vld [vmem:[%s728 + $0xa28] sm:$0xff]
        %v1985 = vld [vmem:[%s728 + $0xa30] sm:$0xff]
        %v1986 = vld [vmem:[%s728 + $0xa38] sm:$0xff]
        %v1987 = vld [vmem:[%s728 + $0xa40] sm:$0xff]
        %v1988 = vld [vmem:[%s728 + $0xa48] sm:$0xff]
        %v1989 = vld [vmem:[%s728 + $0xa50] sm:$0xff]
        %v1990 = vld [vmem:[%s728 + $0xa58] sm:$0xff]
        %v1991 = vld [vmem:[%s728 + $0xa60] sm:$0xff]
        %v1992 = vld [vmem:[%s728 + $0xa68] sm:$0xff]
        %v1993 = vld [vmem:[%s728 + $0xa70] sm:$0xff]
        %v1994 = vld [vmem:[%s728 + $0xa78] sm:$0xff]
        %v1995 = vld [vmem:[%s728 + $0xa80] sm:$0xff]
        %v1996 = vld [vmem:[%s728 + $0xa88] sm:$0xff]
        %v1997 = vld [vmem:[%s728 + $0xa90] sm:$0xff]
        %v1998 = vld [vmem:[%s728 + $0xa98] sm:$0xff]
        %v1999 = vld [vmem:[%s728 + $0xaa0] sm:$0xff]
        %v2000 = vld [vmem:[%s728 + $0xaa8] sm:$0xff]
        %v2001 = vld [vmem:[%s728 + $0xab0] sm:$0xff]
        %v2002 = vld [vmem:[%s728 + $0xab8] sm:$0xff]
        %v2003 = vld [vmem:[%s728 + $0xac0] sm:$0xff]
        %v2004 = vld [vmem:[%s728 + $0xac8] sm:$0xff]
        %v2005 = vld [vmem:[%s728 + $0xad0] sm:$0xff]
        %v2006 = vld [vmem:[%s728 + $0xad8] sm:$0xff]
        %v2007 = vld [vmem:[%s728 + $0xae0] sm:$0xff]
        %v2008 = vld [vmem:[%s728 + $0xae8] sm:$0xff]
        %v2009 = vld [vmem:[%s728 + $0xaf0] sm:$0xff]
        %v2010 = vld [vmem:[%s728 + $0xaf8] sm:$0xff]
        %v2011 = vld [vmem:[%s728 + $0xb00] sm:$0xff]
        %v2012 = vld [vmem:[%s728 + $0xb08] sm:$0xff]
        %v2013 = vld [vmem:[%s728 + $0xb10] sm:$0xff]
        %v2014 = vld [vmem:[%s728 + $0xb18] sm:$0xff]
        %v2015 = vld [vmem:[%s728 + $0xb20] sm:$0xff]
        %v2016 = vld [vmem:[%s728 + $0xb28] sm:$0xff]
        %v2017 = vld [vmem:[%s728 + $0xb30] sm:$0xff]
        %v2018 = vld [vmem:[%s728 + $0xb38] sm:$0xff]
        %v2019 = vld [vmem:[%s728 + $0xb40] sm:$0xff]
        %v2020 = vld [vmem:[%s728 + $0xb48] sm:$0xff]
        %v2021 = vld [vmem:[%s728 + $0xb50] sm:$0xff]
        %v2022 = vld [vmem:[%s728 + $0xb58] sm:$0xff]
        %v2023 = vld [vmem:[%s728 + $0xb60] sm:$0xff]
        %v2024 = vld [vmem:[%s728 + $0xb68] sm:$0xff]
        %v2025 = vld [vmem:[%s728 + $0xb70] sm:$0xff]
        %v2026 = vld [vmem:[%s728 + $0xb78] sm:$0xff]
        %v2027 = vld [vmem:[%s728 + $0xb80] sm:$0xff]
        %v2028 = vld [vmem:[%s728 + $0xb88] sm:$0xff]
        %v2029 = vld [vmem:[%s728 + $0xb90] sm:$0xff]
        %v2030 = vld [vmem:[%s728 + $0xb98] sm:$0xff]
        %v2031 = vld [vmem:[%s728 + $0xba0] sm:$0xff]
        %v2032 = vld [vmem:[%s728 + $0xba8] sm:$0xff]
        %v2033 = vld [vmem:[%s728 + $0xbb0] sm:$0xff]
        %v2034 = vld [vmem:[%s728 + $0xbb8] sm:$0xff]
        %v2035 = vld [vmem:[%s728 + $0xbc0] sm:$0xff]
        %v2036 = vld [vmem:[%s728 + $0xbc8] sm:$0xff]
        %v2037 = vld [vmem:[%s728 + $0xbd0] sm:$0xff]
        %v2038 = vld [vmem:[%s728 + $0xbd8] sm:$0xff]
        %v2039 = vld [vmem:[%s728 + $0xbe0] sm:$0xff]
        %v2040 = vld [vmem:[%s728 + $0xbe8] sm:$0xff]
        %v2041 = vld [vmem:[%s728 + $0xbf0] sm:$0xff]
        %v2042 = vld [vmem:[%s728 + $0xbf8] sm:$0xff]
        %v2043 = vld [vmem:[%s728 + $0xc00] sm:$0xff]
        %v2044 = vld [vmem:[%s728 + $0xc08] sm:$0xff]
        %v2045 = vld [vmem:[%s728 + $0xc10] sm:$0xff]
        %v2046 = vld [vmem:[%s728 + $0xc18] sm:$0xff]
        %v2047 = vld [vmem:[%s728 + $0xc20] sm:$0xff]
        %v2048 = vld [vmem:[%s728 + $0xc28] sm:$0xff]
        %v2049 = vld [vmem:[%s728 + $0xc30] sm:$0xff]
        %v2050 = vld [vmem:[%s728 + $0xc38] sm:$0xff]
        %v2051 = vld [vmem:[%s728 + $0xc40] sm:$0xff]
        %v2052 = vld [vmem:[%s728 + $0xc48] sm:$0xff]
        %v2053 = vld [vmem:[%s728 + $0xc50] sm:$0xff]
        %v2054 = vld [vmem:[%s728 + $0xc58] sm:$0xff]
        %v2055 = vld [vmem:[%s728 + $0xc60] sm:$0xff]
        %v2056 = vld [vmem:[%s728 + $0xc68] sm:$0xff]
        %v2057 = vld [vmem:[%s728 + $0xc70] sm:$0xff]
        %v2058 = vld [vmem:[%s728 + $0xc78] sm:$0xff]
        %v2059 = vld [vmem:[%s728 + $0xc80] sm:$0xff]
        %v2060 = vld [vmem:[%s728 + $0xc88] sm:$0xff]
        %v2061 = vld [vmem:[%s728 + $0xc90] sm:$0xff]
        %v2062 = vld [vmem:[%s728 + $0xc98] sm:$0xff]
        %v2063 = vld [vmem:[%s728 + $0xca0] sm:$0xff]
        %v2064 = vld [vmem:[%s728 + $0xca8] sm:$0xff]
        %v2065 = vld [vmem:[%s728 + $0xcb0] sm:$0xff]
        %v2066 = vld [vmem:[%s728 + $0xcb8] sm:$0xff]
        %v2067 = vld [vmem:[%s728 + $0xcc0] sm:$0xff]
        %v2068 = vld [vmem:[%s728 + $0xcc8] sm:$0xff]
        %v2069 = vld [vmem:[%s728 + $0xcd0] sm:$0xff]
        %v2070 = vld [vmem:[%s728 + $0xcd8] sm:$0xff]
        %v2071 = vld [vmem:[%s728 + $0xce0] sm:$0xff]
        %v2072 = vld [vmem:[%s728 + $0xce8] sm:$0xff]
        %v2073 = vld [vmem:[%s728 + $0xcf0] sm:$0xff]
        %v2074 = vld [vmem:[%s728 + $0xcf8] sm:$0xff]
        %v2075 = vld [vmem:[%s728 + $0xd00] sm:$0xff]
        %v2076 = vld [vmem:[%s728 + $0xd08] sm:$0xff]
        %v2077 = vld [vmem:[%s728 + $0xd10] sm:$0xff]
        %v2078 = vld [vmem:[%s728 + $0xd18] sm:$0xff]
        %v2079 = vld [vmem:[%s728 + $0xd20] sm:$0xff]
        %v2080 = vld [vmem:[%s728 + $0xd28] sm:$0xff]
        %v2081 = vld [vmem:[%s728 + $0xd30] sm:$0xff]
        %v2082 = vld [vmem:[%s728 + $0xd38] sm:$0xff]
        %v2083 = vld [vmem:[%s728 + $0xd40] sm:$0xff]
        %v2084 = vld [vmem:[%s728 + $0xd48] sm:$0xff]
        %v2085 = vld [vmem:[%s728 + $0xd50] sm:$0xff]
        %v2086 = vld [vmem:[%s728 + $0xd58] sm:$0xff]
        %v2087 = vld [vmem:[%s728 + $0xd60] sm:$0xff]
        %v2088 = vld [vmem:[%s728 + $0xd68] sm:$0xff]
        %v2089 = vld [vmem:[%s728 + $0xd70] sm:$0xff]
        %v2090 = vld [vmem:[%s728 + $0xd78] sm:$0xff]
        %v2091 = vld [vmem:[%s728 + $0xd80] sm:$0xff]
        %v2092 = vld [vmem:[%s728 + $0xd88] sm:$0xff]
        %v2093 = vld [vmem:[%s728 + $0xd90] sm:$0xff]
        %v2094 = vld [vmem:[%s728 + $0xd98] sm:$0xff]
        %v2095 = vld [vmem:[%s728 + $0xda0] sm:$0xff]
        %v2096 = vld [vmem:[%s728 + $0xda8] sm:$0xff]
        %v2097 = vld [vmem:[%s728 + $0xdb0] sm:$0xff]
        %v2098 = vld [vmem:[%s728 + $0xdb8] sm:$0xff]
        %v2099 = vld [vmem:[%s728 + $0xdc0] sm:$0xff]
        %v2100 = vld [vmem:[%s728 + $0xdc8] sm:$0xff]
        %v2101 = vld [vmem:[%s728 + $0xdd0] sm:$0xff]
        %v2102 = vld [vmem:[%s728 + $0xdd8] sm:$0xff]
        %v2103 = vld [vmem:[%s728 + $0xde0] sm:$0xff]
        %v2104 = vld [vmem:[%s728 + $0xde8] sm:$0xff]
        %v2105 = vld [vmem:[%s728 + $0xdf0] sm:$0xff]
        %v2106 = vld [vmem:[%s728 + $0xdf8] sm:$0xff]
        %v2107 = vld [vmem:[%s728 + $0xe00] sm:$0xff]
        %v2108 = vld [vmem:[%s728 + $0xe08] sm:$0xff]
        %v2109 = vld [vmem:[%s728 + $0xe10] sm:$0xff]
        %v2110 = vld [vmem:[%s728 + $0xe18] sm:$0xff]
        %v2111 = vld [vmem:[%s728 + $0xe20] sm:$0xff]
        %v2112 = vld [vmem:[%s728 + $0xe28] sm:$0xff]
        %v2113 = vld [vmem:[%s728 + $0xe30] sm:$0xff]
        %v2114 = vld [vmem:[%s728 + $0xe38] sm:$0xff]
        %v2115 = vld [vmem:[%s728 + $0xe40] sm:$0xff]
        %v2116 = vld [vmem:[%s728 + $0xe48] sm:$0xff]
        %v2117 = vld [vmem:[%s728 + $0xe50] sm:$0xff]
        %v2118 = vld [vmem:[%s728 + $0xe58] sm:$0xff]
        %v2119 = vld [vmem:[%s728 + $0xe60] sm:$0xff]
        %v2120 = vld [vmem:[%s728 + $0xe68] sm:$0xff]
        %v2121 = vld [vmem:[%s728 + $0xe70] sm:$0xff]
        %v2122 = vld [vmem:[%s728 + $0xe78] sm:$0xff]
        %v2123 = vld [vmem:[%s728 + $0xe80] sm:$0xff]
        %v2124 = vld [vmem:[%s728 + $0xe88] sm:$0xff]
        %v2125 = vld [vmem:[%s728 + $0xe90] sm:$0xff]
        %v2126 = vld [vmem:[%s728 + $0xe98] sm:$0xff]
        %v2127 = vld [vmem:[%s728 + $0xea0] sm:$0xff]
        %v2128 = vld [vmem:[%s728 + $0xea8] sm:$0xff]
        %v2129 = vld [vmem:[%s728 + $0xeb0] sm:$0xff]
        %v2130 = vld [vmem:[%s728 + $0xeb8] sm:$0xff]
        %v2131 = vld [vmem:[%s728 + $0xec0] sm:$0xff]
        %v2132 = vld [vmem:[%s728 + $0xec8] sm:$0xff]
        %v2133 = vld [vmem:[%s728 + $0xed0] sm:$0xff]
        %v2134 = vld [vmem:[%s728 + $0xed8] sm:$0xff]
        %v2135 = vld [vmem:[%s728 + $0xee0] sm:$0xff]
        %v2136 = vld [vmem:[%s728 + $0xee8] sm:$0xff]
        %v2137 = vld [vmem:[%s728 + $0xef0] sm:$0xff]
        %v2138 = vld [vmem:[%s728 + $0xef8] sm:$0xff]
        %v2139 = vld [vmem:[%s728 + $0xf00] sm:$0xff]
        %v2140 = vld [vmem:[%s728 + $0xf08] sm:$0xff]
        %v2141 = vld [vmem:[%s728 + $0xf10] sm:$0xff]
        %v2142 = vld [vmem:[%s728 + $0xf18] sm:$0xff]
        %v2143 = vld [vmem:[%s728 + $0xf20] sm:$0xff]
        %v2144 = vld [vmem:[%s728 + $0xf28] sm:$0xff]
        %v2145 = vld [vmem:[%s728 + $0xf30] sm:$0xff]
        %v2146 = vld [vmem:[%s728 + $0xf38] sm:$0xff]
        %v2147 = vld [vmem:[%s728 + $0xf40] sm:$0xff]
        %v2148 = vld [vmem:[%s728 + $0xf48] sm:$0xff]
        %v2149 = vld [vmem:[%s728 + $0xf50] sm:$0xff]
        %v2150 = vld [vmem:[%s728 + $0xf58] sm:$0xff]
        %v2151 = vld [vmem:[%s728 + $0xf60] sm:$0xff]
        %v2152 = vld [vmem:[%s728 + $0xf68] sm:$0xff]
        %v2153 = vld [vmem:[%s728 + $0xf70] sm:$0xff]
        %v2154 = vld [vmem:[%s728 + $0xf78] sm:$0xff]
        %v2155 = vld [vmem:[%s728 + $0xf80] sm:$0xff]
        %v2156 = vld [vmem:[%s728 + $0xf88] sm:$0xff]
        %v2157 = vld [vmem:[%s728 + $0xf90] sm:$0xff]
        %v2158 = vld [vmem:[%s728 + $0xf98] sm:$0xff]
        %v2159 = vld [vmem:[%s728 + $0xfa0] sm:$0xff]
        %v2160 = vld [vmem:[%s728 + $0xfa8] sm:$0xff]
        %v2161 = vld [vmem:[%s728 + $0xfb0] sm:$0xff]
        %v2162 = vld [vmem:[%s728 + $0xfb8] sm:$0xff]
        %v2163 = vld [vmem:[%s728 + $0xfc0] sm:$0xff]
        %v2164 = vld [vmem:[%s728 + $0xfc8] sm:$0xff]
        %v2165 = vld [vmem:[%s728 + $0xfd0] sm:$0xff]
        %v2166 = vld [vmem:[%s728 + $0xfd8] sm:$0xff]
        %v2167 = vld [vmem:[%s728 + $0xfe0] sm:$0xff]
        %v2168 = vld [vmem:[%s728 + $0xfe8] sm:$0xff]
        %v2169 = vld [vmem:[%s728 + $0xff0] sm:$0xff]
        %v2170 = vld [vmem:[%s728 + $0xff8] sm:$0xff]
        %v2171 = vld [vmem:[%s728 + $0x1000] sm:$0xff]
        %v2172 = vld [vmem:[%s728 + $0x1008] sm:$0xff]
        %v2173 = vld [vmem:[%s728 + $0x1010] sm:$0xff]
        %v2174 = vld [vmem:[%s728 + $0x1018] sm:$0xff]
        %v2175 = vld [vmem:[%s728 + $0x1020] sm:$0xff]
        %v2176 = vld [vmem:[%s728 + $0x1028] sm:$0xff]
        %v2177 = vld [vmem:[%s728 + $0x1030] sm:$0xff]
        %v2178 = vld [vmem:[%s728 + $0x1038] sm:$0xff]
        %v2179 = vld [vmem:[%s728 + $0x1040] sm:$0xff]
        %v2180 = vld [vmem:[%s728 + $0x1048] sm:$0xff]
        %v2181 = vld [vmem:[%s728 + $0x1050] sm:$0xff]
        %v2182 = vld [vmem:[%s728 + $0x1058] sm:$0xff]
        %v2183 = vld [vmem:[%s728 + $0x1060] sm:$0xff]
        %v2184 = vld [vmem:[%s728 + $0x1068] sm:$0xff]
        %v2185 = vld [vmem:[%s728 + $0x1070] sm:$0xff]
        %v2186 = vld [vmem:[%s728 + $0x1078] sm:$0xff]
        %v2187 = vld [vmem:[%s728 + $0x1080] sm:$0xff]
        %v2188 = vld [vmem:[%s728 + $0x1088] sm:$0xff]
        %v2189 = vld [vmem:[%s728 + $0x1090] sm:$0xff]
        %v2190 = vld [vmem:[%s728 + $0x1098] sm:$0xff]
        %v2191 = vld [vmem:[%s728 + $0x10a0] sm:$0xff]
        %v2192 = vld [vmem:[%s728 + $0x10a8] sm:$0xff]
        %v2193 = vld [vmem:[%s728 + $0x10b0] sm:$0xff]
        %v2194 = vld [vmem:[%s728 + $0x10b8] sm:$0xff]
        %v2195 = vld [vmem:[%s728 + $0x10c0] sm:$0xff]
        %v2196 = vld [vmem:[%s728 + $0x10c8] sm:$0xff]
        %v2197 = vld [vmem:[%s728 + $0x10d0] sm:$0xff]
        %v2198 = vld [vmem:[%s728 + $0x10d8] sm:$0xff]
        %v2199 = vld [vmem:[%s728 + $0x10e0] sm:$0xff]
        %v2200 = vld [vmem:[%s728 + $0x10e8] sm:$0xff]
        %v2201 = vld [vmem:[%s728 + $0x10f0] sm:$0xff]
        %v2202 = vld [vmem:[%s728 + $0x10f8] sm:$0xff]
        %v2203 = vld [vmem:[%s728 + $0x1100] sm:$0xff]
        %v2204 = vld [vmem:[%s728 + $0x1108] sm:$0xff]
        %v2205 = vld [vmem:[%s728 + $0x1110] sm:$0x1]
        %vm2206 = vcmask 138240
        %v2208 = vsel %vm2206, %v1658, 0
        %v2211 = vsel %vm1336, %v2205, 0
        %2213 = vmatprep.subr.mxu0 0.0
        %2214 = vmatpush1.msra.mxu0 %v1659
        %2215 = vmatprep.subr.mxu0 0.0
        %2216 = vmatpush1.msra.mxu0 %v1660
        %2217 = vmatprep.subr.mxu0 0.0
        %2218 = vmatpush1.msra.mxu0 %v1661
        %2219 = vmatprep.subr.mxu0 0.0
        %2220 = vmatpush1.msra.mxu0 %v1662
        %2221 = vmatprep.subr.mxu0 0.0
        %2222 = vmatpush1.msra.mxu0 %v1663
        %2223 = vmatprep.subr.mxu0 0.0
        %2224 = vmatpush1.msra.mxu0 %v1664
        %2225 = vmatprep.subr.mxu0 0.0
        %2226 = vmatpush1.msra.mxu0 %v1665
        %2227 = vmatprep.subr.mxu0 0.0
        %2228 = vmatpush1.msra.mxu0 %v1666
        %2229 = vmatprep.subr.mxu0 0.0
        %2230 = vmatpush1.msra.mxu0 %v1667
        %2231 = vmatprep.subr.mxu0 0.0
        %2232 = vmatpush1.msra.mxu0 %v1668
        %2233 = vmatprep.subr.mxu0 0.0
        %2234 = vmatpush1.msra.mxu0 %v1669
        %2235 = vmatprep.subr.mxu0 0.0
        %2236 = vmatpush1.msra.mxu0 %v1670
        %2237 = vmatprep.subr.mxu0 0.0
        %2238 = vmatpush1.msra.mxu0 %v1671
        %2239 = vmatprep.subr.mxu0 0.0
        %2240 = vmatpush1.msra.mxu0 %v1672
        %2241 = vmatprep.subr.mxu0 0.0
        %2242 = vmatpush1.msra.mxu0 %v1673
        %2243 = vmatprep.subr.mxu0 0.0
        %2244 = vmatpush1.msra.mxu0 %v1674
        %2245 = vmatprep.subr.mxu0 0.0
        %2246 = vmatpush1.msra.mxu0 %v1675
        %2247 = vmatprep.subr.mxu0 0.0
        %2248 = vmatpush1.msra.mxu0 %v1676
        %2249 = vmatprep.subr.mxu0 0.0
        %2250 = vmatpush1.msra.mxu0 %v1677
        %2251 = vmatprep.subr.mxu0 0.0
        %2252 = vmatpush1.msra.mxu0 %v1678
        %2253 = vmatprep.subr.mxu0 0.0
        %2254 = vmatpush1.msra.mxu0 %v1679
        %2255 = vmatprep.subr.mxu0 0.0
        %2256 = vmatpush1.msra.mxu0 %v1680
        %2257 = vmatprep.subr.mxu0 0.0
        %2258 = vmatpush1.msra.mxu0 %v1681
        %2259 = vmatprep.subr.mxu0 0.0
        %2260 = vmatpush1.msra.mxu0 %v1682
        %2261 = vmatprep.subr.mxu0 0.0
        %2262 = vmatpush1.msra.mxu0 %v1683
        %2263 = vmatprep.subr.mxu0 0.0
        %2264 = vmatpush1.msra.mxu0 %v1684
        %2265 = vmatprep.subr.mxu0 0.0
        %2266 = vmatpush1.msra.mxu0 %v1685
        %2267 = vmatprep.subr.mxu0 0.0
        %2268 = vmatpush1.msra.mxu0 %v1686
        %2269 = vmatprep.subr.mxu0 0.0
        %2270 = vmatpush1.msra.mxu0 %v1687
        %2271 = vmatprep.subr.mxu0 0.0
        %2272 = vmatpush1.msra.mxu0 %v1688
        %2273 = vmatprep.subr.mxu0 0.0
        %2274 = vmatpush1.msra.mxu0 %v1689
        %2275 = vmatprep.subr.mxu0 0.0
        %2276 = vmatpush1.msra.mxu0 %v1690
        %2277 = vmatprep.mubr.f32.mxu0 %v1563
        %2278 = vmatmul.mubr.f32.gmra.mrb[0].mxu0 %v1562
        %v2279 = vpop.f32.mrb[0].mxu0
        %v2280 = vadd.f32 %v952, %v2279
        %v2281 = vpop.f32.mrb[0].mxu0
        %2282 = vdwg.mxu0
        %2283 = vmatprep.subr.mxu0 0.0
        %2284 = vmatpush1.msra.mxu0 %v1691
        %2285 = vmatprep.subr.mxu0 0.0
        %2286 = vmatpush1.msra.mxu0 %v1692
        %2287 = vmatprep.subr.mxu0 0.0
        %2288 = vmatpush1.msra.mxu0 %v1693
        %2289 = vmatprep.subr.mxu0 0.0
        %2290 = vmatpush1.msra.mxu0 %v1694
        %2291 = vmatprep.subr.mxu0 0.0
        %2292 = vmatpush1.msra.mxu0 %v1695
        %2293 = vmatprep.subr.mxu0 0.0
        %2294 = vmatpush1.msra.mxu0 %v1696
        %2295 = vmatprep.subr.mxu0 0.0
        %2296 = vmatpush1.msra.mxu0 %v1697
        %2297 = vmatprep.subr.mxu0 0.0
        %2298 = vmatpush1.msra.mxu0 %v1698
        %2299 = vmatprep.subr.mxu0 0.0
        %2300 = vmatpush1.msra.mxu0 %v1699
        %2301 = vmatprep.subr.mxu0 0.0
        %2302 = vmatpush1.msra.mxu0 %v1700
        %2303 = vmatprep.subr.mxu0 0.0
        %2304 = vmatpush1.msra.mxu0 %v1701
        %2305 = vmatprep.subr.mxu0 0.0
        %2306 = vmatpush1.msra.mxu0 %v1702
        %2307 = vmatprep.subr.mxu0 0.0
        %2308 = vmatpush1.msra.mxu0 %v1703
        %2309 = vmatprep.subr.mxu0 0.0
        %2310 = vmatpush1.msra.mxu0 %v1704
        %2311 = vmatprep.subr.mxu0 0.0
        %2312 = vmatpush1.msra.mxu0 %v1705
        %2313 = vmatprep.subr.mxu0 0.0
        %2314 = vmatpush1.msra.mxu0 %v1706
        %2315 = vmatprep.subr.mxu0 0.0
        %2316 = vmatpush1.msra.mxu0 %v1707
        %2317 = vmatprep.subr.mxu0 0.0
        %2318 = vmatpush1.msra.mxu0 %v1708
        %2319 = vmatprep.subr.mxu0 0.0
        %2320 = vmatpush1.msra.mxu0 %v1709
        %2321 = vmatprep.subr.mxu0 0.0
        %2322 = vmatpush1.msra.mxu0 %v1710
        %2323 = vmatprep.subr.mxu0 0.0
        %2324 = vmatpush1.msra.mxu0 %v1711
        %2325 = vmatprep.subr.mxu0 0.0
        %2326 = vmatpush1.msra.mxu0 %v1712
        %2327 = vmatprep.subr.mxu0 0.0
        %2328 = vmatpush1.msra.mxu0 %v1713
        %2329 = vmatprep.subr.mxu0 0.0
        %2330 = vmatpush1.msra.mxu0 %v1714
        %2331 = vmatprep.subr.mxu0 0.0
        %2332 = vmatpush1.msra.mxu0 %v1715
        %2333 = vmatprep.subr.mxu0 0.0
        %2334 = vmatpush1.msra.mxu0 %v1716
        %2335 = vmatprep.subr.mxu0 0.0
        %2336 = vmatpush1.msra.mxu0 %v1717
        %2337 = vmatprep.subr.mxu0 0.0
        %2338 = vmatpush1.msra.mxu0 %v1718
        %2339 = vmatprep.subr.mxu0 0.0
        %2340 = vmatpush1.msra.mxu0 %v1719
        %2341 = vmatprep.subr.mxu0 0.0
        %2342 = vmatpush1.msra.mxu0 %v1720
        %2343 = vmatprep.subr.mxu0 0.0
        %2344 = vmatpush1.msra.mxu0 %v1721
        %2345 = vmatprep.subr.mxu0 0.0
        %2346 = vmatpush1.msra.mxu0 %v1722
        %2347 = vmatprep.mubr.f32.mxu0 %v1569
        %2348 = vmatmul.mubr.f32.gmra.mrb[0].mxu0 %v1568
        %v2349 = vpop.f32.mrb[0].mxu0
        %v2350 = vadd.f32 %v2280, %v2349
        %v2351 = vpop.f32.mrb[0].mxu0
        %2352 = vdwg.mxu0
        %2353 = vmatprep.subr.mxu0 0.0
        %2354 = vmatpush1.msra.mxu0 %v1723
        %2355 = vmatprep.subr.mxu0 0.0
        %2356 = vmatpush1.msra.mxu0 %v1724
        %2357 = vmatprep.subr.mxu0 0.0
        %2358 = vmatpush1.msra.mxu0 %v1725
        %2359 = vmatprep.subr.mxu0 0.0
        %2360 = vmatpush1.msra.mxu0 %v1726
        %2361 = vmatprep.subr.mxu0 0.0
        %2362 = vmatpush1.msra.mxu0 %v1727
        %2363 = vmatprep.subr.mxu0 0.0
        %2364 = vmatpush1.msra.mxu0 %v1728
        %2365 = vmatprep.subr.mxu0 0.0
        %2366 = vmatpush1.msra.mxu0 %v1729
        %2367 = vmatprep.subr.mxu0 0.0
        %2368 = vmatpush1.msra.mxu0 %v1730
        %2369 = vmatprep.subr.mxu0 0.0
        %2370 = vmatpush1.msra.mxu0 %v1731
        %2371 = vmatprep.subr.mxu0 0.0
        %2372 = vmatpush1.msra.mxu0 %v1732
        %2373 = vmatprep.subr.mxu0 0.0
        %2374 = vmatpush1.msra.mxu0 %v1733
        %2375 = vmatprep.subr.mxu0 0.0
        %2376 = vmatpush1.msra.mxu0 %v1734
        %2377 = vmatprep.subr.mxu0 0.0
        %2378 = vmatpush1.msra.mxu0 %v1735
        %2379 = vmatprep.subr.mxu0 0.0
        %2380 = vmatpush1.msra.mxu0 %v1736
        %2381 = vmatprep.subr.mxu0 0.0
        %2382 = vmatpush1.msra.mxu0 %v1737
        %2383 = vmatprep.subr.mxu0 0.0
        %2384 = vmatpush1.msra.mxu0 %v1738
        %2385 = vmatprep.subr.mxu0 0.0
        %2386 = vmatpush1.msra.mxu0 %v1739
        %2387 = vmatprep.subr.mxu0 0.0
        %2388 = vmatpush1.msra.mxu0 %v1740
        %2389 = vmatprep.subr.mxu0 0.0
        %2390 = vmatpush1.msra.mxu0 %v1741
        %2391 = vmatprep.subr.mxu0 0.0
        %2392 = vmatpush1.msra.mxu0 %v1742
        %2393 = vmatprep.subr.mxu0 0.0
        %2394 = vmatpush1.msra.mxu0 %v1743
        %2395 = vmatprep.subr.mxu0 0.0
        %2396 = vmatpush1.msra.mxu0 %v1744
        %2397 = vmatprep.subr.mxu0 0.0
        %2398 = vmatpush1.msra.mxu0 %v1745
        %2399 = vmatprep.subr.mxu0 0.0
        %2400 = vmatpush1.msra.mxu0 %v1746
        %2401 = vmatprep.subr.mxu0 0.0
        %2402 = vmatpush1.msra.mxu0 %v1747
        %2403 = vmatprep.subr.mxu0 0.0
        %2404 = vmatpush1.msra.mxu0 %v1748
        %2405 = vmatprep.subr.mxu0 0.0
        %2406 = vmatpush1.msra.mxu0 %v1749
        %2407 = vmatprep.subr.mxu0 0.0
        %2408 = vmatpush1.msra.mxu0 %v1750
        %2409 = vmatprep.subr.mxu0 0.0
        %2410 = vmatpush1.msra.mxu0 %v1751
        %2411 = vmatprep.subr.mxu0 0.0
        %2412 = vmatpush1.msra.mxu0 %v1752
        %2413 = vmatprep.subr.mxu0 0.0
        %2414 = vmatpush1.msra.mxu0 %v1753
        %2415 = vmatprep.subr.mxu0 0.0
        %2416 = vmatpush1.msra.mxu0 %v1754
        %2417 = vmatprep.mubr.f32.mxu0 %v1575
        %2418 = vmatmul.mubr.f32.gmra.mrb[0].mxu0 %v1574
        %v2419 = vpop.f32.mrb[0].mxu0
        %v2420 = vadd.f32 %v2350, %v2419
        %v2421 = vpop.f32.mrb[0].mxu0
        %2422 = vdwg.mxu0
        %2423 = vmatprep.subr.mxu0 0.0
        %2424 = vmatpush1.msra.mxu0 %v1755
        %2425 = vmatprep.subr.mxu0 0.0
        %2426 = vmatpush1.msra.mxu0 %v1756
        %2427 = vmatprep.subr.mxu0 0.0
        %2428 = vmatpush1.msra.mxu0 %v1757
        %2429 = vmatprep.subr.mxu0 0.0
        %2430 = vmatpush1.msra.mxu0 %v1758
        %2431 = vmatprep.subr.mxu0 0.0
        %2432 = vmatpush1.msra.mxu0 %v1759
        %2433 = vmatprep.subr.mxu0 0.0
        %2434 = vmatpush1.msra.mxu0 %v1760
        %2435 = vmatprep.subr.mxu0 0.0
        %2436 = vmatpush1.msra.mxu0 %v1761
        %2437 = vmatprep.subr.mxu0 0.0
        %2438 = vmatpush1.msra.mxu0 %v1762
        %2439 = vmatprep.subr.mxu0 0.0
        %2440 = vmatpush1.msra.mxu0 %v1763
        %2441 = vmatprep.subr.mxu0 0.0
        %2442 = vmatpush1.msra.mxu0 %v1764
        %2443 = vmatprep.subr.mxu0 0.0
        %2444 = vmatpush1.msra.mxu0 %v1765
        %2445 = vmatprep.subr.mxu0 0.0
        %2446 = vmatpush1.msra.mxu0 %v1766
        %2447 = vmatprep.subr.mxu0 0.0
        %2448 = vmatpush1.msra.mxu0 %v1767
        %2449 = vmatprep.subr.mxu0 0.0
        %2450 = vmatpush1.msra.mxu0 %v1768
        %2451 = vmatprep.subr.mxu0 0.0
        %2452 = vmatpush1.msra.mxu0 %v1769
        %2453 = vmatprep.subr.mxu0 0.0
        %2454 = vmatpush1.msra.mxu0 %v1770
        %2455 = vmatprep.subr.mxu0 0.0
        %2456 = vmatpush1.msra.mxu0 %v1771
        %2457 = vmatprep.subr.mxu0 0.0
        %2458 = vmatpush1.msra.mxu0 %v1772
        %2459 = vmatprep.subr.mxu0 0.0
        %2460 = vmatpush1.msra.mxu0 %v1773
        %2461 = vmatprep.subr.mxu0 0.0
        %2462 = vmatpush1.msra.mxu0 %v1774
        %2463 = vmatprep.subr.mxu0 0.0
        %2464 = vmatpush1.msra.mxu0 %v1775
        %2465 = vmatprep.subr.mxu0 0.0
        %2466 = vmatpush1.msra.mxu0 %v1776
        %2467 = vmatprep.subr.mxu0 0.0
        %2468 = vmatpush1.msra.mxu0 %v1777
        %2469 = vmatprep.subr.mxu0 0.0
        %2470 = vmatpush1.msra.mxu0 %v1778
        %2471 = vmatprep.subr.mxu0 0.0
        %2472 = vmatpush1.msra.mxu0 %v1779
        %2473 = vmatprep.subr.mxu0 0.0
        %2474 = vmatpush1.msra.mxu0 %v1780
        %2475 = vmatprep.subr.mxu0 0.0
        %2476 = vmatpush1.msra.mxu0 %v1781
        %2477 = vmatprep.subr.mxu0 0.0
        %2478 = vmatpush1.msra.mxu0 %v1782
        %2479 = vmatprep.subr.mxu0 0.0
        %2480 = vmatpush1.msra.mxu0 %v1783
        %2481 = vmatprep.subr.mxu0 0.0
        %2482 = vmatpush1.msra.mxu0 %v1784
        %2483 = vmatprep.subr.mxu0 0.0
        %2484 = vmatpush1.msra.mxu0 %v1785
        %2485 = vmatprep.subr.mxu0 0.0
        %2486 = vmatpush1.msra.mxu0 %v1786
        %2487 = vmatprep.mubr.f32.mxu0 %v1581
        %2488 = vmatmul.mubr.f32.gmra.mrb[0].mxu0 %v1580
        %v2489 = vpop.f32.mrb[0].mxu0
        %v2490 = vadd.f32 %v2420, %v2489
        %v2491 = vpop.f32.mrb[0].mxu0
        %2492 = vdwg.mxu0
        %2493 = vmatprep.subr.mxu0 0.0
        %2494 = vmatpush1.msra.mxu0 %v1787
        %2495 = vmatprep.subr.mxu0 0.0
        %2496 = vmatpush1.msra.mxu0 %v1788
        %2497 = vmatprep.subr.mxu0 0.0
        %2498 = vmatpush1.msra.mxu0 %v1789
        %2499 = vmatprep.subr.mxu0 0.0
        %2500 = vmatpush1.msra.mxu0 %v1790
        %2501 = vmatprep.subr.mxu0 0.0
        %2502 = vmatpush1.msra.mxu0 %v1791
        %2503 = vmatprep.subr.mxu0 0.0
        %2504 = vmatpush1.msra.mxu0 %v1792
        %2505 = vmatprep.subr.mxu0 0.0
        %2506 = vmatpush1.msra.mxu0 %v1793
        %2507 = vmatprep.subr.mxu0 0.0
        %2508 = vmatpush1.msra.mxu0 %v1794
        %2509 = vmatprep.subr.mxu0 0.0
        %2510 = vmatpush1.msra.mxu0 %v1795
        %2511 = vmatprep.subr.mxu0 0.0
        %2512 = vmatpush1.msra.mxu0 %v1796
        %2513 = vmatprep.subr.mxu0 0.0
        %2514 = vmatpush1.msra.mxu0 %v1797
        %2515 = vmatprep.subr.mxu0 0.0
        %2516 = vmatpush1.msra.mxu0 %v1798
        %2517 = vmatprep.subr.mxu0 0.0
        %2518 = vmatpush1.msra.mxu0 %v1799
        %2519 = vmatprep.subr.mxu0 0.0
        %2520 = vmatpush1.msra.mxu0 %v1800
        %2521 = vmatprep.subr.mxu0 0.0
        %2522 = vmatpush1.msra.mxu0 %v1801
        %2523 = vmatprep.subr.mxu0 0.0
        %2524 = vmatpush1.msra.mxu0 %v1802
        %2525 = vmatprep.subr.mxu0 0.0
        %2526 = vmatpush1.msra.mxu0 %v1803
        %2527 = vmatprep.subr.mxu0 0.0
        %2528 = vmatpush1.msra.mxu0 %v1804
        %2529 = vmatprep.subr.mxu0 0.0
        %2530 = vmatpush1.msra.mxu0 %v1805
        %2531 = vmatprep.subr.mxu0 0.0
        %2532 = vmatpush1.msra.mxu0 %v1806
        %2533 = vmatprep.subr.mxu0 0.0
        %2534 = vmatpush1.msra.mxu0 %v1807
        %2535 = vmatprep.subr.mxu0 0.0
        %2536 = vmatpush1.msra.mxu0 %v1808
        %2537 = vmatprep.subr.mxu0 0.0
        %2538 = vmatpush1.msra.mxu0 %v1809
        %2539 = vmatprep.subr.mxu0 0.0
        %2540 = vmatpush1.msra.mxu0 %v1810
        %2541 = vmatprep.subr.mxu0 0.0
        %2542 = vmatpush1.msra.mxu0 %v1811
        %2543 = vmatprep.subr.mxu0 0.0
        %2544 = vmatpush1.msra.mxu0 %v1812
        %2545 = vmatprep.subr.mxu0 0.0
        %2546 = vmatpush1.msra.mxu0 %v1813
        %2547 = vmatprep.subr.mxu0 0.0
        %2548 = vmatpush1.msra.mxu0 %v1814
        %2549 = vmatprep.subr.mxu0 0.0
        %2550 = vmatpush1.msra.mxu0 %v1815
        %2551 = vmatprep.subr.mxu0 0.0
        %2552 = vmatpush1.msra.mxu0 %v1816
        %2553 = vmatprep.subr.mxu0 0.0
        %2554 = vmatpush1.msra.mxu0 %v1817
        %2555 = vmatprep.subr.mxu0 0.0
        %2556 = vmatpush1.msra.mxu0 %v1818
        %2557 = vmatprep.mubr.f32.mxu0 %v1587
        %2558 = vmatmul.mubr.f32.gmra.mrb[0].mxu0 %v1586
        %v2559 = vpop.f32.mrb[0].mxu0
        %v2560 = vadd.f32 %v2490, %v2559
        %v2561 = vpop.f32.mrb[0].mxu0
        %2562 = vdwg.mxu0
        %2563 = vmatprep.subr.mxu0 0.0
        %2564 = vmatpush1.msra.mxu0 %v1819
        %2565 = vmatprep.subr.mxu0 0.0
        %2566 = vmatpush1.msra.mxu0 %v1820
        %2567 = vmatprep.subr.mxu0 0.0
        %2568 = vmatpush1.msra.mxu0 %v1821
        %2569 = vmatprep.subr.mxu0 0.0
        %2570 = vmatpush1.msra.mxu0 %v1822
        %2571 = vmatprep.subr.mxu0 0.0
        %2572 = vmatpush1.msra.mxu0 %v1823
        %2573 = vmatprep.subr.mxu0 0.0
        %2574 = vmatpush1.msra.mxu0 %v1824
        %2575 = vmatprep.subr.mxu0 0.0
        %2576 = vmatpush1.msra.mxu0 %v1825
        %2577 = vmatprep.subr.mxu0 0.0
        %2578 = vmatpush1.msra.mxu0 %v1826
        %2579 = vmatprep.subr.mxu0 0.0
        %2580 = vmatpush1.msra.mxu0 %v1827
        %2581 = vmatprep.subr.mxu0 0.0
        %2582 = vmatpush1.msra.mxu0 %v1828
        %2583 = vmatprep.subr.mxu0 0.0
        %2584 = vmatpush1.msra.mxu0 %v1829
        %2585 = vmatprep.subr.mxu0 0.0
        %2586 = vmatpush1.msra.mxu0 %v1830
        %2587 = vmatprep.subr.mxu0 0.0
        %2588 = vmatpush1.msra.mxu0 %v1831
        %2589 = vmatprep.subr.mxu0 0.0
        %2590 = vmatpush1.msra.mxu0 %v1832
        %2591 = vmatprep.subr.mxu0 0.0
        %2592 = vmatpush1.msra.mxu0 %v1833
        %2593 = vmatprep.subr.mxu0 0.0
        %2594 = vmatpush1.msra.mxu0 %v1834
        %2595 = vmatprep.subr.mxu0 0.0
        %2596 = vmatpush1.msra.mxu0 %v1835
        %2597 = vmatprep.subr.mxu0 0.0
        %2598 = vmatpush1.msra.mxu0 %v1836
        %2599 = vmatprep.subr.mxu0 0.0
        %2600 = vmatpush1.msra.mxu0 %v1837
        %2601 = vmatprep.subr.mxu0 0.0
        %2602 = vmatpush1.msra.mxu0 %v1838
        %2603 = vmatprep.subr.mxu0 0.0
        %2604 = vmatpush1.msra.mxu0 %v1839
        %2605 = vmatprep.subr.mxu0 0.0
        %2606 = vmatpush1.msra.mxu0 %v1840
        %2607 = vmatprep.subr.mxu0 0.0
        %2608 = vmatpush1.msra.mxu0 %v1841
        %2609 = vmatprep.subr.mxu0 0.0
        %2610 = vmatpush1.msra.mxu0 %v1842
        %2611 = vmatprep.subr.mxu0 0.0
        %2612 = vmatpush1.msra.mxu0 %v1843
        %2613 = vmatprep.subr.mxu0 0.0
        %2614 = vmatpush1.msra.mxu0 %v1844
        %2615 = vmatprep.subr.mxu0 0.0
        %2616 = vmatpush1.msra.mxu0 %v1845
        %2617 = vmatprep.subr.mxu0 0.0
        %2618 = vmatpush1.msra.mxu0 %v1846
        %2619 = vmatprep.subr.mxu0 0.0
        %2620 = vmatpush1.msra.mxu0 %v1847
        %2621 = vmatprep.subr.mxu0 0.0
        %2622 = vmatpush1.msra.mxu0 %v1848
        %2623 = vmatprep.subr.mxu0 0.0
        %2624 = vmatpush1.msra.mxu0 %v1849
        %2625 = vmatprep.subr.mxu0 0.0
        %2626 = vmatpush1.msra.mxu0 %v1850
        %2627 = vmatprep.mubr.f32.mxu0 %v1593
        %2628 = vmatmul.mubr.f32.gmra.mrb[0].mxu0 %v1592
        %v2629 = vpop.f32.mrb[0].mxu0
        %v2630 = vadd.f32 %v2560, %v2629
        %v2631 = vpop.f32.mrb[0].mxu0
        %2632 = vdwg.mxu0
        %2633 = vmatprep.subr.mxu0 0.0
        %2634 = vmatpush1.msra.mxu0 %v1851
        %2635 = vmatprep.subr.mxu0 0.0
        %2636 = vmatpush1.msra.mxu0 %v1852
        %2637 = vmatprep.subr.mxu0 0.0
        %2638 = vmatpush1.msra.mxu0 %v1853
        %2639 = vmatprep.subr.mxu0 0.0
        %2640 = vmatpush1.msra.mxu0 %v1854
        %2641 = vmatprep.subr.mxu0 0.0
        %2642 = vmatpush1.msra.mxu0 %v1855
        %2643 = vmatprep.subr.mxu0 0.0
        %2644 = vmatpush1.msra.mxu0 %v1856
        %2645 = vmatprep.subr.mxu0 0.0
        %2646 = vmatpush1.msra.mxu0 %v1857
        %2647 = vmatprep.subr.mxu0 0.0
        %2648 = vmatpush1.msra.mxu0 %v1858
        %2649 = vmatprep.subr.mxu0 0.0
        %2650 = vmatpush1.msra.mxu0 %v1859
        %2651 = vmatprep.subr.mxu0 0.0
        %2652 = vmatpush1.msra.mxu0 %v1860
        %2653 = vmatprep.subr.mxu0 0.0
        %2654 = vmatpush1.msra.mxu0 %v1861
        %2655 = vmatprep.subr.mxu0 0.0
        %2656 = vmatpush1.msra.mxu0 %v1862
        %2657 = vmatprep.subr.mxu0 0.0
        %2658 = vmatpush1.msra.mxu0 %v1863
        %2659 = vmatprep.subr.mxu0 0.0
        %2660 = vmatpush1.msra.mxu0 %v1864
        %2661 = vmatprep.subr.mxu0 0.0
        %2662 = vmatpush1.msra.mxu0 %v1865
        %2663 = vmatprep.subr.mxu0 0.0
        %2664 = vmatpush1.msra.mxu0 %v1866
        %2665 = vmatprep.subr.mxu0 0.0
        %2666 = vmatpush1.msra.mxu0 %v1867
        %2667 = vmatprep.subr.mxu0 0.0
        %2668 = vmatpush1.msra.mxu0 %v1868
        %2669 = vmatprep.subr.mxu0 0.0
        %2670 = vmatpush1.msra.mxu0 %v1869
        %2671 = vmatprep.subr.mxu0 0.0
        %2672 = vmatpush1.msra.mxu0 %v1870
        %2673 = vmatprep.subr.mxu0 0.0
        %2674 = vmatpush1.msra.mxu0 %v1871
        %2675 = vmatprep.subr.mxu0 0.0
        %2676 = vmatpush1.msra.mxu0 %v1872
        %2677 = vmatprep.subr.mxu0 0.0
        %2678 = vmatpush1.msra.mxu0 %v1873
        %2679 = vmatprep.subr.mxu0 0.0
        %2680 = vmatpush1.msra.mxu0 %v1874
        %2681 = vmatprep.subr.mxu0 0.0
        %2682 = vmatpush1.msra.mxu0 %v1875
        %2683 = vmatprep.subr.mxu0 0.0
        %2684 = vmatpush1.msra.mxu0 %v1876
        %2685 = vmatprep.subr.mxu0 0.0
        %2686 = vmatpush1.msra.mxu0 %v1877
        %2687 = vmatprep.subr.mxu0 0.0
        %2688 = vmatpush1.msra.mxu0 %v1878
        %2689 = vmatprep.subr.mxu0 0.0
        %2690 = vmatpush1.msra.mxu0 %v1879
        %2691 = vmatprep.subr.mxu0 0.0
        %2692 = vmatpush1.msra.mxu0 %v1880
        %2693 = vmatprep.subr.mxu0 0.0
        %2694 = vmatpush1.msra.mxu0 %v1881
        %2695 = vmatprep.subr.mxu0 0.0
        %2696 = vmatpush1.msra.mxu0 %v1882
        %2697 = vmatprep.mubr.f32.mxu0 %v1599
        %2698 = vmatmul.mubr.f32.gmra.mrb[0].mxu0 %v1598
        %v2699 = vpop.f32.mrb[0].mxu0
        %v2700 = vadd.f32 %v2630, %v2699
        %v2701 = vpop.f32.mrb[0].mxu0
        %2702 = vdwg.mxu0
        %2703 = vmatprep.subr.mxu0 0.0
        %2704 = vmatpush1.msra.mxu0 %v1883
        %2705 = vmatprep.subr.mxu0 0.0
        %2706 = vmatpush1.msra.mxu0 %v1884
        %2707 = vmatprep.subr.mxu0 0.0
        %2708 = vmatpush1.msra.mxu0 %v1885
        %2709 = vmatprep.subr.mxu0 0.0
        %2710 = vmatpush1.msra.mxu0 %v1886
        %2711 = vmatprep.subr.mxu0 0.0
        %2712 = vmatpush1.msra.mxu0 %v1887
        %2713 = vmatprep.subr.mxu0 0.0
        %2714 = vmatpush1.msra.mxu0 %v1888
        %2715 = vmatprep.subr.mxu0 0.0
        %2716 = vmatpush1.msra.mxu0 %v1889
        %2717 = vmatprep.subr.mxu0 0.0
        %2718 = vmatpush1.msra.mxu0 %v1890
        %2719 = vmatprep.subr.mxu0 0.0
        %2720 = vmatpush1.msra.mxu0 %v1891
        %2721 = vmatprep.subr.mxu0 0.0
        %2722 = vmatpush1.msra.mxu0 %v1892
        %2723 = vmatprep.subr.mxu0 0.0
        %2724 = vmatpush1.msra.mxu0 %v1893
        %2725 = vmatprep.subr.mxu0 0.0
        %2726 = vmatpush1.msra.mxu0 %v1894
        %2727 = vmatprep.subr.mxu0 0.0
        %2728 = vmatpush1.msra.mxu0 %v1895
        %2729 = vmatprep.subr.mxu0 0.0
        %2730 = vmatpush1.msra.mxu0 %v1896
        %2731 = vmatprep.subr.mxu0 0.0
        %2732 = vmatpush1.msra.mxu0 %v1897
        %2733 = vmatprep.subr.mxu0 0.0
        %2734 = vmatpush1.msra.mxu0 %v1898
        %2735 = vmatprep.subr.mxu0 0.0
        %2736 = vmatpush1.msra.mxu0 %v1899
        %2737 = vmatprep.subr.mxu0 0.0
        %2738 = vmatpush1.msra.mxu0 %v1900
        %2739 = vmatprep.subr.mxu0 0.0
        %2740 = vmatpush1.msra.mxu0 %v1901
        %2741 = vmatprep.subr.mxu0 0.0
        %2742 = vmatpush1.msra.mxu0 %v1902
        %2743 = vmatprep.subr.mxu0 0.0
        %2744 = vmatpush1.msra.mxu0 %v1903
        %2745 = vmatprep.subr.mxu0 0.0
        %2746 = vmatpush1.msra.mxu0 %v1904
        %2747 = vmatprep.subr.mxu0 0.0
        %2748 = vmatpush1.msra.mxu0 %v1905
        %2749 = vmatprep.subr.mxu0 0.0
        %2750 = vmatpush1.msra.mxu0 %v1906
        %2751 = vmatprep.subr.mxu0 0.0
        %2752 = vmatpush1.msra.mxu0 %v1907
        %2753 = vmatprep.subr.mxu0 0.0
        %2754 = vmatpush1.msra.mxu0 %v1908
        %2755 = vmatprep.subr.mxu0 0.0
        %2756 = vmatpush1.msra.mxu0 %v1909
        %2757 = vmatprep.subr.mxu0 0.0
        %2758 = vmatpush1.msra.mxu0 %v1910
        %2759 = vmatprep.subr.mxu0 0.0
        %2760 = vmatpush1.msra.mxu0 %v1911
        %2761 = vmatprep.subr.mxu0 0.0
        %2762 = vmatpush1.msra.mxu0 %v1912
        %2763 = vmatprep.subr.mxu0 0.0
        %2764 = vmatpush1.msra.mxu0 %v1913
        %2765 = vmatprep.subr.mxu0 0.0
        %2766 = vmatpush1.msra.mxu0 %v1914
        %2767 = vmatprep.mubr.f32.mxu0 %v1605
        %2768 = vmatmul.mubr.f32.gmra.mrb[0].mxu0 %v1604
        %v2769 = vpop.f32.mrb[0].mxu0
        %v2770 = vadd.f32 %v2700, %v2769
        %v2771 = vpop.f32.mrb[0].mxu0
        %2772 = vdwg.mxu0
        %2773 = vmatprep.subr.mxu0 0.0
        %2774 = vmatpush1.msra.mxu0 %v1915
        %2775 = vmatprep.subr.mxu0 0.0
        %2776 = vmatpush1.msra.mxu0 %v1916
        %2777 = vmatprep.subr.mxu0 0.0
        %2778 = vmatpush1.msra.mxu0 %v1917
        %2779 = vmatprep.subr.mxu0 0.0
        %2780 = vmatpush1.msra.mxu0 %v1918
        %2781 = vmatprep.subr.mxu0 0.0
        %2782 = vmatpush1.msra.mxu0 %v1919
        %2783 = vmatprep.subr.mxu0 0.0
        %2784 = vmatpush1.msra.mxu0 %v1920
        %2785 = vmatprep.subr.mxu0 0.0
        %2786 = vmatpush1.msra.mxu0 %v1921
        %2787 = vmatprep.subr.mxu0 0.0
        %2788 = vmatpush1.msra.mxu0 %v1922
        %2789 = vmatprep.subr.mxu0 0.0
        %2790 = vmatpush1.msra.mxu0 %v1923
        %2791 = vmatprep.subr.mxu0 0.0
        %2792 = vmatpush1.msra.mxu0 %v1924
        %2793 = vmatprep.subr.mxu0 0.0
        %2794 = vmatpush1.msra.mxu0 %v1925
        %2795 = vmatprep.subr.mxu0 0.0
        %2796 = vmatpush1.msra.mxu0 %v1926
        %2797 = vmatprep.subr.mxu0 0.0
        %2798 = vmatpush1.msra.mxu0 %v1927
        %2799 = vmatprep.subr.mxu0 0.0
        %2800 = vmatpush1.msra.mxu0 %v1928
        %2801 = vmatprep.subr.mxu0 0.0
        %2802 = vmatpush1.msra.mxu0 %v1929
        %2803 = vmatprep.subr.mxu0 0.0
        %2804 = vmatpush1.msra.mxu0 %v1930
        %2805 = vmatprep.subr.mxu0 0.0
        %2806 = vmatpush1.msra.mxu0 %v1931
        %2807 = vmatprep.subr.mxu0 0.0
        %2808 = vmatpush1.msra.mxu0 %v1932
        %2809 = vmatprep.subr.mxu0 0.0
        %2810 = vmatpush1.msra.mxu0 %v1933
        %2811 = vmatprep.subr.mxu0 0.0
        %2812 = vmatpush1.msra.mxu0 %v1934
        %2813 = vmatprep.subr.mxu0 0.0
        %2814 = vmatpush1.msra.mxu0 %v1935
        %2815 = vmatprep.subr.mxu0 0.0
        %2816 = vmatpush1.msra.mxu0 %v1936
        %2817 = vmatprep.subr.mxu0 0.0
        %2818 = vmatpush1.msra.mxu0 %v1937
        %2819 = vmatprep.subr.mxu0 0.0
        %2820 = vmatpush1.msra.mxu0 %v1938
        %2821 = vmatprep.subr.mxu0 0.0
        %2822 = vmatpush1.msra.mxu0 %v1939
        %2823 = vmatprep.subr.mxu0 0.0
        %2824 = vmatpush1.msra.mxu0 %v1940
        %2825 = vmatprep.subr.mxu0 0.0
        %2826 = vmatpush1.msra.mxu0 %v1941
        %2827 = vmatprep.subr.mxu0 0.0
        %2828 = vmatpush1.msra.mxu0 %v1942
        %2829 = vmatprep.subr.mxu0 0.0
        %2830 = vmatpush1.msra.mxu0 %v1943
        %2831 = vmatprep.subr.mxu0 0.0
        %2832 = vmatpush1.msra.mxu0 %v1944
        %2833 = vmatprep.subr.mxu0 0.0
        %2834 = vmatpush1.msra.mxu0 %v1945
        %2835 = vmatprep.subr.mxu0 0.0
        %2836 = vmatpush1.msra.mxu0 %v1946
        %2837 = vmatprep.mubr.f32.mxu0 %v1611
        %2838 = vmatmul.mubr.f32.gmra.mrb[0].mxu0 %v1610
        %v2839 = vpop.f32.mrb[0].mxu0
        %v2840 = vadd.f32 %v2770, %v2839
        %v2841 = vpop.f32.mrb[0].mxu0
        %2842 = vdwg.mxu0
        %2843 = vmatprep.subr.mxu0 0.0
        %2844 = vmatpush1.msra.mxu0 %v1947
        %2845 = vmatprep.subr.mxu0 0.0
        %2846 = vmatpush1.msra.mxu0 %v1948
        %2847 = vmatprep.subr.mxu0 0.0
        %2848 = vmatpush1.msra.mxu0 %v1949
        %2849 = vmatprep.subr.mxu0 0.0
        %2850 = vmatpush1.msra.mxu0 %v1950
        %2851 = vmatprep.subr.mxu0 0.0
        %2852 = vmatpush1.msra.mxu0 %v1951
        %2853 = vmatprep.subr.mxu0 0.0
        %2854 = vmatpush1.msra.mxu0 %v1952
        %2855 = vmatprep.subr.mxu0 0.0
        %2856 = vmatpush1.msra.mxu0 %v1953
        %2857 = vmatprep.subr.mxu0 0.0
        %2858 = vmatpush1.msra.mxu0 %v1954
        %2859 = vmatprep.subr.mxu0 0.0
        %2860 = vmatpush1.msra.mxu0 %v1955
        %2861 = vmatprep.subr.mxu0 0.0
        %2862 = vmatpush1.msra.mxu0 %v1956
        %2863 = vmatprep.subr.mxu0 0.0
        %2864 = vmatpush1.msra.mxu0 %v1957
        %2865 = vmatprep.subr.mxu0 0.0
        %2866 = vmatpush1.msra.mxu0 %v1958
        %2867 = vmatprep.subr.mxu0 0.0
        %2868 = vmatpush1.msra.mxu0 %v1959
        %2869 = vmatprep.subr.mxu0 0.0
        %2870 = vmatpush1.msra.mxu0 %v1960
        %2871 = vmatprep.subr.mxu0 0.0
        %2872 = vmatpush1.msra.mxu0 %v1961
        %2873 = vmatprep.subr.mxu0 0.0
        %2874 = vmatpush1.msra.mxu0 %v1962
        %2875 = vmatprep.subr.mxu0 0.0
        %2876 = vmatpush1.msra.mxu0 %v1963
        %2877 = vmatprep.subr.mxu0 0.0
        %2878 = vmatpush1.msra.mxu0 %v1964
        %2879 = vmatprep.subr.mxu0 0.0
        %2880 = vmatpush1.msra.mxu0 %v1965
        %2881 = vmatprep.subr.mxu0 0.0
        %2882 = vmatpush1.msra.mxu0 %v1966
        %2883 = vmatprep.subr.mxu0 0.0
        %2884 = vmatpush1.msra.mxu0 %v1967
        %2885 = vmatprep.subr.mxu0 0.0
        %2886 = vmatpush1.msra.mxu0 %v1968
        %2887 = vmatprep.subr.mxu0 0.0
        %2888 = vmatpush1.msra.mxu0 %v1969
        %2889 = vmatprep.subr.mxu0 0.0
        %2890 = vmatpush1.msra.mxu0 %v1970
        %2891 = vmatprep.subr.mxu0 0.0
        %2892 = vmatpush1.msra.mxu0 %v1971
        %2893 = vmatprep.subr.mxu0 0.0
        %2894 = vmatpush1.msra.mxu0 %v1972
        %2895 = vmatprep.subr.mxu0 0.0
        %2896 = vmatpush1.msra.mxu0 %v1973
        %2897 = vmatprep.subr.mxu0 0.0
        %2898 = vmatpush1.msra.mxu0 %v1974
        %2899 = vmatprep.subr.mxu0 0.0
        %2900 = vmatpush1.msra.mxu0 %v1975
        %2901 = vmatprep.subr.mxu0 0.0
        %2902 = vmatpush1.msra.mxu0 %v1976
        %2903 = vmatprep.subr.mxu0 0.0
        %2904 = vmatpush1.msra.mxu0 %v1977
        %2905 = vmatprep.subr.mxu0 0.0
        %2906 = vmatpush1.msra.mxu0 %v1978
        %2907 = vmatprep.mubr.f32.mxu0 %v1617
        %2908 = vmatmul.mubr.f32.gmra.mrb[0].mxu0 %v1616
        %v2909 = vpop.f32.mrb[0].mxu0
        %v2910 = vadd.f32 %v2840, %v2909
        %v2911 = vpop.f32.mrb[0].mxu0
        %2912 = vdwg.mxu0
        %2913 = vmatprep.subr.mxu0 0.0
        %2914 = vmatpush1.msra.mxu0 %v1979
        %2915 = vmatprep.subr.mxu0 0.0
        %2916 = vmatpush1.msra.mxu0 %v1980
        %2917 = vmatprep.subr.mxu0 0.0
        %2918 = vmatpush1.msra.mxu0 %v1981
        %2919 = vmatprep.subr.mxu0 0.0
        %2920 = vmatpush1.msra.mxu0 %v1982
        %2921 = vmatprep.subr.mxu0 0.0
        %2922 = vmatpush1.msra.mxu0 %v1983
        %2923 = vmatprep.subr.mxu0 0.0
        %2924 = vmatpush1.msra.mxu0 %v1984
        %2925 = vmatprep.subr.mxu0 0.0
        %2926 = vmatpush1.msra.mxu0 %v1985
        %2927 = vmatprep.subr.mxu0 0.0
        %2928 = vmatpush1.msra.mxu0 %v1986
        %2929 = vmatprep.subr.mxu0 0.0
        %2930 = vmatpush1.msra.mxu0 %v1987
        %2931 = vmatprep.subr.mxu0 0.0
        %2932 = vmatpush1.msra.mxu0 %v1988
        %2933 = vmatprep.subr.mxu0 0.0
        %2934 = vmatpush1.msra.mxu0 %v1989
        %2935 = vmatprep.subr.mxu0 0.0
        %2936 = vmatpush1.msra.mxu0 %v1990
        %2937 = vmatprep.subr.mxu0 0.0
        %2938 = vmatpush1.msra.mxu0 %v1991
        %2939 = vmatprep.subr.mxu0 0.0
        %2940 = vmatpush1.msra.mxu0 %v1992
        %2941 = vmatprep.subr.mxu0 0.0
        %2942 = vmatpush1.msra.mxu0 %v1993
        %2943 = vmatprep.subr.mxu0 0.0
        %2944 = vmatpush1.msra.mxu0 %v1994
        %2945 = vmatprep.subr.mxu0 0.0
        %2946 = vmatpush1.msra.mxu0 %v1995
        %2947 = vmatprep.subr.mxu0 0.0
        %2948 = vmatpush1.msra.mxu0 %v1996
        %2949 = vmatprep.subr.mxu0 0.0
        %2950 = vmatpush1.msra.mxu0 %v1997
        %2951 = vmatprep.subr.mxu0 0.0
        %2952 = vmatpush1.msra.mxu0 %v1998
        %2953 = vmatprep.subr.mxu0 0.0
        %2954 = vmatpush1.msra.mxu0 %v1999
        %2955 = vmatprep.subr.mxu0 0.0
        %2956 = vmatpush1.msra.mxu0 %v2000
        %2957 = vmatprep.subr.mxu0 0.0
        %2958 = vmatpush1.msra.mxu0 %v2001
        %2959 = vmatprep.subr.mxu0 0.0
        %2960 = vmatpush1.msra.mxu0 %v2002
        %2961 = vmatprep.subr.mxu0 0.0
        %2962 = vmatpush1.msra.mxu0 %v2003
        %2963 = vmatprep.subr.mxu0 0.0
        %2964 = vmatpush1.msra.mxu0 %v2004
        %2965 = vmatprep.subr.mxu0 0.0
        %2966 = vmatpush1.msra.mxu0 %v2005
        %2967 = vmatprep.subr.mxu0 0.0
        %2968 = vmatpush1.msra.mxu0 %v2006
        %2969 = vmatprep.subr.mxu0 0.0
        %2970 = vmatpush1.msra.mxu0 %v2007
        %2971 = vmatprep.subr.mxu0 0.0
        %2972 = vmatpush1.msra.mxu0 %v2008
        %2973 = vmatprep.subr.mxu0 0.0
        %2974 = vmatpush1.msra.mxu0 %v2009
        %2975 = vmatprep.subr.mxu0 0.0
        %2976 = vmatpush1.msra.mxu0 %v2010
        %2977 = vmatprep.mubr.f32.mxu0 %v1623
        %2978 = vmatmul.mubr.f32.gmra.mrb[0].mxu0 %v1622
        %v2979 = vpop.f32.mrb[0].mxu0
        %v2980 = vadd.f32 %v2910, %v2979
        %v2981 = vpop.f32.mrb[0].mxu0
        %2982 = vdwg.mxu0
        %2983 = vmatprep.subr.mxu0 0.0
        %2984 = vmatpush1.msra.mxu0 %v2011
        %2985 = vmatprep.subr.mxu0 0.0
        %2986 = vmatpush1.msra.mxu0 %v2012
        %2987 = vmatprep.subr.mxu0 0.0
        %2988 = vmatpush1.msra.mxu0 %v2013
        %2989 = vmatprep.subr.mxu0 0.0
        %2990 = vmatpush1.msra.mxu0 %v2014
        %2991 = vmatprep.subr.mxu0 0.0
        %2992 = vmatpush1.msra.mxu0 %v2015
        %2993 = vmatprep.subr.mxu0 0.0
        %2994 = vmatpush1.msra.mxu0 %v2016
        %2995 = vmatprep.subr.mxu0 0.0
        %2996 = vmatpush1.msra.mxu0 %v2017
        %2997 = vmatprep.subr.mxu0 0.0
        %2998 = vmatpush1.msra.mxu0 %v2018
        %2999 = vmatprep.subr.mxu0 0.0
        %3000 = vmatpush1.msra.mxu0 %v2019
        %3001 = vmatprep.subr.mxu0 0.0
        %3002 = vmatpush1.msra.mxu0 %v2020
        %3003 = vmatprep.subr.mxu0 0.0
        %3004 = vmatpush1.msra.mxu0 %v2021
        %3005 = vmatprep.subr.mxu0 0.0
        %3006 = vmatpush1.msra.mxu0 %v2022
        %3007 = vmatprep.subr.mxu0 0.0
        %3008 = vmatpush1.msra.mxu0 %v2023
        %3009 = vmatprep.subr.mxu0 0.0
        %3010 = vmatpush1.msra.mxu0 %v2024
        %3011 = vmatprep.subr.mxu0 0.0
        %3012 = vmatpush1.msra.mxu0 %v2025
        %3013 = vmatprep.subr.mxu0 0.0
        %3014 = vmatpush1.msra.mxu0 %v2026
        %3015 = vmatprep.subr.mxu0 0.0
        %3016 = vmatpush1.msra.mxu0 %v2027
        %3017 = vmatprep.subr.mxu0 0.0
        %3018 = vmatpush1.msra.mxu0 %v2028
        %3019 = vmatprep.subr.mxu0 0.0
        %3020 = vmatpush1.msra.mxu0 %v2029
        %3021 = vmatprep.subr.mxu0 0.0
        %3022 = vmatpush1.msra.mxu0 %v2030
        %3023 = vmatprep.subr.mxu0 0.0
        %3024 = vmatpush1.msra.mxu0 %v2031
        %3025 = vmatprep.subr.mxu0 0.0
        %3026 = vmatpush1.msra.mxu0 %v2032
        %3027 = vmatprep.subr.mxu0 0.0
        %3028 = vmatpush1.msra.mxu0 %v2033
        %3029 = vmatprep.subr.mxu0 0.0
        %3030 = vmatpush1.msra.mxu0 %v2034
        %3031 = vmatprep.subr.mxu0 0.0
        %3032 = vmatpush1.msra.mxu0 %v2035
        %3033 = vmatprep.subr.mxu0 0.0
        %3034 = vmatpush1.msra.mxu0 %v2036
        %3035 = vmatprep.subr.mxu0 0.0
        %3036 = vmatpush1.msra.mxu0 %v2037
        %3037 = vmatprep.subr.mxu0 0.0
        %3038 = vmatpush1.msra.mxu0 %v2038
        %3039 = vmatprep.subr.mxu0 0.0
        %3040 = vmatpush1.msra.mxu0 %v2039
        %3041 = vmatprep.subr.mxu0 0.0
        %3042 = vmatpush1.msra.mxu0 %v2040
        %3043 = vmatprep.subr.mxu0 0.0
        %3044 = vmatpush1.msra.mxu0 %v2041
        %3045 = vmatprep.subr.mxu0 0.0
        %3046 = vmatpush1.msra.mxu0 %v2042
        %3047 = vmatprep.mubr.f32.mxu0 %v1629
        %3048 = vmatmul.mubr.f32.gmra.mrb[0].mxu0 %v1628
        %v3049 = vpop.f32.mrb[0].mxu0
        %v3050 = vadd.f32 %v2980, %v3049
        %v3051 = vpop.f32.mrb[0].mxu0
        %3052 = vdwg.mxu0
        %3053 = vmatprep.subr.mxu0 0.0
        %3054 = vmatpush1.msra.mxu0 %v2043
        %3055 = vmatprep.subr.mxu0 0.0
        %3056 = vmatpush1.msra.mxu0 %v2044
        %3057 = vmatprep.subr.mxu0 0.0
        %3058 = vmatpush1.msra.mxu0 %v2045
        %3059 = vmatprep.subr.mxu0 0.0
        %3060 = vmatpush1.msra.mxu0 %v2046
        %3061 = vmatprep.subr.mxu0 0.0
        %3062 = vmatpush1.msra.mxu0 %v2047
        %3063 = vmatprep.subr.mxu0 0.0
        %3064 = vmatpush1.msra.mxu0 %v2048
        %3065 = vmatprep.subr.mxu0 0.0
        %3066 = vmatpush1.msra.mxu0 %v2049
        %3067 = vmatprep.subr.mxu0 0.0
        %3068 = vmatpush1.msra.mxu0 %v2050
        %3069 = vmatprep.subr.mxu0 0.0
        %3070 = vmatpush1.msra.mxu0 %v2051
        %3071 = vmatprep.subr.mxu0 0.0
        %3072 = vmatpush1.msra.mxu0 %v2052
        %3073 = vmatprep.subr.mxu0 0.0
        %3074 = vmatpush1.msra.mxu0 %v2053
        %3075 = vmatprep.subr.mxu0 0.0
        %3076 = vmatpush1.msra.mxu0 %v2054
        %3077 = vmatprep.subr.mxu0 0.0
        %3078 = vmatpush1.msra.mxu0 %v2055
        %3079 = vmatprep.subr.mxu0 0.0
        %3080 = vmatpush1.msra.mxu0 %v2056
        %3081 = vmatprep.subr.mxu0 0.0
        %3082 = vmatpush1.msra.mxu0 %v2057
        %3083 = vmatprep.subr.mxu0 0.0
        %3084 = vmatpush1.msra.mxu0 %v2058
        %3085 = vmatprep.subr.mxu0 0.0
        %3086 = vmatpush1.msra.mxu0 %v2059
        %3087 = vmatprep.subr.mxu0 0.0
        %3088 = vmatpush1.msra.mxu0 %v2060
        %3089 = vmatprep.subr.mxu0 0.0
        %3090 = vmatpush1.msra.mxu0 %v2061
        %3091 = vmatprep.subr.mxu0 0.0
        %3092 = vmatpush1.msra.mxu0 %v2062
        %3093 = vmatprep.subr.mxu0 0.0
        %3094 = vmatpush1.msra.mxu0 %v2063
        %3095 = vmatprep.subr.mxu0 0.0
        %3096 = vmatpush1.msra.mxu0 %v2064
        %3097 = vmatprep.subr.mxu0 0.0
        %3098 = vmatpush1.msra.mxu0 %v2065
        %3099 = vmatprep.subr.mxu0 0.0
        %3100 = vmatpush1.msra.mxu0 %v2066
        %3101 = vmatprep.subr.mxu0 0.0
        %3102 = vmatpush1.msra.mxu0 %v2067
        %3103 = vmatprep.subr.mxu0 0.0
        %3104 = vmatpush1.msra.mxu0 %v2068
        %3105 = vmatprep.subr.mxu0 0.0
        %3106 = vmatpush1.msra.mxu0 %v2069
        %3107 = vmatprep.subr.mxu0 0.0
        %3108 = vmatpush1.msra.mxu0 %v2070
        %3109 = vmatprep.subr.mxu0 0.0
        %3110 = vmatpush1.msra.mxu0 %v2071
        %3111 = vmatprep.subr.mxu0 0.0
        %3112 = vmatpush1.msra.mxu0 %v2072
        %3113 = vmatprep.subr.mxu0 0.0
        %3114 = vmatpush1.msra.mxu0 %v2073
        %3115 = vmatprep.subr.mxu0 0.0
        %3116 = vmatpush1.msra.mxu0 %v2074
        %3117 = vmatprep.mubr.f32.mxu0 %v1635
        %3118 = vmatmul.mubr.f32.gmra.mrb[0].mxu0 %v1634
        %v3119 = vpop.f32.mrb[0].mxu0
        %v3120 = vadd.f32 %v3050, %v3119
        %v3121 = vpop.f32.mrb[0].mxu0
        %3122 = vdwg.mxu0
        %3123 = vmatprep.subr.mxu0 0.0
        %3124 = vmatpush1.msra.mxu0 %v2075
        %3125 = vmatprep.subr.mxu0 0.0
        %3126 = vmatpush1.msra.mxu0 %v2076
        %3127 = vmatprep.subr.mxu0 0.0
        %3128 = vmatpush1.msra.mxu0 %v2077
        %3129 = vmatprep.subr.mxu0 0.0
        %3130 = vmatpush1.msra.mxu0 %v2078
        %3131 = vmatprep.subr.mxu0 0.0
        %3132 = vmatpush1.msra.mxu0 %v2079
        %3133 = vmatprep.subr.mxu0 0.0
        %3134 = vmatpush1.msra.mxu0 %v2080
        %3135 = vmatprep.subr.mxu0 0.0
        %3136 = vmatpush1.msra.mxu0 %v2081
        %3137 = vmatprep.subr.mxu0 0.0
        %3138 = vmatpush1.msra.mxu0 %v2082
        %3139 = vmatprep.subr.mxu0 0.0
        %3140 = vmatpush1.msra.mxu0 %v2083
        %3141 = vmatprep.subr.mxu0 0.0
        %3142 = vmatpush1.msra.mxu0 %v2084
        %3143 = vmatprep.subr.mxu0 0.0
        %3144 = vmatpush1.msra.mxu0 %v2085
        %3145 = vmatprep.subr.mxu0 0.0
        %3146 = vmatpush1.msra.mxu0 %v2086
        %3147 = vmatprep.subr.mxu0 0.0
        %3148 = vmatpush1.msra.mxu0 %v2087
        %3149 = vmatprep.subr.mxu0 0.0
        %3150 = vmatpush1.msra.mxu0 %v2088
        %3151 = vmatprep.subr.mxu0 0.0
        %3152 = vmatpush1.msra.mxu0 %v2089
        %3153 = vmatprep.subr.mxu0 0.0
        %3154 = vmatpush1.msra.mxu0 %v2090
        %3155 = vmatprep.subr.mxu0 0.0
        %3156 = vmatpush1.msra.mxu0 %v2091
        %3157 = vmatprep.subr.mxu0 0.0
        %3158 = vmatpush1.msra.mxu0 %v2092
        %3159 = vmatprep.subr.mxu0 0.0
        %3160 = vmatpush1.msra.mxu0 %v2093
        %3161 = vmatprep.subr.mxu0 0.0
        %3162 = vmatpush1.msra.mxu0 %v2094
        %3163 = vmatprep.subr.mxu0 0.0
        %3164 = vmatpush1.msra.mxu0 %v2095
        %3165 = vmatprep.subr.mxu0 0.0
        %3166 = vmatpush1.msra.mxu0 %v2096
        %3167 = vmatprep.subr.mxu0 0.0
        %3168 = vmatpush1.msra.mxu0 %v2097
        %3169 = vmatprep.subr.mxu0 0.0
        %3170 = vmatpush1.msra.mxu0 %v2098
        %3171 = vmatprep.subr.mxu0 0.0
        %3172 = vmatpush1.msra.mxu0 %v2099
        %3173 = vmatprep.subr.mxu0 0.0
        %3174 = vmatpush1.msra.mxu0 %v2100
        %3175 = vmatprep.subr.mxu0 0.0
        %3176 = vmatpush1.msra.mxu0 %v2101
        %3177 = vmatprep.subr.mxu0 0.0
        %3178 = vmatpush1.msra.mxu0 %v2102
        %3179 = vmatprep.subr.mxu0 0.0
        %3180 = vmatpush1.msra.mxu0 %v2103
        %3181 = vmatprep.subr.mxu0 0.0
        %3182 = vmatpush1.msra.mxu0 %v2104
        %3183 = vmatprep.subr.mxu0 0.0
        %3184 = vmatpush1.msra.mxu0 %v2105
        %3185 = vmatprep.subr.mxu0 0.0
        %3186 = vmatpush1.msra.mxu0 %v2106
        %3187 = vmatprep.mubr.f32.mxu0 %v1641
        %3188 = vmatmul.mubr.f32.gmra.mrb[0].mxu0 %v1640
        %v3189 = vpop.f32.mrb[0].mxu0
        %v3190 = vadd.f32 %v3120, %v3189
        %v3191 = vpop.f32.mrb[0].mxu0
        %3192 = vdwg.mxu0
        %3193 = vmatprep.subr.mxu0 0.0
        %3194 = vmatpush1.msra.mxu0 %v2107
        %3195 = vmatprep.subr.mxu0 0.0
        %3196 = vmatpush1.msra.mxu0 %v2108
        %3197 = vmatprep.subr.mxu0 0.0
        %3198 = vmatpush1.msra.mxu0 %v2109
        %3199 = vmatprep.subr.mxu0 0.0
        %3200 = vmatpush1.msra.mxu0 %v2110
        %3201 = vmatprep.subr.mxu0 0.0
        %3202 = vmatpush1.msra.mxu0 %v2111
        %3203 = vmatprep.subr.mxu0 0.0
        %3204 = vmatpush1.msra.mxu0 %v2112
        %3205 = vmatprep.subr.mxu0 0.0
        %3206 = vmatpush1.msra.mxu0 %v2113
        %3207 = vmatprep.subr.mxu0 0.0
        %3208 = vmatpush1.msra.mxu0 %v2114
        %3209 = vmatprep.subr.mxu0 0.0
        %3210 = vmatpush1.msra.mxu0 %v2115
        %3211 = vmatprep.subr.mxu0 0.0
        %3212 = vmatpush1.msra.mxu0 %v2116
        %3213 = vmatprep.subr.mxu0 0.0
        %3214 = vmatpush1.msra.mxu0 %v2117
        %3215 = vmatprep.subr.mxu0 0.0
        %3216 = vmatpush1.msra.mxu0 %v2118
        %3217 = vmatprep.subr.mxu0 0.0
        %3218 = vmatpush1.msra.mxu0 %v2119
        %3219 = vmatprep.subr.mxu0 0.0
        %3220 = vmatpush1.msra.mxu0 %v2120
        %3221 = vmatprep.subr.mxu0 0.0
        %3222 = vmatpush1.msra.mxu0 %v2121
        %3223 = vmatprep.subr.mxu0 0.0
        %3224 = vmatpush1.msra.mxu0 %v2122
        %3225 = vmatprep.subr.mxu0 0.0
        %3226 = vmatpush1.msra.mxu0 %v2123
        %3227 = vmatprep.subr.mxu0 0.0
        %3228 = vmatpush1.msra.mxu0 %v2124
        %3229 = vmatprep.subr.mxu0 0.0
        %3230 = vmatpush1.msra.mxu0 %v2125
        %3231 = vmatprep.subr.mxu0 0.0
        %3232 = vmatpush1.msra.mxu0 %v2126
        %3233 = vmatprep.subr.mxu0 0.0
        %3234 = vmatpush1.msra.mxu0 %v2127
        %3235 = vmatprep.subr.mxu0 0.0
        %3236 = vmatpush1.msra.mxu0 %v2128
        %3237 = vmatprep.subr.mxu0 0.0
        %3238 = vmatpush1.msra.mxu0 %v2129
        %3239 = vmatprep.subr.mxu0 0.0
        %3240 = vmatpush1.msra.mxu0 %v2130
        %3241 = vmatprep.subr.mxu0 0.0
        %3242 = vmatpush1.msra.mxu0 %v2131
        %3243 = vmatprep.subr.mxu0 0.0
        %3244 = vmatpush1.msra.mxu0 %v2132
        %3245 = vmatprep.subr.mxu0 0.0
        %3246 = vmatpush1.msra.mxu0 %v2133
        %3247 = vmatprep.subr.mxu0 0.0
        %3248 = vmatpush1.msra.mxu0 %v2134
        %3249 = vmatprep.subr.mxu0 0.0
        %3250 = vmatpush1.msra.mxu0 %v2135
        %3251 = vmatprep.subr.mxu0 0.0
        %3252 = vmatpush1.msra.mxu0 %v2136
        %3253 = vmatprep.subr.mxu0 0.0
        %3254 = vmatpush1.msra.mxu0 %v2137
        %3255 = vmatprep.subr.mxu0 0.0
        %3256 = vmatpush1.msra.mxu0 %v2138
        %3257 = vmatprep.mubr.f32.mxu0 %v1647
        %3258 = vmatmul.mubr.f32.gmra.mrb[0].mxu0 %v1646
        %v3259 = vpop.f32.mrb[0].mxu0
        %v3260 = vadd.f32 %v3190, %v3259
        %v3261 = vpop.f32.mrb[0].mxu0
        %3262 = vdwg.mxu0
        %3263 = vmatprep.subr.mxu0 0.0
        %3264 = vmatpush1.msra.mxu0 %v2139
        %3265 = vmatprep.subr.mxu0 0.0
        %3266 = vmatpush1.msra.mxu0 %v2140
        %3267 = vmatprep.subr.mxu0 0.0
        %3268 = vmatpush1.msra.mxu0 %v2141
        %3269 = vmatprep.subr.mxu0 0.0
        %3270 = vmatpush1.msra.mxu0 %v2142
        %3271 = vmatprep.subr.mxu0 0.0
        %3272 = vmatpush1.msra.mxu0 %v2143
        %3273 = vmatprep.subr.mxu0 0.0
        %3274 = vmatpush1.msra.mxu0 %v2144
        %3275 = vmatprep.subr.mxu0 0.0
        %3276 = vmatpush1.msra.mxu0 %v2145
        %3277 = vmatprep.subr.mxu0 0.0
        %3278 = vmatpush1.msra.mxu0 %v2146
        %3279 = vmatprep.subr.mxu0 0.0
        %3280 = vmatpush1.msra.mxu0 %v2147
        %3281 = vmatprep.subr.mxu0 0.0
        %3282 = vmatpush1.msra.mxu0 %v2148
        %3283 = vmatprep.subr.mxu0 0.0
        %3284 = vmatpush1.msra.mxu0 %v2149
        %3285 = vmatprep.subr.mxu0 0.0
        %3286 = vmatpush1.msra.mxu0 %v2150
        %3287 = vmatprep.subr.mxu0 0.0
        %3288 = vmatpush1.msra.mxu0 %v2151
        %3289 = vmatprep.subr.mxu0 0.0
        %3290 = vmatpush1.msra.mxu0 %v2152
        %3291 = vmatprep.subr.mxu0 0.0
        %3292 = vmatpush1.msra.mxu0 %v2153
        %3293 = vmatprep.subr.mxu0 0.0
        %3294 = vmatpush1.msra.mxu0 %v2154
        %3295 = vmatprep.subr.mxu0 0.0
        %3296 = vmatpush1.msra.mxu0 %v2155
        %3297 = vmatprep.subr.mxu0 0.0
        %3298 = vmatpush1.msra.mxu0 %v2156
        %3299 = vmatprep.subr.mxu0 0.0
        %3300 = vmatpush1.msra.mxu0 %v2157
        %3301 = vmatprep.subr.mxu0 0.0
        %3302 = vmatpush1.msra.mxu0 %v2158
        %3303 = vmatprep.subr.mxu0 0.0
        %3304 = vmatpush1.msra.mxu0 %v2159
        %3305 = vmatprep.subr.mxu0 0.0
        %3306 = vmatpush1.msra.mxu0 %v2160
        %3307 = vmatprep.subr.mxu0 0.0
        %3308 = vmatpush1.msra.mxu0 %v2161
        %3309 = vmatprep.subr.mxu0 0.0
        %3310 = vmatpush1.msra.mxu0 %v2162
        %3311 = vmatprep.subr.mxu0 0.0
        %3312 = vmatpush1.msra.mxu0 %v2163
        %3313 = vmatprep.subr.mxu0 0.0
        %3314 = vmatpush1.msra.mxu0 %v2164
        %3315 = vmatprep.subr.mxu0 0.0
        %3316 = vmatpush1.msra.mxu0 %v2165
        %3317 = vmatprep.subr.mxu0 0.0
        %3318 = vmatpush1.msra.mxu0 %v2166
        %3319 = vmatprep.subr.mxu0 0.0
        %3320 = vmatpush1.msra.mxu0 %v2167
        %3321 = vmatprep.subr.mxu0 0.0
        %3322 = vmatpush1.msra.mxu0 %v2168
        %3323 = vmatprep.subr.mxu0 0.0
        %3324 = vmatpush1.msra.mxu0 %v2169
        %3325 = vmatprep.subr.mxu0 0.0
        %3326 = vmatpush1.msra.mxu0 %v2170
        %3327 = vmatprep.mubr.f32.mxu0 %v1653
        %3328 = vmatmul.mubr.f32.gmra.mrb[0].mxu0 %v1652
        %v3329 = vpop.f32.mrb[0].mxu0
        %v3330 = vadd.f32 %v3260, %v3329
        %v3331 = vpop.f32.mrb[0].mxu0
        %3332 = vdwg.mxu0
        %3333 = vmatprep.subr.mxu0 0.0
        %3334 = vmatpush1.msra.mxu0 %v2171
        %3335 = vmatprep.subr.mxu0 0.0
        %3336 = vmatpush1.msra.mxu0 %v2172
        %3337 = vmatprep.subr.mxu0 0.0
        %3338 = vmatpush1.msra.mxu0 %v2173
        %3339 = vmatprep.subr.mxu0 0.0
        %3340 = vmatpush1.msra.mxu0 %v2174
        %3341 = vmatprep.subr.mxu0 0.0
        %3342 = vmatpush1.msra.mxu0 %v2175
        %3343 = vmatprep.subr.mxu0 0.0
        %3344 = vmatpush1.msra.mxu0 %v2176
        %3345 = vmatprep.subr.mxu0 0.0
        %3346 = vmatpush1.msra.mxu0 %v2177
        %3347 = vmatprep.subr.mxu0 0.0
        %3348 = vmatpush1.msra.mxu0 %v2178
        %3349 = vmatprep.subr.mxu0 0.0
        %3350 = vmatpush1.msra.mxu0 %v2179
        %3351 = vmatprep.subr.mxu0 0.0
        %3352 = vmatpush1.msra.mxu0 %v2180
        %3353 = vmatprep.subr.mxu0 0.0
        %3354 = vmatpush1.msra.mxu0 %v2181
        %3355 = vmatprep.subr.mxu0 0.0
        %3356 = vmatpush1.msra.mxu0 %v2182
        %3357 = vmatprep.subr.mxu0 0.0
        %3358 = vmatpush1.msra.mxu0 %v2183
        %3359 = vmatprep.subr.mxu0 0.0
        %3360 = vmatpush1.msra.mxu0 %v2184
        %3361 = vmatprep.subr.mxu0 0.0
        %3362 = vmatpush1.msra.mxu0 %v2185
        %3363 = vmatprep.subr.mxu0 0.0
        %3364 = vmatpush1.msra.mxu0 %v2186
        %3365 = vmatprep.subr.mxu0 0.0
        %3366 = vmatpush1.msra.mxu0 %v2187
        %3367 = vmatprep.subr.mxu0 0.0
        %3368 = vmatpush1.msra.mxu0 %v2188
        %3369 = vmatprep.subr.mxu0 0.0
        %3370 = vmatpush1.msra.mxu0 %v2189
        %3371 = vmatprep.subr.mxu0 0.0
        %3372 = vmatpush1.msra.mxu0 %v2190
        %3373 = vmatprep.subr.mxu0 0.0
        %3374 = vmatpush1.msra.mxu0 %v2191
        %3375 = vmatprep.subr.mxu0 0.0
        %3376 = vmatpush1.msra.mxu0 %v2192
        %3377 = vmatprep.subr.mxu0 0.0
        %3378 = vmatpush1.msra.mxu0 %v2193
        %3379 = vmatprep.subr.mxu0 0.0
        %3380 = vmatpush1.msra.mxu0 %v2194
        %3381 = vmatprep.subr.mxu0 0.0
        %3382 = vmatpush1.msra.mxu0 %v2195
        %3383 = vmatprep.subr.mxu0 0.0
        %3384 = vmatpush1.msra.mxu0 %v2196
        %3385 = vmatprep.subr.mxu0 0.0
        %3386 = vmatpush1.msra.mxu0 %v2197
        %3387 = vmatprep.subr.mxu0 0.0
        %3388 = vmatpush1.msra.mxu0 %v2198
        %3389 = vmatprep.subr.mxu0 0.0
        %3390 = vmatpush1.msra.mxu0 %v2199
        %3391 = vmatprep.subr.mxu0 0.0
        %3392 = vmatpush1.msra.mxu0 %v2200
        %3393 = vmatprep.subr.mxu0 0.0
        %3394 = vmatpush1.msra.mxu0 %v2201
        %3395 = vmatprep.subr.mxu0 0.0
        %3396 = vmatpush1.msra.mxu0 %v2202
        %3397 = vmatprep.mubr.f32.mxu0 %v1557
        %3398 = vmatmul.mubr.f32.gmra.mrb[0].mxu0 %v1556
        %v3399 = vpop.f32.mrb[0].mxu0
        %v3400 = vadd.f32 %v3330, %v3399
        %v3401 = vpop.f32.mrb[0].mxu0
        %3402 = vdwg.mxu0
        %3403 = vmatprep.subr.mxu0 0.0
        %3404 = vmatpush1.msra.mxu0 %v2203
        %3405 = vmatprep.subr.mxu0 0.0
        %3406 = vmatpush1.msra.mxu0 %v2204
        %3407 = vmatprep.subr.mxu0 0.0
        %3408 = vmatpush1.msra.mxu0 %v2211
        %3409 = vmatprep.subr.mxu0 0.0
        %3410 = vmatpush1.msra.mxu0 0.0
        %3411 = vmatprep.subr.mxu0 0.0
        %3412 = vmatpush1.msra.mxu0 0.0
        %3413 = vmatprep.subr.mxu0 0.0
        %3414 = vmatpush1.msra.mxu0 0.0
        %3415 = vmatprep.subr.mxu0 0.0
        %3416 = vmatpush1.msra.mxu0 0.0
        %3417 = vmatprep.subr.mxu0 0.0
        %3418 = vmatpush1.msra.mxu0 0.0
        %3419 = vmatprep.subr.mxu0 0.0
        %3420 = vmatpush1.msra.mxu0 0.0
        %3421 = vmatprep.subr.mxu0 0.0
        %3422 = vmatpush1.msra.mxu0 0.0
        %3423 = vmatprep.subr.mxu0 0.0
        %3424 = vmatpush1.msra.mxu0 0.0
        %3425 = vmatprep.subr.mxu0 0.0
        %3426 = vmatpush1.msra.mxu0 0.0
        %3427 = vmatprep.subr.mxu0 0.0
        %3428 = vmatpush1.msra.mxu0 0.0
        %3429 = vmatprep.subr.mxu0 0.0
        %3430 = vmatpush1.msra.mxu0 0.0
        %3431 = vmatprep.subr.mxu0 0.0
        %3432 = vmatpush1.msra.mxu0 0.0
        %3433 = vmatprep.subr.mxu0 0.0
        %3434 = vmatpush1.msra.mxu0 0.0
        %3435 = vmatprep.subr.mxu0 0.0
        %3436 = vmatpush1.msra.mxu0 0.0
        %3437 = vmatprep.subr.mxu0 0.0
        %3438 = vmatpush1.msra.mxu0 0.0
        %3439 = vmatprep.subr.mxu0 0.0
        %3440 = vmatpush1.msra.mxu0 0.0
        %3441 = vmatprep.subr.mxu0 0.0
        %3442 = vmatpush1.msra.mxu0 0.0
        %3443 = vmatprep.subr.mxu0 0.0
        %3444 = vmatpush1.msra.mxu0 0.0
        %3445 = vmatprep.subr.mxu0 0.0
        %3446 = vmatpush1.msra.mxu0 0.0
        %3447 = vmatprep.subr.mxu0 0.0
        %3448 = vmatpush1.msra.mxu0 0.0
        %3449 = vmatprep.subr.mxu0 0.0
        %3450 = vmatpush1.msra.mxu0 0.0
        %3451 = vmatprep.subr.mxu0 0.0
        %3452 = vmatpush1.msra.mxu0 0.0
        %3453 = vmatprep.subr.mxu0 0.0
        %3454 = vmatpush1.msra.mxu0 0.0
        %3455 = vmatprep.subr.mxu0 0.0
        %3456 = vmatpush1.msra.mxu0 0.0
        %3457 = vmatprep.subr.mxu0 0.0
        %3458 = vmatpush1.msra.mxu0 0.0
        %3459 = vmatprep.subr.mxu0 0.0
        %3460 = vmatpush1.msra.mxu0 0.0
        %3461 = vmatprep.subr.mxu0 0.0
        %3462 = vmatpush1.msra.mxu0 0.0
        %3463 = vmatprep.subr.mxu0 0.0
        %3464 = vmatpush1.msra.mxu0 0.0
        %3465 = vmatprep.subr.mxu0 0.0
        %3466 = vmatpush1.msra.mxu0 0.0
        %3467 = vmatprep.mubr.f32.mxu0 0.0
        %3468 = vmatmul.mubr.f32.gmra.mrb[0].mxu0 %v2208
        %v3469 = vpop.f32.mrb[0].mxu0
        %v3470 = vadd.f32 %v3400, %v3469
        %v3471 = vpop.f32.mrb[0].mxu0
        %3472 = vdwg.mxu0
        %vm3473 = vcmask 254976
        %v3474 = vsel %vm3473, %v3470, 0.0
        %3475 = vadd.xlane.f32.xlu0 %v3474
        %v3476 = vpop.xlane.xlu0 %3475
        %v3477 = vrcp.pop 32.0
        %v3478 = vmul.f32 %v3476, %v3477
        %v3479 = vsub.f32 %v3470, %v3478
        %v3480 = vmul.f32 %v3479, %v3479
        %v3481 = vsel %vm3473, %v3480, 0.0
        %3482 = vadd.xlane.f32.xlu0 %v3481
        %v3483 = vpop.xlane.xlu0 %3482
        %v3484 = vmul.f32 %v3483, %v3477
        %v3485 = vadd.f32 %v3484, 1e-05
        %v3486 = vrsqrt.pop %v3485
        %v3487 = vmul.f32 %v3479, %v3486
        %v3488 = vlaneseq
        %v3489 = vshrl.u32 %v3488, 7
        %v3490 = vsub.s32 0, %v3489
        %v3491 = vrot.slane %v954, %v3490
        %v3492 = vmul.f32 %v3487, %v3491
        %v3493 = vlaneseq
        %v3494 = vshrl.u32 %v3493, 7
        %v3495 = vsub.s32 1, %v3494
        %v3496 = vrot.slane %v954, %v3495
        %v3497 = vadd.f32 %v3492, %v3496
        %v3498 = vld [vmem:[%s743] sm:$0xff]
        %v3499 = vld [vmem:[%s743 + $0x8] sm:$0xff]
        %v3500 = vld [vmem:[%s743 + $0x10] sm:$0xff]
        %v3501 = vld [vmem:[%s743 + $0x18] sm:$0xff]
        %v3503 = vsel %vm966, %v3497, 0
        %3505 = vmatprep.subr.mxu0 0.0
        %3506 = vmatpush1.msra.mxu0 %v3498
        %3507 = vmatprep.subr.mxu0 0.0
        %3508 = vmatpush1.msra.mxu0 %v3499
        %3509 = vmatprep.subr.mxu0 0.0
        %3510 = vmatpush1.msra.mxu0 %v3500
        %3511 = vmatprep.subr.mxu0 0.0
        %3512 = vmatpush1.msra.mxu0 %v3501
        %3513 = vmatprep.subr.mxu0 0.0
        %3514 = vmatpush1.msra.mxu0 0.0
        %3515 = vmatprep.subr.mxu0 0.0
        %3516 = vmatpush1.msra.mxu0 0.0
        %3517 = vmatprep.subr.mxu0 0.0
        %3518 = vmatpush1.msra.mxu0 0.0
        %3519 = vmatprep.subr.mxu0 0.0
        %3520 = vmatpush1.msra.mxu0 0.0
        %3521 = vmatprep.subr.mxu0 0.0
        %3522 = vmatpush1.msra.mxu0 0.0
        %3523 = vmatprep.subr.mxu0 0.0
        %3524 = vmatpush1.msra.mxu0 0.0
        %3525 = vmatprep.subr.mxu0 0.0
        %3526 = vmatpush1.msra.mxu0 0.0
        %3527 = vmatprep.subr.mxu0 0.0
        %3528 = vmatpush1.msra.mxu0 0.0
        %3529 = vmatprep.subr.mxu0 0.0
        %3530 = vmatpush1.msra.mxu0 0.0
        %3531 = vmatprep.subr.mxu0 0.0
        %3532 = vmatpush1.msra.mxu0 0.0
        %3533 = vmatprep.subr.mxu0 0.0
        %3534 = vmatpush1.msra.mxu0 0.0
        %3535 = vmatprep.subr.mxu0 0.0
        %3536 = vmatpush1.msra.mxu0 0.0
        %3537 = vmatprep.subr.mxu0 0.0
        %3538 = vmatpush1.msra.mxu0 0.0
        %3539 = vmatprep.subr.mxu0 0.0
        %3540 = vmatpush1.msra.mxu0 0.0
        %3541 = vmatprep.subr.mxu0 0.0
        %3542 = vmatpush1.msra.mxu0 0.0
        %3543 = vmatprep.subr.mxu0 0.0
        %3544 = vmatpush1.msra.mxu0 0.0
        %3545 = vmatprep.subr.mxu0 0.0
        %3546 = vmatpush1.msra.mxu0 0.0
        %3547 = vmatprep.subr.mxu0 0.0
        %3548 = vmatpush1.msra.mxu0 0.0
        %3549 = vmatprep.subr.mxu0 0.0
        %3550 = vmatpush1.msra.mxu0 0.0
        %3551 = vmatprep.subr.mxu0 0.0
        %3552 = vmatpush1.msra.mxu0 0.0
        %3553 = vmatprep.subr.mxu0 0.0
        %3554 = vmatpush1.msra.mxu0 0.0
        %3555 = vmatprep.subr.mxu0 0.0
        %3556 = vmatpush1.msra.mxu0 0.0
        %3557 = vmatprep.subr.mxu0 0.0
        %3558 = vmatpush1.msra.mxu0 0.0
        %3559 = vmatprep.subr.mxu0 0.0
        %3560 = vmatpush1.msra.mxu0 0.0
        %3561 = vmatprep.subr.mxu0 0.0
        %3562 = vmatpush1.msra.mxu0 0.0
        %3563 = vmatprep.subr.mxu0 0.0
        %3564 = vmatpush1.msra.mxu0 0.0
        %3565 = vmatprep.subr.mxu0 0.0
        %3566 = vmatpush1.msra.mxu0 0.0
        %3567 = vmatprep.subr.mxu0 0.0
        %3568 = vmatpush1.msra.mxu0 0.0
        %3569 = vmatprep.mubr.f32.mxu0 0.0
        %3570 = vmatmul.mubr.f32.gmra.mrb[0].mxu0 %v3503
        %v3571 = vpop.f32.mrb[0].mxu0
        %v3572 = vadd.f32 0.0, %v3571
        %v3573 = vpop.f32.mrb[0].mxu0
        %3574 = vdwg.mxu0
        %v3575 = vld [vmem:[%s3] sm:$0xff]
        %v3576 = vld [vmem:[%s3 + $0x8] sm:$0xff]
        %v3577 = vld [vmem:[%s748] sm:$0xff]
        %v3578 = vld [vmem:[%s748 + $0x8] sm:$0xff]
        %v3580 = vsel %vm1657, %v3575, 0
        %v3583 = vsel %vm1657, %v3576, 0
        %3585 = vmatprep.subr.mxu0 0.0
        %3586 = vmatpush1.msra.mxu0 %v3577
        %3587 = vmatprep.subr.mxu0 0.0
        %3588 = vmatpush1.msra.mxu0 %v3578
        %3589 = vmatprep.subr.mxu0 0.0
        %3590 = vmatpush1.msra.mxu0 0.0
        %3591 = vmatprep.subr.mxu0 0.0
        %3592 = vmatpush1.msra.mxu0 0.0
        %3593 = vmatprep.subr.mxu0 0.0
        %3594 = vmatpush1.msra.mxu0 0.0
        %3595 = vmatprep.subr.mxu0 0.0
        %3596 = vmatpush1.msra.mxu0 0.0
        %3597 = vmatprep.subr.mxu0 0.0
        %3598 = vmatpush1.msra.mxu0 0.0
        %3599 = vmatprep.subr.mxu0 0.0
        %3600 = vmatpush1.msra.mxu0 0.0
        %3601 = vmatprep.subr.mxu0 0.0
        %3602 = vmatpush1.msra.mxu0 0.0
        %3603 = vmatprep.subr.mxu0 0.0
        %3604 = vmatpush1.msra.mxu0 0.0
        %3605 = vmatprep.subr.mxu0 0.0
        %3606 = vmatpush1.msra.mxu0 0.0
        %3607 = vmatprep.subr.mxu0 0.0
        %3608 = vmatpush1.msra.mxu0 0.0
        %3609 = vmatprep.subr.mxu0 0.0
        %3610 = vmatpush1.msra.mxu0 0.0
        %3611 = vmatprep.subr.mxu0 0.0
        %3612 = vmatpush1.msra.mxu0 0.0
        %3613 = vmatprep.subr.mxu0 0.0
        %3614 = vmatpush1.msra.mxu0 0.0
        %3615 = vmatprep.subr.mxu0 0.0
        %3616 = vmatpush1.msra.mxu0 0.0
        %3617 = vmatprep.subr.mxu0 0.0
        %3618 = vmatpush1.msra.mxu0 0.0
        %3619 = vmatprep.subr.mxu0 0.0
        %3620 = vmatpush1.msra.mxu0 0.0
        %3621 = vmatprep.subr.mxu0 0.0
        %3622 = vmatpush1.msra.mxu0 0.0
        %3623 = vmatprep.subr.mxu0 0.0
        %3624 = vmatpush1.msra.mxu0 0.0
        %3625 = vmatprep.subr.mxu0 0.0
        %3626 = vmatpush1.msra.mxu0 0.0
        %3627 = vmatprep.subr.mxu0 0.0
        %3628 = vmatpush1.msra.mxu0 0.0
        %3629 = vmatprep.subr.mxu0 0.0
        %3630 = vmatpush1.msra.mxu0 0.0
        %3631 = vmatprep.subr.mxu0 0.0
        %3632 = vmatpush1.msra.mxu0 0.0
        %3633 = vmatprep.subr.mxu0 0.0
        %3634 = vmatpush1.msra.mxu0 0.0
        %3635 = vmatprep.subr.mxu0 0.0
        %3636 = vmatpush1.msra.mxu0 0.0
        %3637 = vmatprep.subr.mxu0 0.0
        %3638 = vmatpush1.msra.mxu0 0.0
        %3639 = vmatprep.subr.mxu0 0.0
        %3640 = vmatpush1.msra.mxu0 0.0
        %3641 = vmatprep.subr.mxu0 0.0
        %3642 = vmatpush1.msra.mxu0 0.0
        %3643 = vmatprep.subr.mxu0 0.0
        %3644 = vmatpush1.msra.mxu0 0.0
        %3645 = vmatprep.subr.mxu0 0.0
        %3646 = vmatpush1.msra.mxu0 0.0
        %3647 = vmatprep.subr.mxu0 0.0
        %3648 = vmatpush1.msra.mxu0 0.0
        %3649 = vmatprep.mubr.f32.mxu0 0.0
        %3650 = vmatmul.mubr.f32.gmra.mrb[0].mxu0 %v3580
        %v3651 = vpop.f32.mrb[0].mxu0
        %v3652 = vadd.f32 0.0, %v3651
        %v3653 = vpop.f32.mrb[0].mxu0
        %3654 = vmatprep.mubr.f32.mxu0 0.0
        %3655 = vmatmul.mubr.f32.gmra.mrb[0].mxu0 %v3583
        %v3656 = vpop.f32.mrb[0].mxu0
        %v3657 = vadd.f32 0.0, %v3656
        %v3658 = vpop.f32.mrb[0].mxu0
        %3659 = vdwg.mxu0
        %v3662 = vunpack.c.l.s4 1966171168
        %v3663 = vunpack.c.0.s8 %v3662
        %v3664 = vlaneseq
        %v3665 = vshrl.u32 %v3664, 7
        %v3666 = vsub.s32 %v3663, %v3665
        %v3667 = vrot.slane %v3572, %v3666
        %v3668 = vcombine.high %v3667, %v3667
        %v3670 = vunpack.c.l.s4 1966171168
        %v3671 = vunpack.c.0.s8 %v3670
        %v3672 = vlaneseq
        %v3673 = vshrl.u32 %v3672, 7
        %v3674 = vsub.s32 %v3671, %v3673
        %v3675 = vrot.slane %v3667, %v3674
        %v3677 = vunpack.c.l.s4 1966171168
        %v3678 = vunpack.c.0.s8 %v3677
        %v3679 = vlaneseq
        %v3680 = vshrl.u32 %v3679, 7
        %v3681 = vsub.s32 %v3678, %v3680
        %v3682 = vrot.slane %v3668, %v3681
        %v3683 = vlaneseq
        %v3684 = vshrl.u32 %v3683, 7
        %v3685 = vsub.s32 0, %v3684
        %v3686 = vrot.slane %v3675, %v3685
        %v3687 = vlaneseq
        %v3688 = vshrl.u32 %v3687, 7
        %v3689 = vsub.s32 0, %v3688
        %v3690 = vrot.slane %v3682, %v3689
        %v3693 = vmul.f32 %v3686, %v3652
        %v3694 = vmul.f32 %v3690, %v3657
        %vm3695 = vcmask 64512
        %v3696 = vsel %vm3695, %v3693, 0.0
        %3697 = vadd.xlane.f32.xlu0 %v3696
        %v3698 = vpop.xlane.xlu0 %3697
        %v3699 = vsel %vm3695, %v3694, 0.0
        %3700 = vadd.xlane.f32.xlu0 %v3699
        %v3701 = vpop.xlane.xlu0 %3700
        %v3702 = vmul.f32 %v3698, 0.35355338
        %v3703 = vmul.f32 %v3701, 0.35355338
        %v3706 = vlaneseq
        %v3707 = vand.u32 %v3706, 127
        %v3708 = vlaneseq
        %v3709 = vshrl.u32 %v3708, 7
        %v3710 = vsub.s32 %v3707, %v3709
        %v3711 = vrot.slane %v3702, %v3710
        %v3712 = vlaneseq
        %v3713 = vshrl.u32 %v3712, 7
        %v3714 = vsub.s32 %v3707, %v3713
        %v3715 = vrot.slane %v3703, %v3714
        %vm3716 = vcmask 1041409
        %v3717 = vsel %vm3716, %v3715, %v3711
        %vm3719 = vcmask 58368
        %v3720 = vsel %vm3719, %v3717, -inf
        %3721 = vmax.xlane.f32.xlu0 %v3720
        %v3722 = vpop.xlane.xlu0 %3721
        %v3724 = vlaneseq
        %v3725 = vshrl.u32 %v3724, 7
        %v3726 = vsub.s32 0, %v3725
        %v3727 = vrot.slane %v3722, %v3726
        %v3728 = vlaneseq
        %v3729 = vshrl.u32 %v3728, 7
        %v3730 = vsub.s32 1, %v3729
        %v3731 = vrot.slane %v3722, %v3730
        %v3734 = vsub.f32 %v3702, %v3727
        %v3735 = vsub.f32 %v3703, %v3731
        %v3736 = vmul.f32 %v3734, 1.442695
        %v3737 = vpow.pop %v3736
        %v3738 = vmul.f32 %v3735, 1.442695
        %v3739 = vpow.pop %v3738
        %3742 = vset.pattern.permute.xlu0 0
        %3743 = vperm.xlu0 %3742, %v3737
        %v3744 = vpop.permute.xlu0 %3743
        %3745 = vset.pattern.permute.xlu0 0
        %3746 = vperm.xlu0 %3745, %v3739
        %v3747 = vpop.permute.xlu0 %3746
        %v3748 = vlaneseq
        %v3749 = vshrl.u32 %v3748, 7
        %v3750 = vsub.s32 %v3707, %v3749
        %v3751 = vrot.slane %v3744, %v3750
        %v3752 = vlaneseq
        %v3753 = vshrl.u32 %v3752, 7
        %v3754 = vsub.s32 %v3707, %v3753
        %v3755 = vrot.slane %v3747, %v3754
        %v3756 = vsel %vm3716, %v3755, %v3751
        %v3758 = vsel %vm3719, %v3756, 0.0
        %3759 = vadd.xlane.f32.xlu0 %v3758
        %v3760 = vpop.xlane.xlu0 %3759
        %v3761 = vrcp.pop %v3760
        %v3763 = vlaneseq
        %v3764 = vshrl.u32 %v3763, 7
        %v3765 = vsub.s32 0, %v3764
        %v3766 = vrot.slane %v3761, %v3765
        %v3767 = vlaneseq
        %v3768 = vshrl.u32 %v3767, 7
        %v3769 = vsub.s32 1, %v3768
        %v3770 = vrot.slane %v3761, %v3769
        %v3773 = vmul.f32 %v3737, %v3766
        %v3774 = vmul.f32 %v3739, %v3770
        %3776 = vset.pattern.permute.xlu0 0
        %3777 = vperm.xlu0 %3776, %v3773
        %v3778 = vpop.permute.xlu0 %3777
        %3781 = vset.pattern.permute.xlu0 0
        %3782 = vperm.xlu0 %3781, %v3774
        %v3783 = vpop.permute.xlu0 %3782
        %v3785 = vmul.f32 %v3778, %v3652
        %v3786 = vmul.f32 %v3783, %v3657
        %vm3787 = vcmask 326912
        %v3788 = vsel %vm3787, %v3785, 0.0
        %v3789 = vrot.slane %v3788, 4
        %v3790 = vadd.f32 %v3788, %v3789
        %v3791 = vrot.slane %v3790, 2
        %v3792 = vadd.f32 %v3790, %v3791
        %v3793 = vrot.slane %v3792, 1
        %v3794 = vadd.f32 %v3792, %v3793
        %v3795 = vsel %vm3787, %v3786, 0.0
        %v3796 = vrot.slane %v3795, 4
        %v3797 = vadd.f32 %v3795, %v3796
        %v3798 = vrot.slane %v3797, 2
        %v3799 = vadd.f32 %v3797, %v3798
        %v3800 = vrot.slane %v3799, 1
        %v3801 = vadd.f32 %v3799, %v3800
        %3804 = vrot.lane.b32.xlu0 %v3693, 120
        %v3805 = vpop.permute.xlu0 %3804
        %3806 = vrot.lane.b32.xlu0 %v3694, 120
        %v3807 = vpop.permute.xlu0 %3806
        %v3810 = vsel %vm3695, %v3805, 0.0
        %3811 = vadd.xlane.f32.xlu0 %v3810
        %v3812 = vpop.xlane.xlu0 %3811
        %v3813 = vsel %vm3695, %v3807, 0.0
        %3814 = vadd.xlane.f32.xlu0 %v3813
        %v3815 = vpop.xlane.xlu0 %3814
        %v3816 = vmul.f32 %v3812, 0.35355338
        %v3817 = vmul.f32 %v3815, 0.35355338
        %v3820 = vlaneseq
        %v3821 = vshrl.u32 %v3820, 7
        %v3822 = vsub.s32 %v3707, %v3821
        %v3823 = vrot.slane %v3816, %v3822
        %v3824 = vlaneseq
        %v3825 = vshrl.u32 %v3824, 7
        %v3826 = vsub.s32 %v3707, %v3825
        %v3827 = vrot.slane %v3817, %v3826
        %v3828 = vsel %vm3716, %v3827, %v3823
        %v3830 = vsel %vm3719, %v3828, -inf
        %3831 = vmax.xlane.f32.xlu0 %v3830
        %v3832 = vpop.xlane.xlu0 %3831
        %v3834 = vlaneseq
        %v3835 = vshrl.u32 %v3834, 7
        %v3836 = vsub.s32 0, %v3835
        %v3837 = vrot.slane %v3832, %v3836
        %v3838 = vlaneseq
        %v3839 = vshrl.u32 %v3838, 7
        %v3840 = vsub.s32 1, %v3839
        %v3841 = vrot.slane %v3832, %v3840
        %v3844 = vsub.f32 %v3816, %v3837
        %v3845 = vsub.f32 %v3817, %v3841
        %v3846 = vmul.f32 %v3844, 1.442695
        %v3847 = vpow.pop %v3846
        %v3848 = vmul.f32 %v3845, 1.442695
        %v3849 = vpow.pop %v3848
        %3852 = vset.pattern.permute.xlu0 0
        %3853 = vperm.xlu0 %3852, %v3847
        %v3854 = vpop.permute.xlu0 %3853
        %3855 = vset.pattern.permute.xlu0 0
        %3856 = vperm.xlu0 %3855, %v3849
        %v3857 = vpop.permute.xlu0 %3856
        %v3858 = vlaneseq
        %v3859 = vshrl.u32 %v3858, 7
        %v3860 = vsub.s32 %v3707, %v3859
        %v3861 = vrot.slane %v3854, %v3860
        %v3862 = vlaneseq
        %v3863 = vshrl.u32 %v3862, 7
        %v3864 = vsub.s32 %v3707, %v3863
        %v3865 = vrot.slane %v3857, %v3864
        %v3866 = vsel %vm3716, %v3865, %v3861
        %v3868 = vsel %vm3719, %v3866, 0.0
        %3869 = vadd.xlane.f32.xlu0 %v3868
        %v3870 = vpop.xlane.xlu0 %3869
        %v3871 = vrcp.pop %v3870
        %v3873 = vlaneseq
        %v3874 = vshrl.u32 %v3873, 7
        %v3875 = vsub.s32 0, %v3874
        %v3876 = vrot.slane %v3871, %v3875
        %v3877 = vlaneseq
        %v3878 = vshrl.u32 %v3877, 7
        %v3879 = vsub.s32 1, %v3878
        %v3880 = vrot.slane %v3871, %v3879
        %v3883 = vmul.f32 %v3847, %v3876
        %v3884 = vmul.f32 %v3849, %v3880
        %3886 = vset.pattern.permute.xlu0 0
        %3887 = vperm.xlu0 %3886, %v3883
        %v3888 = vpop.permute.xlu0 %3887
        %3891 = vset.pattern.permute.xlu0 0
        %3892 = vperm.xlu0 %3891, %v3884
        %v3893 = vpop.permute.xlu0 %3892
        %v3895 = vmul.f32 %v3888, %v3652
        %v3896 = vmul.f32 %v3893, %v3657
        %vm3897 = vcmask 392512
        %v3898 = vsel %vm3897, %v3895, 0.0
        %v3899 = vrot.slane %v3898, 4
        %v3900 = vadd.f32 %v3898, %v3899
        %v3901 = vrot.slane %v3900, 2
        %v3902 = vadd.f32 %v3900, %v3901
        %v3903 = vrot.slane %v3902, 1
        %v3904 = vadd.f32 %v3902, %v3903
        %v3905 = vsel %vm3897, %v3896, 0.0
        %v3906 = vrot.slane %v3905, 4
        %v3907 = vadd.f32 %v3905, %v3906
        %v3908 = vrot.slane %v3907, 2
        %v3909 = vadd.f32 %v3907, %v3908
        %v3910 = vrot.slane %v3909, 1
        %v3911 = vadd.f32 %v3909, %v3910
        %3912 = vrot.lane.b32.xlu0 %v3693, 112
        %v3913 = vpop.permute.xlu0 %3912
        %3914 = vrot.lane.b32.xlu0 %v3694, 112
        %v3915 = vpop.permute.xlu0 %3914
        %v3918 = vsel %vm3695, %v3913, 0.0
        %3919 = vadd.xlane.f32.xlu0 %v3918
        %v3920 = vpop.xlane.xlu0 %3919
        %v3921 = vsel %vm3695, %v3915, 0.0
        %3922 = vadd.xlane.f32.xlu0 %v3921
        %v3923 = vpop.xlane.xlu0 %3922
        %v3924 = vmul.f32 %v3920, 0.35355338
        %v3925 = vmul.f32 %v3923, 0.35355338
        %v3928 = vlaneseq
        %v3929 = vshrl.u32 %v3928, 7
        %v3930 = vsub.s32 %v3707, %v3929
        %v3931 = vrot.slane %v3924, %v3930
        %v3932 = vlaneseq
        %v3933 = vshrl.u32 %v3932, 7
        %v3934 = vsub.s32 %v3707, %v3933
        %v3935 = vrot.slane %v3925, %v3934
        %v3936 = vsel %vm3716, %v3935, %v3931
        %v3938 = vsel %vm3719, %v3936, -inf
        %3939 = vmax.xlane.f32.xlu0 %v3938
        %v3940 = vpop.xlane.xlu0 %3939
        %v3942 = vlaneseq
        %v3943 = vshrl.u32 %v3942, 7
        %v3944 = vsub.s32 0, %v3943
        %v3945 = vrot.slane %v3940, %v3944
        %v3946 = vlaneseq
        %v3947 = vshrl.u32 %v3946, 7
        %v3948 = vsub.s32 1, %v3947
        %v3949 = vrot.slane %v3940, %v3948
        %v3952 = vsub.f32 %v3924, %v3945
        %v3953 = vsub.f32 %v3925, %v3949
        %v3954 = vmul.f32 %v3952, 1.442695
        %v3955 = vpow.pop %v3954
        %v3956 = vmul.f32 %v3953, 1.442695
        %v3957 = vpow.pop %v3956
        %3960 = vset.pattern.permute.xlu0 0
        %3961 = vperm.xlu0 %3960, %v3955
        %v3962 = vpop.permute.xlu0 %3961
        %3963 = vset.pattern.permute.xlu0 0
        %3964 = vperm.xlu0 %3963, %v3957
        %v3965 = vpop.permute.xlu0 %3964
        %v3966 = vlaneseq
        %v3967 = vshrl.u32 %v3966, 7
        %v3968 = vsub.s32 %v3707, %v3967
        %v3969 = vrot.slane %v3962, %v3968
        %v3970 = vlaneseq
        %v3971 = vshrl.u32 %v3970, 7
        %v3972 = vsub.s32 %v3707, %v3971
        %v3973 = vrot.slane %v3965, %v3972
        %v3974 = vsel %vm3716, %v3973, %v3969
        %v3976 = vsel %vm3719, %v3974, 0.0
        %3977 = vadd.xlane.f32.xlu0 %v3976
        %v3978 = vpop.xlane.xlu0 %3977
        %v3979 = vrcp.pop %v3978
        %v3981 = vlaneseq
        %v3982 = vshrl.u32 %v3981, 7
        %v3983 = vsub.s32 0, %v3982
        %v3984 = vrot.slane %v3979, %v3983
        %v3985 = vlaneseq
        %v3986 = vshrl.u32 %v3985, 7
        %v3987 = vsub.s32 1, %v3986
        %v3988 = vrot.slane %v3979, %v3987
        %v3991 = vmul.f32 %v3955, %v3984
        %v3992 = vmul.f32 %v3957, %v3988
        %3994 = vset.pattern.permute.xlu0 0
        %3995 = vperm.xlu0 %3994, %v3991
        %v3996 = vpop.permute.xlu0 %3995
        %3999 = vset.pattern.permute.xlu0 0
        %4000 = vperm.xlu0 %3999, %v3992
        %v4001 = vpop.permute.xlu0 %4000
        %v4003 = vmul.f32 %v3996, %v3652
        %v4004 = vmul.f32 %v4001, %v3657
        %vm4005 = vcmask 458112
        %v4006 = vsel %vm4005, %v4003, 0.0
        %v4007 = vrot.slane %v4006, 4
        %v4008 = vadd.f32 %v4006, %v4007
        %v4009 = vrot.slane %v4008, 2
        %v4010 = vadd.f32 %v4008, %v4009
        %v4011 = vrot.slane %v4010, 1
        %v4012 = vadd.f32 %v4010, %v4011
        %v4013 = vsel %vm4005, %v4004, 0.0
        %v4014 = vrot.slane %v4013, 4
        %v4015 = vadd.f32 %v4013, %v4014
        %v4016 = vrot.slane %v4015, 2
        %v4017 = vadd.f32 %v4015, %v4016
        %v4018 = vrot.slane %v4017, 1
        %v4019 = vadd.f32 %v4017, %v4018
        %4020 = vrot.lane.b32.xlu0 %v3693, 104
        %v4021 = vpop.permute.xlu0 %4020
        %4022 = vrot.lane.b32.xlu0 %v3694, 104
        %v4023 = vpop.permute.xlu0 %4022
        %v4026 = vsel %vm3695, %v4021, 0.0
        %4027 = vadd.xlane.f32.xlu0 %v4026
        %v4028 = vpop.xlane.xlu0 %4027
        %v4029 = vsel %vm3695, %v4023, 0.0
        %4030 = vadd.xlane.f32.xlu0 %v4029
        %v4031 = vpop.xlane.xlu0 %4030
        %v4032 = vmul.f32 %v4028, 0.35355338
        %v4033 = vmul.f32 %v4031, 0.35355338
        %v4036 = vlaneseq
        %v4037 = vshrl.u32 %v4036, 7
        %v4038 = vsub.s32 %v3707, %v4037
        %v4039 = vrot.slane %v4032, %v4038
        %v4040 = vlaneseq
        %v4041 = vshrl.u32 %v4040, 7
        %v4042 = vsub.s32 %v3707, %v4041
        %v4043 = vrot.slane %v4033, %v4042
        %v4044 = vsel %vm3716, %v4043, %v4039
        %v4046 = vsel %vm3719, %v4044, -inf
        %4047 = vmax.xlane.f32.xlu0 %v4046
        %v4048 = vpop.xlane.xlu0 %4047
        %v4050 = vlaneseq
        %v4051 = vshrl.u32 %v4050, 7
        %v4052 = vsub.s32 0, %v4051
        %v4053 = vrot.slane %v4048, %v4052
        %v4054 = vlaneseq
        %v4055 = vshrl.u32 %v4054, 7
        %v4056 = vsub.s32 1, %v4055
        %v4057 = vrot.slane %v4048, %v4056
        %v4060 = vsub.f32 %v4032, %v4053
        %v4061 = vsub.f32 %v4033, %v4057
        %v4062 = vmul.f32 %v4060, 1.442695
        %v4063 = vpow.pop %v4062
        %v4064 = vmul.f32 %v4061, 1.442695
        %v4065 = vpow.pop %v4064
        %4068 = vset.pattern.permute.xlu0 0
        %4069 = vperm.xlu0 %4068, %v4063
        %v4070 = vpop.permute.xlu0 %4069
        %4071 = vset.pattern.permute.xlu0 0
        %4072 = vperm.xlu0 %4071, %v4065
        %v4073 = vpop.permute.xlu0 %4072
        %v4074 = vlaneseq
        %v4075 = vshrl.u32 %v4074, 7
        %v4076 = vsub.s32 %v3707, %v4075
        %v4077 = vrot.slane %v4070, %v4076
        %v4078 = vlaneseq
        %v4079 = vshrl.u32 %v4078, 7
        %v4080 = vsub.s32 %v3707, %v4079
        %v4081 = vrot.slane %v4073, %v4080
        %v4082 = vsel %vm3716, %v4081, %v4077
        %v4084 = vsel %vm3719, %v4082, 0.0
        %4085 = vadd.xlane.f32.xlu0 %v4084
        %v4086 = vpop.xlane.xlu0 %4085
        %v4087 = vrcp.pop %v4086
        %v4089 = vlaneseq
        %v4090 = vshrl.u32 %v4089, 7
        %v4091 = vsub.s32 0, %v4090
        %v4092 = vrot.slane %v4087, %v4091
        %v4093 = vlaneseq
        %v4094 = vshrl.u32 %v4093, 7
        %v4095 = vsub.s32 1, %v4094
        %v4096 = vrot.slane %v4087, %v4095
        %v4099 = vmul.f32 %v4063, %v4092
        %v4100 = vmul.f32 %v4065, %v4096
        %4102 = vset.pattern.permute.xlu0 0
        %4103 = vperm.xlu0 %4102, %v4099
        %v4104 = vpop.permute.xlu0 %4103
        %4107 = vset.pattern.permute.xlu0 0
        %4108 = vperm.xlu0 %4107, %v4100
        %v4109 = vpop.permute.xlu0 %4108
        %v4111 = vmul.f32 %v4104, %v3652
        %v4112 = vmul.f32 %v4109, %v3657
        %vm4113 = vcmask 523712
        %v4114 = vsel %vm4113, %v4111, 0.0
        %v4115 = vrot.slane %v4114, 4
        %v4116 = vadd.f32 %v4114, %v4115
        %v4117 = vrot.slane %v4116, 2
        %v4118 = vadd.f32 %v4116, %v4117
        %v4119 = vrot.slane %v4118, 1
        %v4120 = vadd.f32 %v4118, %v4119
        %v4121 = vsel %vm4113, %v4112, 0.0
        %v4122 = vrot.slane %v4121, 4
        %v4123 = vadd.f32 %v4121, %v4122
        %v4124 = vrot.slane %v4123, 2
        %v4125 = vadd.f32 %v4123, %v4124
        %v4126 = vrot.slane %v4125, 1
        %v4127 = vadd.f32 %v4125, %v4126
        %v4130 = vsel %vm3716, %v3801, %v3794
        %4131 = vrot.lane.b32.xlu0 %v4130, 96
        %v4132 = vpop.permute.xlu0 %4131
        %v4136 = vsel %vm3716, %v3911, %v3904
        %4137 = vrot.lane.b32.xlu0 %v4136, 96
        %v4138 = vpop.permute.xlu0 %4137
        %v4142 = vsel %vm3716, %v4019, %v4012
        %4143 = vrot.lane.b32.xlu0 %v4142, 96
        %v4144 = vpop.permute.xlu0 %4143
        %v4148 = vsel %vm3716, %v4127, %v4120
        %4149 = vrot.lane.b32.xlu0 %v4148, 96
        %v4150 = vpop.permute.xlu0 %4149
        %v4152 = vsel %vm3695, %v4132, %v4138
        %v4153 = vsel %vm1657, %v4152, %v4144
        %vm4154 = vcmask 195584
        %v4155 = vsel %vm4154, %v4153, %v4150
        %v4156 = vld [vmem:[%s753] sm:$0xff]
        %v4157 = vld [vmem:[%s753 + $0x8] sm:$0xff]
        %v4158 = vld [vmem:[%s753 + $0x10] sm:$0xff]
        %v4159 = vld [vmem:[%s753 + $0x18] sm:$0xff]
        %v4161 = vsel %vm966, %v4155, 0
        %4163 = vmatprep.subr.mxu0 0.0
        %4164 = vmatpush1.msra.mxu0 %v4156
        %4165 = vmatprep.subr.mxu0 0.0
        %4166 = vmatpush1.msra.mxu0 %v4157
        %4167 = vmatprep.subr.mxu0 0.0
        %4168 = vmatpush1.msra.mxu0 %v4158
        %4169 = vmatprep.subr.mxu0 0.0
        %4170 = vmatpush1.msra.mxu0 %v4159
        %4171 = vmatprep.subr.mxu0 0.0
        %4172 = vmatpush1.msra.mxu0 0.0
        %4173 = vmatprep.subr.mxu0 0.0
        %4174 = vmatpush1.msra.mxu0 0.0
        %4175 = vmatprep.subr.mxu0 0.0
        %4176 = vmatpush1.msra.mxu0 0.0
        %4177 = vmatprep.subr.mxu0 0.0
        %4178 = vmatpush1.msra.mxu0 0.0
        %4179 = vmatprep.subr.mxu0 0.0
        %4180 = vmatpush1.msra.mxu0 0.0
        %4181 = vmatprep.subr.mxu0 0.0
        %4182 = vmatpush1.msra.mxu0 0.0
        %4183 = vmatprep.subr.mxu0 0.0
        %4184 = vmatpush1.msra.mxu0 0.0
        %4185 = vmatprep.subr.mxu0 0.0
        %4186 = vmatpush1.msra.mxu0 0.0
        %4187 = vmatprep.subr.mxu0 0.0
        %4188 = vmatpush1.msra.mxu0 0.0
        %4189 = vmatprep.subr.mxu0 0.0
        %4190 = vmatpush1.msra.mxu0 0.0
        %4191 = vmatprep.subr.mxu0 0.0
        %4192 = vmatpush1.msra.mxu0 0.0
        %4193 = vmatprep.subr.mxu0 0.0
        %4194 = vmatpush1.msra.mxu0 0.0
        %4195 = vmatprep.subr.mxu0 0.0
        %4196 = vmatpush1.msra.mxu0 0.0
        %4197 = vmatprep.subr.mxu0 0.0
        %4198 = vmatpush1.msra.mxu0 0.0
        %4199 = vmatprep.subr.mxu0 0.0
        %4200 = vmatpush1.msra.mxu0 0.0
        %4201 = vmatprep.subr.mxu0 0.0
        %4202 = vmatpush1.msra.mxu0 0.0
        %4203 = vmatprep.subr.mxu0 0.0
        %4204 = vmatpush1.msra.mxu0 0.0
        %4205 = vmatprep.subr.mxu0 0.0
        %4206 = vmatpush1.msra.mxu0 0.0
        %4207 = vmatprep.subr.mxu0 0.0
        %4208 = vmatpush1.msra.mxu0 0.0
        %4209 = vmatprep.subr.mxu0 0.0
        %4210 = vmatpush1.msra.mxu0 0.0
        %4211 = vmatprep.subr.mxu0 0.0
        %4212 = vmatpush1.msra.mxu0 0.0
        %4213 = vmatprep.subr.mxu0 0.0
        %4214 = vmatpush1.msra.mxu0 0.0
        %4215 = vmatprep.subr.mxu0 0.0
        %4216 = vmatpush1.msra.mxu0 0.0
        %4217 = vmatprep.subr.mxu0 0.0
        %4218 = vmatpush1.msra.mxu0 0.0
        %4219 = vmatprep.subr.mxu0 0.0
        %4220 = vmatpush1.msra.mxu0 0.0
        %4221 = vmatprep.subr.mxu0 0.0
        %4222 = vmatpush1.msra.mxu0 0.0
        %4223 = vmatprep.subr.mxu0 0.0
        %4224 = vmatpush1.msra.mxu0 0.0
        %4225 = vmatprep.subr.mxu0 0.0
        %4226 = vmatpush1.msra.mxu0 0.0
        %4227 = vmatprep.mubr.f32.mxu0 0.0
        %4228 = vmatmul.mubr.f32.gmra.mrb[0].mxu0 %v4161
        %v4229 = vpop.f32.mrb[0].mxu0
        %v4230 = vadd.f32 %v3497, %v4229
        %v4231 = vpop.f32.mrb[0].mxu0
        %4232 = vdwg.mxu0
        %v4233 = vsel %vm3473, %v4230, 0.0
        %4234 = vadd.xlane.f32.xlu0 %v4233
        %v4235 = vpop.xlane.xlu0 %4234
        %v4236 = vmul.f32 %v4235, %v3477
        %v4237 = vsub.f32 %v4230, %v4236
        %v4238 = vmul.f32 %v4237, %v4237
        %v4239 = vsel %vm3473, %v4238, 0.0
        %4240 = vadd.xlane.f32.xlu0 %v4239
        %v4241 = vpop.xlane.xlu0 %4240
        %v4242 = vmul.f32 %v4241, %v3477
        %v4243 = vadd.f32 %v4242, 1e-05
        %v4244 = vrsqrt.pop %v4243
        %v4245 = vmul.f32 %v4237, %v4244
        %v4246 = vlaneseq
        %v4247 = vshrl.u32 %v4246, 7
        %v4248 = vsub.s32 2, %v4247
        %v4249 = vrot.slane %v954, %v4248
        %v4250 = vmul.f32 %v4245, %v4249
        %v4251 = vlaneseq
        %v4252 = vshrl.u32 %v4251, 7
        %v4253 = vsub.s32 3, %v4252
        %v4254 = vrot.slane %v954, %v4253
        %v4255 = vadd.f32 %v4250, %v4254
        %4256 = vset.pattern.permute.xlu0 64
        %4257 = vperm.xlu0 %4256, %v1040
        %v4258 = vpop.permute.xlu0 %4257
        %v4260 = vmul.f32 %v4258, %v4255
        %4261 = vset.pattern.permute.xlu0 65
        %4262 = vperm.xlu0 %4261, %v1040
        %v4263 = vpop.permute.xlu0 %4262
        %v4265 = vmul.f32 %v4263, %v4255
        %4266 = vset.pattern.permute.xlu0 66
        %4267 = vperm.xlu0 %4266, %v1040
        %v4268 = vpop.permute.xlu0 %4267
        %v4270 = vmul.f32 %v4268, %v4255
        %4271 = vset.pattern.permute.xlu0 67
        %4272 = vperm.xlu0 %4271, %v1040
        %v4273 = vpop.permute.xlu0 %4272
        %v4275 = vmul.f32 %v4273, %v4255
        %4276 = vset.pattern.permute.xlu0 68
        %4277 = vperm.xlu0 %4276, %v1040
        %v4278 = vpop.permute.xlu0 %4277
        %v4280 = vmul.f32 %v4278, %v4255
        %4281 = vset.pattern.permute.xlu0 69
        %4282 = vperm.xlu0 %4281, %v1040
        %v4283 = vpop.permute.xlu0 %4282
        %v4285 = vmul.f32 %v4283, %v4255
        %4286 = vset.pattern.permute.xlu0 70
        %4287 = vperm.xlu0 %4286, %v1040
        %v4288 = vpop.permute.xlu0 %4287
        %v4290 = vmul.f32 %v4288, %v4255
        %4291 = vset.pattern.permute.xlu0 71
        %4292 = vperm.xlu0 %4291, %v1040
        %v4293 = vpop.permute.xlu0 %4292
        %v4295 = vmul.f32 %v4293, %v4255
        %4296 = vset.pattern.permute.xlu0 72
        %4297 = vperm.xlu0 %4296, %v1040
        %v4298 = vpop.permute.xlu0 %4297
        %v4300 = vmul.f32 %v4298, %v4255
        %4301 = vset.pattern.permute.xlu0 73
        %4302 = vperm.xlu0 %4301, %v1040
        %v4303 = vpop.permute.xlu0 %4302
        %v4305 = vmul.f32 %v4303, %v4255
        %4306 = vset.pattern.permute.xlu0 74
        %4307 = vperm.xlu0 %4306, %v1040
        %v4308 = vpop.permute.xlu0 %4307
        %v4310 = vmul.f32 %v4308, %v4255
        %4311 = vset.pattern.permute.xlu0 75
        %4312 = vperm.xlu0 %4311, %v1040
        %v4313 = vpop.permute.xlu0 %4312
        %v4315 = vmul.f32 %v4313, %v4255
        %4316 = vset.pattern.permute.xlu0 76
        %4317 = vperm.xlu0 %4316, %v1040
        %v4318 = vpop.permute.xlu0 %4317
        %v4320 = vmul.f32 %v4318, %v4255
        %4321 = vset.pattern.permute.xlu0 77
        %4322 = vperm.xlu0 %4321, %v1040
        %v4323 = vpop.permute.xlu0 %4322
        %v4325 = vmul.f32 %v4323, %v4255
        %4326 = vset.pattern.permute.xlu0 78
        %4327 = vperm.xlu0 %4326, %v1040
        %v4328 = vpop.permute.xlu0 %4327
        %v4330 = vmul.f32 %v4328, %v4255
        %4331 = vset.pattern.permute.xlu0 79
        %4332 = vperm.xlu0 %4331, %v1040
        %v4333 = vpop.permute.xlu0 %4332
        %v4335 = vmul.f32 %v4333, %v4255
        %4337 = vrot.lane.b32.xlu0 %v4265, 32
        %v4338 = vpop.permute.xlu0 %4337
        %4341 = vrot.lane.b32.xlu0 %v4270, 64
        %v4342 = vpop.permute.xlu0 %4341
        %4345 = vrot.lane.b32.xlu0 %v4275, 96
        %v4346 = vpop.permute.xlu0 %4345
        %4349 = vrot.lane.b32.xlu0 %v4285, 32
        %v4350 = vpop.permute.xlu0 %4349
        %4353 = vrot.lane.b32.xlu0 %v4290, 64
        %v4354 = vpop.permute.xlu0 %4353
        %4357 = vrot.lane.b32.xlu0 %v4295, 96
        %v4358 = vpop.permute.xlu0 %4357
        %4361 = vrot.lane.b32.xlu0 %v4305, 32
        %v4362 = vpop.permute.xlu0 %4361
        %4365 = vrot.lane.b32.xlu0 %v4310, 64
        %v4366 = vpop.permute.xlu0 %4365
        %4369 = vrot.lane.b32.xlu0 %v4315, 96
        %v4370 = vpop.permute.xlu0 %4369
        %4373 = vrot.lane.b32.xlu0 %v4325, 32
        %v4374 = vpop.permute.xlu0 %4373
        %4377 = vrot.lane.b32.xlu0 %v4330, 64
        %v4378 = vpop.permute.xlu0 %4377
        %4381 = vrot.lane.b32.xlu0 %v4335, 96
        %v4382 = vpop.permute.xlu0 %4381
        %v4384 = vsel %vm966, %v4260, %v4338
        %v4385 = vsel %vm1171, %v4384, %v4342
        %v4386 = vsel %vm1173, %v4385, %v4346
        %v4387 = vsel %vm966, %v4280, %v4350
        %v4388 = vsel %vm1171, %v4387, %v4354
        %v4389 = vsel %vm1173, %v4388, %v4358
        %v4390 = vsel %vm966, %v4300, %v4362
        %v4391 = vsel %vm1171, %v4390, %v4366
        %v4392 = vsel %vm1173, %v4391, %v4370
        %v4393 = vsel %vm966, %v4320, %v4374
        %v4394 = vsel %vm1171, %v4393, %v4378
        %v4395 = vsel %vm1173, %v4394, %v4382
        %v4396 = vsel %vm966, %v4255, %v1655
        %v4397 = vsel %vm1188, %v4396, 1.0
        %v4398 = vld [vmem:[%s733] sm:$0xff]
        %v4399 = vld [vmem:[%s733 + $0x8] sm:$0xff]
        %v4400 = vld [vmem:[%s733 + $0x10] sm:$0xff]
        %v4401 = vld [vmem:[%s733 + $0x18] sm:$0xff]
        %v4402 = vld [vmem:[%s733 + $0x20] sm:$0xff]
        %v4403 = vld [vmem:[%s733 + $0x28] sm:$0xff]
        %v4404 = vld [vmem:[%s733 + $0x30] sm:$0xff]
        %v4405 = vld [vmem:[%s733 + $0x38] sm:$0xff]
        %v4406 = vld [vmem:[%s733 + $0x40] sm:$0xff]
        %v4407 = vld [vmem:[%s733 + $0x48] sm:$0xff]
        %v4408 = vld [vmem:[%s733 + $0x50] sm:$0xff]
        %v4409 = vld [vmem:[%s733 + $0x58] sm:$0xff]
        %v4410 = vld [vmem:[%s733 + $0x60] sm:$0xff]
        %v4411 = vld [vmem:[%s733 + $0x68] sm:$0xff]
        %v4412 = vld [vmem:[%s733 + $0x70] sm:$0xff]
        %v4413 = vld [vmem:[%s733 + $0x78] sm:$0xff]
        %v4414 = vld [vmem:[%s733 + $0x80] sm:$0xff]
        %v4415 = vld [vmem:[%s733 + $0x88] sm:$0xff]
        %v4416 = vld [vmem:[%s733 + $0x90] sm:$0xff]
        %v4417 = vld [vmem:[%s733 + $0x98] sm:$0xff]
        %v4418 = vld [vmem:[%s733 + $0xa0] sm:$0xff]
        %v4419 = vld [vmem:[%s733 + $0xa8] sm:$0xff]
        %v4420 = vld [vmem:[%s733 + $0xb0] sm:$0xff]
        %v4421 = vld [vmem:[%s733 + $0xb8] sm:$0xff]
        %v4422 = vld [vmem:[%s733 + $0xc0] sm:$0xff]
        %v4423 = vld [vmem:[%s733 + $0xc8] sm:$0xff]
        %v4424 = vld [vmem:[%s733 + $0xd0] sm:$0xff]
        %v4425 = vld [vmem:[%s733 + $0xd8] sm:$0xff]
        %v4426 = vld [vmem:[%s733 + $0xe0] sm:$0xff]
        %v4427 = vld [vmem:[%s733 + $0xe8] sm:$0xff]
        %v4428 = vld [vmem:[%s733 + $0xf0] sm:$0xff]
        %v4429 = vld [vmem:[%s733 + $0xf8] sm:$0xff]
        %v4430 = vld [vmem:[%s733 + $0x100] sm:$0xff]
        %v4431 = vld [vmem:[%s733 + $0x108] sm:$0xff]
        %v4432 = vld [vmem:[%s733 + $0x110] sm:$0xff]
        %v4433 = vld [vmem:[%s733 + $0x118] sm:$0xff]
        %v4434 = vld [vmem:[%s733 + $0x120] sm:$0xff]
        %v4435 = vld [vmem:[%s733 + $0x128] sm:$0xff]
        %v4436 = vld [vmem:[%s733 + $0x130] sm:$0xff]
        %v4437 = vld [vmem:[%s733 + $0x138] sm:$0xff]
        %v4438 = vld [vmem:[%s733 + $0x140] sm:$0xff]
        %v4439 = vld [vmem:[%s733 + $0x148] sm:$0xff]
        %v4440 = vld [vmem:[%s733 + $0x150] sm:$0xff]
        %v4441 = vld [vmem:[%s733 + $0x158] sm:$0xff]
        %v4442 = vld [vmem:[%s733 + $0x160] sm:$0xff]
        %v4443 = vld [vmem:[%s733 + $0x168] sm:$0xff]
        %v4444 = vld [vmem:[%s733 + $0x170] sm:$0xff]
        %v4445 = vld [vmem:[%s733 + $0x178] sm:$0xff]
        %v4446 = vld [vmem:[%s733 + $0x180] sm:$0xff]
        %v4447 = vld [vmem:[%s733 + $0x188] sm:$0xff]
        %v4448 = vld [vmem:[%s733 + $0x190] sm:$0xff]
        %v4449 = vld [vmem:[%s733 + $0x198] sm:$0xff]
        %v4450 = vld [vmem:[%s733 + $0x1a0] sm:$0xff]
        %v4451 = vld [vmem:[%s733 + $0x1a8] sm:$0xff]
        %v4452 = vld [vmem:[%s733 + $0x1b0] sm:$0xff]
        %v4453 = vld [vmem:[%s733 + $0x1b8] sm:$0xff]
        %v4454 = vld [vmem:[%s733 + $0x1c0] sm:$0xff]
        %v4455 = vld [vmem:[%s733 + $0x1c8] sm:$0xff]
        %v4456 = vld [vmem:[%s733 + $0x1d0] sm:$0xff]
        %v4457 = vld [vmem:[%s733 + $0x1d8] sm:$0xff]
        %v4458 = vld [vmem:[%s733 + $0x1e0] sm:$0xff]
        %v4459 = vld [vmem:[%s733 + $0x1e8] sm:$0xff]
        %v4460 = vld [vmem:[%s733 + $0x1f0] sm:$0xff]
        %v4461 = vld [vmem:[%s733 + $0x1f8] sm:$0xff]
        %v4462 = vld [vmem:[%s733 + $0x200] sm:$0xff]
        %v4463 = vld [vmem:[%s733 + $0x208] sm:$0xff]
        %v4464 = vld [vmem:[%s733 + $0x210] sm:$0xff]
        %v4465 = vld [vmem:[%s733 + $0x218] sm:$0xff]
        %v4466 = vld [vmem:[%s733 + $0x220] sm:$0xff]
        %v4467 = vld [vmem:[%s733 + $0x228] sm:$0xff]
        %v4468 = vld [vmem:[%s733 + $0x230] sm:$0xff]
        %v4469 = vld [vmem:[%s733 + $0x238] sm:$0xff]
        %v4470 = vld [vmem:[%s733 + $0x240] sm:$0xff]
        %v4471 = vld [vmem:[%s733 + $0x248] sm:$0xff]
        %v4472 = vld [vmem:[%s733 + $0x250] sm:$0xff]
        %v4473 = vld [vmem:[%s733 + $0x258] sm:$0xff]
        %v4474 = vld [vmem:[%s733 + $0x260] sm:$0xff]
        %v4475 = vld [vmem:[%s733 + $0x268] sm:$0xff]
        %v4476 = vld [vmem:[%s733 + $0x270] sm:$0xff]
        %v4477 = vld [vmem:[%s733 + $0x278] sm:$0xff]
        %v4478 = vld [vmem:[%s733 + $0x280] sm:$0xff]
        %v4479 = vld [vmem:[%s733 + $0x288] sm:$0xff]
        %v4480 = vld [vmem:[%s733 + $0x290] sm:$0xff]
        %v4481 = vld [vmem:[%s733 + $0x298] sm:$0xff]
        %v4482 = vld [vmem:[%s733 + $0x2a0] sm:$0xff]
        %v4483 = vld [vmem:[%s733 + $0x2a8] sm:$0xff]
        %v4484 = vld [vmem:[%s733 + $0x2b0] sm:$0xff]
        %v4485 = vld [vmem:[%s733 + $0x2b8] sm:$0xff]
        %v4486 = vld [vmem:[%s733 + $0x2c0] sm:$0xff]
        %v4487 = vld [vmem:[%s733 + $0x2c8] sm:$0xff]
        %v4488 = vld [vmem:[%s733 + $0x2d0] sm:$0xff]
        %v4489 = vld [vmem:[%s733 + $0x2d8] sm:$0xff]
        %v4490 = vld [vmem:[%s733 + $0x2e0] sm:$0xff]
        %v4491 = vld [vmem:[%s733 + $0x2e8] sm:$0xff]
        %v4492 = vld [vmem:[%s733 + $0x2f0] sm:$0xff]
        %v4493 = vld [vmem:[%s733 + $0x2f8] sm:$0xff]
        %v4494 = vld [vmem:[%s733 + $0x300] sm:$0xff]
        %v4495 = vld [vmem:[%s733 + $0x308] sm:$0xff]
        %v4496 = vld [vmem:[%s733 + $0x310] sm:$0xff]
        %v4497 = vld [vmem:[%s733 + $0x318] sm:$0xff]
        %v4498 = vld [vmem:[%s733 + $0x320] sm:$0xff]
        %v4499 = vld [vmem:[%s733 + $0x328] sm:$0xff]
        %v4500 = vld [vmem:[%s733 + $0x330] sm:$0xff]
        %v4501 = vld [vmem:[%s733 + $0x338] sm:$0xff]
        %v4502 = vld [vmem:[%s733 + $0x340] sm:$0xff]
        %v4503 = vld [vmem:[%s733 + $0x348] sm:$0xff]
        %v4504 = vld [vmem:[%s733 + $0x350] sm:$0xff]
        %v4505 = vld [vmem:[%s733 + $0x358] sm:$0xff]
        %v4506 = vld [vmem:[%s733 + $0x360] sm:$0xff]
        %v4507 = vld [vmem:[%s733 + $0x368] sm:$0xff]
        %v4508 = vld [vmem:[%s733 + $0x370] sm:$0xff]
        %v4509 = vld [vmem:[%s733 + $0x378] sm:$0xff]
        %v4510 = vld [vmem:[%s733 + $0x380] sm:$0xff]
        %v4511 = vld [vmem:[%s733 + $0x388] sm:$0xff]
        %v4512 = vld [vmem:[%s733 + $0x390] sm:$0xff]
        %v4513 = vld [vmem:[%s733 + $0x398] sm:$0xff]
        %v4514 = vld [vmem:[%s733 + $0x3a0] sm:$0xff]
        %v4515 = vld [vmem:[%s733 + $0x3a8] sm:$0xff]
        %v4516 = vld [vmem:[%s733 + $0x3b0] sm:$0xff]
        %v4517 = vld [vmem:[%s733 + $0x3b8] sm:$0xff]
        %v4518 = vld [vmem:[%s733 + $0x3c0] sm:$0xff]
        %v4519 = vld [vmem:[%s733 + $0x3c8] sm:$0xff]
        %v4520 = vld [vmem:[%s733 + $0x3d0] sm:$0xff]
        %v4521 = vld [vmem:[%s733 + $0x3d8] sm:$0xff]
        %v4522 = vld [vmem:[%s733 + $0x3e0] sm:$0xff]
        %v4523 = vld [vmem:[%s733 + $0x3e8] sm:$0xff]
        %v4524 = vld [vmem:[%s733 + $0x3f0] sm:$0xff]
        %v4525 = vld [vmem:[%s733 + $0x3f8] sm:$0xff]
        %v4526 = vld [vmem:[%s733 + $0x400] sm:$0xff]
        %v4527 = vld [vmem:[%s733 + $0x408] sm:$0xff]
        %v4528 = vld [vmem:[%s733 + $0x410] sm:$0xff]
        %v4529 = vld [vmem:[%s733 + $0x418] sm:$0xff]
        %v4530 = vld [vmem:[%s733 + $0x420] sm:$0xff]
        %v4531 = vld [vmem:[%s733 + $0x428] sm:$0xff]
        %v4532 = vld [vmem:[%s733 + $0x430] sm:$0xff]
        %v4533 = vld [vmem:[%s733 + $0x438] sm:$0xff]
        %v4534 = vld [vmem:[%s733 + $0x440] sm:$0xff]
        %v4535 = vld [vmem:[%s733 + $0x448] sm:$0xff]
        %v4536 = vld [vmem:[%s733 + $0x450] sm:$0xff]
        %v4537 = vld [vmem:[%s733 + $0x458] sm:$0xff]
        %v4538 = vld [vmem:[%s733 + $0x460] sm:$0x1]
        %v4539 = vld [vmem:[%s733 + $0x468] sm:$0x1]
        %v4541 = vsel %vm1332, %v4397, 0
        %v4544 = vsel %vm1336, %v4538, 0
        %v4547 = vsel %vm1336, %v4539, 0
        %4549 = vmatprep.subr.mxu0 %v4399
        %4550 = vmatpush1.msra.mxu0 %v4398
        %4551 = vmatprep.subr.mxu0 %v4401
        %4552 = vmatpush1.msra.mxu0 %v4400
        %4553 = vmatprep.subr.mxu0 %v4403
        %4554 = vmatpush1.msra.mxu0 %v4402
        %4555 = vmatprep.subr.mxu0 %v4405
        %4556 = vmatpush1.msra.mxu0 %v4404
        %4557 = vmatprep.subr.mxu0 %v4407
        %4558 = vmatpush1.msra.mxu0 %v4406
        %4559 = vmatprep.subr.mxu0 %v4409
        %4560 = vmatpush1.msra.mxu0 %v4408
        %4561 = vmatprep.subr.mxu0 %v4411
        %4562 = vmatpush1.msra.mxu0 %v4410
        %4563 = vmatprep.subr.mxu0 %v4413
        %4564 = vmatpush1.msra.mxu0 %v4412
        %4565 = vmatprep.subr.mxu0 %v4415
        %4566 = vmatpush1.msra.mxu0 %v4414
        %4567 = vmatprep.subr.mxu0 %v4417
        %4568 = vmatpush1.msra.mxu0 %v4416
        %4569 = vmatprep.subr.mxu0 %v4419
        %4570 = vmatpush1.msra.mxu0 %v4418
        %4571 = vmatprep.subr.mxu0 %v4421
        %4572 = vmatpush1.msra.mxu0 %v4420
        %4573 = vmatprep.subr.mxu0 %v4423
        %4574 = vmatpush1.msra.mxu0 %v4422
        %4575 = vmatprep.subr.mxu0 %v4425
        %4576 = vmatpush1.msra.mxu0 %v4424
        %4577 = vmatprep.subr.mxu0 %v4427
        %4578 = vmatpush1.msra.mxu0 %v4426
        %4579 = vmatprep.subr.mxu0 %v4429
        %4580 = vmatpush1.msra.mxu0 %v4428
        %4581 = vmatprep.subr.mxu0 %v4431
        %4582 = vmatpush1.msra.mxu0 %v4430
        %4583 = vmatprep.subr.mxu0 %v4433
        %4584 = vmatpush1.msra.mxu0 %v4432
        %4585 = vmatprep.subr.mxu0 %v4435
        %4586 = vmatpush1.msra.mxu0 %v4434
        %4587 = vmatprep.subr.mxu0 %v4437
        %4588 = vmatpush1.msra.mxu0 %v4436
        %4589 = vmatprep.subr.mxu0 %v4439
        %4590 = vmatpush1.msra.mxu0 %v4438
        %4591 = vmatprep.subr.mxu0 %v4441
        %4592 = vmatpush1.msra.mxu0 %v4440
        %4593 = vmatprep.subr.mxu0 %v4443
        %4594 = vmatpush1.msra.mxu0 %v4442
        %4595 = vmatprep.subr.mxu0 %v4445
        %4596 = vmatpush1.msra.mxu0 %v4444
        %4597 = vmatprep.subr.mxu0 %v4447
        %4598 = vmatpush1.msra.mxu0 %v4446
        %4599 = vmatprep.subr.mxu0 %v4449
        %4600 = vmatpush1.msra.mxu0 %v4448
        %4601 = vmatprep.subr.mxu0 %v4451
        %4602 = vmatpush1.msra.mxu0 %v4450
        %4603 = vmatprep.subr.mxu0 %v4453
        %4604 = vmatpush1.msra.mxu0 %v4452
        %4605 = vmatprep.subr.mxu0 %v4455
        %4606 = vmatpush1.msra.mxu0 %v4454
        %4607 = vmatprep.subr.mxu0 %v4457
        %4608 = vmatpush1.msra.mxu0 %v4456
        %4609 = vmatprep.subr.mxu0 %v4459
        %4610 = vmatpush1.msra.mxu0 %v4458
        %4611 = vmatprep.subr.mxu0 %v4461
        %4612 = vmatpush1.msra.mxu0 %v4460
        %4613 = vmatprep.mubr.f32.mxu0 %v4389
        %4614 = vmatmul.mubr.f32.gmra.mrb[0].mxu0 %v4386
        %v4615 = vpop.f32.mrb[0].mxu0
        %v4616 = vadd.f32 0.0, %v4615
        %v4617 = vpop.f32.mrb[0].mxu0
        %v4618 = vadd.f32 0.0, %v4617
        %4619 = vdwg.mxu0
        %4620 = vmatprep.subr.mxu0 %v4463
        %4621 = vmatpush1.msra.mxu0 %v4462
        %4622 = vmatprep.subr.mxu0 %v4465
        %4623 = vmatpush1.msra.mxu0 %v4464
        %4624 = vmatprep.subr.mxu0 %v4467
        %4625 = vmatpush1.msra.mxu0 %v4466
        %4626 = vmatprep.subr.mxu0 %v4469
        %4627 = vmatpush1.msra.mxu0 %v4468
        %4628 = vmatprep.subr.mxu0 %v4471
        %4629 = vmatpush1.msra.mxu0 %v4470
        %4630 = vmatprep.subr.mxu0 %v4473
        %4631 = vmatpush1.msra.mxu0 %v4472
        %4632 = vmatprep.subr.mxu0 %v4475
        %4633 = vmatpush1.msra.mxu0 %v4474
        %4634 = vmatprep.subr.mxu0 %v4477
        %4635 = vmatpush1.msra.mxu0 %v4476
        %4636 = vmatprep.subr.mxu0 %v4479
        %4637 = vmatpush1.msra.mxu0 %v4478
        %4638 = vmatprep.subr.mxu0 %v4481
        %4639 = vmatpush1.msra.mxu0 %v4480
        %4640 = vmatprep.subr.mxu0 %v4483
        %4641 = vmatpush1.msra.mxu0 %v4482
        %4642 = vmatprep.subr.mxu0 %v4485
        %4643 = vmatpush1.msra.mxu0 %v4484
        %4644 = vmatprep.subr.mxu0 %v4487
        %4645 = vmatpush1.msra.mxu0 %v4486
        %4646 = vmatprep.subr.mxu0 %v4489
        %4647 = vmatpush1.msra.mxu0 %v4488
        %4648 = vmatprep.subr.mxu0 %v4491
        %4649 = vmatpush1.msra.mxu0 %v4490
        %4650 = vmatprep.subr.mxu0 %v4493
        %4651 = vmatpush1.msra.mxu0 %v4492
        %4652 = vmatprep.subr.mxu0 %v4495
        %4653 = vmatpush1.msra.mxu0 %v4494
        %4654 = vmatprep.subr.mxu0 %v4497
        %4655 = vmatpush1.msra.mxu0 %v4496
        %4656 = vmatprep.subr.mxu0 %v4499
        %4657 = vmatpush1.msra.mxu0 %v4498
        %4658 = vmatprep.subr.mxu0 %v4501
        %4659 = vmatpush1.msra.mxu0 %v4500
        %4660 = vmatprep.subr.mxu0 %v4503
        %4661 = vmatpush1.msra.mxu0 %v4502
        %4662 = vmatprep.subr.mxu0 %v4505
        %4663 = vmatpush1.msra.mxu0 %v4504
        %4664 = vmatprep.subr.mxu0 %v4507
        %4665 = vmatpush1.msra.mxu0 %v4506
        %4666 = vmatprep.subr.mxu0 %v4509
        %4667 = vmatpush1.msra.mxu0 %v4508
        %4668 = vmatprep.subr.mxu0 %v4511
        %4669 = vmatpush1.msra.mxu0 %v4510
        %4670 = vmatprep.subr.mxu0 %v4513
        %4671 = vmatpush1.msra.mxu0 %v4512
        %4672 = vmatprep.subr.mxu0 %v4515
        %4673 = vmatpush1.msra.mxu0 %v4514
        %4674 = vmatprep.subr.mxu0 %v4517
        %4675 = vmatpush1.msra.mxu0 %v4516
        %4676 = vmatprep.subr.mxu0 %v4519
        %4677 = vmatpush1.msra.mxu0 %v4518
        %4678 = vmatprep.subr.mxu0 %v4521
        %4679 = vmatpush1.msra.mxu0 %v4520
        %4680 = vmatprep.subr.mxu0 %v4523
        %4681 = vmatpush1.msra.mxu0 %v4522
        %4682 = vmatprep.subr.mxu0 %v4525
        %4683 = vmatpush1.msra.mxu0 %v4524
        %4684 = vmatprep.mubr.f32.mxu0 %v4395
        %4685 = vmatmul.mubr.f32.gmra.mrb[0].mxu0 %v4392
        %v4686 = vpop.f32.mrb[0].mxu0
        %v4687 = vadd.f32 %v4616, %v4686
        %v4688 = vpop.f32.mrb[0].mxu0
        %v4689 = vadd.f32 %v4618, %v4688
        %4690 = vdwg.mxu0
        %4691 = vmatprep.subr.mxu0 %v4527
        %4692 = vmatpush1.msra.mxu0 %v4526
        %4693 = vmatprep.subr.mxu0 %v4529
        %4694 = vmatpush1.msra.mxu0 %v4528
        %4695 = vmatprep.subr.mxu0 %v4531
        %4696 = vmatpush1.msra.mxu0 %v4530
        %4697 = vmatprep.subr.mxu0 %v4533
        %4698 = vmatpush1.msra.mxu0 %v4532
        %4699 = vmatprep.subr.mxu0 %v4535
        %4700 = vmatpush1.msra.mxu0 %v4534
        %4701 = vmatprep.subr.mxu0 %v4537
        %4702 = vmatpush1.msra.mxu0 %v4536
        %4703 = vmatprep.subr.mxu0 %v4547
        %4704 = vmatpush1.msra.mxu0 %v4544
        %4705 = vmatprep.subr.mxu0 0.0
        %4706 = vmatpush1.msra.mxu0 0.0
        %4707 = vmatprep.subr.mxu0 0.0
        %4708 = vmatpush1.msra.mxu0 0.0
        %4709 = vmatprep.subr.mxu0 0.0
        %4710 = vmatpush1.msra.mxu0 0.0
        %4711 = vmatprep.subr.mxu0 0.0
        %4712 = vmatpush1.msra.mxu0 0.0
        %4713 = vmatprep.subr.mxu0 0.0
        %4714 = vmatpush1.msra.mxu0 0.0
        %4715 = vmatprep.subr.mxu0 0.0
        %4716 = vmatpush1.msra.mxu0 0.0
        %4717 = vmatprep.subr.mxu0 0.0
        %4718 = vmatpush1.msra.mxu0 0.0
        %4719 = vmatprep.subr.mxu0 0.0
        %4720 = vmatpush1.msra.mxu0 0.0
        %4721 = vmatprep.subr.mxu0 0.0
        %4722 = vmatpush1.msra.mxu0 0.0
        %4723 = vmatprep.subr.mxu0 0.0
        %4724 = vmatpush1.msra.mxu0 0.0
        %4725 = vmatprep.subr.mxu0 0.0
        %4726 = vmatpush1.msra.mxu0 0.0
        %4727 = vmatprep.subr.mxu0 0.0
        %4728 = vmatpush1.msra.mxu0 0.0
        %4729 = vmatprep.subr.mxu0 0.0
        %4730 = vmatpush1.msra.mxu0 0.0
        %4731 = vmatprep.subr.mxu0 0.0
        %4732 = vmatpush1.msra.mxu0 0.0
        %4733 = vmatprep.subr.mxu0 0.0
        %4734 = vmatpush1.msra.mxu0 0.0
        %4735 = vmatprep.subr.mxu0 0.0
        %4736 = vmatpush1.msra.mxu0 0.0
        %4737 = vmatprep.subr.mxu0 0.0
        %4738 = vmatpush1.msra.mxu0 0.0
        %4739 = vmatprep.subr.mxu0 0.0
        %4740 = vmatpush1.msra.mxu0 0.0
        %4741 = vmatprep.subr.mxu0 0.0
        %4742 = vmatpush1.msra.mxu0 0.0
        %4743 = vmatprep.subr.mxu0 0.0
        %4744 = vmatpush1.msra.mxu0 0.0
        %4745 = vmatprep.subr.mxu0 0.0
        %4746 = vmatpush1.msra.mxu0 0.0
        %4747 = vmatprep.subr.mxu0 0.0
        %4748 = vmatpush1.msra.mxu0 0.0
        %4749 = vmatprep.subr.mxu0 0.0
        %4750 = vmatpush1.msra.mxu0 0.0
        %4751 = vmatprep.subr.mxu0 0.0
        %4752 = vmatpush1.msra.mxu0 0.0
        %4753 = vmatprep.subr.mxu0 0.0
        %4754 = vmatpush1.msra.mxu0 0.0
        %4755 = vmatprep.mubr.f32.mxu0 0.0
        %4756 = vmatmul.mubr.f32.gmra.mrb[0].mxu0 %v4541
        %v4757 = vpop.f32.mrb[0].mxu0
        %v4758 = vadd.f32 %v4687, %v4757
        %v4759 = vpop.f32.mrb[0].mxu0
        %v4760 = vadd.f32 %v4689, %v4759
        %4761 = vdwg.mxu0
        %v4762 = vmax.f32 %v4758, 0.0
        %v4763 = vmax.f32 %v4760, 0.0
        %4764 = vset.pattern.permute.xlu0 96
        %4765 = vperm.xlu0 %4764, %v1040
        %v4766 = vpop.permute.xlu0 %4765
        %v4768 = vmul.f32 %v4766, %v4762
        %v4769 = vmul.f32 %v4766, %v4763
        %4770 = vset.pattern.permute.xlu0 97
        %4771 = vperm.xlu0 %4770, %v1040
        %v4772 = vpop.permute.xlu0 %4771
        %v4774 = vmul.f32 %v4772, %v4762
        %v4775 = vmul.f32 %v4772, %v4763
        %4776 = vset.pattern.permute.xlu0 98
        %4777 = vperm.xlu0 %4776, %v1040
        %v4778 = vpop.permute.xlu0 %4777
        %v4780 = vmul.f32 %v4778, %v4762
        %v4781 = vmul.f32 %v4778, %v4763
        %4782 = vset.pattern.permute.xlu0 99
        %4783 = vperm.xlu0 %4782, %v1040
        %v4784 = vpop.permute.xlu0 %4783
        %v4786 = vmul.f32 %v4784, %v4762
        %v4787 = vmul.f32 %v4784, %v4763
        %4788 = vset.pattern.permute.xlu0 100
        %4789 = vperm.xlu0 %4788, %v1040
        %v4790 = vpop.permute.xlu0 %4789
        %v4792 = vmul.f32 %v4790, %v4762
        %v4793 = vmul.f32 %v4790, %v4763
        %4794 = vset.pattern.permute.xlu0 101
        %4795 = vperm.xlu0 %4794, %v1040
        %v4796 = vpop.permute.xlu0 %4795
        %v4798 = vmul.f32 %v4796, %v4762
        %v4799 = vmul.f32 %v4796, %v4763
        %4800 = vset.pattern.permute.xlu0 102
        %4801 = vperm.xlu0 %4800, %v1040
        %v4802 = vpop.permute.xlu0 %4801
        %v4804 = vmul.f32 %v4802, %v4762
        %v4805 = vmul.f32 %v4802, %v4763
        %4806 = vset.pattern.permute.xlu0 103
        %4807 = vperm.xlu0 %4806, %v1040
        %v4808 = vpop.permute.xlu0 %4807
        %v4810 = vmul.f32 %v4808, %v4762
        %v4811 = vmul.f32 %v4808, %v4763
        %4812 = vset.pattern.permute.xlu0 104
        %4813 = vperm.xlu0 %4812, %v1040
        %v4814 = vpop.permute.xlu0 %4813
        %v4816 = vmul.f32 %v4814, %v4762
        %v4817 = vmul.f32 %v4814, %v4763
        %4818 = vset.pattern.permute.xlu0 105
        %4819 = vperm.xlu0 %4818, %v1040
        %v4820 = vpop.permute.xlu0 %4819
        %v4822 = vmul.f32 %v4820, %v4762
        %v4823 = vmul.f32 %v4820, %v4763
        %4824 = vset.pattern.permute.xlu0 106
        %4825 = vperm.xlu0 %4824, %v1040
        %v4826 = vpop.permute.xlu0 %4825
        %v4828 = vmul.f32 %v4826, %v4762
        %v4829 = vmul.f32 %v4826, %v4763
        %4830 = vset.pattern.permute.xlu0 107
        %4831 = vperm.xlu0 %4830, %v1040
        %v4832 = vpop.permute.xlu0 %4831
        %v4834 = vmul.f32 %v4832, %v4762
        %v4835 = vmul.f32 %v4832, %v4763
        %4836 = vset.pattern.permute.xlu0 108
        %4837 = vperm.xlu0 %4836, %v1040
        %v4838 = vpop.permute.xlu0 %4837
        %v4840 = vmul.f32 %v4838, %v4762
        %v4841 = vmul.f32 %v4838, %v4763
        %4842 = vset.pattern.permute.xlu0 109
        %4843 = vperm.xlu0 %4842, %v1040
        %v4844 = vpop.permute.xlu0 %4843
        %v4846 = vmul.f32 %v4844, %v4762
        %v4847 = vmul.f32 %v4844, %v4763
        %4848 = vset.pattern.permute.xlu0 110
        %4849 = vperm.xlu0 %4848, %v1040
        %v4850 = vpop.permute.xlu0 %4849
        %v4852 = vmul.f32 %v4850, %v4762
        %v4853 = vmul.f32 %v4850, %v4763
        %4854 = vset.pattern.permute.xlu0 111
        %4855 = vperm.xlu0 %4854, %v1040
        %v4856 = vpop.permute.xlu0 %4855
        %v4858 = vmul.f32 %v4856, %v4762
        %v4859 = vmul.f32 %v4856, %v4763
        %v4860 = vsel %vm1657, %v1185, 1.0
        %v4861 = vld [vmem:[%s738] sm:$0xff]
        %v4862 = vld [vmem:[%s738 + $0x8] sm:$0xff]
        %v4863 = vld [vmem:[%s738 + $0x10] sm:$0xff]
        %v4864 = vld [vmem:[%s738 + $0x18] sm:$0xff]
        %v4865 = vld [vmem:[%s738 + $0x20] sm:$0xff]
        %v4866 = vld [vmem:[%s738 + $0x28] sm:$0xff]
        %v4867 = vld [vmem:[%s738 + $0x30] sm:$0xff]
        %v4868 = vld [vmem:[%s738 + $0x38] sm:$0xff]
        %v4869 = vld [vmem:[%s738 + $0x40] sm:$0xff]
        %v4870 = vld [vmem:[%s738 + $0x48] sm:$0xff]
        %v4871 = vld [vmem:[%s738 + $0x50] sm:$0xff]
        %v4872 = vld [vmem:[%s738 + $0x58] sm:$0xff]
        %v4873 = vld [vmem:[%s738 + $0x60] sm:$0xff]
        %v4874 = vld [vmem:[%s738 + $0x68] sm:$0xff]
        %v4875 = vld [vmem:[%s738 + $0x70] sm:$0xff]
        %v4876 = vld [vmem:[%s738 + $0x78] sm:$0xff]
        %v4877 = vld [vmem:[%s738 + $0x80] sm:$0xff]
        %v4878 = vld [vmem:[%s738 + $0x88] sm:$0xff]
        %v4879 = vld [vmem:[%s738 + $0x90] sm:$0xff]
        %v4880 = vld [vmem:[%s738 + $0x98] sm:$0xff]
        %v4881 = vld [vmem:[%s738 + $0xa0] sm:$0xff]
        %v4882 = vld [vmem:[%s738 + $0xa8] sm:$0xff]
        %v4883 = vld [vmem:[%s738 + $0xb0] sm:$0xff]
        %v4884 = vld [vmem:[%s738 + $0xb8] sm:$0xff]
        %v4885 = vld [vmem:[%s738 + $0xc0] sm:$0xff]
        %v4886 = vld [vmem:[%s738 + $0xc8] sm:$0xff]
        %v4887 = vld [vmem:[%s738 + $0xd0] sm:$0xff]
        %v4888 = vld [vmem:[%s738 + $0xd8] sm:$0xff]
        %v4889 = vld [vmem:[%s738 + $0xe0] sm:$0xff]
        %v4890 = vld [vmem:[%s738 + $0xe8] sm:$0xff]
        %v4891 = vld [vmem:[%s738 + $0xf0] sm:$0xff]
        %v4892 = vld [vmem:[%s738 + $0xf8] sm:$0xff]
        %v4893 = vld [vmem:[%s738 + $0x100] sm:$0xff]
        %v4894 = vld [vmem:[%s738 + $0x108] sm:$0xff]
        %v4895 = vld [vmem:[%s738 + $0x110] sm:$0xff]
        %v4896 = vld [vmem:[%s738 + $0x118] sm:$0xff]
        %v4897 = vld [vmem:[%s738 + $0x120] sm:$0xff]
        %v4898 = vld [vmem:[%s738 + $0x128] sm:$0xff]
        %v4899 = vld [vmem:[%s738 + $0x130] sm:$0xff]
        %v4900 = vld [vmem:[%s738 + $0x138] sm:$0xff]
        %v4901 = vld [vmem:[%s738 + $0x140] sm:$0xff]
        %v4902 = vld [vmem:[%s738 + $0x148] sm:$0xff]
        %v4903 = vld [vmem:[%s738 + $0x150] sm:$0xff]
        %v4904 = vld [vmem:[%s738 + $0x158] sm:$0xff]
        %v4905 = vld [vmem:[%s738 + $0x160] sm:$0xff]
        %v4906 = vld [vmem:[%s738 + $0x168] sm:$0xff]
        %v4907 = vld [vmem:[%s738 + $0x170] sm:$0xff]
        %v4908 = vld [vmem:[%s738 + $0x178] sm:$0xff]
        %v4909 = vld [vmem:[%s738 + $0x180] sm:$0xff]
        %v4910 = vld [vmem:[%s738 + $0x188] sm:$0xff]
        %v4911 = vld [vmem:[%s738 + $0x190] sm:$0xff]
        %v4912 = vld [vmem:[%s738 + $0x198] sm:$0xff]
        %v4913 = vld [vmem:[%s738 + $0x1a0] sm:$0xff]
        %v4914 = vld [vmem:[%s738 + $0x1a8] sm:$0xff]
        %v4915 = vld [vmem:[%s738 + $0x1b0] sm:$0xff]
        %v4916 = vld [vmem:[%s738 + $0x1b8] sm:$0xff]
        %v4917 = vld [vmem:[%s738 + $0x1c0] sm:$0xff]
        %v4918 = vld [vmem:[%s738 + $0x1c8] sm:$0xff]
        %v4919 = vld [vmem:[%s738 + $0x1d0] sm:$0xff]
        %v4920 = vld [vmem:[%s738 + $0x1d8] sm:$0xff]
        %v4921 = vld [vmem:[%s738 + $0x1e0] sm:$0xff]
        %v4922 = vld [vmem:[%s738 + $0x1e8] sm:$0xff]
        %v4923 = vld [vmem:[%s738 + $0x1f0] sm:$0xff]
        %v4924 = vld [vmem:[%s738 + $0x1f8] sm:$0xff]
        %v4925 = vld [vmem:[%s738 + $0x200] sm:$0xff]
        %v4926 = vld [vmem:[%s738 + $0x208] sm:$0xff]
        %v4927 = vld [vmem:[%s738 + $0x210] sm:$0xff]
        %v4928 = vld [vmem:[%s738 + $0x218] sm:$0xff]
        %v4929 = vld [vmem:[%s738 + $0x220] sm:$0xff]
        %v4930 = vld [vmem:[%s738 + $0x228] sm:$0xff]
        %v4931 = vld [vmem:[%s738 + $0x230] sm:$0xff]
        %v4932 = vld [vmem:[%s738 + $0x238] sm:$0xff]
        %v4933 = vld [vmem:[%s738 + $0x240] sm:$0xff]
        %v4934 = vld [vmem:[%s738 + $0x248] sm:$0xff]
        %v4935 = vld [vmem:[%s738 + $0x250] sm:$0xff]
        %v4936 = vld [vmem:[%s738 + $0x258] sm:$0xff]
        %v4937 = vld [vmem:[%s738 + $0x260] sm:$0xff]
        %v4938 = vld [vmem:[%s738 + $0x268] sm:$0xff]
        %v4939 = vld [vmem:[%s738 + $0x270] sm:$0xff]
        %v4940 = vld [vmem:[%s738 + $0x278] sm:$0xff]
        %v4941 = vld [vmem:[%s738 + $0x280] sm:$0xff]
        %v4942 = vld [vmem:[%s738 + $0x288] sm:$0xff]
        %v4943 = vld [vmem:[%s738 + $0x290] sm:$0xff]
        %v4944 = vld [vmem:[%s738 + $0x298] sm:$0xff]
        %v4945 = vld [vmem:[%s738 + $0x2a0] sm:$0xff]
        %v4946 = vld [vmem:[%s738 + $0x2a8] sm:$0xff]
        %v4947 = vld [vmem:[%s738 + $0x2b0] sm:$0xff]
        %v4948 = vld [vmem:[%s738 + $0x2b8] sm:$0xff]
        %v4949 = vld [vmem:[%s738 + $0x2c0] sm:$0xff]
        %v4950 = vld [vmem:[%s738 + $0x2c8] sm:$0xff]
        %v4951 = vld [vmem:[%s738 + $0x2d0] sm:$0xff]
        %v4952 = vld [vmem:[%s738 + $0x2d8] sm:$0xff]
        %v4953 = vld [vmem:[%s738 + $0x2e0] sm:$0xff]
        %v4954 = vld [vmem:[%s738 + $0x2e8] sm:$0xff]
        %v4955 = vld [vmem:[%s738 + $0x2f0] sm:$0xff]
        %v4956 = vld [vmem:[%s738 + $0x2f8] sm:$0xff]
        %v4957 = vld [vmem:[%s738 + $0x300] sm:$0xff]
        %v4958 = vld [vmem:[%s738 + $0x308] sm:$0xff]
        %v4959 = vld [vmem:[%s738 + $0x310] sm:$0xff]
        %v4960 = vld [vmem:[%s738 + $0x318] sm:$0xff]
        %v4961 = vld [vmem:[%s738 + $0x320] sm:$0xff]
        %v4962 = vld [vmem:[%s738 + $0x328] sm:$0xff]
        %v4963 = vld [vmem:[%s738 + $0x330] sm:$0xff]
        %v4964 = vld [vmem:[%s738 + $0x338] sm:$0xff]
        %v4965 = vld [vmem:[%s738 + $0x340] sm:$0xff]
        %v4966 = vld [vmem:[%s738 + $0x348] sm:$0xff]
        %v4967 = vld [vmem:[%s738 + $0x350] sm:$0xff]
        %v4968 = vld [vmem:[%s738 + $0x358] sm:$0xff]
        %v4969 = vld [vmem:[%s738 + $0x360] sm:$0xff]
        %v4970 = vld [vmem:[%s738 + $0x368] sm:$0xff]
        %v4971 = vld [vmem:[%s738 + $0x370] sm:$0xff]
        %v4972 = vld [vmem:[%s738 + $0x378] sm:$0xff]
        %v4973 = vld [vmem:[%s738 + $0x380] sm:$0xff]
        %v4974 = vld [vmem:[%s738 + $0x388] sm:$0xff]
        %v4975 = vld [vmem:[%s738 + $0x390] sm:$0xff]
        %v4976 = vld [vmem:[%s738 + $0x398] sm:$0xff]
        %v4977 = vld [vmem:[%s738 + $0x3a0] sm:$0xff]
        %v4978 = vld [vmem:[%s738 + $0x3a8] sm:$0xff]
        %v4979 = vld [vmem:[%s738 + $0x3b0] sm:$0xff]
        %v4980 = vld [vmem:[%s738 + $0x3b8] sm:$0xff]
        %v4981 = vld [vmem:[%s738 + $0x3c0] sm:$0xff]
        %v4982 = vld [vmem:[%s738 + $0x3c8] sm:$0xff]
        %v4983 = vld [vmem:[%s738 + $0x3d0] sm:$0xff]
        %v4984 = vld [vmem:[%s738 + $0x3d8] sm:$0xff]
        %v4985 = vld [vmem:[%s738 + $0x3e0] sm:$0xff]
        %v4986 = vld [vmem:[%s738 + $0x3e8] sm:$0xff]
        %v4987 = vld [vmem:[%s738 + $0x3f0] sm:$0xff]
        %v4988 = vld [vmem:[%s738 + $0x3f8] sm:$0xff]
        %v4989 = vld [vmem:[%s738 + $0x400] sm:$0xff]
        %v4990 = vld [vmem:[%s738 + $0x408] sm:$0xff]
        %v4991 = vld [vmem:[%s738 + $0x410] sm:$0xff]
        %v4992 = vld [vmem:[%s738 + $0x418] sm:$0xff]
        %v4993 = vld [vmem:[%s738 + $0x420] sm:$0xff]
        %v4994 = vld [vmem:[%s738 + $0x428] sm:$0xff]
        %v4995 = vld [vmem:[%s738 + $0x430] sm:$0xff]
        %v4996 = vld [vmem:[%s738 + $0x438] sm:$0xff]
        %v4997 = vld [vmem:[%s738 + $0x440] sm:$0xff]
        %v4998 = vld [vmem:[%s738 + $0x448] sm:$0xff]
        %v4999 = vld [vmem:[%s738 + $0x450] sm:$0xff]
        %v5000 = vld [vmem:[%s738 + $0x458] sm:$0xff]
        %v5001 = vld [vmem:[%s738 + $0x460] sm:$0xff]
        %v5002 = vld [vmem:[%s738 + $0x468] sm:$0xff]
        %v5003 = vld [vmem:[%s738 + $0x470] sm:$0xff]
        %v5004 = vld [vmem:[%s738 + $0x478] sm:$0xff]
        %v5005 = vld [vmem:[%s738 + $0x480] sm:$0xff]
        %v5006 = vld [vmem:[%s738 + $0x488] sm:$0xff]
        %v5007 = vld [vmem:[%s738 + $0x490] sm:$0xff]
        %v5008 = vld [vmem:[%s738 + $0x498] sm:$0xff]
        %v5009 = vld [vmem:[%s738 + $0x4a0] sm:$0xff]
        %v5010 = vld [vmem:[%s738 + $0x4a8] sm:$0xff]
        %v5011 = vld [vmem:[%s738 + $0x4b0] sm:$0xff]
        %v5012 = vld [vmem:[%s738 + $0x4b8] sm:$0xff]
        %v5013 = vld [vmem:[%s738 + $0x4c0] sm:$0xff]
        %v5014 = vld [vmem:[%s738 + $0x4c8] sm:$0xff]
        %v5015 = vld [vmem:[%s738 + $0x4d0] sm:$0xff]
        %v5016 = vld [vmem:[%s738 + $0x4d8] sm:$0xff]
        %v5017 = vld [vmem:[%s738 + $0x4e0] sm:$0xff]
        %v5018 = vld [vmem:[%s738 + $0x4e8] sm:$0xff]
        %v5019 = vld [vmem:[%s738 + $0x4f0] sm:$0xff]
        %v5020 = vld [vmem:[%s738 + $0x4f8] sm:$0xff]
        %v5021 = vld [vmem:[%s738 + $0x500] sm:$0xff]
        %v5022 = vld [vmem:[%s738 + $0x508] sm:$0xff]
        %v5023 = vld [vmem:[%s738 + $0x510] sm:$0xff]
        %v5024 = vld [vmem:[%s738 + $0x518] sm:$0xff]
        %v5025 = vld [vmem:[%s738 + $0x520] sm:$0xff]
        %v5026 = vld [vmem:[%s738 + $0x528] sm:$0xff]
        %v5027 = vld [vmem:[%s738 + $0x530] sm:$0xff]
        %v5028 = vld [vmem:[%s738 + $0x538] sm:$0xff]
        %v5029 = vld [vmem:[%s738 + $0x540] sm:$0xff]
        %v5030 = vld [vmem:[%s738 + $0x548] sm:$0xff]
        %v5031 = vld [vmem:[%s738 + $0x550] sm:$0xff]
        %v5032 = vld [vmem:[%s738 + $0x558] sm:$0xff]
        %v5033 = vld [vmem:[%s738 + $0x560] sm:$0xff]
        %v5034 = vld [vmem:[%s738 + $0x568] sm:$0xff]
        %v5035 = vld [vmem:[%s738 + $0x570] sm:$0xff]
        %v5036 = vld [vmem:[%s738 + $0x578] sm:$0xff]
        %v5037 = vld [vmem:[%s738 + $0x580] sm:$0xff]
        %v5038 = vld [vmem:[%s738 + $0x588] sm:$0xff]
        %v5039 = vld [vmem:[%s738 + $0x590] sm:$0xff]
        %v5040 = vld [vmem:[%s738 + $0x598] sm:$0xff]
        %v5041 = vld [vmem:[%s738 + $0x5a0] sm:$0xff]
        %v5042 = vld [vmem:[%s738 + $0x5a8] sm:$0xff]
        %v5043 = vld [vmem:[%s738 + $0x5b0] sm:$0xff]
        %v5044 = vld [vmem:[%s738 + $0x5b8] sm:$0xff]
        %v5045 = vld [vmem:[%s738 + $0x5c0] sm:$0xff]
        %v5046 = vld [vmem:[%s738 + $0x5c8] sm:$0xff]
        %v5047 = vld [vmem:[%s738 + $0x5d0] sm:$0xff]
        %v5048 = vld [vmem:[%s738 + $0x5d8] sm:$0xff]
        %v5049 = vld [vmem:[%s738 + $0x5e0] sm:$0xff]
        %v5050 = vld [vmem:[%s738 + $0x5e8] sm:$0xff]
        %v5051 = vld [vmem:[%s738 + $0x5f0] sm:$0xff]
        %v5052 = vld [vmem:[%s738 + $0x5f8] sm:$0xff]
        %v5053 = vld [vmem:[%s738 + $0x600] sm:$0xff]
        %v5054 = vld [vmem:[%s738 + $0x608] sm:$0xff]
        %v5055 = vld [vmem:[%s738 + $0x610] sm:$0xff]
        %v5056 = vld [vmem:[%s738 + $0x618] sm:$0xff]
        %v5057 = vld [vmem:[%s738 + $0x620] sm:$0xff]
        %v5058 = vld [vmem:[%s738 + $0x628] sm:$0xff]
        %v5059 = vld [vmem:[%s738 + $0x630] sm:$0xff]
        %v5060 = vld [vmem:[%s738 + $0x638] sm:$0xff]
        %v5061 = vld [vmem:[%s738 + $0x640] sm:$0xff]
        %v5062 = vld [vmem:[%s738 + $0x648] sm:$0xff]
        %v5063 = vld [vmem:[%s738 + $0x650] sm:$0xff]
        %v5064 = vld [vmem:[%s738 + $0x658] sm:$0xff]
        %v5065 = vld [vmem:[%s738 + $0x660] sm:$0xff]
        %v5066 = vld [vmem:[%s738 + $0x668] sm:$0xff]
        %v5067 = vld [vmem:[%s738 + $0x670] sm:$0xff]
        %v5068 = vld [vmem:[%s738 + $0x678] sm:$0xff]
        %v5069 = vld [vmem:[%s738 + $0x680] sm:$0xff]
        %v5070 = vld [vmem:[%s738 + $0x688] sm:$0xff]
        %v5071 = vld [vmem:[%s738 + $0x690] sm:$0xff]
        %v5072 = vld [vmem:[%s738 + $0x698] sm:$0xff]
        %v5073 = vld [vmem:[%s738 + $0x6a0] sm:$0xff]
        %v5074 = vld [vmem:[%s738 + $0x6a8] sm:$0xff]
        %v5075 = vld [vmem:[%s738 + $0x6b0] sm:$0xff]
        %v5076 = vld [vmem:[%s738 + $0x6b8] sm:$0xff]
        %v5077 = vld [vmem:[%s738 + $0x6c0] sm:$0xff]
        %v5078 = vld [vmem:[%s738 + $0x6c8] sm:$0xff]
        %v5079 = vld [vmem:[%s738 + $0x6d0] sm:$0xff]
        %v5080 = vld [vmem:[%s738 + $0x6d8] sm:$0xff]
        %v5081 = vld [vmem:[%s738 + $0x6e0] sm:$0xff]
        %v5082 = vld [vmem:[%s738 + $0x6e8] sm:$0xff]
        %v5083 = vld [vmem:[%s738 + $0x6f0] sm:$0xff]
        %v5084 = vld [vmem:[%s738 + $0x6f8] sm:$0xff]
        %v5085 = vld [vmem:[%s738 + $0x700] sm:$0xff]
        %v5086 = vld [vmem:[%s738 + $0x708] sm:$0xff]
        %v5087 = vld [vmem:[%s738 + $0x710] sm:$0xff]
        %v5088 = vld [vmem:[%s738 + $0x718] sm:$0xff]
        %v5089 = vld [vmem:[%s738 + $0x720] sm:$0xff]
        %v5090 = vld [vmem:[%s738 + $0x728] sm:$0xff]
        %v5091 = vld [vmem:[%s738 + $0x730] sm:$0xff]
        %v5092 = vld [vmem:[%s738 + $0x738] sm:$0xff]
        %v5093 = vld [vmem:[%s738 + $0x740] sm:$0xff]
        %v5094 = vld [vmem:[%s738 + $0x748] sm:$0xff]
        %v5095 = vld [vmem:[%s738 + $0x750] sm:$0xff]
        %v5096 = vld [vmem:[%s738 + $0x758] sm:$0xff]
        %v5097 = vld [vmem:[%s738 + $0x760] sm:$0xff]
        %v5098 = vld [vmem:[%s738 + $0x768] sm:$0xff]
        %v5099 = vld [vmem:[%s738 + $0x770] sm:$0xff]
        %v5100 = vld [vmem:[%s738 + $0x778] sm:$0xff]
        %v5101 = vld [vmem:[%s738 + $0x780] sm:$0xff]
        %v5102 = vld [vmem:[%s738 + $0x788] sm:$0xff]
        %v5103 = vld [vmem:[%s738 + $0x790] sm:$0xff]
        %v5104 = vld [vmem:[%s738 + $0x798] sm:$0xff]
        %v5105 = vld [vmem:[%s738 + $0x7a0] sm:$0xff]
        %v5106 = vld [vmem:[%s738 + $0x7a8] sm:$0xff]
        %v5107 = vld [vmem:[%s738 + $0x7b0] sm:$0xff]
        %v5108 = vld [vmem:[%s738 + $0x7b8] sm:$0xff]
        %v5109 = vld [vmem:[%s738 + $0x7c0] sm:$0xff]
        %v5110 = vld [vmem:[%s738 + $0x7c8] sm:$0xff]
        %v5111 = vld [vmem:[%s738 + $0x7d0] sm:$0xff]
        %v5112 = vld [vmem:[%s738 + $0x7d8] sm:$0xff]
        %v5113 = vld [vmem:[%s738 + $0x7e0] sm:$0xff]
        %v5114 = vld [vmem:[%s738 + $0x7e8] sm:$0xff]
        %v5115 = vld [vmem:[%s738 + $0x7f0] sm:$0xff]
        %v5116 = vld [vmem:[%s738 + $0x7f8] sm:$0xff]
        %v5117 = vld [vmem:[%s738 + $0x800] sm:$0xff]
        %v5118 = vld [vmem:[%s738 + $0x808] sm:$0xff]
        %v5119 = vld [vmem:[%s738 + $0x810] sm:$0xff]
        %v5120 = vld [vmem:[%s738 + $0x818] sm:$0xff]
        %v5121 = vld [vmem:[%s738 + $0x820] sm:$0xff]
        %v5122 = vld [vmem:[%s738 + $0x828] sm:$0xff]
        %v5123 = vld [vmem:[%s738 + $0x830] sm:$0xff]
        %v5124 = vld [vmem:[%s738 + $0x838] sm:$0xff]
        %v5125 = vld [vmem:[%s738 + $0x840] sm:$0xff]
        %v5126 = vld [vmem:[%s738 + $0x848] sm:$0xff]
        %v5127 = vld [vmem:[%s738 + $0x850] sm:$0xff]
        %v5128 = vld [vmem:[%s738 + $0x858] sm:$0xff]
        %v5129 = vld [vmem:[%s738 + $0x860] sm:$0xff]
        %v5130 = vld [vmem:[%s738 + $0x868] sm:$0xff]
        %v5131 = vld [vmem:[%s738 + $0x870] sm:$0xff]
        %v5132 = vld [vmem:[%s738 + $0x878] sm:$0xff]
        %v5133 = vld [vmem:[%s738 + $0x880] sm:$0xff]
        %v5134 = vld [vmem:[%s738 + $0x888] sm:$0xff]
        %v5135 = vld [vmem:[%s738 + $0x890] sm:$0xff]
        %v5136 = vld [vmem:[%s738 + $0x898] sm:$0xff]
        %v5137 = vld [vmem:[%s738 + $0x8a0] sm:$0xff]
        %v5138 = vld [vmem:[%s738 + $0x8a8] sm:$0xff]
        %v5139 = vld [vmem:[%s738 + $0x8b0] sm:$0xff]
        %v5140 = vld [vmem:[%s738 + $0x8b8] sm:$0xff]
        %v5141 = vld [vmem:[%s738 + $0x8c0] sm:$0xff]
        %v5142 = vld [vmem:[%s738 + $0x8c8] sm:$0xff]
        %v5143 = vld [vmem:[%s738 + $0x8d0] sm:$0xff]
        %v5144 = vld [vmem:[%s738 + $0x8d8] sm:$0xff]
        %v5145 = vld [vmem:[%s738 + $0x8e0] sm:$0xff]
        %v5146 = vld [vmem:[%s738 + $0x8e8] sm:$0xff]
        %v5147 = vld [vmem:[%s738 + $0x8f0] sm:$0xff]
        %v5148 = vld [vmem:[%s738 + $0x8f8] sm:$0xff]
        %v5149 = vld [vmem:[%s738 + $0x900] sm:$0xff]
        %v5150 = vld [vmem:[%s738 + $0x908] sm:$0xff]
        %v5151 = vld [vmem:[%s738 + $0x910] sm:$0xff]
        %v5152 = vld [vmem:[%s738 + $0x918] sm:$0xff]
        %v5153 = vld [vmem:[%s738 + $0x920] sm:$0xff]
        %v5154 = vld [vmem:[%s738 + $0x928] sm:$0xff]
        %v5155 = vld [vmem:[%s738 + $0x930] sm:$0xff]
        %v5156 = vld [vmem:[%s738 + $0x938] sm:$0xff]
        %v5157 = vld [vmem:[%s738 + $0x940] sm:$0xff]
        %v5158 = vld [vmem:[%s738 + $0x948] sm:$0xff]
        %v5159 = vld [vmem:[%s738 + $0x950] sm:$0xff]
        %v5160 = vld [vmem:[%s738 + $0x958] sm:$0xff]
        %v5161 = vld [vmem:[%s738 + $0x960] sm:$0xff]
        %v5162 = vld [vmem:[%s738 + $0x968] sm:$0xff]
        %v5163 = vld [vmem:[%s738 + $0x970] sm:$0xff]
        %v5164 = vld [vmem:[%s738 + $0x978] sm:$0xff]
        %v5165 = vld [vmem:[%s738 + $0x980] sm:$0xff]
        %v5166 = vld [vmem:[%s738 + $0x988] sm:$0xff]
        %v5167 = vld [vmem:[%s738 + $0x990] sm:$0xff]
        %v5168 = vld [vmem:[%s738 + $0x998] sm:$0xff]
        %v5169 = vld [vmem:[%s738 + $0x9a0] sm:$0xff]
        %v5170 = vld [vmem:[%s738 + $0x9a8] sm:$0xff]
        %v5171 = vld [vmem:[%s738 + $0x9b0] sm:$0xff]
        %v5172 = vld [vmem:[%s738 + $0x9b8] sm:$0xff]
        %v5173 = vld [vmem:[%s738 + $0x9c0] sm:$0xff]
        %v5174 = vld [vmem:[%s738 + $0x9c8] sm:$0xff]
        %v5175 = vld [vmem:[%s738 + $0x9d0] sm:$0xff]
        %v5176 = vld [vmem:[%s738 + $0x9d8] sm:$0xff]
        %v5177 = vld [vmem:[%s738 + $0x9e0] sm:$0xff]
        %v5178 = vld [vmem:[%s738 + $0x9e8] sm:$0xff]
        %v5179 = vld [vmem:[%s738 + $0x9f0] sm:$0xff]
        %v5180 = vld [vmem:[%s738 + $0x9f8] sm:$0xff]
        %v5181 = vld [vmem:[%s738 + $0xa00] sm:$0xff]
        %v5182 = vld [vmem:[%s738 + $0xa08] sm:$0xff]
        %v5183 = vld [vmem:[%s738 + $0xa10] sm:$0xff]
        %v5184 = vld [vmem:[%s738 + $0xa18] sm:$0xff]
        %v5185 = vld [vmem:[%s738 + $0xa20] sm:$0xff]
        %v5186 = vld [vmem:[%s738 + $0xa28] sm:$0xff]
        %v5187 = vld [vmem:[%s738 + $0xa30] sm:$0xff]
        %v5188 = vld [vmem:[%s738 + $0xa38] sm:$0xff]
        %v5189 = vld [vmem:[%s738 + $0xa40] sm:$0xff]
        %v5190 = vld [vmem:[%s738 + $0xa48] sm:$0xff]
        %v5191 = vld [vmem:[%s738 + $0xa50] sm:$0xff]
        %v5192 = vld [vmem:[%s738 + $0xa58] sm:$0xff]
        %v5193 = vld [vmem:[%s738 + $0xa60] sm:$0xff]
        %v5194 = vld [vmem:[%s738 + $0xa68] sm:$0xff]
        %v5195 = vld [vmem:[%s738 + $0xa70] sm:$0xff]
        %v5196 = vld [vmem:[%s738 + $0xa78] sm:$0xff]
        %v5197 = vld [vmem:[%s738 + $0xa80] sm:$0xff]
        %v5198 = vld [vmem:[%s738 + $0xa88] sm:$0xff]
        %v5199 = vld [vmem:[%s738 + $0xa90] sm:$0xff]
        %v5200 = vld [vmem:[%s738 + $0xa98] sm:$0xff]
        %v5201 = vld [vmem:[%s738 + $0xaa0] sm:$0xff]
        %v5202 = vld [vmem:[%s738 + $0xaa8] sm:$0xff]
        %v5203 = vld [vmem:[%s738 + $0xab0] sm:$0xff]
        %v5204 = vld [vmem:[%s738 + $0xab8] sm:$0xff]
        %v5205 = vld [vmem:[%s738 + $0xac0] sm:$0xff]
        %v5206 = vld [vmem:[%s738 + $0xac8] sm:$0xff]
        %v5207 = vld [vmem:[%s738 + $0xad0] sm:$0xff]
        %v5208 = vld [vmem:[%s738 + $0xad8] sm:$0xff]
        %v5209 = vld [vmem:[%s738 + $0xae0] sm:$0xff]
        %v5210 = vld [vmem:[%s738 + $0xae8] sm:$0xff]
        %v5211 = vld [vmem:[%s738 + $0xaf0] sm:$0xff]
        %v5212 = vld [vmem:[%s738 + $0xaf8] sm:$0xff]
        %v5213 = vld [vmem:[%s738 + $0xb00] sm:$0xff]
        %v5214 = vld [vmem:[%s738 + $0xb08] sm:$0xff]
        %v5215 = vld [vmem:[%s738 + $0xb10] sm:$0xff]
        %v5216 = vld [vmem:[%s738 + $0xb18] sm:$0xff]
        %v5217 = vld [vmem:[%s738 + $0xb20] sm:$0xff]
        %v5218 = vld [vmem:[%s738 + $0xb28] sm:$0xff]
        %v5219 = vld [vmem:[%s738 + $0xb30] sm:$0xff]
        %v5220 = vld [vmem:[%s738 + $0xb38] sm:$0xff]
        %v5221 = vld [vmem:[%s738 + $0xb40] sm:$0xff]
        %v5222 = vld [vmem:[%s738 + $0xb48] sm:$0xff]
        %v5223 = vld [vmem:[%s738 + $0xb50] sm:$0xff]
        %v5224 = vld [vmem:[%s738 + $0xb58] sm:$0xff]
        %v5225 = vld [vmem:[%s738 + $0xb60] sm:$0xff]
        %v5226 = vld [vmem:[%s738 + $0xb68] sm:$0xff]
        %v5227 = vld [vmem:[%s738 + $0xb70] sm:$0xff]
        %v5228 = vld [vmem:[%s738 + $0xb78] sm:$0xff]
        %v5229 = vld [vmem:[%s738 + $0xb80] sm:$0xff]
        %v5230 = vld [vmem:[%s738 + $0xb88] sm:$0xff]
        %v5231 = vld [vmem:[%s738 + $0xb90] sm:$0xff]
        %v5232 = vld [vmem:[%s738 + $0xb98] sm:$0xff]
        %v5233 = vld [vmem:[%s738 + $0xba0] sm:$0xff]
        %v5234 = vld [vmem:[%s738 + $0xba8] sm:$0xff]
        %v5235 = vld [vmem:[%s738 + $0xbb0] sm:$0xff]
        %v5236 = vld [vmem:[%s738 + $0xbb8] sm:$0xff]
        %v5237 = vld [vmem:[%s738 + $0xbc0] sm:$0xff]
        %v5238 = vld [vmem:[%s738 + $0xbc8] sm:$0xff]
        %v5239 = vld [vmem:[%s738 + $0xbd0] sm:$0xff]
        %v5240 = vld [vmem:[%s738 + $0xbd8] sm:$0xff]
        %v5241 = vld [vmem:[%s738 + $0xbe0] sm:$0xff]
        %v5242 = vld [vmem:[%s738 + $0xbe8] sm:$0xff]
        %v5243 = vld [vmem:[%s738 + $0xbf0] sm:$0xff]
        %v5244 = vld [vmem:[%s738 + $0xbf8] sm:$0xff]
        %v5245 = vld [vmem:[%s738 + $0xc00] sm:$0xff]
        %v5246 = vld [vmem:[%s738 + $0xc08] sm:$0xff]
        %v5247 = vld [vmem:[%s738 + $0xc10] sm:$0xff]
        %v5248 = vld [vmem:[%s738 + $0xc18] sm:$0xff]
        %v5249 = vld [vmem:[%s738 + $0xc20] sm:$0xff]
        %v5250 = vld [vmem:[%s738 + $0xc28] sm:$0xff]
        %v5251 = vld [vmem:[%s738 + $0xc30] sm:$0xff]
        %v5252 = vld [vmem:[%s738 + $0xc38] sm:$0xff]
        %v5253 = vld [vmem:[%s738 + $0xc40] sm:$0xff]
        %v5254 = vld [vmem:[%s738 + $0xc48] sm:$0xff]
        %v5255 = vld [vmem:[%s738 + $0xc50] sm:$0xff]
        %v5256 = vld [vmem:[%s738 + $0xc58] sm:$0xff]
        %v5257 = vld [vmem:[%s738 + $0xc60] sm:$0xff]
        %v5258 = vld [vmem:[%s738 + $0xc68] sm:$0xff]
        %v5259 = vld [vmem:[%s738 + $0xc70] sm:$0xff]
        %v5260 = vld [vmem:[%s738 + $0xc78] sm:$0xff]
        %v5261 = vld [vmem:[%s738 + $0xc80] sm:$0xff]
        %v5262 = vld [vmem:[%s738 + $0xc88] sm:$0xff]
        %v5263 = vld [vmem:[%s738 + $0xc90] sm:$0xff]
        %v5264 = vld [vmem:[%s738 + $0xc98] sm:$0xff]
        %v5265 = vld [vmem:[%s738 + $0xca0] sm:$0xff]
        %v5266 = vld [vmem:[%s738 + $0xca8] sm:$0xff]
        %v5267 = vld [vmem:[%s738 + $0xcb0] sm:$0xff]
        %v5268 = vld [vmem:[%s738 + $0xcb8] sm:$0xff]
        %v5269 = vld [vmem:[%s738 + $0xcc0] sm:$0xff]
        %v5270 = vld [vmem:[%s738 + $0xcc8] sm:$0xff]
        %v5271 = vld [vmem:[%s738 + $0xcd0] sm:$0xff]
        %v5272 = vld [vmem:[%s738 + $0xcd8] sm:$0xff]
        %v5273 = vld [vmem:[%s738 + $0xce0] sm:$0xff]
        %v5274 = vld [vmem:[%s738 + $0xce8] sm:$0xff]
        %v5275 = vld [vmem:[%s738 + $0xcf0] sm:$0xff]
        %v5276 = vld [vmem:[%s738 + $0xcf8] sm:$0xff]
        %v5277 = vld [vmem:[%s738 + $0xd00] sm:$0xff]
        %v5278 = vld [vmem:[%s738 + $0xd08] sm:$0xff]
        %v5279 = vld [vmem:[%s738 + $0xd10] sm:$0xff]
        %v5280 = vld [vmem:[%s738 + $0xd18] sm:$0xff]
        %v5281 = vld [vmem:[%s738 + $0xd20] sm:$0xff]
        %v5282 = vld [vmem:[%s738 + $0xd28] sm:$0xff]
        %v5283 = vld [vmem:[%s738 + $0xd30] sm:$0xff]
        %v5284 = vld [vmem:[%s738 + $0xd38] sm:$0xff]
        %v5285 = vld [vmem:[%s738 + $0xd40] sm:$0xff]
        %v5286 = vld [vmem:[%s738 + $0xd48] sm:$0xff]
        %v5287 = vld [vmem:[%s738 + $0xd50] sm:$0xff]
        %v5288 = vld [vmem:[%s738 + $0xd58] sm:$0xff]
        %v5289 = vld [vmem:[%s738 + $0xd60] sm:$0xff]
        %v5290 = vld [vmem:[%s738 + $0xd68] sm:$0xff]
        %v5291 = vld [vmem:[%s738 + $0xd70] sm:$0xff]
        %v5292 = vld [vmem:[%s738 + $0xd78] sm:$0xff]
        %v5293 = vld [vmem:[%s738 + $0xd80] sm:$0xff]
        %v5294 = vld [vmem:[%s738 + $0xd88] sm:$0xff]
        %v5295 = vld [vmem:[%s738 + $0xd90] sm:$0xff]
        %v5296 = vld [vmem:[%s738 + $0xd98] sm:$0xff]
        %v5297 = vld [vmem:[%s738 + $0xda0] sm:$0xff]
        %v5298 = vld [vmem:[%s738 + $0xda8] sm:$0xff]
        %v5299 = vld [vmem:[%s738 + $0xdb0] sm:$0xff]
        %v5300 = vld [vmem:[%s738 + $0xdb8] sm:$0xff]
        %v5301 = vld [vmem:[%s738 + $0xdc0] sm:$0xff]
        %v5302 = vld [vmem:[%s738 + $0xdc8] sm:$0xff]
        %v5303 = vld [vmem:[%s738 + $0xdd0] sm:$0xff]
        %v5304 = vld [vmem:[%s738 + $0xdd8] sm:$0xff]
        %v5305 = vld [vmem:[%s738 + $0xde0] sm:$0xff]
        %v5306 = vld [vmem:[%s738 + $0xde8] sm:$0xff]
        %v5307 = vld [vmem:[%s738 + $0xdf0] sm:$0xff]
        %v5308 = vld [vmem:[%s738 + $0xdf8] sm:$0xff]
        %v5309 = vld [vmem:[%s738 + $0xe00] sm:$0xff]
        %v5310 = vld [vmem:[%s738 + $0xe08] sm:$0xff]
        %v5311 = vld [vmem:[%s738 + $0xe10] sm:$0xff]
        %v5312 = vld [vmem:[%s738 + $0xe18] sm:$0xff]
        %v5313 = vld [vmem:[%s738 + $0xe20] sm:$0xff]
        %v5314 = vld [vmem:[%s738 + $0xe28] sm:$0xff]
        %v5315 = vld [vmem:[%s738 + $0xe30] sm:$0xff]
        %v5316 = vld [vmem:[%s738 + $0xe38] sm:$0xff]
        %v5317 = vld [vmem:[%s738 + $0xe40] sm:$0xff]
        %v5318 = vld [vmem:[%s738 + $0xe48] sm:$0xff]
        %v5319 = vld [vmem:[%s738 + $0xe50] sm:$0xff]
        %v5320 = vld [vmem:[%s738 + $0xe58] sm:$0xff]
        %v5321 = vld [vmem:[%s738 + $0xe60] sm:$0xff]
        %v5322 = vld [vmem:[%s738 + $0xe68] sm:$0xff]
        %v5323 = vld [vmem:[%s738 + $0xe70] sm:$0xff]
        %v5324 = vld [vmem:[%s738 + $0xe78] sm:$0xff]
        %v5325 = vld [vmem:[%s738 + $0xe80] sm:$0xff]
        %v5326 = vld [vmem:[%s738 + $0xe88] sm:$0xff]
        %v5327 = vld [vmem:[%s738 + $0xe90] sm:$0xff]
        %v5328 = vld [vmem:[%s738 + $0xe98] sm:$0xff]
        %v5329 = vld [vmem:[%s738 + $0xea0] sm:$0xff]
        %v5330 = vld [vmem:[%s738 + $0xea8] sm:$0xff]
        %v5331 = vld [vmem:[%s738 + $0xeb0] sm:$0xff]
        %v5332 = vld [vmem:[%s738 + $0xeb8] sm:$0xff]
        %v5333 = vld [vmem:[%s738 + $0xec0] sm:$0xff]
        %v5334 = vld [vmem:[%s738 + $0xec8] sm:$0xff]
        %v5335 = vld [vmem:[%s738 + $0xed0] sm:$0xff]
        %v5336 = vld [vmem:[%s738 + $0xed8] sm:$0xff]
        %v5337 = vld [vmem:[%s738 + $0xee0] sm:$0xff]
        %v5338 = vld [vmem:[%s738 + $0xee8] sm:$0xff]
        %v5339 = vld [vmem:[%s738 + $0xef0] sm:$0xff]
        %v5340 = vld [vmem:[%s738 + $0xef8] sm:$0xff]
        %v5341 = vld [vmem:[%s738 + $0xf00] sm:$0xff]
        %v5342 = vld [vmem:[%s738 + $0xf08] sm:$0xff]
        %v5343 = vld [vmem:[%s738 + $0xf10] sm:$0xff]
        %v5344 = vld [vmem:[%s738 + $0xf18] sm:$0xff]
        %v5345 = vld [vmem:[%s738 + $0xf20] sm:$0xff]
        %v5346 = vld [vmem:[%s738 + $0xf28] sm:$0xff]
        %v5347 = vld [vmem:[%s738 + $0xf30] sm:$0xff]
        %v5348 = vld [vmem:[%s738 + $0xf38] sm:$0xff]
        %v5349 = vld [vmem:[%s738 + $0xf40] sm:$0xff]
        %v5350 = vld [vmem:[%s738 + $0xf48] sm:$0xff]
        %v5351 = vld [vmem:[%s738 + $0xf50] sm:$0xff]
        %v5352 = vld [vmem:[%s738 + $0xf58] sm:$0xff]
        %v5353 = vld [vmem:[%s738 + $0xf60] sm:$0xff]
        %v5354 = vld [vmem:[%s738 + $0xf68] sm:$0xff]
        %v5355 = vld [vmem:[%s738 + $0xf70] sm:$0xff]
        %v5356 = vld [vmem:[%s738 + $0xf78] sm:$0xff]
        %v5357 = vld [vmem:[%s738 + $0xf80] sm:$0xff]
        %v5358 = vld [vmem:[%s738 + $0xf88] sm:$0xff]
        %v5359 = vld [vmem:[%s738 + $0xf90] sm:$0xff]
        %v5360 = vld [vmem:[%s738 + $0xf98] sm:$0xff]
        %v5361 = vld [vmem:[%s738 + $0xfa0] sm:$0xff]
        %v5362 = vld [vmem:[%s738 + $0xfa8] sm:$0xff]
        %v5363 = vld [vmem:[%s738 + $0xfb0] sm:$0xff]
        %v5364 = vld [vmem:[%s738 + $0xfb8] sm:$0xff]
        %v5365 = vld [vmem:[%s738 + $0xfc0] sm:$0xff]
        %v5366 = vld [vmem:[%s738 + $0xfc8] sm:$0xff]
        %v5367 = vld [vmem:[%s738 + $0xfd0] sm:$0xff]
        %v5368 = vld [vmem:[%s738 + $0xfd8] sm:$0xff]
        %v5369 = vld [vmem:[%s738 + $0xfe0] sm:$0xff]
        %v5370 = vld [vmem:[%s738 + $0xfe8] sm:$0xff]
        %v5371 = vld [vmem:[%s738 + $0xff0] sm:$0xff]
        %v5372 = vld [vmem:[%s738 + $0xff8] sm:$0xff]
        %v5373 = vld [vmem:[%s738 + $0x1000] sm:$0xff]
        %v5374 = vld [vmem:[%s738 + $0x1008] sm:$0xff]
        %v5375 = vld [vmem:[%s738 + $0x1010] sm:$0xff]
        %v5376 = vld [vmem:[%s738 + $0x1018] sm:$0xff]
        %v5377 = vld [vmem:[%s738 + $0x1020] sm:$0xff]
        %v5378 = vld [vmem:[%s738 + $0x1028] sm:$0xff]
        %v5379 = vld [vmem:[%s738 + $0x1030] sm:$0xff]
        %v5380 = vld [vmem:[%s738 + $0x1038] sm:$0xff]
        %v5381 = vld [vmem:[%s738 + $0x1040] sm:$0xff]
        %v5382 = vld [vmem:[%s738 + $0x1048] sm:$0xff]
        %v5383 = vld [vmem:[%s738 + $0x1050] sm:$0xff]
        %v5384 = vld [vmem:[%s738 + $0x1058] sm:$0xff]
        %v5385 = vld [vmem:[%s738 + $0x1060] sm:$0xff]
        %v5386 = vld [vmem:[%s738 + $0x1068] sm:$0xff]
        %v5387 = vld [vmem:[%s738 + $0x1070] sm:$0xff]
        %v5388 = vld [vmem:[%s738 + $0x1078] sm:$0xff]
        %v5389 = vld [vmem:[%s738 + $0x1080] sm:$0xff]
        %v5390 = vld [vmem:[%s738 + $0x1088] sm:$0xff]
        %v5391 = vld [vmem:[%s738 + $0x1090] sm:$0xff]
        %v5392 = vld [vmem:[%s738 + $0x1098] sm:$0xff]
        %v5393 = vld [vmem:[%s738 + $0x10a0] sm:$0xff]
        %v5394 = vld [vmem:[%s738 + $0x10a8] sm:$0xff]
        %v5395 = vld [vmem:[%s738 + $0x10b0] sm:$0xff]
        %v5396 = vld [vmem:[%s738 + $0x10b8] sm:$0xff]
        %v5397 = vld [vmem:[%s738 + $0x10c0] sm:$0xff]
        %v5398 = vld [vmem:[%s738 + $0x10c8] sm:$0xff]
        %v5399 = vld [vmem:[%s738 + $0x10d0] sm:$0xff]
        %v5400 = vld [vmem:[%s738 + $0x10d8] sm:$0xff]
        %v5401 = vld [vmem:[%s738 + $0x10e0] sm:$0xff]
        %v5402 = vld [vmem:[%s738 + $0x10e8] sm:$0xff]
        %v5403 = vld [vmem:[%s738 + $0x10f0] sm:$0xff]
        %v5404 = vld [vmem:[%s738 + $0x10f8] sm:$0xff]
        %v5405 = vld [vmem:[%s738 + $0x1100] sm:$0xff]
        %v5406 = vld [vmem:[%s738 + $0x1108] sm:$0xff]
        %v5407 = vld [vmem:[%s738 + $0x1110] sm:$0x1]
        %v5409 = vsel %vm2206, %v4860, 0
        %v5412 = vsel %vm1336, %v5407, 0
        %5414 = vmatprep.subr.mxu0 0.0
        %5415 = vmatpush1.msra.mxu0 %v4861
        %5416 = vmatprep.subr.mxu0 0.0
        %5417 = vmatpush1.msra.mxu0 %v4862
        %5418 = vmatprep.subr.mxu0 0.0
        %5419 = vmatpush1.msra.mxu0 %v4863
        %5420 = vmatprep.subr.mxu0 0.0
        %5421 = vmatpush1.msra.mxu0 %v4864
        %5422 = vmatprep.subr.mxu0 0.0
        %5423 = vmatpush1.msra.mxu0 %v4865
        %5424 = vmatprep.subr.mxu0 0.0
        %5425 = vmatpush1.msra.mxu0 %v4866
        %5426 = vmatprep.subr.mxu0 0.0
        %5427 = vmatpush1.msra.mxu0 %v4867
        %5428 = vmatprep.subr.mxu0 0.0
        %5429 = vmatpush1.msra.mxu0 %v4868
        %5430 = vmatprep.subr.mxu0 0.0
        %5431 = vmatpush1.msra.mxu0 %v4869
        %5432 = vmatprep.subr.mxu0 0.0
        %5433 = vmatpush1.msra.mxu0 %v4870
        %5434 = vmatprep.subr.mxu0 0.0
        %5435 = vmatpush1.msra.mxu0 %v4871
        %5436 = vmatprep.subr.mxu0 0.0
        %5437 = vmatpush1.msra.mxu0 %v4872
        %5438 = vmatprep.subr.mxu0 0.0
        %5439 = vmatpush1.msra.mxu0 %v4873
        %5440 = vmatprep.subr.mxu0 0.0
        %5441 = vmatpush1.msra.mxu0 %v4874
        %5442 = vmatprep.subr.mxu0 0.0
        %5443 = vmatpush1.msra.mxu0 %v4875
        %5444 = vmatprep.subr.mxu0 0.0
        %5445 = vmatpush1.msra.mxu0 %v4876
        %5446 = vmatprep.subr.mxu0 0.0
        %5447 = vmatpush1.msra.mxu0 %v4877
        %5448 = vmatprep.subr.mxu0 0.0
        %5449 = vmatpush1.msra.mxu0 %v4878
        %5450 = vmatprep.subr.mxu0 0.0
        %5451 = vmatpush1.msra.mxu0 %v4879
        %5452 = vmatprep.subr.mxu0 0.0
        %5453 = vmatpush1.msra.mxu0 %v4880
        %5454 = vmatprep.subr.mxu0 0.0
        %5455 = vmatpush1.msra.mxu0 %v4881
        %5456 = vmatprep.subr.mxu0 0.0
        %5457 = vmatpush1.msra.mxu0 %v4882
        %5458 = vmatprep.subr.mxu0 0.0
        %5459 = vmatpush1.msra.mxu0 %v4883
        %5460 = vmatprep.subr.mxu0 0.0
        %5461 = vmatpush1.msra.mxu0 %v4884
        %5462 = vmatprep.subr.mxu0 0.0
        %5463 = vmatpush1.msra.mxu0 %v4885
        %5464 = vmatprep.subr.mxu0 0.0
        %5465 = vmatpush1.msra.mxu0 %v4886
        %5466 = vmatprep.subr.mxu0 0.0
        %5467 = vmatpush1.msra.mxu0 %v4887
        %5468 = vmatprep.subr.mxu0 0.0
        %5469 = vmatpush1.msra.mxu0 %v4888
        %5470 = vmatprep.subr.mxu0 0.0
        %5471 = vmatpush1.msra.mxu0 %v4889
        %5472 = vmatprep.subr.mxu0 0.0
        %5473 = vmatpush1.msra.mxu0 %v4890
        %5474 = vmatprep.subr.mxu0 0.0
        %5475 = vmatpush1.msra.mxu0 %v4891
        %5476 = vmatprep.subr.mxu0 0.0
        %5477 = vmatpush1.msra.mxu0 %v4892
        %5478 = vmatprep.mubr.f32.mxu0 %v4769
        %5479 = vmatmul.mubr.f32.gmra.mrb[0].mxu0 %v4768
        %v5480 = vpop.f32.mrb[0].mxu0
        %v5481 = vadd.f32 %v4255, %v5480
        %v5482 = vpop.f32.mrb[0].mxu0
        %5483 = vdwg.mxu0
        %5484 = vmatprep.subr.mxu0 0.0
        %5485 = vmatpush1.msra.mxu0 %v4893
        %5486 = vmatprep.subr.mxu0 0.0
        %5487 = vmatpush1.msra.mxu0 %v4894
        %5488 = vmatprep.subr.mxu0 0.0
        %5489 = vmatpush1.msra.mxu0 %v4895
        %5490 = vmatprep.subr.mxu0 0.0
        %5491 = vmatpush1.msra.mxu0 %v4896
        %5492 = vmatprep.subr.mxu0 0.0
        %5493 = vmatpush1.msra.mxu0 %v4897
        %5494 = vmatprep.subr.mxu0 0.0
        %5495 = vmatpush1.msra.mxu0 %v4898
        %5496 = vmatprep.subr.mxu0 0.0
        %5497 = vmatpush1.msra.mxu0 %v4899
        %5498 = vmatprep.subr.mxu0 0.0
        %5499 = vmatpush1.msra.mxu0 %v4900
        %5500 = vmatprep.subr.mxu0 0.0
        %5501 = vmatpush1.msra.mxu0 %v4901
        %5502 = vmatprep.subr.mxu0 0.0
        %5503 = vmatpush1.msra.mxu0 %v4902
        %5504 = vmatprep.subr.mxu0 0.0
        %5505 = vmatpush1.msra.mxu0 %v4903
        %5506 = vmatprep.subr.mxu0 0.0
        %5507 = vmatpush1.msra.mxu0 %v4904
        %5508 = vmatprep.subr.mxu0 0.0
        %5509 = vmatpush1.msra.mxu0 %v4905
        %5510 = vmatprep.subr.mxu0 0.0
        %5511 = vmatpush1.msra.mxu0 %v4906
        %5512 = vmatprep.subr.mxu0 0.0
        %5513 = vmatpush1.msra.mxu0 %v4907
        %5514 = vmatprep.subr.mxu0 0.0
        %5515 = vmatpush1.msra.mxu0 %v4908
        %5516 = vmatprep.subr.mxu0 0.0
        %5517 = vmatpush1.msra.mxu0 %v4909
        %5518 = vmatprep.subr.mxu0 0.0
        %5519 = vmatpush1.msra.mxu0 %v4910
        %5520 = vmatprep.subr.mxu0 0.0
        %5521 = vmatpush1.msra.mxu0 %v4911
        %5522 = vmatprep.subr.mxu0 0.0
        %5523 = vmatpush1.msra.mxu0 %v4912
        %5524 = vmatprep.subr.mxu0 0.0
        %5525 = vmatpush1.msra.mxu0 %v4913
        %5526 = vmatprep.subr.mxu0 0.0
        %5527 = vmatpush1.msra.mxu0 %v4914
        %5528 = vmatprep.subr.mxu0 0.0
        %5529 = vmatpush1.msra.mxu0 %v4915
        %5530 = vmatprep.subr.mxu0 0.0
        %5531 = vmatpush1.msra.mxu0 %v4916
        %5532 = vmatprep.subr.mxu0 0.0
        %5533 = vmatpush1.msra.mxu0 %v4917
        %5534 = vmatprep.subr.mxu0 0.0
        %5535 = vmatpush1.msra.mxu0 %v4918
        %5536 = vmatprep.subr.mxu0 0.0
        %5537 = vmatpush1.msra.mxu0 %v4919
        %5538 = vmatprep.subr.mxu0 0.0
        %5539 = vmatpush1.msra.mxu0 %v4920
        %5540 = vmatprep.subr.mxu0 0.0
        %5541 = vmatpush1.msra.mxu0 %v4921
        %5542 = vmatprep.subr.mxu0 0.0
        %5543 = vmatpush1.msra.mxu0 %v4922
        %5544 = vmatprep.subr.mxu0 0.0
        %5545 = vmatpush1.msra.mxu0 %v4923
        %5546 = vmatprep.subr.mxu0 0.0
        %5547 = vmatpush1.msra.mxu0 %v4924
        %5548 = vmatprep.mubr.f32.mxu0 %v4775
        %5549 = vmatmul.mubr.f32.gmra.mrb[0].mxu0 %v4774
        %v5550 = vpop.f32.mrb[0].mxu0
        %v5551 = vadd.f32 %v5481, %v5550
        %v5552 = vpop.f32.mrb[0].mxu0
        %5553 = vdwg.mxu0
        %5554 = vmatprep.subr.mxu0 0.0
        %5555 = vmatpush1.msra.mxu0 %v4925
        %5556 = vmatprep.subr.mxu0 0.0
        %5557 = vmatpush1.msra.mxu0 %v4926
        %5558 = vmatprep.subr.mxu0 0.0
        %5559 = vmatpush1.msra.mxu0 %v4927
        %5560 = vmatprep.subr.mxu0 0.0
        %5561 = vmatpush1.msra.mxu0 %v4928
        %5562 = vmatprep.subr.mxu0 0.0
        %5563 = vmatpush1.msra.mxu0 %v4929
        %5564 = vmatprep.subr.mxu0 0.0
        %5565 = vmatpush1.msra.mxu0 %v4930
        %5566 = vmatprep.subr.mxu0 0.0
        %5567 = vmatpush1.msra.mxu0 %v4931
        %5568 = vmatprep.subr.mxu0 0.0
        %5569 = vmatpush1.msra.mxu0 %v4932
        %5570 = vmatprep.subr.mxu0 0.0
        %5571 = vmatpush1.msra.mxu0 %v4933
        %5572 = vmatprep.subr.mxu0 0.0
        %5573 = vmatpush1.msra.mxu0 %v4934
        %5574 = vmatprep.subr.mxu0 0.0
        %5575 = vmatpush1.msra.mxu0 %v4935
        %5576 = vmatprep.subr.mxu0 0.0
        %5577 = vmatpush1.msra.mxu0 %v4936
        %5578 = vmatprep.subr.mxu0 0.0
        %5579 = vmatpush1.msra.mxu0 %v4937
        %5580 = vmatprep.subr.mxu0 0.0
        %5581 = vmatpush1.msra.mxu0 %v4938
        %5582 = vmatprep.subr.mxu0 0.0
        %5583 = vmatpush1.msra.mxu0 %v4939
        %5584 = vmatprep.subr.mxu0 0.0
        %5585 = vmatpush1.msra.mxu0 %v4940
        %5586 = vmatprep.subr.mxu0 0.0
        %5587 = vmatpush1.msra.mxu0 %v4941
        %5588 = vmatprep.subr.mxu0 0.0
        %5589 = vmatpush1.msra.mxu0 %v4942
        %5590 = vmatprep.subr.mxu0 0.0
        %5591 = vmatpush1.msra.mxu0 %v4943
        %5592 = vmatprep.subr.mxu0 0.0
        %5593 = vmatpush1.msra.mxu0 %v4944
        %5594 = vmatprep.subr.mxu0 0.0
        %5595 = vmatpush1.msra.mxu0 %v4945
        %5596 = vmatprep.subr.mxu0 0.0
        %5597 = vmatpush1.msra.mxu0 %v4946
        %5598 = vmatprep.subr.mxu0 0.0
        %5599 = vmatpush1.msra.mxu0 %v4947
        %5600 = vmatprep.subr.mxu0 0.0
        %5601 = vmatpush1.msra.mxu0 %v4948
        %5602 = vmatprep.subr.mxu0 0.0
        %5603 = vmatpush1.msra.mxu0 %v4949
        %5604 = vmatprep.subr.mxu0 0.0
        %5605 = vmatpush1.msra.mxu0 %v4950
        %5606 = vmatprep.subr.mxu0 0.0
        %5607 = vmatpush1.msra.mxu0 %v4951
        %5608 = vmatprep.subr.mxu0 0.0
        %5609 = vmatpush1.msra.mxu0 %v4952
        %5610 = vmatprep.subr.mxu0 0.0
        %5611 = vmatpush1.msra.mxu0 %v4953
        %5612 = vmatprep.subr.mxu0 0.0
        %5613 = vmatpush1.msra.mxu0 %v4954
        %5614 = vmatprep.subr.mxu0 0.0
        %5615 = vmatpush1.msra.mxu0 %v4955
        %5616 = vmatprep.subr.mxu0 0.0
        %5617 = vmatpush1.msra.mxu0 %v4956
        %5618 = vmatprep.mubr.f32.mxu0 %v4781
        %5619 = vmatmul.mubr.f32.gmra.mrb[0].mxu0 %v4780
        %v5620 = vpop.f32.mrb[0].mxu0
        %v5621 = vadd.f32 %v5551, %v5620
        %v5622 = vpop.f32.mrb[0].mxu0
        %5623 = vdwg.mxu0
        %5624 = vmatprep.subr.mxu0 0.0
        %5625 = vmatpush1.msra.mxu0 %v4957
        %5626 = vmatprep.subr.mxu0 0.0
        %5627 = vmatpush1.msra.mxu0 %v4958
        %5628 = vmatprep.subr.mxu0 0.0
        %5629 = vmatpush1.msra.mxu0 %v4959
        %5630 = vmatprep.subr.mxu0 0.0
        %5631 = vmatpush1.msra.mxu0 %v4960
        %5632 = vmatprep.subr.mxu0 0.0
        %5633 = vmatpush1.msra.mxu0 %v4961
        %5634 = vmatprep.subr.mxu0 0.0
        %5635 = vmatpush1.msra.mxu0 %v4962
        %5636 = vmatprep.subr.mxu0 0.0
        %5637 = vmatpush1.msra.mxu0 %v4963
        %5638 = vmatprep.subr.mxu0 0.0
        %5639 = vmatpush1.msra.mxu0 %v4964
        %5640 = vmatprep.subr.mxu0 0.0
        %5641 = vmatpush1.msra.mxu0 %v4965
        %5642 = vmatprep.subr.mxu0 0.0
        %5643 = vmatpush1.msra.mxu0 %v4966
        %5644 = vmatprep.subr.mxu0 0.0
        %5645 = vmatpush1.msra.mxu0 %v4967
        %5646 = vmatprep.subr.mxu0 0.0
        %5647 = vmatpush1.msra.mxu0 %v4968
        %5648 = vmatprep.subr.mxu0 0.0
        %5649 = vmatpush1.msra.mxu0 %v4969
        %5650 = vmatprep.subr.mxu0 0.0
        %5651 = vmatpush1.msra.mxu0 %v4970
        %5652 = vmatprep.subr.mxu0 0.0
        %5653 = vmatpush1.msra.mxu0 %v4971
        %5654 = vmatprep.subr.mxu0 0.0
        %5655 = vmatpush1.msra.mxu0 %v4972
        %5656 = vmatprep.subr.mxu0 0.0
        %5657 = vmatpush1.msra.mxu0 %v4973
        %5658 = vmatprep.subr.mxu0 0.0
        %5659 = vmatpush1.msra.mxu0 %v4974
        %5660 = vmatprep.subr.mxu0 0.0
        %5661 = vmatpush1.msra.mxu0 %v4975
        %5662 = vmatprep.subr.mxu0 0.0
        %5663 = vmatpush1.msra.mxu0 %v4976
        %5664 = vmatprep.subr.mxu0 0.0
        %5665 = vmatpush1.msra.mxu0 %v4977
        %5666 = vmatprep.subr.mxu0 0.0
        %5667 = vmatpush1.msra.mxu0 %v4978
        %5668 = vmatprep.subr.mxu0 0.0
        %5669 = vmatpush1.msra.mxu0 %v4979
        %5670 = vmatprep.subr.mxu0 0.0
        %5671 = vmatpush1.msra.mxu0 %v4980
        %5672 = vmatprep.subr.mxu0 0.0
        %5673 = vmatpush1.msra.mxu0 %v4981
        %5674 = vmatprep.subr.mxu0 0.0
        %5675 = vmatpush1.msra.mxu0 %v4982
        %5676 = vmatprep.subr.mxu0 0.0
        %5677 = vmatpush1.msra.mxu0 %v4983
        %5678 = vmatprep.subr.mxu0 0.0
        %5679 = vmatpush1.msra.mxu0 %v4984
        %5680 = vmatprep.subr.mxu0 0.0
        %5681 = vmatpush1.msra.mxu0 %v4985
        %5682 = vmatprep.subr.mxu0 0.0
        %5683 = vmatpush1.msra.mxu0 %v4986
        %5684 = vmatprep.subr.mxu0 0.0
        %5685 = vmatpush1.msra.mxu0 %v4987
        %5686 = vmatprep.subr.mxu0 0.0
        %5687 = vmatpush1.msra.mxu0 %v4988
        %5688 = vmatprep.mubr.f32.mxu0 %v4787
        %5689 = vmatmul.mubr.f32.gmra.mrb[0].mxu0 %v4786
        %v5690 = vpop.f32.mrb[0].mxu0
        %v5691 = vadd.f32 %v5621, %v5690
        %v5692 = vpop.f32.mrb[0].mxu0
        %5693 = vdwg.mxu0
        %5694 = vmatprep.subr.mxu0 0.0
        %5695 = vmatpush1.msra.mxu0 %v4989
        %5696 = vmatprep.subr.mxu0 0.0
        %5697 = vmatpush1.msra.mxu0 %v4990
        %5698 = vmatprep.subr.mxu0 0.0
        %5699 = vmatpush1.msra.mxu0 %v4991
        %5700 = vmatprep.subr.mxu0 0.0
        %5701 = vmatpush1.msra.mxu0 %v4992
        %5702 = vmatprep.subr.mxu0 0.0
        %5703 = vmatpush1.msra.mxu0 %v4993
        %5704 = vmatprep.subr.mxu0 0.0
        %5705 = vmatpush1.msra.mxu0 %v4994
        %5706 = vmatprep.subr.mxu0 0.0
        %5707 = vmatpush1.msra.mxu0 %v4995
        %5708 = vmatprep.subr.mxu0 0.0
        %5709 = vmatpush1.msra.mxu0 %v4996
        %5710 = vmatprep.subr.mxu0 0.0
        %5711 = vmatpush1.msra.mxu0 %v4997
        %5712 = vmatprep.subr.mxu0 0.0
        %5713 = vmatpush1.msra.mxu0 %v4998
        %5714 = vmatprep.subr.mxu0 0.0
        %5715 = vmatpush1.msra.mxu0 %v4999
        %5716 = vmatprep.subr.mxu0 0.0
        %5717 = vmatpush1.msra.mxu0 %v5000
        %5718 = vmatprep.subr.mxu0 0.0
        %5719 = vmatpush1.msra.mxu0 %v5001
        %5720 = vmatprep.subr.mxu0 0.0
        %5721 = vmatpush1.msra.mxu0 %v5002
        %5722 = vmatprep.subr.mxu0 0.0
        %5723 = vmatpush1.msra.mxu0 %v5003
        %5724 = vmatprep.subr.mxu0 0.0
        %5725 = vmatpush1.msra.mxu0 %v5004
        %5726 = vmatprep.subr.mxu0 0.0
        %5727 = vmatpush1.msra.mxu0 %v5005
        %5728 = vmatprep.subr.mxu0 0.0
        %5729 = vmatpush1.msra.mxu0 %v5006
        %5730 = vmatprep.subr.mxu0 0.0
        %5731 = vmatpush1.msra.mxu0 %v5007
        %5732 = vmatprep.subr.mxu0 0.0
        %5733 = vmatpush1.msra.mxu0 %v5008
        %5734 = vmatprep.subr.mxu0 0.0
        %5735 = vmatpush1.msra.mxu0 %v5009
        %5736 = vmatprep.subr.mxu0 0.0
        %5737 = vmatpush1.msra.mxu0 %v5010
        %5738 = vmatprep.subr.mxu0 0.0
        %5739 = vmatpush1.msra.mxu0 %v5011
        %5740 = vmatprep.subr.mxu0 0.0
        %5741 = vmatpush1.msra.mxu0 %v5012
        %5742 = vmatprep.subr.mxu0 0.0
        %5743 = vmatpush1.msra.mxu0 %v5013
        %5744 = vmatprep.subr.mxu0 0.0
        %5745 = vmatpush1.msra.mxu0 %v5014
        %5746 = vmatprep.subr.mxu0 0.0
        %5747 = vmatpush1.msra.mxu0 %v5015
        %5748 = vmatprep.subr.mxu0 0.0
        %5749 = vmatpush1.msra.mxu0 %v5016
        %5750 = vmatprep.subr.mxu0 0.0
        %5751 = vmatpush1.msra.mxu0 %v5017
        %5752 = vmatprep.subr.mxu0 0.0
        %5753 = vmatpush1.msra.mxu0 %v5018
        %5754 = vmatprep.subr.mxu0 0.0
        %5755 = vmatpush1.msra.mxu0 %v5019
        %5756 = vmatprep.subr.mxu0 0.0
        %5757 = vmatpush1.msra.mxu0 %v5020
        %5758 = vmatprep.mubr.f32.mxu0 %v4793
        %5759 = vmatmul.mubr.f32.gmra.mrb[0].mxu0 %v4792
        %v5760 = vpop.f32.mrb[0].mxu0
        %v5761 = vadd.f32 %v5691, %v5760
        %v5762 = vpop.f32.mrb[0].mxu0
        %5763 = vdwg.mxu0
        %5764 = vmatprep.subr.mxu0 0.0
        %5765 = vmatpush1.msra.mxu0 %v5021
        %5766 = vmatprep.subr.mxu0 0.0
        %5767 = vmatpush1.msra.mxu0 %v5022
        %5768 = vmatprep.subr.mxu0 0.0
        %5769 = vmatpush1.msra.mxu0 %v5023
        %5770 = vmatprep.subr.mxu0 0.0
        %5771 = vmatpush1.msra.mxu0 %v5024
        %5772 = vmatprep.subr.mxu0 0.0
        %5773 = vmatpush1.msra.mxu0 %v5025
        %5774 = vmatprep.subr.mxu0 0.0
        %5775 = vmatpush1.msra.mxu0 %v5026
        %5776 = vmatprep.subr.mxu0 0.0
        %5777 = vmatpush1.msra.mxu0 %v5027
        %5778 = vmatprep.subr.mxu0 0.0
        %5779 = vmatpush1.msra.mxu0 %v5028
        %5780 = vmatprep.subr.mxu0 0.0
        %5781 = vmatpush1.msra.mxu0 %v5029
        %5782 = vmatprep.subr.mxu0 0.0
        %5783 = vmatpush1.msra.mxu0 %v5030
        %5784 = vmatprep.subr.mxu0 0.0
        %5785 = vmatpush1.msra.mxu0 %v5031
        %5786 = vmatprep.subr.mxu0 0.0
        %5787 = vmatpush1.msra.mxu0 %v5032
        %5788 = vmatprep.subr.mxu0 0.0
        %5789 = vmatpush1.msra.mxu0 %v5033
        %5790 = vmatprep.subr.mxu0 0.0
        %5791 = vmatpush1.msra.mxu0 %v5034
        %5792 = vmatprep.subr.mxu0 0.0
        %5793 = vmatpush1.msra.mxu0 %v5035
        %5794 = vmatprep.subr.mxu0 0.0
        %5795 = vmatpush1.msra.mxu0 %v5036
        %5796 = vmatprep.subr.mxu0 0.0
        %5797 = vmatpush1.msra.mxu0 %v5037
        %5798 = vmatprep.subr.mxu0 0.0
        %5799 = vmatpush1.msra.mxu0 %v5038
        %5800 = vmatprep.subr.mxu0 0.0
        %5801 = vmatpush1.msra.mxu0 %v5039
        %5802 = vmatprep.subr.mxu0 0.0
        %5803 = vmatpush1.msra.mxu0 %v5040
        %5804 = vmatprep.subr.mxu0 0.0
        %5805 = vmatpush1.msra.mxu0 %v5041
        %5806 = vmatprep.subr.mxu0 0.0
        %5807 = vmatpush1.msra.mxu0 %v5042
        %5808 = vmatprep.subr.mxu0 0.0
        %5809 = vmatpush1.msra.mxu0 %v5043
        %5810 = vmatprep.subr.mxu0 0.0
        %5811 = vmatpush1.msra.mxu0 %v5044
        %5812 = vmatprep.subr.mxu0 0.0
        %5813 = vmatpush1.msra.mxu0 %v5045
        %5814 = vmatprep.subr.mxu0 0.0
        %5815 = vmatpush1.msra.mxu0 %v5046
        %5816 = vmatprep.subr.mxu0 0.0
        %5817 = vmatpush1.msra.mxu0 %v5047
        %5818 = vmatprep.subr.mxu0 0.0
        %5819 = vmatpush1.msra.mxu0 %v5048
        %5820 = vmatprep.subr.mxu0 0.0
        %5821 = vmatpush1.msra.mxu0 %v5049
        %5822 = vmatprep.subr.mxu0 0.0
        %5823 = vmatpush1.msra.mxu0 %v5050
        %5824 = vmatprep.subr.mxu0 0.0
        %5825 = vmatpush1.msra.mxu0 %v5051
        %5826 = vmatprep.subr.mxu0 0.0
        %5827 = vmatpush1.msra.mxu0 %v5052
        %5828 = vmatprep.mubr.f32.mxu0 %v4799
        %5829 = vmatmul.mubr.f32.gmra.mrb[0].mxu0 %v4798
        %v5830 = vpop.f32.mrb[0].mxu0
        %v5831 = vadd.f32 %v5761, %v5830
        %v5832 = vpop.f32.mrb[0].mxu0
        %5833 = vdwg.mxu0
        %5834 = vmatprep.subr.mxu0 0.0
        %5835 = vmatpush1.msra.mxu0 %v5053
        %5836 = vmatprep.subr.mxu0 0.0
        %5837 = vmatpush1.msra.mxu0 %v5054
        %5838 = vmatprep.subr.mxu0 0.0
        %5839 = vmatpush1.msra.mxu0 %v5055
        %5840 = vmatprep.subr.mxu0 0.0
        %5841 = vmatpush1.msra.mxu0 %v5056
        %5842 = vmatprep.subr.mxu0 0.0
        %5843 = vmatpush1.msra.mxu0 %v5057
        %5844 = vmatprep.subr.mxu0 0.0
        %5845 = vmatpush1.msra.mxu0 %v5058
        %5846 = vmatprep.subr.mxu0 0.0
        %5847 = vmatpush1.msra.mxu0 %v5059
        %5848 = vmatprep.subr.mxu0 0.0
        %5849 = vmatpush1.msra.mxu0 %v5060
        %5850 = vmatprep.subr.mxu0 0.0
        %5851 = vmatpush1.msra.mxu0 %v5061
        %5852 = vmatprep.subr.mxu0 0.0
        %5853 = vmatpush1.msra.mxu0 %v5062
        %5854 = vmatprep.subr.mxu0 0.0
        %5855 = vmatpush1.msra.mxu0 %v5063
        %5856 = vmatprep.subr.mxu0 0.0
        %5857 = vmatpush1.msra.mxu0 %v5064
        %5858 = vmatprep.subr.mxu0 0.0
        %5859 = vmatpush1.msra.mxu0 %v5065
        %5860 = vmatprep.subr.mxu0 0.0
        %5861 = vmatpush1.msra.mxu0 %v5066
        %5862 = vmatprep.subr.mxu0 0.0
        %5863 = vmatpush1.msra.mxu0 %v5067
        %5864 = vmatprep.subr.mxu0 0.0
        %5865 = vmatpush1.msra.mxu0 %v5068
        %5866 = vmatprep.subr.mxu0 0.0
        %5867 = vmatpush1.msra.mxu0 %v5069
        %5868 = vmatprep.subr.mxu0 0.0
        %5869 = vmatpush1.msra.mxu0 %v5070
        %5870 = vmatprep.subr.mxu0 0.0
        %5871 = vmatpush1.msra.mxu0 %v5071
        %5872 = vmatprep.subr.mxu0 0.0
        %5873 = vmatpush1.msra.mxu0 %v5072
        %5874 = vmatprep.subr.mxu0 0.0
        %5875 = vmatpush1.msra.mxu0 %v5073
        %5876 = vmatprep.subr.mxu0 0.0
        %5877 = vmatpush1.msra.mxu0 %v5074
        %5878 = vmatprep.subr.mxu0 0.0
        %5879 = vmatpush1.msra.mxu0 %v5075
        %5880 = vmatprep.subr.mxu0 0.0
        %5881 = vmatpush1.msra.mxu0 %v5076
        %5882 = vmatprep.subr.mxu0 0.0
        %5883 = vmatpush1.msra.mxu0 %v5077
        %5884 = vmatprep.subr.mxu0 0.0
        %5885 = vmatpush1.msra.mxu0 %v5078
        %5886 = vmatprep.subr.mxu0 0.0
        %5887 = vmatpush1.msra.mxu0 %v5079
        %5888 = vmatprep.subr.mxu0 0.0
        %5889 = vmatpush1.msra.mxu0 %v5080
        %5890 = vmatprep.subr.mxu0 0.0
        %5891 = vmatpush1.msra.mxu0 %v5081
        %5892 = vmatprep.subr.mxu0 0.0
        %5893 = vmatpush1.msra.mxu0 %v5082
        %5894 = vmatprep.subr.mxu0 0.0
        %5895 = vmatpush1.msra.mxu0 %v5083
        %5896 = vmatprep.subr.mxu0 0.0
        %5897 = vmatpush1.msra.mxu0 %v5084
        %5898 = vmatprep.mubr.f32.mxu0 %v4805
        %5899 = vmatmul.mubr.f32.gmra.mrb[0].mxu0 %v4804
        %v5900 = vpop.f32.mrb[0].mxu0
        %v5901 = vadd.f32 %v5831, %v5900
        %v5902 = vpop.f32.mrb[0].mxu0
        %5903 = vdwg.mxu0
        %5904 = vmatprep.subr.mxu0 0.0
        %5905 = vmatpush1.msra.mxu0 %v5085
        %5906 = vmatprep.subr.mxu0 0.0
        %5907 = vmatpush1.msra.mxu0 %v5086
        %5908 = vmatprep.subr.mxu0 0.0
        %5909 = vmatpush1.msra.mxu0 %v5087
        %5910 = vmatprep.subr.mxu0 0.0
        %5911 = vmatpush1.msra.mxu0 %v5088
        %5912 = vmatprep.subr.mxu0 0.0
        %5913 = vmatpush1.msra.mxu0 %v5089
        %5914 = vmatprep.subr.mxu0 0.0
        %5915 = vmatpush1.msra.mxu0 %v5090
        %5916 = vmatprep.subr.mxu0 0.0
        %5917 = vmatpush1.msra.mxu0 %v5091
        %5918 = vmatprep.subr.mxu0 0.0
        %5919 = vmatpush1.msra.mxu0 %v5092
        %5920 = vmatprep.subr.mxu0 0.0
        %5921 = vmatpush1.msra.mxu0 %v5093
        %5922 = vmatprep.subr.mxu0 0.0
        %5923 = vmatpush1.msra.mxu0 %v5094
        %5924 = vmatprep.subr.mxu0 0.0
        %5925 = vmatpush1.msra.mxu0 %v5095
        %5926 = vmatprep.subr.mxu0 0.0
        %5927 = vmatpush1.msra.mxu0 %v5096
        %5928 = vmatprep.subr.mxu0 0.0
        %5929 = vmatpush1.msra.mxu0 %v5097
        %5930 = vmatprep.subr.mxu0 0.0
        %5931 = vmatpush1.msra.mxu0 %v5098
        %5932 = vmatprep.subr.mxu0 0.0
        %5933 = vmatpush1.msra.mxu0 %v5099
        %5934 = vmatprep.subr.mxu0 0.0
        %5935 = vmatpush1.msra.mxu0 %v5100
        %5936 = vmatprep.subr.mxu0 0.0
        %5937 = vmatpush1.msra.mxu0 %v5101
        %5938 = vmatprep.subr.mxu0 0.0
        %5939 = vmatpush1.msra.mxu0 %v5102
        %5940 = vmatprep.subr.mxu0 0.0
        %5941 = vmatpush1.msra.mxu0 %v5103
        %5942 = vmatprep.subr.mxu0 0.0
        %5943 = vmatpush1.msra.mxu0 %v5104
        %5944 = vmatprep.subr.mxu0 0.0
        %5945 = vmatpush1.msra.mxu0 %v5105
        %5946 = vmatprep.subr.mxu0 0.0
        %5947 = vmatpush1.msra.mxu0 %v5106
        %5948 = vmatprep.subr.mxu0 0.0
        %5949 = vmatpush1.msra.mxu0 %v5107
        %5950 = vmatprep.subr.mxu0 0.0
        %5951 = vmatpush1.msra.mxu0 %v5108
        %5952 = vmatprep.subr.mxu0 0.0
        %5953 = vmatpush1.msra.mxu0 %v5109
        %5954 = vmatprep.subr.mxu0 0.0
        %5955 = vmatpush1.msra.mxu0 %v5110
        %5956 = vmatprep.subr.mxu0 0.0
        %5957 = vmatpush1.msra.mxu0 %v5111
        %5958 = vmatprep.subr.mxu0 0.0
        %5959 = vmatpush1.msra.mxu0 %v5112
        %5960 = vmatprep.subr.mxu0 0.0
        %5961 = vmatpush1.msra.mxu0 %v5113
        %5962 = vmatprep.subr.mxu0 0.0
        %5963 = vmatpush1.msra.mxu0 %v5114
        %5964 = vmatprep.subr.mxu0 0.0
        %5965 = vmatpush1.msra.mxu0 %v5115
        %5966 = vmatprep.subr.mxu0 0.0
        %5967 = vmatpush1.msra.mxu0 %v5116
        %5968 = vmatprep.mubr.f32.mxu0 %v4811
        %5969 = vmatmul.mubr.f32.gmra.mrb[0].mxu0 %v4810
        %v5970 = vpop.f32.mrb[0].mxu0
        %v5971 = vadd.f32 %v5901, %v5970
        %v5972 = vpop.f32.mrb[0].mxu0
        %5973 = vdwg.mxu0
        %5974 = vmatprep.subr.mxu0 0.0
        %5975 = vmatpush1.msra.mxu0 %v5117
        %5976 = vmatprep.subr.mxu0 0.0
        %5977 = vmatpush1.msra.mxu0 %v5118
        %5978 = vmatprep.subr.mxu0 0.0
        %5979 = vmatpush1.msra.mxu0 %v5119
        %5980 = vmatprep.subr.mxu0 0.0
        %5981 = vmatpush1.msra.mxu0 %v5120
        %5982 = vmatprep.subr.mxu0 0.0
        %5983 = vmatpush1.msra.mxu0 %v5121
        %5984 = vmatprep.subr.mxu0 0.0
        %5985 = vmatpush1.msra.mxu0 %v5122
        %5986 = vmatprep.subr.mxu0 0.0
        %5987 = vmatpush1.msra.mxu0 %v5123
        %5988 = vmatprep.subr.mxu0 0.0
        %5989 = vmatpush1.msra.mxu0 %v5124
        %5990 = vmatprep.subr.mxu0 0.0
        %5991 = vmatpush1.msra.mxu0 %v5125
        %5992 = vmatprep.subr.mxu0 0.0
        %5993 = vmatpush1.msra.mxu0 %v5126
        %5994 = vmatprep.subr.mxu0 0.0
        %5995 = vmatpush1.msra.mxu0 %v5127
        %5996 = vmatprep.subr.mxu0 0.0
        %5997 = vmatpush1.msra.mxu0 %v5128
        %5998 = vmatprep.subr.mxu0 0.0
        %5999 = vmatpush1.msra.mxu0 %v5129
        %6000 = vmatprep.subr.mxu0 0.0
        %6001 = vmatpush1.msra.mxu0 %v5130
        %6002 = vmatprep.subr.mxu0 0.0
        %6003 = vmatpush1.msra.mxu0 %v5131
        %6004 = vmatprep.subr.mxu0 0.0
        %6005 = vmatpush1.msra.mxu0 %v5132
        %6006 = vmatprep.subr.mxu0 0.0
        %6007 = vmatpush1.msra.mxu0 %v5133
        %6008 = vmatprep.subr.mxu0 0.0
        %6009 = vmatpush1.msra.mxu0 %v5134
        %6010 = vmatprep.subr.mxu0 0.0
        %6011 = vmatpush1.msra.mxu0 %v5135
        %6012 = vmatprep.subr.mxu0 0.0
        %6013 = vmatpush1.msra.mxu0 %v5136
        %6014 = vmatprep.subr.mxu0 0.0
        %6015 = vmatpush1.msra.mxu0 %v5137
        %6016 = vmatprep.subr.mxu0 0.0
        %6017 = vmatpush1.msra.mxu0 %v5138
        %6018 = vmatprep.subr.mxu0 0.0
        %6019 = vmatpush1.msra.mxu0 %v5139
        %6020 = vmatprep.subr.mxu0 0.0
        %6021 = vmatpush1.msra.mxu0 %v5140
        %6022 = vmatprep.subr.mxu0 0.0
        %6023 = vmatpush1.msra.mxu0 %v5141
        %6024 = vmatprep.subr.mxu0 0.0
        %6025 = vmatpush1.msra.mxu0 %v5142
        %6026 = vmatprep.subr.mxu0 0.0
        %6027 = vmatpush1.msra.mxu0 %v5143
        %6028 = vmatprep.subr.mxu0 0.0
        %6029 = vmatpush1.msra.mxu0 %v5144
        %6030 = vmatprep.subr.mxu0 0.0
        %6031 = vmatpush1.msra.mxu0 %v5145
        %6032 = vmatprep.subr.mxu0 0.0
        %6033 = vmatpush1.msra.mxu0 %v5146
        %6034 = vmatprep.subr.mxu0 0.0
        %6035 = vmatpush1.msra.mxu0 %v5147
        %6036 = vmatprep.subr.mxu0 0.0
        %6037 = vmatpush1.msra.mxu0 %v5148
        %6038 = vmatprep.mubr.f32.mxu0 %v4817
        %6039 = vmatmul.mubr.f32.gmra.mrb[0].mxu0 %v4816
        %v6040 = vpop.f32.mrb[0].mxu0
        %v6041 = vadd.f32 %v5971, %v6040
        %v6042 = vpop.f32.mrb[0].mxu0
        %6043 = vdwg.mxu0
        %6044 = vmatprep.subr.mxu0 0.0
        %6045 = vmatpush1.msra.mxu0 %v5149
        %6046 = vmatprep.subr.mxu0 0.0
        %6047 = vmatpush1.msra.mxu0 %v5150
        %6048 = vmatprep.subr.mxu0 0.0
        %6049 = vmatpush1.msra.mxu0 %v5151
        %6050 = vmatprep.subr.mxu0 0.0
        %6051 = vmatpush1.msra.mxu0 %v5152
        %6052 = vmatprep.subr.mxu0 0.0
        %6053 = vmatpush1.msra.mxu0 %v5153
        %6054 = vmatprep.subr.mxu0 0.0
        %6055 = vmatpush1.msra.mxu0 %v5154
        %6056 = vmatprep.subr.mxu0 0.0
        %6057 = vmatpush1.msra.mxu0 %v5155
        %6058 = vmatprep.subr.mxu0 0.0
        %6059 = vmatpush1.msra.mxu0 %v5156
        %6060 = vmatprep.subr.mxu0 0.0
        %6061 = vmatpush1.msra.mxu0 %v5157
        %6062 = vmatprep.subr.mxu0 0.0
        %6063 = vmatpush1.msra.mxu0 %v5158
        %6064 = vmatprep.subr.mxu0 0.0
        %6065 = vmatpush1.msra.mxu0 %v5159
        %6066 = vmatprep.subr.mxu0 0.0
        %6067 = vmatpush1.msra.mxu0 %v5160
        %6068 = vmatprep.subr.mxu0 0.0
        %6069 = vmatpush1.msra.mxu0 %v5161
        %6070 = vmatprep.subr.mxu0 0.0
        %6071 = vmatpush1.msra.mxu0 %v5162
        %6072 = vmatprep.subr.mxu0 0.0
        %6073 = vmatpush1.msra.mxu0 %v5163
        %6074 = vmatprep.subr.mxu0 0.0
        %6075 = vmatpush1.msra.mxu0 %v5164
        %6076 = vmatprep.subr.mxu0 0.0
        %6077 = vmatpush1.msra.mxu0 %v5165
        %6078 = vmatprep.subr.mxu0 0.0
        %6079 = vmatpush1.msra.mxu0 %v5166
        %6080 = vmatprep.subr.mxu0 0.0
        %6081 = vmatpush1.msra.mxu0 %v5167
        %6082 = vmatprep.subr.mxu0 0.0
        %6083 = vmatpush1.msra.mxu0 %v5168
        %6084 = vmatprep.subr.mxu0 0.0
        %6085 = vmatpush1.msra.mxu0 %v5169
        %6086 = vmatprep.subr.mxu0 0.0
        %6087 = vmatpush1.msra.mxu0 %v5170
        %6088 = vmatprep.subr.mxu0 0.0
        %6089 = vmatpush1.msra.mxu0 %v5171
        %6090 = vmatprep.subr.mxu0 0.0
        %6091 = vmatpush1.msra.mxu0 %v5172
        %6092 = vmatprep.subr.mxu0 0.0
        %6093 = vmatpush1.msra.mxu0 %v5173
        %6094 = vmatprep.subr.mxu0 0.0
        %6095 = vmatpush1.msra.mxu0 %v5174
        %6096 = vmatprep.subr.mxu0 0.0
        %6097 = vmatpush1.msra.mxu0 %v5175
        %6098 = vmatprep.subr.mxu0 0.0
        %6099 = vmatpush1.msra.mxu0 %v5176
        %6100 = vmatprep.subr.mxu0 0.0
        %6101 = vmatpush1.msra.mxu0 %v5177
        %6102 = vmatprep.subr.mxu0 0.0
        %6103 = vmatpush1.msra.mxu0 %v5178
        %6104 = vmatprep.subr.mxu0 0.0
        %6105 = vmatpush1.msra.mxu0 %v5179
        %6106 = vmatprep.subr.mxu0 0.0
        %6107 = vmatpush1.msra.mxu0 %v5180
        %6108 = vmatprep.mubr.f32.mxu0 %v4823
        %6109 = vmatmul.mubr.f32.gmra.mrb[0].mxu0 %v4822
        %v6110 = vpop.f32.mrb[0].mxu0
        %v6111 = vadd.f32 %v6041, %v6110
        %v6112 = vpop.f32.mrb[0].mxu0
        %6113 = vdwg.mxu0
        %6114 = vmatprep.subr.mxu0 0.0
        %6115 = vmatpush1.msra.mxu0 %v5181
        %6116 = vmatprep.subr.mxu0 0.0
        %6117 = vmatpush1.msra.mxu0 %v5182
        %6118 = vmatprep.subr.mxu0 0.0
        %6119 = vmatpush1.msra.mxu0 %v5183
        %6120 = vmatprep.subr.mxu0 0.0
        %6121 = vmatpush1.msra.mxu0 %v5184
        %6122 = vmatprep.subr.mxu0 0.0
        %6123 = vmatpush1.msra.mxu0 %v5185
        %6124 = vmatprep.subr.mxu0 0.0
        %6125 = vmatpush1.msra.mxu0 %v5186
        %6126 = vmatprep.subr.mxu0 0.0
        %6127 = vmatpush1.msra.mxu0 %v5187
        %6128 = vmatprep.subr.mxu0 0.0
        %6129 = vmatpush1.msra.mxu0 %v5188
        %6130 = vmatprep.subr.mxu0 0.0
        %6131 = vmatpush1.msra.mxu0 %v5189
        %6132 = vmatprep.subr.mxu0 0.0
        %6133 = vmatpush1.msra.mxu0 %v5190
        %6134 = vmatprep.subr.mxu0 0.0
        %6135 = vmatpush1.msra.mxu0 %v5191
        %6136 = vmatprep.subr.mxu0 0.0
        %6137 = vmatpush1.msra.mxu0 %v5192
        %6138 = vmatprep.subr.mxu0 0.0
        %6139 = vmatpush1.msra.mxu0 %v5193
        %6140 = vmatprep.subr.mxu0 0.0
        %6141 = vmatpush1.msra.mxu0 %v5194
        %6142 = vmatprep.subr.mxu0 0.0
        %6143 = vmatpush1.msra.mxu0 %v5195
        %6144 = vmatprep.subr.mxu0 0.0
        %6145 = vmatpush1.msra.mxu0 %v5196
        %6146 = vmatprep.subr.mxu0 0.0
        %6147 = vmatpush1.msra.mxu0 %v5197
        %6148 = vmatprep.subr.mxu0 0.0
        %6149 = vmatpush1.msra.mxu0 %v5198
        %6150 = vmatprep.subr.mxu0 0.0
        %6151 = vmatpush1.msra.mxu0 %v5199
        %6152 = vmatprep.subr.mxu0 0.0
        %6153 = vmatpush1.msra.mxu0 %v5200
        %6154 = vmatprep.subr.mxu0 0.0
        %6155 = vmatpush1.msra.mxu0 %v5201
        %6156 = vmatprep.subr.mxu0 0.0
        %6157 = vmatpush1.msra.mxu0 %v5202
        %6158 = vmatprep.subr.mxu0 0.0
        %6159 = vmatpush1.msra.mxu0 %v5203
        %6160 = vmatprep.subr.mxu0 0.0
        %6161 = vmatpush1.msra.mxu0 %v5204
        %6162 = vmatprep.subr.mxu0 0.0
        %6163 = vmatpush1.msra.mxu0 %v5205
        %6164 = vmatprep.subr.mxu0 0.0
        %6165 = vmatpush1.msra.mxu0 %v5206
        %6166 = vmatprep.subr.mxu0 0.0
        %6167 = vmatpush1.msra.mxu0 %v5207
        %6168 = vmatprep.subr.mxu0 0.0
        %6169 = vmatpush1.msra.mxu0 %v5208
        %6170 = vmatprep.subr.mxu0 0.0
        %6171 = vmatpush1.msra.mxu0 %v5209
        %6172 = vmatprep.subr.mxu0 0.0
        %6173 = vmatpush1.msra.mxu0 %v5210
        %6174 = vmatprep.subr.mxu0 0.0
        %6175 = vmatpush1.msra.mxu0 %v5211
        %6176 = vmatprep.subr.mxu0 0.0
        %6177 = vmatpush1.msra.mxu0 %v5212
        %6178 = vmatprep.mubr.f32.mxu0 %v4829
        %6179 = vmatmul.mubr.f32.gmra.mrb[0].mxu0 %v4828
        %v6180 = vpop.f32.mrb[0].mxu0
        %v6181 = vadd.f32 %v6111, %v6180
        %v6182 = vpop.f32.mrb[0].mxu0
        %6183 = vdwg.mxu0
        %6184 = vmatprep.subr.mxu0 0.0
        %6185 = vmatpush1.msra.mxu0 %v5213
        %6186 = vmatprep.subr.mxu0 0.0
        %6187 = vmatpush1.msra.mxu0 %v5214
        %6188 = vmatprep.subr.mxu0 0.0
        %6189 = vmatpush1.msra.mxu0 %v5215
        %6190 = vmatprep.subr.mxu0 0.0
        %6191 = vmatpush1.msra.mxu0 %v5216
        %6192 = vmatprep.subr.mxu0 0.0
        %6193 = vmatpush1.msra.mxu0 %v5217
        %6194 = vmatprep.subr.mxu0 0.0
        %6195 = vmatpush1.msra.mxu0 %v5218
        %6196 = vmatprep.subr.mxu0 0.0
        %6197 = vmatpush1.msra.mxu0 %v5219
        %6198 = vmatprep.subr.mxu0 0.0
        %6199 = vmatpush1.msra.mxu0 %v5220
        %6200 = vmatprep.subr.mxu0 0.0
        %6201 = vmatpush1.msra.mxu0 %v5221
        %6202 = vmatprep.subr.mxu0 0.0
        %6203 = vmatpush1.msra.mxu0 %v5222
        %6204 = vmatprep.subr.mxu0 0.0
        %6205 = vmatpush1.msra.mxu0 %v5223
        %6206 = vmatprep.subr.mxu0 0.0
        %6207 = vmatpush1.msra.mxu0 %v5224
        %6208 = vmatprep.subr.mxu0 0.0
        %6209 = vmatpush1.msra.mxu0 %v5225
        %6210 = vmatprep.subr.mxu0 0.0
        %6211 = vmatpush1.msra.mxu0 %v5226
        %6212 = vmatprep.subr.mxu0 0.0
        %6213 = vmatpush1.msra.mxu0 %v5227
        %6214 = vmatprep.subr.mxu0 0.0
        %6215 = vmatpush1.msra.mxu0 %v5228
        %6216 = vmatprep.subr.mxu0 0.0
        %6217 = vmatpush1.msra.mxu0 %v5229
        %6218 = vmatprep.subr.mxu0 0.0
        %6219 = vmatpush1.msra.mxu0 %v5230
        %6220 = vmatprep.subr.mxu0 0.0
        %6221 = vmatpush1.msra.mxu0 %v5231
        %6222 = vmatprep.subr.mxu0 0.0
        %6223 = vmatpush1.msra.mxu0 %v5232
        %6224 = vmatprep.subr.mxu0 0.0
        %6225 = vmatpush1.msra.mxu0 %v5233
        %6226 = vmatprep.subr.mxu0 0.0
        %6227 = vmatpush1.msra.mxu0 %v5234
        %6228 = vmatprep.subr.mxu0 0.0
        %6229 = vmatpush1.msra.mxu0 %v5235
        %6230 = vmatprep.subr.mxu0 0.0
        %6231 = vmatpush1.msra.mxu0 %v5236
        %6232 = vmatprep.subr.mxu0 0.0
        %6233 = vmatpush1.msra.mxu0 %v5237
        %6234 = vmatprep.subr.mxu0 0.0
        %6235 = vmatpush1.msra.mxu0 %v5238
        %6236 = vmatprep.subr.mxu0 0.0
        %6237 = vmatpush1.msra.mxu0 %v5239
        %6238 = vmatprep.subr.mxu0 0.0
        %6239 = vmatpush1.msra.mxu0 %v5240
        %6240 = vmatprep.subr.mxu0 0.0
        %6241 = vmatpush1.msra.mxu0 %v5241
        %6242 = vmatprep.subr.mxu0 0.0
        %6243 = vmatpush1.msra.mxu0 %v5242
        %6244 = vmatprep.subr.mxu0 0.0
        %6245 = vmatpush1.msra.mxu0 %v5243
        %6246 = vmatprep.subr.mxu0 0.0
        %6247 = vmatpush1.msra.mxu0 %v5244
        %6248 = vmatprep.mubr.f32.mxu0 %v4835
        %6249 = vmatmul.mubr.f32.gmra.mrb[0].mxu0 %v4834
        %v6250 = vpop.f32.mrb[0].mxu0
        %v6251 = vadd.f32 %v6181, %v6250
        %v6252 = vpop.f32.mrb[0].mxu0
        %6253 = vdwg.mxu0
        %6254 = vmatprep.subr.mxu0 0.0
        %6255 = vmatpush1.msra.mxu0 %v5245
        %6256 = vmatprep.subr.mxu0 0.0
        %6257 = vmatpush1.msra.mxu0 %v5246
        %6258 = vmatprep.subr.mxu0 0.0
        %6259 = vmatpush1.msra.mxu0 %v5247
        %6260 = vmatprep.subr.mxu0 0.0
        %6261 = vmatpush1.msra.mxu0 %v5248
        %6262 = vmatprep.subr.mxu0 0.0
        %6263 = vmatpush1.msra.mxu0 %v5249
        %6264 = vmatprep.subr.mxu0 0.0
        %6265 = vmatpush1.msra.mxu0 %v5250
        %6266 = vmatprep.subr.mxu0 0.0
        %6267 = vmatpush1.msra.mxu0 %v5251
        %6268 = vmatprep.subr.mxu0 0.0
        %6269 = vmatpush1.msra.mxu0 %v5252
        %6270 = vmatprep.subr.mxu0 0.0
        %6271 = vmatpush1.msra.mxu0 %v5253
        %6272 = vmatprep.subr.mxu0 0.0
        %6273 = vmatpush1.msra.mxu0 %v5254
        %6274 = vmatprep.subr.mxu0 0.0
        %6275 = vmatpush1.msra.mxu0 %v5255
        %6276 = vmatprep.subr.mxu0 0.0
        %6277 = vmatpush1.msra.mxu0 %v5256
        %6278 = vmatprep.subr.mxu0 0.0
        %6279 = vmatpush1.msra.mxu0 %v5257
        %6280 = vmatprep.subr.mxu0 0.0
        %6281 = vmatpush1.msra.mxu0 %v5258
        %6282 = vmatprep.subr.mxu0 0.0
        %6283 = vmatpush1.msra.mxu0 %v5259
        %6284 = vmatprep.subr.mxu0 0.0
        %6285 = vmatpush1.msra.mxu0 %v5260
        %6286 = vmatprep.subr.mxu0 0.0
        %6287 = vmatpush1.msra.mxu0 %v5261
        %6288 = vmatprep.subr.mxu0 0.0
        %6289 = vmatpush1.msra.mxu0 %v5262
        %6290 = vmatprep.subr.mxu0 0.0
        %6291 = vmatpush1.msra.mxu0 %v5263
        %6292 = vmatprep.subr.mxu0 0.0
        %6293 = vmatpush1.msra.mxu0 %v5264
        %6294 = vmatprep.subr.mxu0 0.0
        %6295 = vmatpush1.msra.mxu0 %v5265
        %6296 = vmatprep.subr.mxu0 0.0
        %6297 = vmatpush1.msra.mxu0 %v5266
        %6298 = vmatprep.subr.mxu0 0.0
        %6299 = vmatpush1.msra.mxu0 %v5267
        %6300 = vmatprep.subr.mxu0 0.0
        %6301 = vmatpush1.msra.mxu0 %v5268
        %6302 = vmatprep.subr.mxu0 0.0
        %6303 = vmatpush1.msra.mxu0 %v5269
        %6304 = vmatprep.subr.mxu0 0.0
        %6305 = vmatpush1.msra.mxu0 %v5270
        %6306 = vmatprep.subr.mxu0 0.0
        %6307 = vmatpush1.msra.mxu0 %v5271
        %6308 = vmatprep.subr.mxu0 0.0
        %6309 = vmatpush1.msra.mxu0 %v5272
        %6310 = vmatprep.subr.mxu0 0.0
        %6311 = vmatpush1.msra.mxu0 %v5273
        %6312 = vmatprep.subr.mxu0 0.0
        %6313 = vmatpush1.msra.mxu0 %v5274
        %6314 = vmatprep.subr.mxu0 0.0
        %6315 = vmatpush1.msra.mxu0 %v5275
        %6316 = vmatprep.subr.mxu0 0.0
        %6317 = vmatpush1.msra.mxu0 %v5276
        %6318 = vmatprep.mubr.f32.mxu0 %v4841
        %6319 = vmatmul.mubr.f32.gmra.mrb[0].mxu0 %v4840
        %v6320 = vpop.f32.mrb[0].mxu0
        %v6321 = vadd.f32 %v6251, %v6320
        %v6322 = vpop.f32.mrb[0].mxu0
        %6323 = vdwg.mxu0
        %6324 = vmatprep.subr.mxu0 0.0
        %6325 = vmatpush1.msra.mxu0 %v5277
        %6326 = vmatprep.subr.mxu0 0.0
        %6327 = vmatpush1.msra.mxu0 %v5278
        %6328 = vmatprep.subr.mxu0 0.0
        %6329 = vmatpush1.msra.mxu0 %v5279
        %6330 = vmatprep.subr.mxu0 0.0
        %6331 = vmatpush1.msra.mxu0 %v5280
        %6332 = vmatprep.subr.mxu0 0.0
        %6333 = vmatpush1.msra.mxu0 %v5281
        %6334 = vmatprep.subr.mxu0 0.0
        %6335 = vmatpush1.msra.mxu0 %v5282
        %6336 = vmatprep.subr.mxu0 0.0
        %6337 = vmatpush1.msra.mxu0 %v5283
        %6338 = vmatprep.subr.mxu0 0.0
        %6339 = vmatpush1.msra.mxu0 %v5284
        %6340 = vmatprep.subr.mxu0 0.0
        %6341 = vmatpush1.msra.mxu0 %v5285
        %6342 = vmatprep.subr.mxu0 0.0
        %6343 = vmatpush1.msra.mxu0 %v5286
        %6344 = vmatprep.subr.mxu0 0.0
        %6345 = vmatpush1.msra.mxu0 %v5287
        %6346 = vmatprep.subr.mxu0 0.0
        %6347 = vmatpush1.msra.mxu0 %v5288
        %6348 = vmatprep.subr.mxu0 0.0
        %6349 = vmatpush1.msra.mxu0 %v5289
        %6350 = vmatprep.subr.mxu0 0.0
        %6351 = vmatpush1.msra.mxu0 %v5290
        %6352 = vmatprep.subr.mxu0 0.0
        %6353 = vmatpush1.msra.mxu0 %v5291
        %6354 = vmatprep.subr.mxu0 0.0
        %6355 = vmatpush1.msra.mxu0 %v5292
        %6356 = vmatprep.subr.mxu0 0.0
        %6357 = vmatpush1.msra.mxu0 %v5293
        %6358 = vmatprep.subr.mxu0 0.0
        %6359 = vmatpush1.msra.mxu0 %v5294
        %6360 = vmatprep.subr.mxu0 0.0
        %6361 = vmatpush1.msra.mxu0 %v5295
        %6362 = vmatprep.subr.mxu0 0.0
        %6363 = vmatpush1.msra.mxu0 %v5296
        %6364 = vmatprep.subr.mxu0 0.0
        %6365 = vmatpush1.msra.mxu0 %v5297
        %6366 = vmatprep.subr.mxu0 0.0
        %6367 = vmatpush1.msra.mxu0 %v5298
        %6368 = vmatprep.subr.mxu0 0.0
        %6369 = vmatpush1.msra.mxu0 %v5299
        %6370 = vmatprep.subr.mxu0 0.0
        %6371 = vmatpush1.msra.mxu0 %v5300
        %6372 = vmatprep.subr.mxu0 0.0
        %6373 = vmatpush1.msra.mxu0 %v5301
        %6374 = vmatprep.subr.mxu0 0.0
        %6375 = vmatpush1.msra.mxu0 %v5302
        %6376 = vmatprep.subr.mxu0 0.0
        %6377 = vmatpush1.msra.mxu0 %v5303
        %6378 = vmatprep.subr.mxu0 0.0
        %6379 = vmatpush1.msra.mxu0 %v5304
        %6380 = vmatprep.subr.mxu0 0.0
        %6381 = vmatpush1.msra.mxu0 %v5305
        %6382 = vmatprep.subr.mxu0 0.0
        %6383 = vmatpush1.msra.mxu0 %v5306
        %6384 = vmatprep.subr.mxu0 0.0
        %6385 = vmatpush1.msra.mxu0 %v5307
        %6386 = vmatprep.subr.mxu0 0.0
        %6387 = vmatpush1.msra.mxu0 %v5308
        %6388 = vmatprep.mubr.f32.mxu0 %v4847
        %6389 = vmatmul.mubr.f32.gmra.mrb[0].mxu0 %v4846
        %v6390 = vpop.f32.mrb[0].mxu0
        %v6391 = vadd.f32 %v6321, %v6390
        %v6392 = vpop.f32.mrb[0].mxu0
        %6393 = vdwg.mxu0
        %6394 = vmatprep.subr.mxu0 0.0
        %6395 = vmatpush1.msra.mxu0 %v5309
        %6396 = vmatprep.subr.mxu0 0.0
        %6397 = vmatpush1.msra.mxu0 %v5310
        %6398 = vmatprep.subr.mxu0 0.0
        %6399 = vmatpush1.msra.mxu0 %v5311
        %6400 = vmatprep.subr.mxu0 0.0
        %6401 = vmatpush1.msra.mxu0 %v5312
        %6402 = vmatprep.subr.mxu0 0.0
        %6403 = vmatpush1.msra.mxu0 %v5313
        %6404 = vmatprep.subr.mxu0 0.0
        %6405 = vmatpush1.msra.mxu0 %v5314
        %6406 = vmatprep.subr.mxu0 0.0
        %6407 = vmatpush1.msra.mxu0 %v5315
        %6408 = vmatprep.subr.mxu0 0.0
        %6409 = vmatpush1.msra.mxu0 %v5316
        %6410 = vmatprep.subr.mxu0 0.0
        %6411 = vmatpush1.msra.mxu0 %v5317
        %6412 = vmatprep.subr.mxu0 0.0
        %6413 = vmatpush1.msra.mxu0 %v5318
        %6414 = vmatprep.subr.mxu0 0.0
        %6415 = vmatpush1.msra.mxu0 %v5319
        %6416 = vmatprep.subr.mxu0 0.0
        %6417 = vmatpush1.msra.mxu0 %v5320
        %6418 = vmatprep.subr.mxu0 0.0
        %6419 = vmatpush1.msra.mxu0 %v5321
        %6420 = vmatprep.subr.mxu0 0.0
        %6421 = vmatpush1.msra.mxu0 %v5322
        %6422 = vmatprep.subr.mxu0 0.0
        %6423 = vmatpush1.msra.mxu0 %v5323
        %6424 = vmatprep.subr.mxu0 0.0
        %6425 = vmatpush1.msra.mxu0 %v5324
        %6426 = vmatprep.subr.mxu0 0.0
        %6427 = vmatpush1.msra.mxu0 %v5325
        %6428 = vmatprep.subr.mxu0 0.0
        %6429 = vmatpush1.msra.mxu0 %v5326
        %6430 = vmatprep.subr.mxu0 0.0
        %6431 = vmatpush1.msra.mxu0 %v5327
        %6432 = vmatprep.subr.mxu0 0.0
        %6433 = vmatpush1.msra.mxu0 %v5328
        %6434 = vmatprep.subr.mxu0 0.0
        %6435 = vmatpush1.msra.mxu0 %v5329
        %6436 = vmatprep.subr.mxu0 0.0
        %6437 = vmatpush1.msra.mxu0 %v5330
        %6438 = vmatprep.subr.mxu0 0.0
        %6439 = vmatpush1.msra.mxu0 %v5331
        %6440 = vmatprep.subr.mxu0 0.0
        %6441 = vmatpush1.msra.mxu0 %v5332
        %6442 = vmatprep.subr.mxu0 0.0
        %6443 = vmatpush1.msra.mxu0 %v5333
        %6444 = vmatprep.subr.mxu0 0.0
        %6445 = vmatpush1.msra.mxu0 %v5334
        %6446 = vmatprep.subr.mxu0 0.0
        %6447 = vmatpush1.msra.mxu0 %v5335
        %6448 = vmatprep.subr.mxu0 0.0
        %6449 = vmatpush1.msra.mxu0 %v5336
        %6450 = vmatprep.subr.mxu0 0.0
        %6451 = vmatpush1.msra.mxu0 %v5337
        %6452 = vmatprep.subr.mxu0 0.0
        %6453 = vmatpush1.msra.mxu0 %v5338
        %6454 = vmatprep.subr.mxu0 0.0
        %6455 = vmatpush1.msra.mxu0 %v5339
        %6456 = vmatprep.subr.mxu0 0.0
        %6457 = vmatpush1.msra.mxu0 %v5340
        %6458 = vmatprep.mubr.f32.mxu0 %v4853
        %6459 = vmatmul.mubr.f32.gmra.mrb[0].mxu0 %v4852
        %v6460 = vpop.f32.mrb[0].mxu0
        %v6461 = vadd.f32 %v6391, %v6460
        %v6462 = vpop.f32.mrb[0].mxu0
        %6463 = vdwg.mxu0
        %6464 = vmatprep.subr.mxu0 0.0
        %6465 = vmatpush1.msra.mxu0 %v5341
        %6466 = vmatprep.subr.mxu0 0.0
        %6467 = vmatpush1.msra.mxu0 %v5342
        %6468 = vmatprep.subr.mxu0 0.0
        %6469 = vmatpush1.msra.mxu0 %v5343
        %6470 = vmatprep.subr.mxu0 0.0
        %6471 = vmatpush1.msra.mxu0 %v5344
        %6472 = vmatprep.subr.mxu0 0.0
        %6473 = vmatpush1.msra.mxu0 %v5345
        %6474 = vmatprep.subr.mxu0 0.0
        %6475 = vmatpush1.msra.mxu0 %v5346
        %6476 = vmatprep.subr.mxu0 0.0
        %6477 = vmatpush1.msra.mxu0 %v5347
        %6478 = vmatprep.subr.mxu0 0.0
        %6479 = vmatpush1.msra.mxu0 %v5348
        %6480 = vmatprep.subr.mxu0 0.0
        %6481 = vmatpush1.msra.mxu0 %v5349
        %6482 = vmatprep.subr.mxu0 0.0
        %6483 = vmatpush1.msra.mxu0 %v5350
        %6484 = vmatprep.subr.mxu0 0.0
        %6485 = vmatpush1.msra.mxu0 %v5351
        %6486 = vmatprep.subr.mxu0 0.0
        %6487 = vmatpush1.msra.mxu0 %v5352
        %6488 = vmatprep.subr.mxu0 0.0
        %6489 = vmatpush1.msra.mxu0 %v5353
        %6490 = vmatprep.subr.mxu0 0.0
        %6491 = vmatpush1.msra.mxu0 %v5354
        %6492 = vmatprep.subr.mxu0 0.0
        %6493 = vmatpush1.msra.mxu0 %v5355
        %6494 = vmatprep.subr.mxu0 0.0
        %6495 = vmatpush1.msra.mxu0 %v5356
        %6496 = vmatprep.subr.mxu0 0.0
        %6497 = vmatpush1.msra.mxu0 %v5357
        %6498 = vmatprep.subr.mxu0 0.0
        %6499 = vmatpush1.msra.mxu0 %v5358
        %6500 = vmatprep.subr.mxu0 0.0
        %6501 = vmatpush1.msra.mxu0 %v5359
        %6502 = vmatprep.subr.mxu0 0.0
        %6503 = vmatpush1.msra.mxu0 %v5360
        %6504 = vmatprep.subr.mxu0 0.0
        %6505 = vmatpush1.msra.mxu0 %v5361
        %6506 = vmatprep.subr.mxu0 0.0
        %6507 = vmatpush1.msra.mxu0 %v5362
        %6508 = vmatprep.subr.mxu0 0.0
        %6509 = vmatpush1.msra.mxu0 %v5363
        %6510 = vmatprep.subr.mxu0 0.0
        %6511 = vmatpush1.msra.mxu0 %v5364
        %6512 = vmatprep.subr.mxu0 0.0
        %6513 = vmatpush1.msra.mxu0 %v5365
        %6514 = vmatprep.subr.mxu0 0.0
        %6515 = vmatpush1.msra.mxu0 %v5366
        %6516 = vmatprep.subr.mxu0 0.0
        %6517 = vmatpush1.msra.mxu0 %v5367
        %6518 = vmatprep.subr.mxu0 0.0
        %6519 = vmatpush1.msra.mxu0 %v5368
        %6520 = vmatprep.subr.mxu0 0.0
        %6521 = vmatpush1.msra.mxu0 %v5369
        %6522 = vmatprep.subr.mxu0 0.0
        %6523 = vmatpush1.msra.mxu0 %v5370
        %6524 = vmatprep.subr.mxu0 0.0
        %6525 = vmatpush1.msra.mxu0 %v5371
        %6526 = vmatprep.subr.mxu0 0.0
        %6527 = vmatpush1.msra.mxu0 %v5372
        %6528 = vmatprep.mubr.f32.mxu0 %v4859
        %6529 = vmatmul.mubr.f32.gmra.mrb[0].mxu0 %v4858
        %v6530 = vpop.f32.mrb[0].mxu0
        %v6531 = vadd.f32 %v6461, %v6530
        %v6532 = vpop.f32.mrb[0].mxu0
        %6533 = vdwg.mxu0
        %6534 = vmatprep.subr.mxu0 0.0
        %6535 = vmatpush1.msra.mxu0 %v5373
        %6536 = vmatprep.subr.mxu0 0.0
        %6537 = vmatpush1.msra.mxu0 %v5374
        %6538 = vmatprep.subr.mxu0 0.0
        %6539 = vmatpush1.msra.mxu0 %v5375
        %6540 = vmatprep.subr.mxu0 0.0
        %6541 = vmatpush1.msra.mxu0 %v5376
        %6542 = vmatprep.subr.mxu0 0.0
        %6543 = vmatpush1.msra.mxu0 %v5377
        %6544 = vmatprep.subr.mxu0 0.0
        %6545 = vmatpush1.msra.mxu0 %v5378
        %6546 = vmatprep.subr.mxu0 0.0
        %6547 = vmatpush1.msra.mxu0 %v5379
        %6548 = vmatprep.subr.mxu0 0.0
        %6549 = vmatpush1.msra.mxu0 %v5380
        %6550 = vmatprep.subr.mxu0 0.0
        %6551 = vmatpush1.msra.mxu0 %v5381
        %6552 = vmatprep.subr.mxu0 0.0
        %6553 = vmatpush1.msra.mxu0 %v5382
        %6554 = vmatprep.subr.mxu0 0.0
        %6555 = vmatpush1.msra.mxu0 %v5383
        %6556 = vmatprep.subr.mxu0 0.0
        %6557 = vmatpush1.msra.mxu0 %v5384
        %6558 = vmatprep.subr.mxu0 0.0
        %6559 = vmatpush1.msra.mxu0 %v5385
        %6560 = vmatprep.subr.mxu0 0.0
        %6561 = vmatpush1.msra.mxu0 %v5386
        %6562 = vmatprep.subr.mxu0 0.0
        %6563 = vmatpush1.msra.mxu0 %v5387
        %6564 = vmatprep.subr.mxu0 0.0
        %6565 = vmatpush1.msra.mxu0 %v5388
        %6566 = vmatprep.subr.mxu0 0.0
        %6567 = vmatpush1.msra.mxu0 %v5389
        %6568 = vmatprep.subr.mxu0 0.0
        %6569 = vmatpush1.msra.mxu0 %v5390
        %6570 = vmatprep.subr.mxu0 0.0
        %6571 = vmatpush1.msra.mxu0 %v5391
        %6572 = vmatprep.subr.mxu0 0.0
        %6573 = vmatpush1.msra.mxu0 %v5392
        %6574 = vmatprep.subr.mxu0 0.0
        %6575 = vmatpush1.msra.mxu0 %v5393
        %6576 = vmatprep.subr.mxu0 0.0
        %6577 = vmatpush1.msra.mxu0 %v5394
        %6578 = vmatprep.subr.mxu0 0.0
        %6579 = vmatpush1.msra.mxu0 %v5395
        %6580 = vmatprep.subr.mxu0 0.0
        %6581 = vmatpush1.msra.mxu0 %v5396
        %6582 = vmatprep.subr.mxu0 0.0
        %6583 = vmatpush1.msra.mxu0 %v5397
        %6584 = vmatprep.subr.mxu0 0.0
        %6585 = vmatpush1.msra.mxu0 %v5398
        %6586 = vmatprep.subr.mxu0 0.0
        %6587 = vmatpush1.msra.mxu0 %v5399
        %6588 = vmatprep.subr.mxu0 0.0
        %6589 = vmatpush1.msra.mxu0 %v5400
        %6590 = vmatprep.subr.mxu0 0.0
        %6591 = vmatpush1.msra.mxu0 %v5401
        %6592 = vmatprep.subr.mxu0 0.0
        %6593 = vmatpush1.msra.mxu0 %v5402
        %6594 = vmatprep.subr.mxu0 0.0
        %6595 = vmatpush1.msra.mxu0 %v5403
        %6596 = vmatprep.subr.mxu0 0.0
        %6597 = vmatpush1.msra.mxu0 %v5404
        %6598 = vmatprep.mubr.f32.mxu0 %v4763
        %6599 = vmatmul.mubr.f32.gmra.mrb[0].mxu0 %v4762
        %v6600 = vpop.f32.mrb[0].mxu0
        %v6601 = vadd.f32 %v6531, %v6600
        %v6602 = vpop.f32.mrb[0].mxu0
        %6603 = vdwg.mxu0
        %6604 = vmatprep.subr.mxu0 0.0
        %6605 = vmatpush1.msra.mxu0 %v5405
        %6606 = vmatprep.subr.mxu0 0.0
        %6607 = vmatpush1.msra.mxu0 %v5406
        %6608 = vmatprep.subr.mxu0 0.0
        %6609 = vmatpush1.msra.mxu0 %v5412
        %6610 = vmatprep.subr.mxu0 0.0
        %6611 = vmatpush1.msra.mxu0 0.0
        %6612 = vmatprep.subr.mxu0 0.0
        %6613 = vmatpush1.msra.mxu0 0.0
        %6614 = vmatprep.subr.mxu0 0.0
        %6615 = vmatpush1.msra.mxu0 0.0
        %6616 = vmatprep.subr.mxu0 0.0
        %6617 = vmatpush1.msra.mxu0 0.0
        %6618 = vmatprep.subr.mxu0 0.0
        %6619 = vmatpush1.msra.mxu0 0.0
        %6620 = vmatprep.subr.mxu0 0.0
        %6621 = vmatpush1.msra.mxu0 0.0
        %6622 = vmatprep.subr.mxu0 0.0
        %6623 = vmatpush1.msra.mxu0 0.0
        %6624 = vmatprep.subr.mxu0 0.0
        %6625 = vmatpush1.msra.mxu0 0.0
        %6626 = vmatprep.subr.mxu0 0.0
        %6627 = vmatpush1.msra.mxu0 0.0
        %6628 = vmatprep.subr.mxu0 0.0
        %6629 = vmatpush1.msra.mxu0 0.0
        %6630 = vmatprep.subr.mxu0 0.0
        %6631 = vmatpush1.msra.mxu0 0.0
        %6632 = vmatprep.subr.mxu0 0.0
        %6633 = vmatpush1.msra.mxu0 0.0
        %6634 = vmatprep.subr.mxu0 0.0
        %6635 = vmatpush1.msra.mxu0 0.0
        %6636 = vmatprep.subr.mxu0 0.0
        %6637 = vmatpush1.msra.mxu0 0.0
        %6638 = vmatprep.subr.mxu0 0.0
        %6639 = vmatpush1.msra.mxu0 0.0
        %6640 = vmatprep.subr.mxu0 0.0
        %6641 = vmatpush1.msra.mxu0 0.0
        %6642 = vmatprep.subr.mxu0 0.0
        %6643 = vmatpush1.msra.mxu0 0.0
        %6644 = vmatprep.subr.mxu0 0.0
        %6645 = vmatpush1.msra.mxu0 0.0
        %6646 = vmatprep.subr.mxu0 0.0
        %6647 = vmatpush1.msra.mxu0 0.0
        %6648 = vmatprep.subr.mxu0 0.0
        %6649 = vmatpush1.msra.mxu0 0.0
        %6650 = vmatprep.subr.mxu0 0.0
        %6651 = vmatpush1.msra.mxu0 0.0
        %6652 = vmatprep.subr.mxu0 0.0
        %6653 = vmatpush1.msra.mxu0 0.0
        %6654 = vmatprep.subr.mxu0 0.0
        %6655 = vmatpush1.msra.mxu0 0.0
        %6656 = vmatprep.subr.mxu0 0.0
        %6657 = vmatpush1.msra.mxu0 0.0
        %6658 = vmatprep.subr.mxu0 0.0
        %6659 = vmatpush1.msra.mxu0 0.0
        %6660 = vmatprep.subr.mxu0 0.0
        %6661 = vmatpush1.msra.mxu0 0.0
        %6662 = vmatprep.subr.mxu0 0.0
        %6663 = vmatpush1.msra.mxu0 0.0
        %6664 = vmatprep.subr.mxu0 0.0
        %6665 = vmatpush1.msra.mxu0 0.0
        %6666 = vmatprep.subr.mxu0 0.0
        %6667 = vmatpush1.msra.mxu0 0.0
        %6668 = vmatprep.mubr.f32.mxu0 0.0
        %6669 = vmatmul.mubr.f32.gmra.mrb[0].mxu0 %v5409
        %v6670 = vpop.f32.mrb[0].mxu0
        %v6671 = vadd.f32 %v6601, %v6670
        %v6672 = vpop.f32.mrb[0].mxu0
        %6673 = vdwg.mxu0
        %v6674 = vsel %vm3473, %v6671, 0.0
        %6675 = vadd.xlane.f32.xlu0 %v6674
        %v6676 = vpop.xlane.xlu0 %6675
        %v6677 = vmul.f32 %v6676, %v3477
        %v6678 = vsub.f32 %v6671, %v6677
        %v6679 = vmul.f32 %v6678, %v6678
        %v6680 = vsel %vm3473, %v6679, 0.0
        %6681 = vadd.xlane.f32.xlu0 %v6680
        %v6682 = vpop.xlane.xlu0 %6681
        %v6683 = vmul.f32 %v6682, %v3477
        %v6684 = vadd.f32 %v6683, 1e-05
        %v6685 = vrsqrt.pop %v6684
        %v6686 = vmul.f32 %v6678, %v6685
        %v6687 = vlaneseq
        %v6688 = vshrl.u32 %v6687, 7
        %v6689 = vsub.s32 4, %v6688
        %v6690 = vrot.slane %v954, %v6689
        %v6691 = vmul.f32 %v6686, %v6690
        %v6692 = vlaneseq
        %v6693 = vshrl.u32 %v6692, 7
        %v6694 = vsub.s32 5, %v6693
        %v6695 = vrot.slane %v954, %v6694
        %v6696 = vadd.f32 %v6691, %v6695
        %6697 = vst.msk [vmem:[#allocation2] sm:$0x3] %vm3473, %v6696
        %p6698 = scmp.eq.s32.totalorder %s32, 1
        // Predicated region
        $region97: #{transformer_decoder_fwd.1} parent=91 // pred_check
          %p6699 = pneg %p6698
        $region98: #{transformer_decoder_fwd.1} parent=91 // pred_check_branch
          %6701 = sbr.rel (%p6699) target = $region100
        $region99: #{transformer_decoder_fwd.1} parent=91 // pred_region
          %v6702 = vlaneseq
          %v6703 = vshrl.u32 %v6702, 7
          %v6704 = vsub.s32 %v3707, %v6703
          %v6705 = vrot.slane %v3778, %v6704
          %v6706 = vlaneseq
          %v6707 = vshrl.u32 %v6706, 7
          %v6708 = vsub.s32 %v3707, %v6707
          %v6709 = vrot.slane %v3783, %v6708
          %v6710 = vsel %vm3716, %v6709, %v6705
          %v6712 = vadd.s32 %v3707, 4294967288
          %v6713 = vlaneseq
          %v6714 = vshrl.u32 %v6713, 7
          %v6715 = vsub.s32 %v6712, %v6714
          %v6716 = vrot.slane %v3888, %v6715
          %v6717 = vlaneseq
          %v6718 = vshrl.u32 %v6717, 7
          %v6719 = vsub.s32 %v6712, %v6718
          %v6720 = vrot.slane %v3893, %v6719
          %v6721 = vsel %vm3716, %v6720, %v6716
          %v6723 = vadd.s32 %v3707, 4294967280
          %v6724 = vlaneseq
          %v6725 = vshrl.u32 %v6724, 7
          %v6726 = vsub.s32 %v6723, %v6725
          %v6727 = vrot.slane %v3996, %v6726
          %v6728 = vlaneseq
          %v6729 = vshrl.u32 %v6728, 7
          %v6730 = vsub.s32 %v6723, %v6729
          %v6731 = vrot.slane %v4001, %v6730
          %v6732 = vsel %vm3716, %v6731, %v6727
          %v6734 = vadd.s32 %v3707, 4294967272
          %v6735 = vlaneseq
          %v6736 = vshrl.u32 %v6735, 7
          %v6737 = vsub.s32 %v6734, %v6736
          %v6738 = vrot.slane %v4104, %v6737
          %v6739 = vlaneseq
          %v6740 = vshrl.u32 %v6739, 7
          %v6741 = vsub.s32 %v6734, %v6740
          %v6742 = vrot.slane %v4109, %v6741
          %v6743 = vsel %vm3716, %v6742, %v6738
          %v6745 = vsel %vm3695, %v6710, %v6721
          %v6746 = vsel %vm1657, %v6745, %v6732
          %v6747 = vsel %vm4154, %v6746, %v6743
          %6748 = vst.msk [vmem:[%s19] sm:$0x3] %vm3473, %v6747
        $region100: #{transformer_decoder_fwd.1} parent=91 // pred_fallthru
          _
        // Predicated region
        $region101: #{transformer_decoder_fwd.1} parent=91 // pred_check
          %p6749 = pneg %p473
        $region102: #{transformer_decoder_fwd.1} parent=91 // pred_check_branch
          %6751 = sbr.rel (%p6749) target = $region104
        $region103: #{transformer_decoder_fwd.1} parent=91 // pred_region
          %s6753 = ssub.s32 32, 32
          %6754 = vsyncadd [#allocation3], %s6753
          %s6756 = sshll.u32 [#allocation2], 4
          %s6757 = int_to_ptr.vmem [resolvable:$true] %s6756
          %6759 = dma.vmem_to_hbm [thread:$0]  %s6757, 32, %s18, [#allocation3]
        $region104: #{transformer_decoder_fwd.1} parent=91 // pred_fallthru
          _
        // Predicated region
        $region105: #{transformer_decoder_fwd.1} parent=91 // pred_check
          %p6760 = pneg %p494
        $region106: #{transformer_decoder_fwd.1} parent=91 // pred_check_branch
          %6762 = sbr.rel (%p6760) target = $region108
        $region107: #{transformer_decoder_fwd.1} parent=91 // pred_region
          _
        $region108: #{transformer_decoder_fwd.1} parent=91 // pred_fallthru
          _
        // Predicated region
        $region109: #{transformer_decoder_fwd.1} parent=91 // pred_check
          %p6763 = pneg %p473
        $region110: #{transformer_decoder_fwd.1} parent=91 // pred_check_branch
          %6765 = sbr.rel (%p6763) target = $region112
        $region111: #{transformer_decoder_fwd.1} parent=91 // pred_region
          %6766 = dma.done [#allocation3], 32
        $region112: #{transformer_decoder_fwd.1} parent=91 // pred_fallthru
          _
        // Predicated region
        $region113: #{transformer_decoder_fwd.1} parent=91 // pred_check
          %p6767 = pneg %p494
        $region114: #{transformer_decoder_fwd.1} parent=91 // pred_check_branch
          %6769 = sbr.rel (%p6767) target = $region116
        $region115: #{transformer_decoder_fwd.1} parent=91 // pred_region
          _
        $region116: #{transformer_decoder_fwd.1} parent=91 // pred_fallthru
          _
      $region92: #{transformer_decoder_fwd.1} parent=5 // pred_fallthru
        _
      %p6770 = scmp.le.s32.totalorder 2, %s27
      // Predicated region
      $region117: #{transformer_decoder_fwd.1} parent=5 // pred_check
        %p6771 = pneg %p6770
      $region118: #{transformer_decoder_fwd.1} parent=5 // pred_check_branch
        %6773 = sbr.rel (%p6771) target = $region120
      $region119: #{transformer_decoder_fwd.1} parent=5 // pred_region
        %s6774 = ssub.s32 %s27, 2
      $region120: #{transformer_decoder_fwd.1} parent=5 // pred_fallthru
        _
    $region6: #{transformer_decoder_fwd.1} parent=1 // loop_footer
      %s31 = sadd.s32 1, %s27
    $region7: #{transformer_decoder_fwd.1} parent=1 // loop_footer_branch
      %26 = sbr.rel target = $region3
    $region8: #{transformer_decoder_fwd.1} parent=1 // loop_exit
      _
    %6775 = vsyncpa [#allocation3], 1
    %s6776 = scalar_lea.sflag [#allocation3], 1
    %6777 = vsyncpa %s6776, 1

</llo_original>
